<compile_context>
chip_gen: v7x
topology: tpu7x:2x2x1
jax: 0.10.0
libtpu: 0.0.40
codegen_flags: <defaults>
</compile_context>

<pallas_src>
import jax
import jax.numpy as jnp
from jax import lax
from jax.experimental import pallas as pl
from jax.experimental.pallas import tpu as pltpu

EPS = 1e-5  # nn.BatchNorm2d default eps


# ---------------------------------------------------------------------------
# Wrapper-side weight preprocessing (runs once per forward, weight-sized work)
# ---------------------------------------------------------------------------
def _build_layer_tables(w_hwio, gamma, beta, hin, win):
    """Build the per-layer constant tables consumed by the fused kernel."""
    k = 3
    cin, cout = int(w_hwio.shape[2]), int(w_hwio.shape[3])
    ho, wo = hin - k + 1, win - k + 1
    hp, wp = ho // 2, wo // 2
    lin, lout, lpool = win * cin, wo * cout, wp * cout

    # "band" weights: conv3x3 over the (H, W*C) slab as 3 matmuls (one per kh):
    #   y[ho, wo*Cout+co] = sum_kh (x[kh:kh+Ho, :] @ band[kh])[ho, wo*Cout+co]
    bands = []
    for kh in range(k):
        b = jnp.zeros((lin, lout), jnp.float32)
        for kw in range(k):
            shift = jnp.eye(win, wo, k=-kw, dtype=jnp.float32)  # [w, wo]=1 iff w == wo+kw
            b = b + jnp.einsum("wv,ic->wivc", shift, w_hwio[kh, kw]).reshape(lin, lout)
        bands.append(b)
    band = jnp.stack(bands).astype(jnp.bfloat16)                 # (3, Lin, Lout) bf16 MXU operand

    # per-channel reduce / broadcast helpers for BN over the interleaved (wo, co) lanes
    sel = jnp.tile(jnp.eye(cout, dtype=jnp.float32), (wo, 1))    # (Lout, Cout)
    sel_t = sel.T                                                # (Cout, Lout)
    gb = jnp.stack([jnp.tile(gamma.astype(jnp.float32), wo),
                    jnp.tile(beta.astype(jnp.float32), wo)])     # (2, Lout) interleaved gamma/beta

    # stride-2 window selection (rows / interleaved cols) for the 2x2 max pool
    p_sel = (jnp.arange(ho - 1)[None, :] ==
             2 * jnp.arange(hp)[:, None]).astype(jnp.float32)    # (Hp, Ho-1)
    cols = jnp.arange(lpool)
    src = 2 * (cols // cout) * cout + (cols % cout)
    q_sel = (jnp.arange(lout - cout)[:, None] ==
             src[None, :]).astype(jnp.float32)                   # (Lout-Cout, Wp*Cout)

    dims = dict(Hin=hin, Win=win, Cin=cin, Cout=cout, Ho=ho, Wo=wo,
                Hp=hp, Wp=wp, Lin=lin, Lout=lout, Lpool=lpool)
    return [band, sel, sel_t, gb, p_sel, q_sel], dims


# ---------------------------------------------------------------------------
# The fused Pallas kernel (whole network, single invocation)
# ---------------------------------------------------------------------------
def _make_kernel(layer_dims, n_imgs):
    def kernel(*refs):
        x_ref, o_ref = refs[0], refs[-1]
        lrefs = refs[1:-1]

        # per-image activation slabs (H, W*C) f32, channels minor on the lane dim
        acts = [x_ref[i] for i in range(n_imgs)]

        for li, d in enumerate(layer_dims):
            band_ref, sel_ref, selt_ref, gb_ref, p_ref, q_ref = lrefs[6 * li:6 * li + 6]
            ho, wo, cout = d["Ho"], d["Wo"], d["Cout"]
            lout, hp, lpool = d["Lout"], d["Hp"], d["Lpool"]

            # ---- conv3x3 (VALID): 3 lane-dense band matmuls / image, bf16 in, f32 acc.
            #      (conv bias omitted: it cancels exactly in batch-stat BatchNorm)
            ys = []
            for x in acts:
                y = None
                for kh in range(3):
                    t = jnp.dot(x[kh:kh + ho, :].astype(jnp.bfloat16), band_ref[kh],
                                preferred_element_type=jnp.float32)
                    y = t if y is None else y + t
                ys.append(y)                                     # (Ho, Wo*Cout) f32

            # ---- BatchNorm2d(track_running_stats=False): single-pass batch stats (f32)
            sums = jnp.zeros((1, lout), jnp.float32)
            sumsq = jnp.zeros((1, lout), jnp.float32)
            for y in ys:
                sums = sums + jnp.sum(y, axis=0, keepdims=True)
                sumsq = sumsq + jnp.sum(y * y, axis=0, keepdims=True)
            inv_cnt = 1.0 / float(n_imgs * ho * wo)
            sel, sel_t = sel_ref[...], selt_ref[...]
            mean_c = jnp.dot(sums, sel, preferred_element_type=jnp.float32) * inv_cnt
            ex2_c = jnp.dot(sumsq, sel, preferred_element_type=jnp.float32) * inv_cnt
            var_c = ex2_c - mean_c * mean_c                      # biased variance, (1, Cout)
            mean_i = jnp.dot(mean_c, sel_t, preferred_element_type=jnp.float32)  # (1, Lout)
            var_i = jnp.dot(var_c, sel_t, preferred_element_type=jnp.float32)
            gb = gb_ref[...]
            scale_i = gb[0:1, :] * lax.rsqrt(var_i + EPS)
            shift_i = gb[1:2, :] - mean_i * scale_i

            # ---- fused normalize + 2x2 maxpool + ReLU epilogue (all f32, lane-dense)
            use_p = hp < ho - 1
            use_q = lpool < lout - cout
            p_mat = p_ref[...] if use_p else None
            q_mat = q_ref[...] if use_q else None
            new_acts = []
            for y in ys:
                yn = y * scale_i + shift_i
                rmax = jnp.maximum(yn[0:ho - 1, :], yn[1:ho, :])                # row-pair max
                cmax = jnp.maximum(rmax[:, 0:lout - cout], rmax[:, cout:lout])  # col-pair max
                act = jnp.maximum(cmax, 0.0)                                    # ReLU
                # stride-2 window selection via tiny 0/1 matmuls (identity cases skipped)
                if use_p:
                    act = jnp.dot(p_mat, act, preferred_element_type=jnp.float32)
                if use_q:
                    act = jnp.dot(act, q_mat, preferred_element_type=jnp.float32)
                new_acts.append(act)                                            # (Hp, Wp*Cout)
            acts = new_acts

        for i in range(n_imgs):
            o_ref[i] = acts[i].astype(o_ref.dtype)

    return kernel


def _full_spec(shape):
    nd = len(shape)
    return pl.BlockSpec(shape, lambda i, _nd=nd: (0,) * _nd)


def _nbytes(a):
    return int(a.size) * a.dtype.itemsize


# ---------------------------------------------------------------------------
# Forward pass
# ---------------------------------------------------------------------------
def simple_conv_forward(x_nchw, params):
    # x_nchw: (B, 3, H, W) float32, same convention as the torch module
    n, cin0, h, w = (int(s) for s in x_nchw.shape)
    # NCHW -> NHWC -> per-image 2D slab (H, W*C)
    x_slab = jnp.transpose(x_nchw, (0, 2, 3, 1)).reshape(n, h, w * cin0)

    layer_inputs, layer_dims = [], []
    hin, win = h, w
    for (wk, _b, g, beta) in params:           # conv bias intentionally unused (see header)
        tables, dims = _build_layer_tables(wk, g, beta, hin, win)
        layer_inputs += tables
        layer_dims.append(dims)
        hin, win = dims["Hp"], dims["Wp"]
    assert layer_dims[-1]["Hp"] >= 1 and layer_dims[-1]["Wp"] >= 1, "input too small"

    d_last = layer_dims[-1]
    out_shape = (n, d_last["Hp"], d_last["Wp"] * d_last["Cout"])

    flat_inputs = [x_slab] + layer_inputs
    req_bytes = sum(_nbytes(a) for a in flat_inputs) + 4 * out_shape[0] * out_shape[1] * out_shape[2]
    # generous headroom for in-kernel temporaries, capped for v7x's 64 MiB VMEM
    vmem_limit = int(min(48 * 1024 * 1024, max(16 * 1024 * 1024, 8 * req_bytes)))

    out = pl.pallas_call(
        _make_kernel(layer_dims, n),
        out_shape=jax.ShapeDtypeStruct(out_shape, jnp.float32),
        grid=(1,),
        in_specs=[_full_spec(a.shape) for a in flat_inputs],
        out_specs=_full_spec(out_shape),
        compiler_params=pltpu.CompilerParams(
            dimension_semantics=("arbitrary",),
            vmem_limit_bytes=vmem_limit),
    )(*flat_inputs)

    # match torch's x.flatten(1) on NCHW (final spatial is 1x1 here; kept general)
    out = out.reshape(n, d_last["Hp"], d_last["Wp"], d_last["Cout"])
    out = jnp.transpose(out, (0, 3, 1, 2))
    return out.reshape(n, -1)


# ---------------------------------------------------------------------------
# Parameters and pure-JAX reference (faithful to the torch module, incl. bias)
# ---------------------------------------------------------------------------
def init_params(key):
    chans = [(3, 6), (6, 12), (12, 16), (16, 24)]
    params = []
    for i, (cin, cout) in enumerate(chans):
        kw, kb, kg, kbeta = jax.random.split(jax.random.fold_in(key, i), 4)
        bound = 1.0 / jnp.sqrt(cin * 9.0)
        w = jax.random.uniform(kw, (3, 3, cin, cout), jnp.float32, -bound, bound)  # HWIO
        b = jax.random.uniform(kb, (cout,), jnp.float32, -bound, bound)
        g = 1.0 + 0.1 * jax.random.normal(kg, (cout,), jnp.float32)
        beta = 0.1 * jax.random.normal(kbeta, (cout,), jnp.float32)
        params.append((w, b, g, beta))
    return params


def reference_forward(x_nchw, params):
    x = jnp.transpose(x_nchw, (0, 2, 3, 1))
    for (w, b, g, beta) in params:
        y = lax.conv_general_dilated(
            x, w, (1, 1), 'VALID',
            dimension_numbers=('NHWC', 'HWIO', 'NHWC')) + b
        mean = jnp.mean(y, axis=(0, 1, 2), keepdims=True)
        var = jnp.mean((y - mean) ** 2, axis=(0, 1, 2), keepdims=True)
        y = (y - mean) * g * lax.rsqrt(var + EPS) + beta
        n, h, w_, c = y.shape
        hp, wp = h // 2, w_ // 2
        y = y[:, :2 * hp, :2 * wp, :].reshape(n, hp, 2, wp, 2, c).max(axis=(2, 4))
        x = jnp.maximum(y, 0.0)
    x = jnp.transpose(x, (0, 3, 1, 2))
    return x.reshape(x.shape[0], -1)


if __name__ == "__main__":
    key = jax.random.PRNGKey(0)
    kx, kp = jax.random.split(key)
    # Smallest "round" input that survives 4x (conv3 VALID + pool2): 48x48.
    x = jax.random.normal(kx, (2, 3, 48, 48), jnp.float32)  # NCHW, like torch
    params = init_params(kp)

    out = jax.block_until_ready(simple_conv_forward(x, params))
    ref = jax.block_until_ready(reference_forward(x, params))

    assert out.shape == ref.shape == (2, 24), out.shape
    err = float(jnp.max(jnp.abs(out - ref)))
    # bf16 MXU operands for the conv matmuls (per perf review) => slightly looser tol
    assert err < 5e-2, f"max abs error too large: {err}"
    print("KERNEL_OK")
</pallas_src>

<mosaic_0001>
module attributes {stable_mosaic.version = 11 : i64} {
  func.func @kernel(%arg0: i32, %arg1: memref<2x48x144xf32, #tpu.memory_space<vmem>>, %arg2: memref<3x144x276xbf16, #tpu.memory_space<vmem>>, %arg3: memref<276x6xf32, #tpu.memory_space<vmem>>, %arg4: memref<6x276xf32, #tpu.memory_space<vmem>>, %arg5: memref<2x276xf32, #tpu.memory_space<vmem>>, %arg6: memref<23x45xf32, #tpu.memory_space<vmem>>, %arg7: memref<270x138xf32, #tpu.memory_space<vmem>>, %arg8: memref<3x138x252xbf16, #tpu.memory_space<vmem>>, %arg9: memref<252x12xf32, #tpu.memory_space<vmem>>, %arg10: memref<12x252xf32, #tpu.memory_space<vmem>>, %arg11: memref<2x252xf32, #tpu.memory_space<vmem>>, %arg12: memref<10x20xf32, #tpu.memory_space<vmem>>, %arg13: memref<240x120xf32, #tpu.memory_space<vmem>>, %arg14: memref<3x120x128xbf16, #tpu.memory_space<vmem>>, %arg15: memref<128x16xf32, #tpu.memory_space<vmem>>, %arg16: memref<16x128xf32, #tpu.memory_space<vmem>>, %arg17: memref<2x128xf32, #tpu.memory_space<vmem>>, %arg18: memref<4x7xf32, #tpu.memory_space<vmem>>, %arg19: memref<112x64xf32, #tpu.memory_space<vmem>>, %arg20: memref<3x64x48xbf16, #tpu.memory_space<vmem>>, %arg21: memref<48x24xf32, #tpu.memory_space<vmem>>, %arg22: memref<24x48xf32, #tpu.memory_space<vmem>>, %arg23: memref<2x48xf32, #tpu.memory_space<vmem>>, %arg24: memref<1x1xf32, #tpu.memory_space<vmem>>, %arg25: memref<24x24xf32, #tpu.memory_space<vmem>>, %arg26: memref<2x1x24xf32, #tpu.memory_space<vmem>>) attributes {dimension_semantics = [#tpu.dimension_semantics<arbitrary>], iteration_bounds = array<i64: 1>, scalar_prefetch = 0 : i64, scratch_operands = 0 : i64, tpu.core_type = #tpu.core_type<tc>, window_params = [{pipeline_mode = #tpu.pipeline_mode<synchronous>, transform_indices = @transform_0, window_bounds = array<i64: 2, 48, 144>}, {pipeline_mode = #tpu.pipeline_mode<synchronous>, transform_indices = @transform_1, window_bounds = array<i64: 3, 144, 276>}, {pipeline_mode = #tpu.pipeline_mode<synchronous>, transform_indices = @transform_2, window_bounds = array<i64: 276, 6>}, {pipeline_mode = #tpu.pipeline_mode<synchronous>, transform_indices = @transform_3, window_bounds = array<i64: 6, 276>}, {pipeline_mode = #tpu.pipeline_mode<synchronous>, transform_indices = @transform_4, window_bounds = array<i64: 2, 276>}, {pipeline_mode = #tpu.pipeline_mode<synchronous>, transform_indices = @transform_5, window_bounds = array<i64: 23, 45>}, {pipeline_mode = #tpu.pipeline_mode<synchronous>, transform_indices = @transform_6, window_bounds = array<i64: 270, 138>}, {pipeline_mode = #tpu.pipeline_mode<synchronous>, transform_indices = @transform_7, window_bounds = array<i64: 3, 138, 252>}, {pipeline_mode = #tpu.pipeline_mode<synchronous>, transform_indices = @transform_8, window_bounds = array<i64: 252, 12>}, {pipeline_mode = #tpu.pipeline_mode<synchronous>, transform_indices = @transform_9, window_bounds = array<i64: 12, 252>}, {pipeline_mode = #tpu.pipeline_mode<synchronous>, transform_indices = @transform_10, window_bounds = array<i64: 2, 252>}, {pipeline_mode = #tpu.pipeline_mode<synchronous>, transform_indices = @transform_11, window_bounds = array<i64: 10, 20>}, {pipeline_mode = #tpu.pipeline_mode<synchronous>, transform_indices = @transform_12, window_bounds = array<i64: 240, 120>}, {pipeline_mode = #tpu.pipeline_mode<synchronous>, transform_indices = @transform_13, window_bounds = array<i64: 3, 120, 128>}, {pipeline_mode = #tpu.pipeline_mode<synchronous>, transform_indices = @transform_14, window_bounds = array<i64: 128, 16>}, {pipeline_mode = #tpu.pipeline_mode<synchronous>, transform_indices = @transform_15, window_bounds = array<i64: 16, 128>}, {pipeline_mode = #tpu.pipeline_mode<synchronous>, transform_indices = @transform_16, window_bounds = array<i64: 2, 128>}, {pipeline_mode = #tpu.pipeline_mode<synchronous>, transform_indices = @transform_17, window_bounds = array<i64: 4, 7>}, {pipeline_mode = #tpu.pipeline_mode<synchronous>, transform_indices = @transform_18, window_bounds = array<i64: 112, 64>}, {pipeline_mode = #tpu.pipeline_mode<synchronous>, transform_indices = @transform_19, window_bounds = array<i64: 3, 64, 48>}, {pipeline_mode = #tpu.pipeline_mode<synchronous>, transform_indices = @transform_20, window_bounds = array<i64: 48, 24>}, {pipeline_mode = #tpu.pipeline_mode<synchronous>, transform_indices = @transform_21, window_bounds = array<i64: 24, 48>}, {pipeline_mode = #tpu.pipeline_mode<synchronous>, transform_indices = @transform_22, window_bounds = array<i64: 2, 48>}, {pipeline_mode = #tpu.pipeline_mode<synchronous>, transform_indices = @transform_23, window_bounds = array<i64: 1, 1>}, {pipeline_mode = #tpu.pipeline_mode<synchronous>, transform_indices = @transform_24, window_bounds = array<i64: 24, 24>}, {pipeline_mode = #tpu.pipeline_mode<synchronous>, transform_indices = @transform_25, window_bounds = array<i64: 2, 1, 24>}]} {
    %c0 = arith.constant 0 : index
    %c0_0 = arith.constant 0 : index
    %c0_1 = arith.constant 0 : index
    %0 = vector.load %arg1[%c0, %c0_0, %c0_1] : memref<2x48x144xf32, #tpu.memory_space<vmem>>, vector<1x48x144xf32>
    %1 = vector.shape_cast %0 : vector<1x48x144xf32> to vector<48x144xf32>
    %c1 = arith.constant 1 : index
    %c0_2 = arith.constant 0 : index
    %c0_3 = arith.constant 0 : index
    %2 = vector.load %arg1[%c1, %c0_2, %c0_3] : memref<2x48x144xf32, #tpu.memory_space<vmem>>, vector<1x48x144xf32>
    %3 = vector.shape_cast %2 : vector<1x48x144xf32> to vector<48x144xf32>
    %4 = vector.extract_strided_slice %1 {offsets = [0, 0], sizes = [46, 144], strides = [1, 1]} : vector<48x144xf32> to vector<46x144xf32>
    %5 = arith.truncf %4 : vector<46x144xf32> to vector<46x144xbf16>
    %c0_4 = arith.constant 0 : index
    %c0_5 = arith.constant 0 : index
    %c0_6 = arith.constant 0 : index
    %6 = vector.load %arg2[%c0_4, %c0_5, %c0_6] : memref<3x144x276xbf16, #tpu.memory_space<vmem>>, vector<1x144x276xbf16>
    %7 = vector.shape_cast %6 : vector<1x144x276xbf16> to vector<144x276xbf16>
    %cst = arith.constant dense<0.000000e+00> : vector<46x276xf32>
    %8 = tpu.matmul %5, %7, %cst {dimension_numbers = #tpu.dot_dimension_numbers<[1], [0], [0], [1], [0, 0, 1, 1], [], []>} : vector<46x144xbf16>, vector<144x276xbf16>, vector<46x276xf32> -> vector<46x276xf32>
    %9 = vector.extract_strided_slice %1 {offsets = [1, 0], sizes = [46, 144], strides = [1, 1]} : vector<48x144xf32> to vector<46x144xf32>
    %10 = arith.truncf %9 : vector<46x144xf32> to vector<46x144xbf16>
    %c1_7 = arith.constant 1 : index
    %c0_8 = arith.constant 0 : index
    %c0_9 = arith.constant 0 : index
    %11 = vector.load %arg2[%c1_7, %c0_8, %c0_9] : memref<3x144x276xbf16, #tpu.memory_space<vmem>>, vector<1x144x276xbf16>
    %12 = vector.shape_cast %11 : vector<1x144x276xbf16> to vector<144x276xbf16>
    %cst_10 = arith.constant dense<0.000000e+00> : vector<46x276xf32>
    %13 = tpu.matmul %10, %12, %cst_10 {dimension_numbers = #tpu.dot_dimension_numbers<[1], [0], [0], [1], [0, 0, 1, 1], [], []>} : vector<46x144xbf16>, vector<144x276xbf16>, vector<46x276xf32> -> vector<46x276xf32>
    %14 = arith.addf %8, %13 : vector<46x276xf32>
    %15 = vector.extract_strided_slice %1 {offsets = [2, 0], sizes = [46, 144], strides = [1, 1]} : vector<48x144xf32> to vector<46x144xf32>
    %16 = arith.truncf %15 : vector<46x144xf32> to vector<46x144xbf16>
    %c2 = arith.constant 2 : index
    %c0_11 = arith.constant 0 : index
    %c0_12 = arith.constant 0 : index
    %17 = vector.load %arg2[%c2, %c0_11, %c0_12] : memref<3x144x276xbf16, #tpu.memory_space<vmem>>, vector<1x144x276xbf16>
    %18 = vector.shape_cast %17 : vector<1x144x276xbf16> to vector<144x276xbf16>
    %cst_13 = arith.constant dense<0.000000e+00> : vector<46x276xf32>
    %19 = tpu.matmul %16, %18, %cst_13 {dimension_numbers = #tpu.dot_dimension_numbers<[1], [0], [0], [1], [0, 0, 1, 1], [], []>} : vector<46x144xbf16>, vector<144x276xbf16>, vector<46x276xf32> -> vector<46x276xf32>
    %20 = arith.addf %14, %19 : vector<46x276xf32>
    %21 = vector.extract_strided_slice %3 {offsets = [0, 0], sizes = [46, 144], strides = [1, 1]} : vector<48x144xf32> to vector<46x144xf32>
    %22 = arith.truncf %21 : vector<46x144xf32> to vector<46x144xbf16>
    %c0_14 = arith.constant 0 : index
    %c0_15 = arith.constant 0 : index
    %c0_16 = arith.constant 0 : index
    %23 = vector.load %arg2[%c0_14, %c0_15, %c0_16] : memref<3x144x276xbf16, #tpu.memory_space<vmem>>, vector<1x144x276xbf16>
    %24 = vector.shape_cast %23 : vector<1x144x276xbf16> to vector<144x276xbf16>
    %cst_17 = arith.constant dense<0.000000e+00> : vector<46x276xf32>
    %25 = tpu.matmul %22, %24, %cst_17 {dimension_numbers = #tpu.dot_dimension_numbers<[1], [0], [0], [1], [0, 0, 1, 1], [], []>} : vector<46x144xbf16>, vector<144x276xbf16>, vector<46x276xf32> -> vector<46x276xf32>
    %26 = vector.extract_strided_slice %3 {offsets = [1, 0], sizes = [46, 144], strides = [1, 1]} : vector<48x144xf32> to vector<46x144xf32>
    %27 = arith.truncf %26 : vector<46x144xf32> to vector<46x144xbf16>
    %c1_18 = arith.constant 1 : index
    %c0_19 = arith.constant 0 : index
    %c0_20 = arith.constant 0 : index
    %28 = vector.load %arg2[%c1_18, %c0_19, %c0_20] : memref<3x144x276xbf16, #tpu.memory_space<vmem>>, vector<1x144x276xbf16>
    %29 = vector.shape_cast %28 : vector<1x144x276xbf16> to vector<144x276xbf16>
    %cst_21 = arith.constant dense<0.000000e+00> : vector<46x276xf32>
    %30 = tpu.matmul %27, %29, %cst_21 {dimension_numbers = #tpu.dot_dimension_numbers<[1], [0], [0], [1], [0, 0, 1, 1], [], []>} : vector<46x144xbf16>, vector<144x276xbf16>, vector<46x276xf32> -> vector<46x276xf32>
    %31 = arith.addf %25, %30 : vector<46x276xf32>
    %32 = vector.extract_strided_slice %3 {offsets = [2, 0], sizes = [46, 144], strides = [1, 1]} : vector<48x144xf32> to vector<46x144xf32>
    %33 = arith.truncf %32 : vector<46x144xf32> to vector<46x144xbf16>
    %c2_22 = arith.constant 2 : index
    %c0_23 = arith.constant 0 : index
    %c0_24 = arith.constant 0 : index
    %34 = vector.load %arg2[%c2_22, %c0_23, %c0_24] : memref<3x144x276xbf16, #tpu.memory_space<vmem>>, vector<1x144x276xbf16>
    %35 = vector.shape_cast %34 : vector<1x144x276xbf16> to vector<144x276xbf16>
    %cst_25 = arith.constant dense<0.000000e+00> : vector<46x276xf32>
    %36 = tpu.matmul %33, %35, %cst_25 {dimension_numbers = #tpu.dot_dimension_numbers<[1], [0], [0], [1], [0, 0, 1, 1], [], []>} : vector<46x144xbf16>, vector<144x276xbf16>, vector<46x276xf32> -> vector<46x276xf32>
    %37 = arith.addf %31, %36 : vector<46x276xf32>
    %cst_26 = arith.constant 0.000000e+00 : f32
    %38 = vector.broadcast %cst_26 : f32 to vector<1x276xf32>
    %cst_27 = arith.constant 0.000000e+00 : f32
    %39 = vector.broadcast %cst_27 : f32 to vector<1x276xf32>
    %cst_28 = arith.constant dense<0.000000e+00> : vector<276xf32>
    %40 = vector.multi_reduction <add>, %20, %cst_28 [0] : vector<46x276xf32> to vector<276xf32>
    %41 = vector.shape_cast %40 : vector<276xf32> to vector<1x276xf32>
    %42 = arith.addf %38, %41 : vector<1x276xf32>
    %43 = arith.mulf %20, %20 : vector<46x276xf32>
    %cst_29 = arith.constant dense<0.000000e+00> : vector<276xf32>
    %44 = vector.multi_reduction <add>, %43, %cst_29 [0] : vector<46x276xf32> to vector<276xf32>
    %45 = vector.shape_cast %44 : vector<276xf32> to vector<1x276xf32>
    %46 = arith.addf %39, %45 : vector<1x276xf32>
    %cst_30 = arith.constant dense<0.000000e+00> : vector<276xf32>
    %47 = vector.multi_reduction <add>, %37, %cst_30 [0] : vector<46x276xf32> to vector<276xf32>
    %48 = vector.shape_cast %47 : vector<276xf32> to vector<1x276xf32>
    %49 = arith.addf %42, %48 : vector<1x276xf32>
    %50 = arith.mulf %37, %37 : vector<46x276xf32>
    %cst_31 = arith.constant dense<0.000000e+00> : vector<276xf32>
    %51 = vector.multi_reduction <add>, %50, %cst_31 [0] : vector<46x276xf32> to vector<276xf32>
    %52 = vector.shape_cast %51 : vector<276xf32> to vector<1x276xf32>
    %53 = arith.addf %46, %52 : vector<1x276xf32>
    %c0_32 = arith.constant 0 : index
    %c0_33 = arith.constant 0 : index
    %54 = vector.load %arg3[%c0_32, %c0_33] : memref<276x6xf32, #tpu.memory_space<vmem>>, vector<276x6xf32>
    %c0_34 = arith.constant 0 : index
    %c0_35 = arith.constant 0 : index
    %55 = vector.load %arg4[%c0_34, %c0_35] : memref<6x276xf32, #tpu.memory_space<vmem>>, vector<6x276xf32>
    %cst_36 = arith.constant dense<0.000000e+00> : vector<1x6xf32>
    %56 = tpu.matmul %49, %54, %cst_36 {dimension_numbers = #tpu.dot_dimension_numbers<[1], [0], [0], [1], [0, 0, 1, 1], [], []>} : vector<1x276xf32>, vector<276x6xf32>, vector<1x6xf32> -> vector<1x6xf32>
    %cst_37 = arith.constant 2.36294902E-4 : f32
    %57 = vector.broadcast %cst_37 : f32 to vector<1x6xf32>
    %58 = arith.mulf %56, %57 : vector<1x6xf32>
    %cst_38 = arith.constant dense<0.000000e+00> : vector<1x6xf32>
    %59 = tpu.matmul %53, %54, %cst_38 {dimension_numbers = #tpu.dot_dimension_numbers<[1], [0], [0], [1], [0, 0, 1, 1], [], []>} : vector<1x276xf32>, vector<276x6xf32>, vector<1x6xf32> -> vector<1x6xf32>
    %cst_39 = arith.constant 2.36294902E-4 : f32
    %60 = vector.broadcast %cst_39 : f32 to vector<1x6xf32>
    %61 = arith.mulf %59, %60 : vector<1x6xf32>
    %62 = arith.mulf %58, %58 : vector<1x6xf32>
    %63 = arith.subf %61, %62 : vector<1x6xf32>
    %cst_40 = arith.constant dense<0.000000e+00> : vector<1x276xf32>
    %64 = tpu.matmul %58, %55, %cst_40 {dimension_numbers = #tpu.dot_dimension_numbers<[1], [0], [0], [1], [0, 0, 1, 1], [], []>} : vector<1x6xf32>, vector<6x276xf32>, vector<1x276xf32> -> vector<1x276xf32>
    %cst_41 = arith.constant dense<0.000000e+00> : vector<1x276xf32>
    %65 = tpu.matmul %63, %55, %cst_41 {dimension_numbers = #tpu.dot_dimension_numbers<[1], [0], [0], [1], [0, 0, 1, 1], [], []>} : vector<1x6xf32>, vector<6x276xf32>, vector<1x276xf32> -> vector<1x276xf32>
    %c0_42 = arith.constant 0 : index
    %c0_43 = arith.constant 0 : index
    %66 = vector.load %arg5[%c0_42, %c0_43] : memref<2x276xf32, #tpu.memory_space<vmem>>, vector<2x276xf32>
    %67 = vector.extract_strided_slice %66 {offsets = [0, 0], sizes = [1, 276], strides = [1, 1]} : vector<2x276xf32> to vector<1x276xf32>
    %cst_44 = arith.constant 9.99999974E-6 : f32
    %68 = vector.broadcast %cst_44 : f32 to vector<1x276xf32>
    %69 = arith.addf %65, %68 : vector<1x276xf32>
    %70 = math.rsqrt %69 : vector<1x276xf32>
    %71 = arith.mulf %67, %70 : vector<1x276xf32>
    %72 = vector.extract_strided_slice %66 {offsets = [1, 0], sizes = [1, 276], strides = [1, 1]} : vector<2x276xf32> to vector<1x276xf32>
    %73 = arith.mulf %64, %71 : vector<1x276xf32>
    %74 = arith.subf %72, %73 : vector<1x276xf32>
    %c0_45 = arith.constant 0 : index
    %c0_46 = arith.constant 0 : index
    %75 = vector.load %arg6[%c0_45, %c0_46] : memref<23x45xf32, #tpu.memory_space<vmem>>, vector<23x45xf32>
    %c0_47 = arith.constant 0 : index
    %c0_48 = arith.constant 0 : index
    %76 = vector.load %arg7[%c0_47, %c0_48] : memref<270x138xf32, #tpu.memory_space<vmem>>, vector<270x138xf32>
    %77 = vector.broadcast %71 : vector<1x276xf32> to vector<46x276xf32>
    %78 = arith.mulf %20, %77 : vector<46x276xf32>
    %79 = vector.broadcast %74 : vector<1x276xf32> to vector<46x276xf32>
    %80 = arith.addf %78, %79 : vector<46x276xf32>
    %81 = vector.extract_strided_slice %80 {offsets = [0, 0], sizes = [45, 276], strides = [1, 1]} : vector<46x276xf32> to vector<45x276xf32>
    %82 = vector.extract_strided_slice %80 {offsets = [1, 0], sizes = [45, 276], strides = [1, 1]} : vector<46x276xf32> to vector<45x276xf32>
    %83 = arith.maximumf %81, %82 : vector<45x276xf32>
    %84 = vector.extract_strided_slice %83 {offsets = [0, 0], sizes = [45, 270], strides = [1, 1]} : vector<45x276xf32> to vector<45x270xf32>
    %85 = vector.extract_strided_slice %83 {offsets = [0, 6], sizes = [45, 270], strides = [1, 1]} : vector<45x276xf32> to vector<45x270xf32>
    %86 = arith.maximumf %84, %85 : vector<45x270xf32>
    %cst_49 = arith.constant 0.000000e+00 : f32
    %87 = vector.broadcast %cst_49 : f32 to vector<45x270xf32>
    %88 = arith.maximumf %86, %87 : vector<45x270xf32>
    %cst_50 = arith.constant dense<0.000000e+00> : vector<23x270xf32>
    %89 = tpu.matmul %75, %88, %cst_50 {dimension_numbers = #tpu.dot_dimension_numbers<[1], [0], [0], [1], [0, 0, 1, 1], [], []>} : vector<23x45xf32>, vector<45x270xf32>, vector<23x270xf32> -> vector<23x270xf32>
    %cst_51 = arith.constant dense<0.000000e+00> : vector<23x138xf32>
    %90 = tpu.matmul %89, %76, %cst_51 {dimension_numbers = #tpu.dot_dimension_numbers<[1], [0], [0], [1], [0, 0, 1, 1], [], []>} : vector<23x270xf32>, vector<270x138xf32>, vector<23x138xf32> -> vector<23x138xf32>
    %91 = vector.broadcast %71 : vector<1x276xf32> to vector<46x276xf32>
    %92 = arith.mulf %37, %91 : vector<46x276xf32>
    %93 = vector.broadcast %74 : vector<1x276xf32> to vector<46x276xf32>
    %94 = arith.addf %92, %93 : vector<46x276xf32>
    %95 = vector.extract_strided_slice %94 {offsets = [0, 0], sizes = [45, 276], strides = [1, 1]} : vector<46x276xf32> to vector<45x276xf32>
    %96 = vector.extract_strided_slice %94 {offsets = [1, 0], sizes = [45, 276], strides = [1, 1]} : vector<46x276xf32> to vector<45x276xf32>
    %97 = arith.maximumf %95, %96 : vector<45x276xf32>
    %98 = vector.extract_strided_slice %97 {offsets = [0, 0], sizes = [45, 270], strides = [1, 1]} : vector<45x276xf32> to vector<45x270xf32>
    %99 = vector.extract_strided_slice %97 {offsets = [0, 6], sizes = [45, 270], strides = [1, 1]} : vector<45x276xf32> to vector<45x270xf32>
    %100 = arith.maximumf %98, %99 : vector<45x270xf32>
    %cst_52 = arith.constant 0.000000e+00 : f32
    %101 = vector.broadcast %cst_52 : f32 to vector<45x270xf32>
    %102 = arith.maximumf %100, %101 : vector<45x270xf32>
    %cst_53 = arith.constant dense<0.000000e+00> : vector<23x270xf32>
    %103 = tpu.matmul %75, %102, %cst_53 {dimension_numbers = #tpu.dot_dimension_numbers<[1], [0], [0], [1], [0, 0, 1, 1], [], []>} : vector<23x45xf32>, vector<45x270xf32>, vector<23x270xf32> -> vector<23x270xf32>
    %cst_54 = arith.constant dense<0.000000e+00> : vector<23x138xf32>
    %104 = tpu.matmul %103, %76, %cst_54 {dimension_numbers = #tpu.dot_dimension_numbers<[1], [0], [0], [1], [0, 0, 1, 1], [], []>} : vector<23x270xf32>, vector<270x138xf32>, vector<23x138xf32> -> vector<23x138xf32>
    %105 = vector.extract_strided_slice %90 {offsets = [0, 0], sizes = [21, 138], strides = [1, 1]} : vector<23x138xf32> to vector<21x138xf32>
    %106 = arith.truncf %105 : vector<21x138xf32> to vector<21x138xbf16>
    %c0_55 = arith.constant 0 : index
    %c0_56 = arith.constant 0 : index
    %c0_57 = arith.constant 0 : index
    %107 = vector.load %arg8[%c0_55, %c0_56, %c0_57] : memref<3x138x252xbf16, #tpu.memory_space<vmem>>, vector<1x138x252xbf16>
    %108 = vector.shape_cast %107 : vector<1x138x252xbf16> to vector<138x252xbf16>
    %cst_58 = arith.constant dense<0.000000e+00> : vector<21x252xf32>
    %109 = tpu.matmul %106, %108, %cst_58 {dimension_numbers = #tpu.dot_dimension_numbers<[1], [0], [0], [1], [0, 0, 1, 1], [], []>} : vector<21x138xbf16>, vector<138x252xbf16>, vector<21x252xf32> -> vector<21x252xf32>
    %110 = vector.extract_strided_slice %90 {offsets = [1, 0], sizes = [21, 138], strides = [1, 1]} : vector<23x138xf32> to vector<21x138xf32>
    %111 = arith.truncf %110 : vector<21x138xf32> to vector<21x138xbf16>
    %c1_59 = arith.constant 1 : index
    %c0_60 = arith.constant 0 : index
    %c0_61 = arith.constant 0 : index
    %112 = vector.load %arg8[%c1_59, %c0_60, %c0_61] : memref<3x138x252xbf16, #tpu.memory_space<vmem>>, vector<1x138x252xbf16>
    %113 = vector.shape_cast %112 : vector<1x138x252xbf16> to vector<138x252xbf16>
    %cst_62 = arith.constant dense<0.000000e+00> : vector<21x252xf32>
    %114 = tpu.matmul %111, %113, %cst_62 {dimension_numbers = #tpu.dot_dimension_numbers<[1], [0], [0], [1], [0, 0, 1, 1], [], []>} : vector<21x138xbf16>, vector<138x252xbf16>, vector<21x252xf32> -> vector<21x252xf32>
    %115 = arith.addf %109, %114 : vector<21x252xf32>
    %116 = vector.extract_strided_slice %90 {offsets = [2, 0], sizes = [21, 138], strides = [1, 1]} : vector<23x138xf32> to vector<21x138xf32>
    %117 = arith.truncf %116 : vector<21x138xf32> to vector<21x138xbf16>
    %c2_63 = arith.constant 2 : index
    %c0_64 = arith.constant 0 : index
    %c0_65 = arith.constant 0 : index
    %118 = vector.load %arg8[%c2_63, %c0_64, %c0_65] : memref<3x138x252xbf16, #tpu.memory_space<vmem>>, vector<1x138x252xbf16>
    %119 = vector.shape_cast %118 : vector<1x138x252xbf16> to vector<138x252xbf16>
    %cst_66 = arith.constant dense<0.000000e+00> : vector<21x252xf32>
    %120 = tpu.matmul %117, %119, %cst_66 {dimension_numbers = #tpu.dot_dimension_numbers<[1], [0], [0], [1], [0, 0, 1, 1], [], []>} : vector<21x138xbf16>, vector<138x252xbf16>, vector<21x252xf32> -> vector<21x252xf32>
    %121 = arith.addf %115, %120 : vector<21x252xf32>
    %122 = vector.extract_strided_slice %104 {offsets = [0, 0], sizes = [21, 138], strides = [1, 1]} : vector<23x138xf32> to vector<21x138xf32>
    %123 = arith.truncf %122 : vector<21x138xf32> to vector<21x138xbf16>
    %c0_67 = arith.constant 0 : index
    %c0_68 = arith.constant 0 : index
    %c0_69 = arith.constant 0 : index
    %124 = vector.load %arg8[%c0_67, %c0_68, %c0_69] : memref<3x138x252xbf16, #tpu.memory_space<vmem>>, vector<1x138x252xbf16>
    %125 = vector.shape_cast %124 : vector<1x138x252xbf16> to vector<138x252xbf16>
    %cst_70 = arith.constant dense<0.000000e+00> : vector<21x252xf32>
    %126 = tpu.matmul %123, %125, %cst_70 {dimension_numbers = #tpu.dot_dimension_numbers<[1], [0], [0], [1], [0, 0, 1, 1], [], []>} : vector<21x138xbf16>, vector<138x252xbf16>, vector<21x252xf32> -> vector<21x252xf32>
    %127 = vector.extract_strided_slice %104 {offsets = [1, 0], sizes = [21, 138], strides = [1, 1]} : vector<23x138xf32> to vector<21x138xf32>
    %128 = arith.truncf %127 : vector<21x138xf32> to vector<21x138xbf16>
    %c1_71 = arith.constant 1 : index
    %c0_72 = arith.constant 0 : index
    %c0_73 = arith.constant 0 : index
    %129 = vector.load %arg8[%c1_71, %c0_72, %c0_73] : memref<3x138x252xbf16, #tpu.memory_space<vmem>>, vector<1x138x252xbf16>
    %130 = vector.shape_cast %129 : vector<1x138x252xbf16> to vector<138x252xbf16>
    %cst_74 = arith.constant dense<0.000000e+00> : vector<21x252xf32>
    %131 = tpu.matmul %128, %130, %cst_74 {dimension_numbers = #tpu.dot_dimension_numbers<[1], [0], [0], [1], [0, 0, 1, 1], [], []>} : vector<21x138xbf16>, vector<138x252xbf16>, vector<21x252xf32> -> vector<21x252xf32>
    %132 = arith.addf %126, %131 : vector<21x252xf32>
    %133 = vector.extract_strided_slice %104 {offsets = [2, 0], sizes = [21, 138], strides = [1, 1]} : vector<23x138xf32> to vector<21x138xf32>
    %134 = arith.truncf %133 : vector<21x138xf32> to vector<21x138xbf16>
    %c2_75 = arith.constant 2 : index
    %c0_76 = arith.constant 0 : index
    %c0_77 = arith.constant 0 : index
    %135 = vector.load %arg8[%c2_75, %c0_76, %c0_77] : memref<3x138x252xbf16, #tpu.memory_space<vmem>>, vector<1x138x252xbf16>
    %136 = vector.shape_cast %135 : vector<1x138x252xbf16> to vector<138x252xbf16>
    %cst_78 = arith.constant dense<0.000000e+00> : vector<21x252xf32>
    %137 = tpu.matmul %134, %136, %cst_78 {dimension_numbers = #tpu.dot_dimension_numbers<[1], [0], [0], [1], [0, 0, 1, 1], [], []>} : vector<21x138xbf16>, vector<138x252xbf16>, vector<21x252xf32> -> vector<21x252xf32>
    %138 = arith.addf %132, %137 : vector<21x252xf32>
    %cst_79 = arith.constant 0.000000e+00 : f32
    %139 = vector.broadcast %cst_79 : f32 to vector<1x252xf32>
    %cst_80 = arith.constant 0.000000e+00 : f32
    %140 = vector.broadcast %cst_80 : f32 to vector<1x252xf32>
    %cst_81 = arith.constant dense<0.000000e+00> : vector<252xf32>
    %141 = vector.multi_reduction <add>, %121, %cst_81 [0] : vector<21x252xf32> to vector<252xf32>
    %142 = vector.shape_cast %141 : vector<252xf32> to vector<1x252xf32>
    %143 = arith.addf %139, %142 : vector<1x252xf32>
    %144 = arith.mulf %121, %121 : vector<21x252xf32>
    %cst_82 = arith.constant dense<0.000000e+00> : vector<252xf32>
    %145 = vector.multi_reduction <add>, %144, %cst_82 [0] : vector<21x252xf32> to vector<252xf32>
    %146 = vector.shape_cast %145 : vector<252xf32> to vector<1x252xf32>
    %147 = arith.addf %140, %146 : vector<1x252xf32>
    %cst_83 = arith.constant dense<0.000000e+00> : vector<252xf32>
    %148 = vector.multi_reduction <add>, %138, %cst_83 [0] : vector<21x252xf32> to vector<252xf32>
    %149 = vector.shape_cast %148 : vector<252xf32> to vector<1x252xf32>
    %150 = arith.addf %143, %149 : vector<1x252xf32>
    %151 = arith.mulf %138, %138 : vector<21x252xf32>
    %cst_84 = arith.constant dense<0.000000e+00> : vector<252xf32>
    %152 = vector.multi_reduction <add>, %151, %cst_84 [0] : vector<21x252xf32> to vector<252xf32>
    %153 = vector.shape_cast %152 : vector<252xf32> to vector<1x252xf32>
    %154 = arith.addf %147, %153 : vector<1x252xf32>
    %c0_85 = arith.constant 0 : index
    %c0_86 = arith.constant 0 : index
    %155 = vector.load %arg9[%c0_85, %c0_86] : memref<252x12xf32, #tpu.memory_space<vmem>>, vector<252x12xf32>
    %c0_87 = arith.constant 0 : index
    %c0_88 = arith.constant 0 : index
    %156 = vector.load %arg10[%c0_87, %c0_88] : memref<12x252xf32, #tpu.memory_space<vmem>>, vector<12x252xf32>
    %cst_89 = arith.constant dense<0.000000e+00> : vector<1x12xf32>
    %157 = tpu.matmul %150, %155, %cst_89 {dimension_numbers = #tpu.dot_dimension_numbers<[1], [0], [0], [1], [0, 0, 1, 1], [], []>} : vector<1x252xf32>, vector<252x12xf32>, vector<1x12xf32> -> vector<1x12xf32>
    %cst_90 = arith.constant 0.00113378686 : f32
    %158 = vector.broadcast %cst_90 : f32 to vector<1x12xf32>
    %159 = arith.mulf %157, %158 : vector<1x12xf32>
    %cst_91 = arith.constant dense<0.000000e+00> : vector<1x12xf32>
    %160 = tpu.matmul %154, %155, %cst_91 {dimension_numbers = #tpu.dot_dimension_numbers<[1], [0], [0], [1], [0, 0, 1, 1], [], []>} : vector<1x252xf32>, vector<252x12xf32>, vector<1x12xf32> -> vector<1x12xf32>
    %cst_92 = arith.constant 0.00113378686 : f32
    %161 = vector.broadcast %cst_92 : f32 to vector<1x12xf32>
    %162 = arith.mulf %160, %161 : vector<1x12xf32>
    %163 = arith.mulf %159, %159 : vector<1x12xf32>
    %164 = arith.subf %162, %163 : vector<1x12xf32>
    %cst_93 = arith.constant dense<0.000000e+00> : vector<1x252xf32>
    %165 = tpu.matmul %159, %156, %cst_93 {dimension_numbers = #tpu.dot_dimension_numbers<[1], [0], [0], [1], [0, 0, 1, 1], [], []>} : vector<1x12xf32>, vector<12x252xf32>, vector<1x252xf32> -> vector<1x252xf32>
    %cst_94 = arith.constant dense<0.000000e+00> : vector<1x252xf32>
    %166 = tpu.matmul %164, %156, %cst_94 {dimension_numbers = #tpu.dot_dimension_numbers<[1], [0], [0], [1], [0, 0, 1, 1], [], []>} : vector<1x12xf32>, vector<12x252xf32>, vector<1x252xf32> -> vector<1x252xf32>
    %c0_95 = arith.constant 0 : index
    %c0_96 = arith.constant 0 : index
    %167 = vector.load %arg11[%c0_95, %c0_96] : memref<2x252xf32, #tpu.memory_space<vmem>>, vector<2x252xf32>
    %168 = vector.extract_strided_slice %167 {offsets = [0, 0], sizes = [1, 252], strides = [1, 1]} : vector<2x252xf32> to vector<1x252xf32>
    %cst_97 = arith.constant 9.99999974E-6 : f32
    %169 = vector.broadcast %cst_97 : f32 to vector<1x252xf32>
    %170 = arith.addf %166, %169 : vector<1x252xf32>
    %171 = math.rsqrt %170 : vector<1x252xf32>
    %172 = arith.mulf %168, %171 : vector<1x252xf32>
    %173 = vector.extract_strided_slice %167 {offsets = [1, 0], sizes = [1, 252], strides = [1, 1]} : vector<2x252xf32> to vector<1x252xf32>
    %174 = arith.mulf %165, %172 : vector<1x252xf32>
    %175 = arith.subf %173, %174 : vector<1x252xf32>
    %c0_98 = arith.constant 0 : index
    %c0_99 = arith.constant 0 : index
    %176 = vector.load %arg12[%c0_98, %c0_99] : memref<10x20xf32, #tpu.memory_space<vmem>>, vector<10x20xf32>
    %c0_100 = arith.constant 0 : index
    %c0_101 = arith.constant 0 : index
    %177 = vector.load %arg13[%c0_100, %c0_101] : memref<240x120xf32, #tpu.memory_space<vmem>>, vector<240x120xf32>
    %178 = vector.broadcast %172 : vector<1x252xf32> to vector<21x252xf32>
    %179 = arith.mulf %121, %178 : vector<21x252xf32>
    %180 = vector.broadcast %175 : vector<1x252xf32> to vector<21x252xf32>
    %181 = arith.addf %179, %180 : vector<21x252xf32>
    %182 = vector.extract_strided_slice %181 {offsets = [0, 0], sizes = [20, 252], strides = [1, 1]} : vector<21x252xf32> to vector<20x252xf32>
    %183 = vector.extract_strided_slice %181 {offsets = [1, 0], sizes = [20, 252], strides = [1, 1]} : vector<21x252xf32> to vector<20x252xf32>
    %184 = arith.maximumf %182, %183 : vector<20x252xf32>
    %185 = vector.extract_strided_slice %184 {offsets = [0, 0], sizes = [20, 240], strides = [1, 1]} : vector<20x252xf32> to vector<20x240xf32>
    %186 = vector.extract_strided_slice %184 {offsets = [0, 12], sizes = [20, 240], strides = [1, 1]} : vector<20x252xf32> to vector<20x240xf32>
    %187 = arith.maximumf %185, %186 : vector<20x240xf32>
    %cst_102 = arith.constant 0.000000e+00 : f32
    %188 = vector.broadcast %cst_102 : f32 to vector<20x240xf32>
    %189 = arith.maximumf %187, %188 : vector<20x240xf32>
    %cst_103 = arith.constant dense<0.000000e+00> : vector<10x240xf32>
    %190 = tpu.matmul %176, %189, %cst_103 {dimension_numbers = #tpu.dot_dimension_numbers<[1], [0], [0], [1], [0, 0, 1, 1], [], []>} : vector<10x20xf32>, vector<20x240xf32>, vector<10x240xf32> -> vector<10x240xf32>
    %cst_104 = arith.constant dense<0.000000e+00> : vector<10x120xf32>
    %191 = tpu.matmul %190, %177, %cst_104 {dimension_numbers = #tpu.dot_dimension_numbers<[1], [0], [0], [1], [0, 0, 1, 1], [], []>} : vector<10x240xf32>, vector<240x120xf32>, vector<10x120xf32> -> vector<10x120xf32>
    %192 = vector.broadcast %172 : vector<1x252xf32> to vector<21x252xf32>
    %193 = arith.mulf %138, %192 : vector<21x252xf32>
    %194 = vector.broadcast %175 : vector<1x252xf32> to vector<21x252xf32>
    %195 = arith.addf %193, %194 : vector<21x252xf32>
    %196 = vector.extract_strided_slice %195 {offsets = [0, 0], sizes = [20, 252], strides = [1, 1]} : vector<21x252xf32> to vector<20x252xf32>
    %197 = vector.extract_strided_slice %195 {offsets = [1, 0], sizes = [20, 252], strides = [1, 1]} : vector<21x252xf32> to vector<20x252xf32>
    %198 = arith.maximumf %196, %197 : vector<20x252xf32>
    %199 = vector.extract_strided_slice %198 {offsets = [0, 0], sizes = [20, 240], strides = [1, 1]} : vector<20x252xf32> to vector<20x240xf32>
    %200 = vector.extract_strided_slice %198 {offsets = [0, 12], sizes = [20, 240], strides = [1, 1]} : vector<20x252xf32> to vector<20x240xf32>
    %201 = arith.maximumf %199, %200 : vector<20x240xf32>
    %cst_105 = arith.constant 0.000000e+00 : f32
    %202 = vector.broadcast %cst_105 : f32 to vector<20x240xf32>
    %203 = arith.maximumf %201, %202 : vector<20x240xf32>
    %cst_106 = arith.constant dense<0.000000e+00> : vector<10x240xf32>
    %204 = tpu.matmul %176, %203, %cst_106 {dimension_numbers = #tpu.dot_dimension_numbers<[1], [0], [0], [1], [0, 0, 1, 1], [], []>} : vector<10x20xf32>, vector<20x240xf32>, vector<10x240xf32> -> vector<10x240xf32>
    %cst_107 = arith.constant dense<0.000000e+00> : vector<10x120xf32>
    %205 = tpu.matmul %204, %177, %cst_107 {dimension_numbers = #tpu.dot_dimension_numbers<[1], [0], [0], [1], [0, 0, 1, 1], [], []>} : vector<10x240xf32>, vector<240x120xf32>, vector<10x120xf32> -> vector<10x120xf32>
    %206 = vector.extract_strided_slice %191 {offsets = [0, 0], sizes = [8, 120], strides = [1, 1]} : vector<10x120xf32> to vector<8x120xf32>
    %207 = arith.truncf %206 : vector<8x120xf32> to vector<8x120xbf16>
    %c0_108 = arith.constant 0 : index
    %c0_109 = arith.constant 0 : index
    %c0_110 = arith.constant 0 : index
    %208 = vector.load %arg14[%c0_108, %c0_109, %c0_110] : memref<3x120x128xbf16, #tpu.memory_space<vmem>>, vector<1x120x128xbf16>
    %209 = vector.shape_cast %208 : vector<1x120x128xbf16> to vector<120x128xbf16>
    %cst_111 = arith.constant dense<0.000000e+00> : vector<8x128xf32>
    %210 = tpu.matmul %207, %209, %cst_111 {dimension_numbers = #tpu.dot_dimension_numbers<[1], [0], [0], [1], [0, 0, 1, 1], [], []>} : vector<8x120xbf16>, vector<120x128xbf16>, vector<8x128xf32> -> vector<8x128xf32>
    %211 = vector.extract_strided_slice %191 {offsets = [1, 0], sizes = [8, 120], strides = [1, 1]} : vector<10x120xf32> to vector<8x120xf32>
    %212 = arith.truncf %211 : vector<8x120xf32> to vector<8x120xbf16>
    %c1_112 = arith.constant 1 : index
    %c0_113 = arith.constant 0 : index
    %c0_114 = arith.constant 0 : index
    %213 = vector.load %arg14[%c1_112, %c0_113, %c0_114] : memref<3x120x128xbf16, #tpu.memory_space<vmem>>, vector<1x120x128xbf16>
    %214 = vector.shape_cast %213 : vector<1x120x128xbf16> to vector<120x128xbf16>
    %cst_115 = arith.constant dense<0.000000e+00> : vector<8x128xf32>
    %215 = tpu.matmul %212, %214, %cst_115 {dimension_numbers = #tpu.dot_dimension_numbers<[1], [0], [0], [1], [0, 0, 1, 1], [], []>} : vector<8x120xbf16>, vector<120x128xbf16>, vector<8x128xf32> -> vector<8x128xf32>
    %216 = arith.addf %210, %215 : vector<8x128xf32>
    %217 = vector.extract_strided_slice %191 {offsets = [2, 0], sizes = [8, 120], strides = [1, 1]} : vector<10x120xf32> to vector<8x120xf32>
    %218 = arith.truncf %217 : vector<8x120xf32> to vector<8x120xbf16>
    %c2_116 = arith.constant 2 : index
    %c0_117 = arith.constant 0 : index
    %c0_118 = arith.constant 0 : index
    %219 = vector.load %arg14[%c2_116, %c0_117, %c0_118] : memref<3x120x128xbf16, #tpu.memory_space<vmem>>, vector<1x120x128xbf16>
    %220 = vector.shape_cast %219 : vector<1x120x128xbf16> to vector<120x128xbf16>
    %cst_119 = arith.constant dense<0.000000e+00> : vector<8x128xf32>
    %221 = tpu.matmul %218, %220, %cst_119 {dimension_numbers = #tpu.dot_dimension_numbers<[1], [0], [0], [1], [0, 0, 1, 1], [], []>} : vector<8x120xbf16>, vector<120x128xbf16>, vector<8x128xf32> -> vector<8x128xf32>
    %222 = arith.addf %216, %221 : vector<8x128xf32>
    %223 = vector.extract_strided_slice %205 {offsets = [0, 0], sizes = [8, 120], strides = [1, 1]} : vector<10x120xf32> to vector<8x120xf32>
    %224 = arith.truncf %223 : vector<8x120xf32> to vector<8x120xbf16>
    %c0_120 = arith.constant 0 : index
    %c0_121 = arith.constant 0 : index
    %c0_122 = arith.constant 0 : index
    %225 = vector.load %arg14[%c0_120, %c0_121, %c0_122] : memref<3x120x128xbf16, #tpu.memory_space<vmem>>, vector<1x120x128xbf16>
    %226 = vector.shape_cast %225 : vector<1x120x128xbf16> to vector<120x128xbf16>
    %cst_123 = arith.constant dense<0.000000e+00> : vector<8x128xf32>
    %227 = tpu.matmul %224, %226, %cst_123 {dimension_numbers = #tpu.dot_dimension_numbers<[1], [0], [0], [1], [0, 0, 1, 1], [], []>} : vector<8x120xbf16>, vector<120x128xbf16>, vector<8x128xf32> -> vector<8x128xf32>
    %228 = vector.extract_strided_slice %205 {offsets = [1, 0], sizes = [8, 120], strides = [1, 1]} : vector<10x120xf32> to vector<8x120xf32>
    %229 = arith.truncf %228 : vector<8x120xf32> to vector<8x120xbf16>
    %c1_124 = arith.constant 1 : index
    %c0_125 = arith.constant 0 : index
    %c0_126 = arith.constant 0 : index
    %230 = vector.load %arg14[%c1_124, %c0_125, %c0_126] : memref<3x120x128xbf16, #tpu.memory_space<vmem>>, vector<1x120x128xbf16>
    %231 = vector.shape_cast %230 : vector<1x120x128xbf16> to vector<120x128xbf16>
    %cst_127 = arith.constant dense<0.000000e+00> : vector<8x128xf32>
    %232 = tpu.matmul %229, %231, %cst_127 {dimension_numbers = #tpu.dot_dimension_numbers<[1], [0], [0], [1], [0, 0, 1, 1], [], []>} : vector<8x120xbf16>, vector<120x128xbf16>, vector<8x128xf32> -> vector<8x128xf32>
    %233 = arith.addf %227, %232 : vector<8x128xf32>
    %234 = vector.extract_strided_slice %205 {offsets = [2, 0], sizes = [8, 120], strides = [1, 1]} : vector<10x120xf32> to vector<8x120xf32>
    %235 = arith.truncf %234 : vector<8x120xf32> to vector<8x120xbf16>
    %c2_128 = arith.constant 2 : index
    %c0_129 = arith.constant 0 : index
    %c0_130 = arith.constant 0 : index
    %236 = vector.load %arg14[%c2_128, %c0_129, %c0_130] : memref<3x120x128xbf16, #tpu.memory_space<vmem>>, vector<1x120x128xbf16>
    %237 = vector.shape_cast %236 : vector<1x120x128xbf16> to vector<120x128xbf16>
    %cst_131 = arith.constant dense<0.000000e+00> : vector<8x128xf32>
    %238 = tpu.matmul %235, %237, %cst_131 {dimension_numbers = #tpu.dot_dimension_numbers<[1], [0], [0], [1], [0, 0, 1, 1], [], []>} : vector<8x120xbf16>, vector<120x128xbf16>, vector<8x128xf32> -> vector<8x128xf32>
    %239 = arith.addf %233, %238 : vector<8x128xf32>
    %cst_132 = arith.constant 0.000000e+00 : f32
    %240 = vector.broadcast %cst_132 : f32 to vector<1x128xf32>
    %cst_133 = arith.constant 0.000000e+00 : f32
    %241 = vector.broadcast %cst_133 : f32 to vector<1x128xf32>
    %cst_134 = arith.constant dense<0.000000e+00> : vector<128xf32>
    %242 = vector.multi_reduction <add>, %222, %cst_134 [0] : vector<8x128xf32> to vector<128xf32>
    %243 = vector.shape_cast %242 : vector<128xf32> to vector<1x128xf32>
    %244 = arith.addf %240, %243 : vector<1x128xf32>
    %245 = arith.mulf %222, %222 : vector<8x128xf32>
    %cst_135 = arith.constant dense<0.000000e+00> : vector<128xf32>
    %246 = vector.multi_reduction <add>, %245, %cst_135 [0] : vector<8x128xf32> to vector<128xf32>
    %247 = vector.shape_cast %246 : vector<128xf32> to vector<1x128xf32>
    %248 = arith.addf %241, %247 : vector<1x128xf32>
    %cst_136 = arith.constant dense<0.000000e+00> : vector<128xf32>
    %249 = vector.multi_reduction <add>, %239, %cst_136 [0] : vector<8x128xf32> to vector<128xf32>
    %250 = vector.shape_cast %249 : vector<128xf32> to vector<1x128xf32>
    %251 = arith.addf %244, %250 : vector<1x128xf32>
    %252 = arith.mulf %239, %239 : vector<8x128xf32>
    %cst_137 = arith.constant dense<0.000000e+00> : vector<128xf32>
    %253 = vector.multi_reduction <add>, %252, %cst_137 [0] : vector<8x128xf32> to vector<128xf32>
    %254 = vector.shape_cast %253 : vector<128xf32> to vector<1x128xf32>
    %255 = arith.addf %248, %254 : vector<1x128xf32>
    %c0_138 = arith.constant 0 : index
    %c0_139 = arith.constant 0 : index
    %256 = vector.load %arg15[%c0_138, %c0_139] : memref<128x16xf32, #tpu.memory_space<vmem>>, vector<128x16xf32>
    %c0_140 = arith.constant 0 : index
    %c0_141 = arith.constant 0 : index
    %257 = vector.load %arg16[%c0_140, %c0_141] : memref<16x128xf32, #tpu.memory_space<vmem>>, vector<16x128xf32>
    %cst_142 = arith.constant dense<0.000000e+00> : vector<1x16xf32>
    %258 = tpu.matmul %251, %256, %cst_142 {dimension_numbers = #tpu.dot_dimension_numbers<[1], [0], [0], [1], [0, 0, 1, 1], [], []>} : vector<1x128xf32>, vector<128x16xf32>, vector<1x16xf32> -> vector<1x16xf32>
    %cst_143 = arith.constant 7.812500e-03 : f32
    %259 = vector.broadcast %cst_143 : f32 to vector<1x16xf32>
    %260 = arith.mulf %258, %259 : vector<1x16xf32>
    %cst_144 = arith.constant dense<0.000000e+00> : vector<1x16xf32>
    %261 = tpu.matmul %255, %256, %cst_144 {dimension_numbers = #tpu.dot_dimension_numbers<[1], [0], [0], [1], [0, 0, 1, 1], [], []>} : vector<1x128xf32>, vector<128x16xf32>, vector<1x16xf32> -> vector<1x16xf32>
    %cst_145 = arith.constant 7.812500e-03 : f32
    %262 = vector.broadcast %cst_145 : f32 to vector<1x16xf32>
    %263 = arith.mulf %261, %262 : vector<1x16xf32>
    %264 = arith.mulf %260, %260 : vector<1x16xf32>
    %265 = arith.subf %263, %264 : vector<1x16xf32>
    %cst_146 = arith.constant dense<0.000000e+00> : vector<1x128xf32>
    %266 = tpu.matmul %260, %257, %cst_146 {dimension_numbers = #tpu.dot_dimension_numbers<[1], [0], [0], [1], [0, 0, 1, 1], [], []>} : vector<1x16xf32>, vector<16x128xf32>, vector<1x128xf32> -> vector<1x128xf32>
    %cst_147 = arith.constant dense<0.000000e+00> : vector<1x128xf32>
    %267 = tpu.matmul %265, %257, %cst_147 {dimension_numbers = #tpu.dot_dimension_numbers<[1], [0], [0], [1], [0, 0, 1, 1], [], []>} : vector<1x16xf32>, vector<16x128xf32>, vector<1x128xf32> -> vector<1x128xf32>
    %c0_148 = arith.constant 0 : index
    %c0_149 = arith.constant 0 : index
    %268 = vector.load %arg17[%c0_148, %c0_149] : memref<2x128xf32, #tpu.memory_space<vmem>>, vector<2x128xf32>
    %269 = vector.extract_strided_slice %268 {offsets = [0, 0], sizes = [1, 128], strides = [1, 1]} : vector<2x128xf32> to vector<1x128xf32>
    %cst_150 = arith.constant 9.99999974E-6 : f32
    %270 = vector.broadcast %cst_150 : f32 to vector<1x128xf32>
    %271 = arith.addf %267, %270 : vector<1x128xf32>
    %272 = math.rsqrt %271 : vector<1x128xf32>
    %273 = arith.mulf %269, %272 : vector<1x128xf32>
    %274 = vector.extract_strided_slice %268 {offsets = [1, 0], sizes = [1, 128], strides = [1, 1]} : vector<2x128xf32> to vector<1x128xf32>
    %275 = arith.mulf %266, %273 : vector<1x128xf32>
    %276 = arith.subf %274, %275 : vector<1x128xf32>
    %c0_151 = arith.constant 0 : index
    %c0_152 = arith.constant 0 : index
    %277 = vector.load %arg18[%c0_151, %c0_152] : memref<4x7xf32, #tpu.memory_space<vmem>>, vector<4x7xf32>
    %c0_153 = arith.constant 0 : index
    %c0_154 = arith.constant 0 : index
    %278 = vector.load %arg19[%c0_153, %c0_154] : memref<112x64xf32, #tpu.memory_space<vmem>>, vector<112x64xf32>
    %279 = vector.broadcast %273 : vector<1x128xf32> to vector<8x128xf32>
    %280 = arith.mulf %222, %279 : vector<8x128xf32>
    %281 = vector.broadcast %276 : vector<1x128xf32> to vector<8x128xf32>
    %282 = arith.addf %280, %281 : vector<8x128xf32>
    %283 = vector.extract_strided_slice %282 {offsets = [0, 0], sizes = [7, 128], strides = [1, 1]} : vector<8x128xf32> to vector<7x128xf32>
    %284 = vector.extract_strided_slice %282 {offsets = [1, 0], sizes = [7, 128], strides = [1, 1]} : vector<8x128xf32> to vector<7x128xf32>
    %285 = arith.maximumf %283, %284 : vector<7x128xf32>
    %286 = vector.extract_strided_slice %285 {offsets = [0, 0], sizes = [7, 112], strides = [1, 1]} : vector<7x128xf32> to vector<7x112xf32>
    %287 = vector.extract_strided_slice %285 {offsets = [0, 16], sizes = [7, 112], strides = [1, 1]} : vector<7x128xf32> to vector<7x112xf32>
    %288 = arith.maximumf %286, %287 : vector<7x112xf32>
    %cst_155 = arith.constant 0.000000e+00 : f32
    %289 = vector.broadcast %cst_155 : f32 to vector<7x112xf32>
    %290 = arith.maximumf %288, %289 : vector<7x112xf32>
    %cst_156 = arith.constant dense<0.000000e+00> : vector<4x112xf32>
    %291 = tpu.matmul %277, %290, %cst_156 {dimension_numbers = #tpu.dot_dimension_numbers<[1], [0], [0], [1], [0, 0, 1, 1], [], []>} : vector<4x7xf32>, vector<7x112xf32>, vector<4x112xf32> -> vector<4x112xf32>
    %cst_157 = arith.constant dense<0.000000e+00> : vector<4x64xf32>
    %292 = tpu.matmul %291, %278, %cst_157 {dimension_numbers = #tpu.dot_dimension_numbers<[1], [0], [0], [1], [0, 0, 1, 1], [], []>} : vector<4x112xf32>, vector<112x64xf32>, vector<4x64xf32> -> vector<4x64xf32>
    %293 = vector.broadcast %273 : vector<1x128xf32> to vector<8x128xf32>
    %294 = arith.mulf %239, %293 : vector<8x128xf32>
    %295 = vector.broadcast %276 : vector<1x128xf32> to vector<8x128xf32>
    %296 = arith.addf %294, %295 : vector<8x128xf32>
    %297 = vector.extract_strided_slice %296 {offsets = [0, 0], sizes = [7, 128], strides = [1, 1]} : vector<8x128xf32> to vector<7x128xf32>
    %298 = vector.extract_strided_slice %296 {offsets = [1, 0], sizes = [7, 128], strides = [1, 1]} : vector<8x128xf32> to vector<7x128xf32>
    %299 = arith.maximumf %297, %298 : vector<7x128xf32>
    %300 = vector.extract_strided_slice %299 {offsets = [0, 0], sizes = [7, 112], strides = [1, 1]} : vector<7x128xf32> to vector<7x112xf32>
    %301 = vector.extract_strided_slice %299 {offsets = [0, 16], sizes = [7, 112], strides = [1, 1]} : vector<7x128xf32> to vector<7x112xf32>
    %302 = arith.maximumf %300, %301 : vector<7x112xf32>
    %cst_158 = arith.constant 0.000000e+00 : f32
    %303 = vector.broadcast %cst_158 : f32 to vector<7x112xf32>
    %304 = arith.maximumf %302, %303 : vector<7x112xf32>
    %cst_159 = arith.constant dense<0.000000e+00> : vector<4x112xf32>
    %305 = tpu.matmul %277, %304, %cst_159 {dimension_numbers = #tpu.dot_dimension_numbers<[1], [0], [0], [1], [0, 0, 1, 1], [], []>} : vector<4x7xf32>, vector<7x112xf32>, vector<4x112xf32> -> vector<4x112xf32>
    %cst_160 = arith.constant dense<0.000000e+00> : vector<4x64xf32>
    %306 = tpu.matmul %305, %278, %cst_160 {dimension_numbers = #tpu.dot_dimension_numbers<[1], [0], [0], [1], [0, 0, 1, 1], [], []>} : vector<4x112xf32>, vector<112x64xf32>, vector<4x64xf32> -> vector<4x64xf32>
    %307 = vector.extract_strided_slice %292 {offsets = [0, 0], sizes = [2, 64], strides = [1, 1]} : vector<4x64xf32> to vector<2x64xf32>
    %308 = arith.truncf %307 : vector<2x64xf32> to vector<2x64xbf16>
    %c0_161 = arith.constant 0 : index
    %c0_162 = arith.constant 0 : index
    %c0_163 = arith.constant 0 : index
    %309 = vector.load %arg20[%c0_161, %c0_162, %c0_163] : memref<3x64x48xbf16, #tpu.memory_space<vmem>>, vector<1x64x48xbf16>
    %310 = vector.shape_cast %309 : vector<1x64x48xbf16> to vector<64x48xbf16>
    %cst_164 = arith.constant dense<0.000000e+00> : vector<2x48xf32>
    %311 = tpu.matmul %308, %310, %cst_164 {dimension_numbers = #tpu.dot_dimension_numbers<[1], [0], [0], [1], [0, 0, 1, 1], [], []>} : vector<2x64xbf16>, vector<64x48xbf16>, vector<2x48xf32> -> vector<2x48xf32>
    %312 = vector.extract_strided_slice %292 {offsets = [1, 0], sizes = [2, 64], strides = [1, 1]} : vector<4x64xf32> to vector<2x64xf32>
    %313 = arith.truncf %312 : vector<2x64xf32> to vector<2x64xbf16>
    %c1_165 = arith.constant 1 : index
    %c0_166 = arith.constant 0 : index
    %c0_167 = arith.constant 0 : index
    %314 = vector.load %arg20[%c1_165, %c0_166, %c0_167] : memref<3x64x48xbf16, #tpu.memory_space<vmem>>, vector<1x64x48xbf16>
    %315 = vector.shape_cast %314 : vector<1x64x48xbf16> to vector<64x48xbf16>
    %cst_168 = arith.constant dense<0.000000e+00> : vector<2x48xf32>
    %316 = tpu.matmul %313, %315, %cst_168 {dimension_numbers = #tpu.dot_dimension_numbers<[1], [0], [0], [1], [0, 0, 1, 1], [], []>} : vector<2x64xbf16>, vector<64x48xbf16>, vector<2x48xf32> -> vector<2x48xf32>
    %317 = arith.addf %311, %316 : vector<2x48xf32>
    %318 = vector.extract_strided_slice %292 {offsets = [2, 0], sizes = [2, 64], strides = [1, 1]} : vector<4x64xf32> to vector<2x64xf32>
    %319 = arith.truncf %318 : vector<2x64xf32> to vector<2x64xbf16>
    %c2_169 = arith.constant 2 : index
    %c0_170 = arith.constant 0 : index
    %c0_171 = arith.constant 0 : index
    %320 = vector.load %arg20[%c2_169, %c0_170, %c0_171] : memref<3x64x48xbf16, #tpu.memory_space<vmem>>, vector<1x64x48xbf16>
    %321 = vector.shape_cast %320 : vector<1x64x48xbf16> to vector<64x48xbf16>
    %cst_172 = arith.constant dense<0.000000e+00> : vector<2x48xf32>
    %322 = tpu.matmul %319, %321, %cst_172 {dimension_numbers = #tpu.dot_dimension_numbers<[1], [0], [0], [1], [0, 0, 1, 1], [], []>} : vector<2x64xbf16>, vector<64x48xbf16>, vector<2x48xf32> -> vector<2x48xf32>
    %323 = arith.addf %317, %322 : vector<2x48xf32>
    %324 = vector.extract_strided_slice %306 {offsets = [0, 0], sizes = [2, 64], strides = [1, 1]} : vector<4x64xf32> to vector<2x64xf32>
    %325 = arith.truncf %324 : vector<2x64xf32> to vector<2x64xbf16>
    %c0_173 = arith.constant 0 : index
    %c0_174 = arith.constant 0 : index
    %c0_175 = arith.constant 0 : index
    %326 = vector.load %arg20[%c0_173, %c0_174, %c0_175] : memref<3x64x48xbf16, #tpu.memory_space<vmem>>, vector<1x64x48xbf16>
    %327 = vector.shape_cast %326 : vector<1x64x48xbf16> to vector<64x48xbf16>
    %cst_176 = arith.constant dense<0.000000e+00> : vector<2x48xf32>
    %328 = tpu.matmul %325, %327, %cst_176 {dimension_numbers = #tpu.dot_dimension_numbers<[1], [0], [0], [1], [0, 0, 1, 1], [], []>} : vector<2x64xbf16>, vector<64x48xbf16>, vector<2x48xf32> -> vector<2x48xf32>
    %329 = vector.extract_strided_slice %306 {offsets = [1, 0], sizes = [2, 64], strides = [1, 1]} : vector<4x64xf32> to vector<2x64xf32>
    %330 = arith.truncf %329 : vector<2x64xf32> to vector<2x64xbf16>
    %c1_177 = arith.constant 1 : index
    %c0_178 = arith.constant 0 : index
    %c0_179 = arith.constant 0 : index
    %331 = vector.load %arg20[%c1_177, %c0_178, %c0_179] : memref<3x64x48xbf16, #tpu.memory_space<vmem>>, vector<1x64x48xbf16>
    %332 = vector.shape_cast %331 : vector<1x64x48xbf16> to vector<64x48xbf16>
    %cst_180 = arith.constant dense<0.000000e+00> : vector<2x48xf32>
    %333 = tpu.matmul %330, %332, %cst_180 {dimension_numbers = #tpu.dot_dimension_numbers<[1], [0], [0], [1], [0, 0, 1, 1], [], []>} : vector<2x64xbf16>, vector<64x48xbf16>, vector<2x48xf32> -> vector<2x48xf32>
    %334 = arith.addf %328, %333 : vector<2x48xf32>
    %335 = vector.extract_strided_slice %306 {offsets = [2, 0], sizes = [2, 64], strides = [1, 1]} : vector<4x64xf32> to vector<2x64xf32>
    %336 = arith.truncf %335 : vector<2x64xf32> to vector<2x64xbf16>
    %c2_181 = arith.constant 2 : index
    %c0_182 = arith.constant 0 : index
    %c0_183 = arith.constant 0 : index
    %337 = vector.load %arg20[%c2_181, %c0_182, %c0_183] : memref<3x64x48xbf16, #tpu.memory_space<vmem>>, vector<1x64x48xbf16>
    %338 = vector.shape_cast %337 : vector<1x64x48xbf16> to vector<64x48xbf16>
    %cst_184 = arith.constant dense<0.000000e+00> : vector<2x48xf32>
    %339 = tpu.matmul %336, %338, %cst_184 {dimension_numbers = #tpu.dot_dimension_numbers<[1], [0], [0], [1], [0, 0, 1, 1], [], []>} : vector<2x64xbf16>, vector<64x48xbf16>, vector<2x48xf32> -> vector<2x48xf32>
    %340 = arith.addf %334, %339 : vector<2x48xf32>
    %cst_185 = arith.constant 0.000000e+00 : f32
    %341 = vector.broadcast %cst_185 : f32 to vector<1x48xf32>
    %cst_186 = arith.constant 0.000000e+00 : f32
    %342 = vector.broadcast %cst_186 : f32 to vector<1x48xf32>
    %cst_187 = arith.constant dense<0.000000e+00> : vector<48xf32>
    %343 = vector.multi_reduction <add>, %323, %cst_187 [0] : vector<2x48xf32> to vector<48xf32>
    %344 = vector.shape_cast %343 : vector<48xf32> to vector<1x48xf32>
    %345 = arith.addf %341, %344 : vector<1x48xf32>
    %346 = arith.mulf %323, %323 : vector<2x48xf32>
    %cst_188 = arith.constant dense<0.000000e+00> : vector<48xf32>
    %347 = vector.multi_reduction <add>, %346, %cst_188 [0] : vector<2x48xf32> to vector<48xf32>
    %348 = vector.shape_cast %347 : vector<48xf32> to vector<1x48xf32>
    %349 = arith.addf %342, %348 : vector<1x48xf32>
    %cst_189 = arith.constant dense<0.000000e+00> : vector<48xf32>
    %350 = vector.multi_reduction <add>, %340, %cst_189 [0] : vector<2x48xf32> to vector<48xf32>
    %351 = vector.shape_cast %350 : vector<48xf32> to vector<1x48xf32>
    %352 = arith.addf %345, %351 : vector<1x48xf32>
    %353 = arith.mulf %340, %340 : vector<2x48xf32>
    %cst_190 = arith.constant dense<0.000000e+00> : vector<48xf32>
    %354 = vector.multi_reduction <add>, %353, %cst_190 [0] : vector<2x48xf32> to vector<48xf32>
    %355 = vector.shape_cast %354 : vector<48xf32> to vector<1x48xf32>
    %356 = arith.addf %349, %355 : vector<1x48xf32>
    %c0_191 = arith.constant 0 : index
    %c0_192 = arith.constant 0 : index
    %357 = vector.load %arg21[%c0_191, %c0_192] : memref<48x24xf32, #tpu.memory_space<vmem>>, vector<48x24xf32>
    %c0_193 = arith.constant 0 : index
    %c0_194 = arith.constant 0 : index
    %358 = vector.load %arg22[%c0_193, %c0_194] : memref<24x48xf32, #tpu.memory_space<vmem>>, vector<24x48xf32>
    %cst_195 = arith.constant dense<0.000000e+00> : vector<1x24xf32>
    %359 = tpu.matmul %352, %357, %cst_195 {dimension_numbers = #tpu.dot_dimension_numbers<[1], [0], [0], [1], [0, 0, 1, 1], [], []>} : vector<1x48xf32>, vector<48x24xf32>, vector<1x24xf32> -> vector<1x24xf32>
    %cst_196 = arith.constant 1.250000e-01 : f32
    %360 = vector.broadcast %cst_196 : f32 to vector<1x24xf32>
    %361 = arith.mulf %359, %360 : vector<1x24xf32>
    %cst_197 = arith.constant dense<0.000000e+00> : vector<1x24xf32>
    %362 = tpu.matmul %356, %357, %cst_197 {dimension_numbers = #tpu.dot_dimension_numbers<[1], [0], [0], [1], [0, 0, 1, 1], [], []>} : vector<1x48xf32>, vector<48x24xf32>, vector<1x24xf32> -> vector<1x24xf32>
    %cst_198 = arith.constant 1.250000e-01 : f32
    %363 = vector.broadcast %cst_198 : f32 to vector<1x24xf32>
    %364 = arith.mulf %362, %363 : vector<1x24xf32>
    %365 = arith.mulf %361, %361 : vector<1x24xf32>
    %366 = arith.subf %364, %365 : vector<1x24xf32>
    %cst_199 = arith.constant dense<0.000000e+00> : vector<1x48xf32>
    %367 = tpu.matmul %361, %358, %cst_199 {dimension_numbers = #tpu.dot_dimension_numbers<[1], [0], [0], [1], [0, 0, 1, 1], [], []>} : vector<1x24xf32>, vector<24x48xf32>, vector<1x48xf32> -> vector<1x48xf32>
    %cst_200 = arith.constant dense<0.000000e+00> : vector<1x48xf32>
    %368 = tpu.matmul %366, %358, %cst_200 {dimension_numbers = #tpu.dot_dimension_numbers<[1], [0], [0], [1], [0, 0, 1, 1], [], []>} : vector<1x24xf32>, vector<24x48xf32>, vector<1x48xf32> -> vector<1x48xf32>
    %c0_201 = arith.constant 0 : index
    %c0_202 = arith.constant 0 : index
    %369 = vector.load %arg23[%c0_201, %c0_202] : memref<2x48xf32, #tpu.memory_space<vmem>>, vector<2x48xf32>
    %370 = vector.extract_strided_slice %369 {offsets = [0, 0], sizes = [1, 48], strides = [1, 1]} : vector<2x48xf32> to vector<1x48xf32>
    %cst_203 = arith.constant 9.99999974E-6 : f32
    %371 = vector.broadcast %cst_203 : f32 to vector<1x48xf32>
    %372 = arith.addf %368, %371 : vector<1x48xf32>
    %373 = math.rsqrt %372 : vector<1x48xf32>
    %374 = arith.mulf %370, %373 : vector<1x48xf32>
    %375 = vector.extract_strided_slice %369 {offsets = [1, 0], sizes = [1, 48], strides = [1, 1]} : vector<2x48xf32> to vector<1x48xf32>
    %376 = arith.mulf %367, %374 : vector<1x48xf32>
    %377 = arith.subf %375, %376 : vector<1x48xf32>
    %378 = vector.broadcast %374 : vector<1x48xf32> to vector<2x48xf32>
    %379 = arith.mulf %323, %378 : vector<2x48xf32>
    %380 = vector.broadcast %377 : vector<1x48xf32> to vector<2x48xf32>
    %381 = arith.addf %379, %380 : vector<2x48xf32>
    %382 = vector.extract_strided_slice %381 {offsets = [0, 0], sizes = [1, 48], strides = [1, 1]} : vector<2x48xf32> to vector<1x48xf32>
    %383 = vector.extract_strided_slice %381 {offsets = [1, 0], sizes = [1, 48], strides = [1, 1]} : vector<2x48xf32> to vector<1x48xf32>
    %384 = arith.maximumf %382, %383 : vector<1x48xf32>
    %385 = vector.extract_strided_slice %384 {offsets = [0, 0], sizes = [1, 24], strides = [1, 1]} : vector<1x48xf32> to vector<1x24xf32>
    %386 = vector.extract_strided_slice %384 {offsets = [0, 24], sizes = [1, 24], strides = [1, 1]} : vector<1x48xf32> to vector<1x24xf32>
    %387 = arith.maximumf %385, %386 : vector<1x24xf32>
    %cst_204 = arith.constant 0.000000e+00 : f32
    %388 = vector.broadcast %cst_204 : f32 to vector<1x24xf32>
    %389 = arith.maximumf %387, %388 : vector<1x24xf32>
    %390 = vector.broadcast %374 : vector<1x48xf32> to vector<2x48xf32>
    %391 = arith.mulf %340, %390 : vector<2x48xf32>
    %392 = vector.broadcast %377 : vector<1x48xf32> to vector<2x48xf32>
    %393 = arith.addf %391, %392 : vector<2x48xf32>
    %394 = vector.extract_strided_slice %393 {offsets = [0, 0], sizes = [1, 48], strides = [1, 1]} : vector<2x48xf32> to vector<1x48xf32>
    %395 = vector.extract_strided_slice %393 {offsets = [1, 0], sizes = [1, 48], strides = [1, 1]} : vector<2x48xf32> to vector<1x48xf32>
    %396 = arith.maximumf %394, %395 : vector<1x48xf32>
    %397 = vector.extract_strided_slice %396 {offsets = [0, 0], sizes = [1, 24], strides = [1, 1]} : vector<1x48xf32> to vector<1x24xf32>
    %398 = vector.extract_strided_slice %396 {offsets = [0, 24], sizes = [1, 24], strides = [1, 1]} : vector<1x48xf32> to vector<1x24xf32>
    %399 = arith.maximumf %397, %398 : vector<1x24xf32>
    %cst_205 = arith.constant 0.000000e+00 : f32
    %400 = vector.broadcast %cst_205 : f32 to vector<1x24xf32>
    %401 = arith.maximumf %399, %400 : vector<1x24xf32>
    %c0_206 = arith.constant 0 : index
    %c0_207 = arith.constant 0 : index
    %c0_208 = arith.constant 0 : index
    %402 = vector.load %arg26[%c0_206, %c0_207, %c0_208] : memref<2x1x24xf32, #tpu.memory_space<vmem>>, vector<1x1x24xf32>
    %403 = vector.shape_cast %402 : vector<1x1x24xf32> to vector<1x24xf32>
    %404 = vector.shape_cast %389 : vector<1x24xf32> to vector<1x1x24xf32>
    tpu.vector_store %arg26[%c0_206, %c0_207, %c0_208], %404 {strides = array<i32>} : memref<2x1x24xf32, #tpu.memory_space<vmem>>, vector<1x1x24xf32>,
    %c1_209 = arith.constant 1 : index
    %c0_210 = arith.constant 0 : index
    %c0_211 = arith.constant 0 : index
    %405 = vector.load %arg26[%c1_209, %c0_210, %c0_211] : memref<2x1x24xf32, #tpu.memory_space<vmem>>, vector<1x1x24xf32>
    %406 = vector.shape_cast %405 : vector<1x1x24xf32> to vector<1x24xf32>
    %407 = vector.shape_cast %401 : vector<1x24xf32> to vector<1x1x24xf32>
    tpu.vector_store %arg26[%c1_209, %c0_210, %c0_211], %407 {strides = array<i32>} : memref<2x1x24xf32, #tpu.memory_space<vmem>>, vector<1x1x24xf32>,
    return
  }
  func.func @transform_0(%arg0: i32) -> (i32, i32, i32) {
    %c0_i32 = arith.constant 0 : i32
    %c0_i32_0 = arith.constant 0 : i32
    %c0_i32_1 = arith.constant 0 : i32
    %c0_i32_2 = arith.constant 0 : i32
    return %c0_i32, %c0_i32_0, %c0_i32_1 : i32, i32, i32
  }
  func.func @transform_1(%arg0: i32) -> (i32, i32, i32) {
    %c0_i32 = arith.constant 0 : i32
    %c0_i32_0 = arith.constant 0 : i32
    %c0_i32_1 = arith.constant 0 : i32
    %c0_i32_2 = arith.constant 0 : i32
    return %c0_i32, %c0_i32_0, %c0_i32_1 : i32, i32, i32
  }
  func.func @transform_2(%arg0: i32) -> (i32, i32) {
    %c0_i32 = arith.constant 0 : i32
    %c0_i32_0 = arith.constant 0 : i32
    %c0_i32_1 = arith.constant 0 : i32
    return %c0_i32, %c0_i32_0 : i32, i32
  }
  func.func @transform_3(%arg0: i32) -> (i32, i32) {
    %c0_i32 = arith.constant 0 : i32
    %c0_i32_0 = arith.constant 0 : i32
    %c0_i32_1 = arith.constant 0 : i32
    return %c0_i32, %c0_i32_0 : i32, i32
  }
  func.func @transform_4(%arg0: i32) -> (i32, i32) {
    %c0_i32 = arith.constant 0 : i32
    %c0_i32_0 = arith.constant 0 : i32
    %c0_i32_1 = arith.constant 0 : i32
    return %c0_i32, %c0_i32_0 : i32, i32
  }
  func.func @transform_5(%arg0: i32) -> (i32, i32) {
    %c0_i32 = arith.constant 0 : i32
    %c0_i32_0 = arith.constant 0 : i32
    %c0_i32_1 = arith.constant 0 : i32
    return %c0_i32, %c0_i32_0 : i32, i32
  }
  func.func @transform_6(%arg0: i32) -> (i32, i32) {
    %c0_i32 = arith.constant 0 : i32
    %c0_i32_0 = arith.constant 0 : i32
    %c0_i32_1 = arith.constant 0 : i32
    return %c0_i32, %c0_i32_0 : i32, i32
  }
  func.func @transform_7(%arg0: i32) -> (i32, i32, i32) {
    %c0_i32 = arith.constant 0 : i32
    %c0_i32_0 = arith.constant 0 : i32
    %c0_i32_1 = arith.constant 0 : i32
    %c0_i32_2 = arith.constant 0 : i32
    return %c0_i32, %c0_i32_0, %c0_i32_1 : i32, i32, i32
  }
  func.func @transform_8(%arg0: i32) -> (i32, i32) {
    %c0_i32 = arith.constant 0 : i32
    %c0_i32_0 = arith.constant 0 : i32
    %c0_i32_1 = arith.constant 0 : i32
    return %c0_i32, %c0_i32_0 : i32, i32
  }
  func.func @transform_9(%arg0: i32) -> (i32, i32) {
    %c0_i32 = arith.constant 0 : i32
    %c0_i32_0 = arith.constant 0 : i32
    %c0_i32_1 = arith.constant 0 : i32
    return %c0_i32, %c0_i32_0 : i32, i32
  }
  func.func @transform_10(%arg0: i32) -> (i32, i32) {
    %c0_i32 = arith.constant 0 : i32
    %c0_i32_0 = arith.constant 0 : i32
    %c0_i32_1 = arith.constant 0 : i32
    return %c0_i32, %c0_i32_0 : i32, i32
  }
  func.func @transform_11(%arg0: i32) -> (i32, i32) {
    %c0_i32 = arith.constant 0 : i32
    %c0_i32_0 = arith.constant 0 : i32
    %c0_i32_1 = arith.constant 0 : i32
    return %c0_i32, %c0_i32_0 : i32, i32
  }
  func.func @transform_12(%arg0: i32) -> (i32, i32) {
    %c0_i32 = arith.constant 0 : i32
    %c0_i32_0 = arith.constant 0 : i32
    %c0_i32_1 = arith.constant 0 : i32
    return %c0_i32, %c0_i32_0 : i32, i32
  }
  func.func @transform_13(%arg0: i32) -> (i32, i32, i32) {
    %c0_i32 = arith.constant 0 : i32
    %c0_i32_0 = arith.constant 0 : i32
    %c0_i32_1 = arith.constant 0 : i32
    %c0_i32_2 = arith.constant 0 : i32
    return %c0_i32, %c0_i32_0, %c0_i32_1 : i32, i32, i32
  }
  func.func @transform_14(%arg0: i32) -> (i32, i32) {
    %c0_i32 = arith.constant 0 : i32
    %c0_i32_0 = arith.constant 0 : i32
    %c0_i32_1 = arith.constant 0 : i32
    return %c0_i32, %c0_i32_0 : i32, i32
  }
  func.func @transform_15(%arg0: i32) -> (i32, i32) {
    %c0_i32 = arith.constant 0 : i32
    %c0_i32_0 = arith.constant 0 : i32
    %c0_i32_1 = arith.constant 0 : i32
    return %c0_i32, %c0_i32_0 : i32, i32
  }
  func.func @transform_16(%arg0: i32) -> (i32, i32) {
    %c0_i32 = arith.constant 0 : i32
    %c0_i32_0 = arith.constant 0 : i32
    %c0_i32_1 = arith.constant 0 : i32
    return %c0_i32, %c0_i32_0 : i32, i32
  }
  func.func @transform_17(%arg0: i32) -> (i32, i32) {
    %c0_i32 = arith.constant 0 : i32
    %c0_i32_0 = arith.constant 0 : i32
    %c0_i32_1 = arith.constant 0 : i32
    return %c0_i32, %c0_i32_0 : i32, i32
  }
  func.func @transform_18(%arg0: i32) -> (i32, i32) {
    %c0_i32 = arith.constant 0 : i32
    %c0_i32_0 = arith.constant 0 : i32
    %c0_i32_1 = arith.constant 0 : i32
    return %c0_i32, %c0_i32_0 : i32, i32
  }
  func.func @transform_19(%arg0: i32) -> (i32, i32, i32) {
    %c0_i32 = arith.constant 0 : i32
    %c0_i32_0 = arith.constant 0 : i32
    %c0_i32_1 = arith.constant 0 : i32
    %c0_i32_2 = arith.constant 0 : i32
    return %c0_i32, %c0_i32_0, %c0_i32_1 : i32, i32, i32
  }
  func.func @transform_20(%arg0: i32) -> (i32, i32) {
    %c0_i32 = arith.constant 0 : i32
    %c0_i32_0 = arith.constant 0 : i32
    %c0_i32_1 = arith.constant 0 : i32
    return %c0_i32, %c0_i32_0 : i32, i32
  }
  func.func @transform_21(%arg0: i32) -> (i32, i32) {
    %c0_i32 = arith.constant 0 : i32
    %c0_i32_0 = arith.constant 0 : i32
    %c0_i32_1 = arith.constant 0 : i32
    return %c0_i32, %c0_i32_0 : i32, i32
  }
  func.func @transform_22(%arg0: i32) -> (i32, i32) {
    %c0_i32 = arith.constant 0 : i32
    %c0_i32_0 = arith.constant 0 : i32
    %c0_i32_1 = arith.constant 0 : i32
    return %c0_i32, %c0_i32_0 : i32, i32
  }
  func.func @transform_23(%arg0: i32) -> (i32, i32) {
    %c0_i32 = arith.constant 0 : i32
    %c0_i32_0 = arith.constant 0 : i32
    %c0_i32_1 = arith.constant 0 : i32
    return %c0_i32, %c0_i32_0 : i32, i32
  }
  func.func @transform_24(%arg0: i32) -> (i32, i32) {
    %c0_i32 = arith.constant 0 : i32
    %c0_i32_0 = arith.constant 0 : i32
    %c0_i32_1 = arith.constant 0 : i32
    return %c0_i32, %c0_i32_0 : i32, i32
  }
  func.func @transform_25(%arg0: i32) -> (i32, i32, i32) {
    %c0_i32 = arith.constant 0 : i32
    %c0_i32_0 = arith.constant 0 : i32
    %c0_i32_1 = arith.constant 0 : i32
    %c0_i32_2 = arith.constant 0 : i32
    return %c0_i32, %c0_i32_0, %c0_i32_1 : i32, i32, i32
  }
}

</mosaic_0001>

<llo_original>
// kernel: tpu_custom_call.1
$region0: #{tpu_custom_call.1}
  #allocation0 [shape = 'u32[]', space=smem, size = 0x4, offset = 0x4, fixed_abs, tag = 'smem constant byte address 0x4 - core index']
  #allocation1 [shape = 'u32[144,128]{1,0:T(1,128)}', space=vmem, size = 0x12000, scoped, tag = 'internal scratch']
  #allocation2 [shape = 'f32[1,1]{1,0:T(1,128)S(1)}', space=vmem, size = 0x200, scoped, tag = 'scoped memory for tpu_custom_call.1']
  %s0 = inlined_call_operand.vmem [shape: f32[2,48,144], index: 0, kind: input, shape index: {}]
  %s1 = inlined_call_operand.vmem [shape: bf16[3,144,276], index: 1, kind: input, shape index: {}]
  %s2 = inlined_call_operand.vmem [shape: f32[276,6], index: 2, kind: input, shape index: {}]
  %s3 = inlined_call_operand.hbm [shape: f32[6,276], index: 3, kind: input, shape index: {}]
  %s4 = inlined_call_operand.hbm [shape: f32[2,276], index: 4, kind: input, shape index: {}]
  %s5 = inlined_call_operand.hbm [shape: f32[23,45], index: 5, kind: input, shape index: {}]
  %s6 = inlined_call_operand.vmem [shape: f32[270,138], index: 6, kind: input, shape index: {}]
  %s7 = inlined_call_operand.vmem [shape: bf16[3,138,252], index: 7, kind: input, shape index: {}]
  %s8 = inlined_call_operand.vmem [shape: f32[252,12], index: 8, kind: input, shape index: {}]
  %s9 = inlined_call_operand.hbm [shape: f32[12,252], index: 9, kind: input, shape index: {}]
  %s10 = inlined_call_operand.hbm [shape: f32[2,252], index: 10, kind: input, shape index: {}]
  %s11 = inlined_call_operand.hbm [shape: f32[10,20], index: 11, kind: input, shape index: {}]
  %s12 = inlined_call_operand.vmem [shape: f32[240,120], index: 12, kind: input, shape index: {}]
  %s13 = inlined_call_operand.vmem [shape: bf16[3,120,128], index: 13, kind: input, shape index: {}]
  %s14 = inlined_call_operand.vmem [shape: f32[128,16], index: 14, kind: input, shape index: {}]
  %s15 = inlined_call_operand.hbm [shape: f32[16,128], index: 15, kind: input, shape index: {}]
  %s16 = inlined_call_operand.vmem [shape: f32[2,128], index: 16, kind: input, shape index: {}]
  %s17 = inlined_call_operand.hbm [shape: f32[4,7], index: 17, kind: input, shape index: {}]
  %s18 = inlined_call_operand.vmem [shape: f32[112,64], index: 18, kind: input, shape index: {}]
  %s19 = inlined_call_operand.vmem [shape: bf16[3,64,48], index: 19, kind: input, shape index: {}]
  %s20 = inlined_call_operand.vmem [shape: f32[48,24], index: 20, kind: input, shape index: {}]
  %s21 = inlined_call_operand.hbm [shape: f32[24,48], index: 21, kind: input, shape index: {}]
  %s22 = inlined_call_operand.hbm [shape: f32[2,48], index: 22, kind: input, shape index: {}]
  %s23 = inlined_call_operand.<no memory space> [shape: f32[1,1], index: 23, kind: input, shape index: {}]
  %s24 = inlined_call_operand.hbm [shape: f32[24,24], index: 24, kind: input, shape index: {}]
  %s25 = inlined_call_operand.hbm [shape: f32[2,1,24], index: 25, kind: output, shape index: {}]
  %s26 = sld [smem:[#allocation0]]
  $region154: #{tpu_custom_call.1} parent=0
    _
  %s28 = ssub.s32 1, %s26
  %s29 = scalar_select 0, %s28, %s26
  %v30 = vstv %s23
  %31 = vst [vmem:[#allocation2] sm:$0x1] %v30
  $region1: #{tpu_custom_call.1} parent=0
    #allocation3 [shape = 'u8[12288]{0}', space=vmem, size = 0x3000, scoped, tag = 'input window, operand 3, single buffered']
    #allocation4 [shape = 's32[1]{0}', space=sflag, size = 0x4, scoped, tag = 'scoped memory for tpu_custom_call.1']
    #allocation5 [shape = 's32[1]{0}', space=sflag, size = 0x4, scoped, tag = 'scoped memory for tpu_custom_call.1']
    #allocation6 [shape = 'u8[3072]{0}', space=vmem, size = 0xc00, scoped, tag = 'input window, operand 4, single buffered']
    #allocation7 [shape = 's32[1]{0}', space=sflag, size = 0x4, scoped, tag = 'scoped memory for tpu_custom_call.1']
    #allocation8 [shape = 'u8[12288]{0}', space=vmem, size = 0x3000, scoped, tag = 'input window, operand 5, single buffered']
    #allocation9 [shape = 'u8[16384]{0}', space=vmem, size = 0x4000, scoped, tag = 'input window, operand 9, single buffered']
    #allocation10 [shape = 's32[1]{0}', space=sflag, size = 0x4, scoped, tag = 'scoped memory for tpu_custom_call.1']
    #allocation11 [shape = 'u8[2048]{0}', space=vmem, size = 0x800, scoped, tag = 'input window, operand 10, single buffered']
    #allocation12 [shape = 'u8[8192]{0}', space=vmem, size = 0x2000, scoped, tag = 'input window, operand 11, single buffered']
    #allocation13 [shape = 's32[1]{0}', space=sflag, size = 0x4, scoped, tag = 'scoped memory for tpu_custom_call.1']
    #allocation14 [shape = 'u8[8192]{0}', space=vmem, size = 0x2000, scoped, tag = 'input window, operand 15, single buffered']
    #allocation15 [shape = 'u8[2048]{0}', space=vmem, size = 0x800, scoped, tag = 'input window, operand 17, single buffered']
    #allocation16 [shape = 's32[1]{0}', space=sflag, size = 0x4, scoped, tag = 'scoped memory for tpu_custom_call.1']
    #allocation17 [shape = 'u8[12288]{0}', space=vmem, size = 0x3000, scoped, tag = 'input window, operand 21, single buffered']
    #allocation18 [shape = 'u8[1024]{0}', space=vmem, size = 0x400, scoped, tag = 'input window, operand 22, single buffered']
    #allocation19 [shape = 's32[1]{0}', space=sflag, size = 0x4, scoped, tag = 'scoped memory for tpu_custom_call.1']
    #allocation20 [shape = 'u8[12288]{0}', space=vmem, size = 0x3000, scoped, tag = 'input window, operand 24, single buffered']
    #allocation21 [shape = 'u8[1024]{0}', space=vmem, size = 0x400, scoped, tag = 'output window, operand 0, single buffered']
    %32 = vsyncpa [#allocation4], 0
    %33 = vsyncpa [#allocation7], 0
    %34 = vsyncpa [#allocation10], 0
    %35 = vsyncpa [#allocation13], 0
    %36 = vsyncpa [#allocation16], 0
    %37 = vsyncpa [#allocation19], 0
    %38 = vsyncpa [#allocation5], 0
    // Predicated region
    $region2: #{tpu_custom_call.1} parent=1 // pred_check
      _
    $region3: #{tpu_custom_call.1} parent=1 // pred_check_branch
      %40 = sbr.rel (0) target = $region5
    $region4: #{tpu_custom_call.1} parent=1 // pred_region
      _
    $region5: #{tpu_custom_call.1} parent=1 // pred_fallthru
      _
    // Predicated region
    $region6: #{tpu_custom_call.1} parent=1 // pred_check
      _
    $region7: #{tpu_custom_call.1} parent=1 // pred_check_branch
      %42 = sbr.rel (0) target = $region9
    $region8: #{tpu_custom_call.1} parent=1 // pred_region
      _
    $region9: #{tpu_custom_call.1} parent=1 // pred_fallthru
      _
    // Predicated region
    $region10: #{tpu_custom_call.1} parent=1 // pred_check
      _
    $region11: #{tpu_custom_call.1} parent=1 // pred_check_branch
      %44 = sbr.rel (0) target = $region13
    $region12: #{tpu_custom_call.1} parent=1 // pred_region
      _
    $region13: #{tpu_custom_call.1} parent=1 // pred_fallthru
      _
    // Predicated region
    $region14: #{tpu_custom_call.1} parent=1 // pred_check
      _
    $region15: #{tpu_custom_call.1} parent=1 // pred_check_branch
      %46 = sbr.rel (0) target = $region17
    $region16: #{tpu_custom_call.1} parent=1 // pred_region
      %s48 = ssub.s32 384, 384
      %49 = vsyncadd [#allocation4], %s48
      %s51 = sshll.u32 [#allocation3], 4
      %s52 = int_to_ptr.vmem [resolvable:$true] %s51
      %54 = dma.hbm_to_vmem [thread:$0]  %s3, 384, %s52, [#allocation4]
    $region17: #{tpu_custom_call.1} parent=1 // pred_fallthru
      _
    // Predicated region
    $region18: #{tpu_custom_call.1} parent=1 // pred_check
      _
    $region19: #{tpu_custom_call.1} parent=1 // pred_check_branch
      %56 = sbr.rel (0) target = $region21
    $region20: #{tpu_custom_call.1} parent=1 // pred_region
      %s58 = ssub.s32 96, 96
      %59 = vsyncadd [#allocation7], %s58
      %s61 = sshll.u32 [#allocation6], 4
      %s62 = int_to_ptr.vmem [resolvable:$true] %s61
      %64 = dma.hbm_to_vmem [thread:$0]  %s4, 96, %s62, [#allocation7]
    $region21: #{tpu_custom_call.1} parent=1 // pred_fallthru
      _
    // Predicated region
    $region22: #{tpu_custom_call.1} parent=1 // pred_check
      _
    $region23: #{tpu_custom_call.1} parent=1 // pred_check_branch
      %66 = sbr.rel (0) target = $region25
    $region24: #{tpu_custom_call.1} parent=1 // pred_region
      %s68 = ssub.s32 384, 384
      %69 = vsyncadd [#allocation7], %s68
      %s70 = sshll.u32 [#allocation8], 4
      %s71 = int_to_ptr.vmem [resolvable:$true] %s70
      %76 = dma.hbm_to_vmem [thread:$0]  %s5, 384, %s71, [#allocation7], 128, 128, 8
    $region25: #{tpu_custom_call.1} parent=1 // pred_fallthru
      _
    // Predicated region
    $region26: #{tpu_custom_call.1} parent=1 // pred_check
      _
    $region27: #{tpu_custom_call.1} parent=1 // pred_check_branch
      %78 = sbr.rel (0) target = $region29
    $region28: #{tpu_custom_call.1} parent=1 // pred_region
      _
    $region29: #{tpu_custom_call.1} parent=1 // pred_fallthru
      _
    // Predicated region
    $region30: #{tpu_custom_call.1} parent=1 // pred_check
      _
    $region31: #{tpu_custom_call.1} parent=1 // pred_check_branch
      %80 = sbr.rel (0) target = $region33
    $region32: #{tpu_custom_call.1} parent=1 // pred_region
      _
    $region33: #{tpu_custom_call.1} parent=1 // pred_fallthru
      _
    // Predicated region
    $region34: #{tpu_custom_call.1} parent=1 // pred_check
      _
    $region35: #{tpu_custom_call.1} parent=1 // pred_check_branch
      %82 = sbr.rel (0) target = $region37
    $region36: #{tpu_custom_call.1} parent=1 // pred_region
      _
    $region37: #{tpu_custom_call.1} parent=1 // pred_fallthru
      _
    // Predicated region
    $region38: #{tpu_custom_call.1} parent=1 // pred_check
      _
    $region39: #{tpu_custom_call.1} parent=1 // pred_check_branch
      %84 = sbr.rel (0) target = $region41
    $region40: #{tpu_custom_call.1} parent=1 // pred_region
      %s86 = ssub.s32 512, 512
      %87 = vsyncadd [#allocation10], %s86
      %s88 = sshll.u32 [#allocation9], 4
      %s89 = int_to_ptr.vmem [resolvable:$true] %s88
      %94 = dma.hbm_to_vmem [thread:$0]  %s9, 512, %s89, [#allocation10], 256, 256, 16
    $region41: #{tpu_custom_call.1} parent=1 // pred_fallthru
      _
    // Predicated region
    $region42: #{tpu_custom_call.1} parent=1 // pred_check
      _
    $region43: #{tpu_custom_call.1} parent=1 // pred_check_branch
      %96 = sbr.rel (0) target = $region45
    $region44: #{tpu_custom_call.1} parent=1 // pred_region
      %s98 = ssub.s32 64, 64
      %99 = vsyncadd [#allocation10], %s98
      %s101 = sshll.u32 [#allocation11], 4
      %s102 = int_to_ptr.vmem [resolvable:$true] %s101
      %104 = dma.hbm_to_vmem [thread:$0]  %s10, 64, %s102, [#allocation10]
    $region45: #{tpu_custom_call.1} parent=1 // pred_fallthru
      _
    // Predicated region
    $region46: #{tpu_custom_call.1} parent=1 // pred_check
      _
    $region47: #{tpu_custom_call.1} parent=1 // pred_check_branch
      %106 = sbr.rel (0) target = $region49
    $region48: #{tpu_custom_call.1} parent=1 // pred_region
      %s108 = ssub.s32 256, 256
      %109 = vsyncadd [#allocation13], %s108
      %s110 = sshll.u32 [#allocation12], 4
      %s111 = int_to_ptr.vmem [resolvable:$true] %s110
      %116 = dma.hbm_to_vmem [thread:$0]  %s11, 256, %s111, [#allocation13], 128, 128, 8
    $region49: #{tpu_custom_call.1} parent=1 // pred_fallthru
      _
    // Predicated region
    $region50: #{tpu_custom_call.1} parent=1 // pred_check
      _
    $region51: #{tpu_custom_call.1} parent=1 // pred_check_branch
      %118 = sbr.rel (0) target = $region53
    $region52: #{tpu_custom_call.1} parent=1 // pred_region
      _
    $region53: #{tpu_custom_call.1} parent=1 // pred_fallthru
      _
    // Predicated region
    $region54: #{tpu_custom_call.1} parent=1 // pred_check
      _
    $region55: #{tpu_custom_call.1} parent=1 // pred_check_branch
      %120 = sbr.rel (0) target = $region57
    $region56: #{tpu_custom_call.1} parent=1 // pred_region
      _
    $region57: #{tpu_custom_call.1} parent=1 // pred_fallthru
      _
    // Predicated region
    $region58: #{tpu_custom_call.1} parent=1 // pred_check
      _
    $region59: #{tpu_custom_call.1} parent=1 // pred_check_branch
      %122 = sbr.rel (0) target = $region61
    $region60: #{tpu_custom_call.1} parent=1 // pred_region
      _
    $region61: #{tpu_custom_call.1} parent=1 // pred_fallthru
      _
    // Predicated region
    $region62: #{tpu_custom_call.1} parent=1 // pred_check
      _
    $region63: #{tpu_custom_call.1} parent=1 // pred_check_branch
      %124 = sbr.rel (0) target = $region65
    $region64: #{tpu_custom_call.1} parent=1 // pred_region
      %s126 = ssub.s32 256, 256
      %127 = vsyncadd [#allocation13], %s126
      %s128 = sshll.u32 [#allocation14], 4
      %s129 = int_to_ptr.vmem [resolvable:$true] %s128
      %134 = dma.hbm_to_vmem [thread:$0]  %s15, 256, %s129, [#allocation13], 128, 128, 8
    $region65: #{tpu_custom_call.1} parent=1 // pred_fallthru
      _
    // Predicated region
    $region66: #{tpu_custom_call.1} parent=1 // pred_check
      _
    $region67: #{tpu_custom_call.1} parent=1 // pred_check_branch
      %136 = sbr.rel (0) target = $region69
    $region68: #{tpu_custom_call.1} parent=1 // pred_region
      _
    $region69: #{tpu_custom_call.1} parent=1 // pred_fallthru
      _
    // Predicated region
    $region70: #{tpu_custom_call.1} parent=1 // pred_check
      _
    $region71: #{tpu_custom_call.1} parent=1 // pred_check_branch
      %138 = sbr.rel (0) target = $region73
    $region72: #{tpu_custom_call.1} parent=1 // pred_region
      %s140 = ssub.s32 64, 64
      %141 = vsyncadd [#allocation16], %s140
      %s143 = sshll.u32 [#allocation15], 4
      %s144 = int_to_ptr.vmem [resolvable:$true] %s143
      %146 = dma.hbm_to_vmem [thread:$0]  %s17, 64, %s144, [#allocation16]
    $region73: #{tpu_custom_call.1} parent=1 // pred_fallthru
      _
    // Predicated region
    $region74: #{tpu_custom_call.1} parent=1 // pred_check
      _
    $region75: #{tpu_custom_call.1} parent=1 // pred_check_branch
      %148 = sbr.rel (0) target = $region77
    $region76: #{tpu_custom_call.1} parent=1 // pred_region
      _
    $region77: #{tpu_custom_call.1} parent=1 // pred_fallthru
      _
    // Predicated region
    $region78: #{tpu_custom_call.1} parent=1 // pred_check
      _
    $region79: #{tpu_custom_call.1} parent=1 // pred_check_branch
      %150 = sbr.rel (0) target = $region81
    $region80: #{tpu_custom_call.1} parent=1 // pred_region
      _
    $region81: #{tpu_custom_call.1} parent=1 // pred_fallthru
      _
    // Predicated region
    $region82: #{tpu_custom_call.1} parent=1 // pred_check
      _
    $region83: #{tpu_custom_call.1} parent=1 // pred_check_branch
      %152 = sbr.rel (0) target = $region85
    $region84: #{tpu_custom_call.1} parent=1 // pred_region
      _
    $region85: #{tpu_custom_call.1} parent=1 // pred_fallthru
      _
    // Predicated region
    $region86: #{tpu_custom_call.1} parent=1 // pred_check
      _
    $region87: #{tpu_custom_call.1} parent=1 // pred_check_branch
      %154 = sbr.rel (0) target = $region89
    $region88: #{tpu_custom_call.1} parent=1 // pred_region
      %s156 = ssub.s32 384, 384
      %157 = vsyncadd [#allocation16], %s156
      %s158 = sshll.u32 [#allocation17], 4
      %s159 = int_to_ptr.vmem [resolvable:$true] %s158
      %164 = dma.hbm_to_vmem [thread:$0]  %s21, 384, %s159, [#allocation16], 128, 128, 8
    $region89: #{tpu_custom_call.1} parent=1 // pred_fallthru
      _
    // Predicated region
    $region90: #{tpu_custom_call.1} parent=1 // pred_check
      _
    $region91: #{tpu_custom_call.1} parent=1 // pred_check_branch
      %166 = sbr.rel (0) target = $region93
    $region92: #{tpu_custom_call.1} parent=1 // pred_region
      %s168 = ssub.s32 32, 32
      %169 = vsyncadd [#allocation19], %s168
      %s171 = sshll.u32 [#allocation18], 4
      %s172 = int_to_ptr.vmem [resolvable:$true] %s171
      %174 = dma.hbm_to_vmem [thread:$0]  %s22, 32, %s172, [#allocation19]
    $region93: #{tpu_custom_call.1} parent=1 // pred_fallthru
      _
    // Predicated region
    $region94: #{tpu_custom_call.1} parent=1 // pred_check
      _
    $region95: #{tpu_custom_call.1} parent=1 // pred_check_branch
      %176 = sbr.rel (0) target = $region97
    $region96: #{tpu_custom_call.1} parent=1 // pred_region
      _
    $region97: #{tpu_custom_call.1} parent=1 // pred_fallthru
      _
    // Predicated region
    $region98: #{tpu_custom_call.1} parent=1 // pred_check
      _
    $region99: #{tpu_custom_call.1} parent=1 // pred_check_branch
      %178 = sbr.rel (0) target = $region101
    $region100: #{tpu_custom_call.1} parent=1 // pred_region
      %s180 = ssub.s32 384, 384
      %181 = vsyncadd [#allocation19], %s180
      %s182 = sshll.u32 [#allocation20], 4
      %s183 = int_to_ptr.vmem [resolvable:$true] %s182
      %188 = dma.hbm_to_vmem [thread:$0]  %s24, 384, %s183, [#allocation19], 128, 128, 8
    $region101: #{tpu_custom_call.1} parent=1 // pred_fallthru
      _
    // Predicated region
    $region102: #{tpu_custom_call.1} parent=1 // pred_check
      _
    $region103: #{tpu_custom_call.1} parent=1 // pred_check_branch
      %190 = sbr.rel (0) target = $region105
    $region104: #{tpu_custom_call.1} parent=1 // pred_region
      %191 = dma.done [#allocation4], 384
    $region105: #{tpu_custom_call.1} parent=1 // pred_fallthru
      _
    // Predicated region
    $region106: #{tpu_custom_call.1} parent=1 // pred_check
      _
    $region107: #{tpu_custom_call.1} parent=1 // pred_check_branch
      %193 = sbr.rel (0) target = $region109
    $region108: #{tpu_custom_call.1} parent=1 // pred_region
      %194 = dma.done [#allocation7], 96
    $region109: #{tpu_custom_call.1} parent=1 // pred_fallthru
      _
    // Predicated region
    $region110: #{tpu_custom_call.1} parent=1 // pred_check
      _
    $region111: #{tpu_custom_call.1} parent=1 // pred_check_branch
      %196 = sbr.rel (0) target = $region113
    $region112: #{tpu_custom_call.1} parent=1 // pred_region
      %197 = dma.done [#allocation7], 384
    $region113: #{tpu_custom_call.1} parent=1 // pred_fallthru
      _
    // Predicated region
    $region114: #{tpu_custom_call.1} parent=1 // pred_check
      _
    $region115: #{tpu_custom_call.1} parent=1 // pred_check_branch
      %199 = sbr.rel (0) target = $region117
    $region116: #{tpu_custom_call.1} parent=1 // pred_region
      %200 = dma.done [#allocation10], 512
    $region117: #{tpu_custom_call.1} parent=1 // pred_fallthru
      _
    // Predicated region
    $region118: #{tpu_custom_call.1} parent=1 // pred_check
      _
    $region119: #{tpu_custom_call.1} parent=1 // pred_check_branch
      %202 = sbr.rel (0) target = $region121
    $region120: #{tpu_custom_call.1} parent=1 // pred_region
      %203 = dma.done [#allocation10], 64
    $region121: #{tpu_custom_call.1} parent=1 // pred_fallthru
      _
    // Predicated region
    $region122: #{tpu_custom_call.1} parent=1 // pred_check
      _
    $region123: #{tpu_custom_call.1} parent=1 // pred_check_branch
      %205 = sbr.rel (0) target = $region125
    $region124: #{tpu_custom_call.1} parent=1 // pred_region
      %206 = dma.done [#allocation13], 256
    $region125: #{tpu_custom_call.1} parent=1 // pred_fallthru
      _
    // Predicated region
    $region126: #{tpu_custom_call.1} parent=1 // pred_check
      _
    $region127: #{tpu_custom_call.1} parent=1 // pred_check_branch
      %208 = sbr.rel (0) target = $region129
    $region128: #{tpu_custom_call.1} parent=1 // pred_region
      %209 = dma.done [#allocation13], 256
    $region129: #{tpu_custom_call.1} parent=1 // pred_fallthru
      _
    // Predicated region
    $region130: #{tpu_custom_call.1} parent=1 // pred_check
      _
    $region131: #{tpu_custom_call.1} parent=1 // pred_check_branch
      %211 = sbr.rel (0) target = $region133
    $region132: #{tpu_custom_call.1} parent=1 // pred_region
      %212 = dma.done [#allocation16], 64
    $region133: #{tpu_custom_call.1} parent=1 // pred_fallthru
      _
    // Predicated region
    $region134: #{tpu_custom_call.1} parent=1 // pred_check
      _
    $region135: #{tpu_custom_call.1} parent=1 // pred_check_branch
      %214 = sbr.rel (0) target = $region137
    $region136: #{tpu_custom_call.1} parent=1 // pred_region
      %215 = dma.done [#allocation16], 384
    $region137: #{tpu_custom_call.1} parent=1 // pred_fallthru
      _
    // Predicated region
    $region138: #{tpu_custom_call.1} parent=1 // pred_check
      _
    $region139: #{tpu_custom_call.1} parent=1 // pred_check_branch
      %217 = sbr.rel (0) target = $region141
    $region140: #{tpu_custom_call.1} parent=1 // pred_region
      %218 = dma.done [#allocation19], 32
    $region141: #{tpu_custom_call.1} parent=1 // pred_fallthru
      _
    // Predicated region
    $region142: #{tpu_custom_call.1} parent=1 // pred_check
      _
    $region143: #{tpu_custom_call.1} parent=1 // pred_check_branch
      %220 = sbr.rel (0) target = $region145
    $region144: #{tpu_custom_call.1} parent=1 // pred_region
      %221 = dma.done [#allocation19], 384
    $region145: #{tpu_custom_call.1} parent=1 // pred_fallthru
      _
    %v223 = vld [vmem:[%s0] sm:$0xff]
    %v224 = vld [vmem:[%s0 + $0x8] sm:$0xff]
    %v225 = vld [vmem:[%s0 + $0x10] sm:$0xff]
    %v226 = vld [vmem:[%s0 + $0x18] sm:$0xff]
    %v227 = vld [vmem:[%s0 + $0x20] sm:$0xff]
    %v228 = vld [vmem:[%s0 + $0x28] sm:$0xff]
    %v229 = vld [vmem:[%s0 + $0x30] sm:$0xff]
    %v230 = vld [vmem:[%s0 + $0x38] sm:$0xff]
    %v231 = vld [vmem:[%s0 + $0x40] sm:$0xff]
    %v232 = vld [vmem:[%s0 + $0x48] sm:$0xff]
    %v233 = vld [vmem:[%s0 + $0x50] sm:$0xff]
    %v234 = vld [vmem:[%s0 + $0x58] sm:$0xff]
    %s235 = scalar_lea.vmem %s0, 96
    %v236 = vld [vmem:[%s235] sm:$0xff]
    %v237 = vld [vmem:[%s235 + $0x8] sm:$0xff]
    %v238 = vld [vmem:[%s235 + $0x10] sm:$0xff]
    %v239 = vld [vmem:[%s235 + $0x18] sm:$0xff]
    %v240 = vld [vmem:[%s235 + $0x20] sm:$0xff]
    %v241 = vld [vmem:[%s235 + $0x28] sm:$0xff]
    %v242 = vld [vmem:[%s235 + $0x30] sm:$0xff]
    %v243 = vld [vmem:[%s235 + $0x38] sm:$0xff]
    %v244 = vld [vmem:[%s235 + $0x40] sm:$0xff]
    %v245 = vld [vmem:[%s235 + $0x48] sm:$0xff]
    %v246 = vld [vmem:[%s235 + $0x50] sm:$0xff]
    %v247 = vld [vmem:[%s235 + $0x58] sm:$0xff]
    %v248 = vpack.c.bf16 %v225, %v223
    %v249 = vpack.c.bf16 %v226, %v224
    %v250 = vpack.c.bf16 %v229, %v227
    %v251 = vpack.c.bf16 %v230, %v228
    %v252 = vpack.c.bf16 %v233, %v231
    %v253 = vpack.c.bf16 %v234, %v232
    %v254 = vld [vmem:[%s1] sm:$0xff]
    %v255 = vld [vmem:[%s1 + $0x8] sm:$0xf]
    %v256 = vld [vmem:[%s1 + $0xc] sm:$0xff]
    %v257 = vld [vmem:[%s1 + $0x14] sm:$0xf]
    %v258 = vld [vmem:[%s1 + $0x18] sm:$0xff]
    %v259 = vld [vmem:[%s1 + $0x20] sm:$0xf]
    %v260 = vld [vmem:[%s1 + $0x24] sm:$0xff]
    %v261 = vld [vmem:[%s1 + $0x2c] sm:$0xf]
    %v262 = vld [vmem:[%s1 + $0x30] sm:$0xff]
    %v263 = vld [vmem:[%s1 + $0x38] sm:$0xf]
    %v264 = vld [vmem:[%s1 + $0x3c] sm:$0xff]
    %v265 = vld [vmem:[%s1 + $0x44] sm:$0xf]
    %v266 = vld [vmem:[%s1 + $0x48] sm:$0xff]
    %v267 = vld [vmem:[%s1 + $0x50] sm:$0xf]
    %v268 = vld [vmem:[%s1 + $0x54] sm:$0xff]
    %v269 = vld [vmem:[%s1 + $0x5c] sm:$0xf]
    %v270 = vld [vmem:[%s1 + $0x60] sm:$0xff]
    %v271 = vld [vmem:[%s1 + $0x68] sm:$0xf]
    %v272 = vld [vmem:[%s1 + $0x6c] sm:$0xff]
    %v273 = vld [vmem:[%s1 + $0x74] sm:$0xf]
    %v274 = vld [vmem:[%s1 + $0x78] sm:$0xff]
    %v275 = vld [vmem:[%s1 + $0x80] sm:$0xf]
    %v276 = vld [vmem:[%s1 + $0x84] sm:$0xff]
    %v277 = vld [vmem:[%s1 + $0x8c] sm:$0xf]
    %v278 = vld [vmem:[%s1 + $0x90] sm:$0xff]
    %v279 = vld [vmem:[%s1 + $0x98] sm:$0xf]
    %v280 = vld [vmem:[%s1 + $0x9c] sm:$0xff]
    %v281 = vld [vmem:[%s1 + $0xa4] sm:$0xf]
    %v282 = vld [vmem:[%s1 + $0xa8] sm:$0xff]
    %v283 = vld [vmem:[%s1 + $0xb0] sm:$0xf]
    %v284 = vld [vmem:[%s1 + $0xb4] sm:$0xff]
    %v285 = vld [vmem:[%s1 + $0xbc] sm:$0xf]
    %v286 = vld [vmem:[%s1 + $0xc0] sm:$0xff]
    %v287 = vld [vmem:[%s1 + $0xc8] sm:$0xf]
    %v288 = vld [vmem:[%s1 + $0xcc] sm:$0xff]
    %v289 = vld [vmem:[%s1 + $0xd4] sm:$0xf]
    %s290 = scalar_lea.vmem %s1, 216
    %v291 = vld [vmem:[%s290] sm:$0xff]
    %v292 = vld [vmem:[%s290 + $0x8] sm:$0xf]
    %v293 = vld [vmem:[%s290 + $0xc] sm:$0xff]
    %v294 = vld [vmem:[%s290 + $0x14] sm:$0xf]
    %v295 = vld [vmem:[%s290 + $0x18] sm:$0xff]
    %v296 = vld [vmem:[%s290 + $0x20] sm:$0xf]
    %v297 = vld [vmem:[%s290 + $0x24] sm:$0xff]
    %v298 = vld [vmem:[%s290 + $0x2c] sm:$0xf]
    %v299 = vld [vmem:[%s290 + $0x30] sm:$0xff]
    %v300 = vld [vmem:[%s290 + $0x38] sm:$0xf]
    %v301 = vld [vmem:[%s290 + $0x3c] sm:$0xff]
    %v302 = vld [vmem:[%s290 + $0x44] sm:$0xf]
    %v303 = vld [vmem:[%s290 + $0x48] sm:$0xff]
    %v304 = vld [vmem:[%s290 + $0x50] sm:$0xf]
    %v305 = vld [vmem:[%s290 + $0x54] sm:$0xff]
    %v306 = vld [vmem:[%s290 + $0x5c] sm:$0xf]
    %v307 = vld [vmem:[%s290 + $0x60] sm:$0xff]
    %v308 = vld [vmem:[%s290 + $0x68] sm:$0xf]
    %v309 = vld [vmem:[%s290 + $0x6c] sm:$0xff]
    %v310 = vld [vmem:[%s290 + $0x74] sm:$0xf]
    %v311 = vld [vmem:[%s290 + $0x78] sm:$0xff]
    %v312 = vld [vmem:[%s290 + $0x80] sm:$0xf]
    %v313 = vld [vmem:[%s290 + $0x84] sm:$0xff]
    %v314 = vld [vmem:[%s290 + $0x8c] sm:$0xf]
    %v315 = vld [vmem:[%s290 + $0x90] sm:$0xff]
    %v316 = vld [vmem:[%s290 + $0x98] sm:$0xf]
    %v317 = vld [vmem:[%s290 + $0x9c] sm:$0xff]
    %v318 = vld [vmem:[%s290 + $0xa4] sm:$0xf]
    %v319 = vld [vmem:[%s290 + $0xa8] sm:$0xff]
    %v320 = vld [vmem:[%s290 + $0xb0] sm:$0xf]
    %v321 = vld [vmem:[%s290 + $0xb4] sm:$0xff]
    %v322 = vld [vmem:[%s290 + $0xbc] sm:$0xf]
    %v323 = vld [vmem:[%s290 + $0xc0] sm:$0xff]
    %v324 = vld [vmem:[%s290 + $0xc8] sm:$0xf]
    %v325 = vld [vmem:[%s290 + $0xcc] sm:$0xff]
    %v326 = vld [vmem:[%s290 + $0xd4] sm:$0xf]
    %vm327 = vsmask.f32 7424
    %v329 = vshrl.u32 %v248, 16
    %v331 = vshll.u32 %v248, 16
    %v333 = vrot.slane %v331, 1
    %v334 = vor.u32 %v329, %v333
    %v336 = vshll.u32 %v250, 16
    %v338 = vrot.slane %v336, 1
    %v339 = vsel %vm327, %v334, %v338
    %v341 = vshrl.u32 %v249, 16
    %v343 = vshll.u32 %v249, 16
    %v345 = vrot.slane %v343, 1
    %v346 = vor.u32 %v341, %v345
    %v348 = vshll.u32 %v251, 16
    %v350 = vrot.slane %v348, 1
    %v351 = vsel %vm327, %v346, %v350
    %v352 = vshrl.u32 %v250, 16
    %v354 = vor.u32 %v352, %v338
    %v356 = vshll.u32 %v252, 16
    %v358 = vrot.slane %v356, 1
    %v359 = vsel %vm327, %v354, %v358
    %v360 = vshrl.u32 %v251, 16
    %v362 = vor.u32 %v360, %v350
    %v364 = vshll.u32 %v253, 16
    %v366 = vrot.slane %v364, 1
    %v367 = vsel %vm327, %v362, %v366
    %v368 = vshrl.u32 %v252, 16
    %v370 = vor.u32 %v368, %v358
    %v371 = vshrl.u32 %v253, 16
    %v373 = vor.u32 %v371, %v366
    %v413 = vunpack.c.l.b16 %v291
    %v414 = vunpack.c.h.b16 %v291
    %v415 = vunpack.c.l.b16 %v292
    %v416 = vunpack.c.l.b16 %v293
    %v417 = vunpack.c.h.b16 %v293
    %v418 = vunpack.c.l.b16 %v294
    %v419 = vunpack.c.l.b16 %v295
    %v420 = vunpack.c.h.b16 %v295
    %v421 = vunpack.c.l.b16 %v296
    %v422 = vunpack.c.l.b16 %v297
    %v423 = vunpack.c.h.b16 %v297
    %v424 = vunpack.c.l.b16 %v298
    %v425 = vunpack.c.l.b16 %v299
    %v426 = vunpack.c.h.b16 %v299
    %v427 = vunpack.c.l.b16 %v300
    %v428 = vunpack.c.l.b16 %v301
    %v429 = vunpack.c.h.b16 %v301
    %v430 = vunpack.c.l.b16 %v302
    %v431 = vunpack.c.l.b16 %v303
    %v432 = vunpack.c.h.b16 %v303
    %v433 = vunpack.c.l.b16 %v304
    %v434 = vunpack.c.l.b16 %v305
    %v435 = vunpack.c.h.b16 %v305
    %v436 = vunpack.c.l.b16 %v306
    %v437 = vunpack.c.l.b16 %v307
    %v438 = vunpack.c.h.b16 %v307
    %v439 = vunpack.c.l.b16 %v308
    %v440 = vunpack.c.l.b16 %v309
    %v441 = vunpack.c.h.b16 %v309
    %v442 = vunpack.c.l.b16 %v310
    %v443 = vunpack.c.l.b16 %v311
    %v444 = vunpack.c.h.b16 %v311
    %v445 = vunpack.c.l.b16 %v312
    %v446 = vunpack.c.l.b16 %v313
    %v447 = vunpack.c.h.b16 %v313
    %v448 = vunpack.c.l.b16 %v314
    %v449 = vunpack.c.l.b16 %v315
    %v450 = vunpack.c.h.b16 %v315
    %v451 = vunpack.c.l.b16 %v316
    %v452 = vunpack.c.l.b16 %v317
    %v453 = vunpack.c.h.b16 %v317
    %v454 = vunpack.c.l.b16 %v318
    %v455 = vunpack.c.l.b16 %v319
    %v456 = vunpack.c.h.b16 %v319
    %v457 = vunpack.c.l.b16 %v320
    %v458 = vunpack.c.l.b16 %v321
    %v459 = vunpack.c.h.b16 %v321
    %v460 = vunpack.c.l.b16 %v322
    %v461 = vunpack.c.l.b16 %v323
    %v462 = vunpack.c.h.b16 %v323
    %v463 = vunpack.c.l.b16 %v324
    %v464 = vunpack.c.l.b16 %v325
    %v465 = vunpack.c.h.b16 %v325
    %v466 = vunpack.c.l.b16 %v326
    %v467 = vpack.c.b16 %v416, %v413
    %v468 = vpack.c.b16 %v417, %v414
    %v469 = vpack.c.b16 %v418, %v415
    %v470 = vpack.c.b16 %v422, %v419
    %v471 = vpack.c.b16 %v423, %v420
    %v472 = vpack.c.b16 %v424, %v421
    %v473 = vpack.c.b16 %v428, %v425
    %v474 = vpack.c.b16 %v429, %v426
    %v475 = vpack.c.b16 %v430, %v427
    %v476 = vpack.c.b16 %v434, %v431
    %v477 = vpack.c.b16 %v435, %v432
    %v478 = vpack.c.b16 %v436, %v433
    %v479 = vpack.c.b16 %v440, %v437
    %v480 = vpack.c.b16 %v441, %v438
    %v481 = vpack.c.b16 %v442, %v439
    %v482 = vpack.c.b16 %v446, %v443
    %v483 = vpack.c.b16 %v447, %v444
    %v484 = vpack.c.b16 %v448, %v445
    %v485 = vpack.c.b16 %v452, %v449
    %v486 = vpack.c.b16 %v453, %v450
    %v487 = vpack.c.b16 %v454, %v451
    %v488 = vpack.c.b16 %v458, %v455
    %v489 = vpack.c.b16 %v459, %v456
    %v490 = vpack.c.b16 %v460, %v457
    %v491 = vpack.c.b16 %v464, %v461
    %v492 = vpack.c.b16 %v465, %v462
    %v493 = vpack.c.b16 %v466, %v463
    %vm521 = vcmask 130048
    %v523 = vsel %vm521, %v351, 0
    %v526 = vsel %vm521, %v367, 0
    %v529 = vsel %vm521, %v373, 0
    %531 = vmatprep.subr.bf16.mxu0 %v468
    %532 = vmatpush1.bf16.msra.mxu0 %v467
    %533 = vmatprep.subr.bf16.mxu0 %v471
    %534 = vmatpush1.bf16.msra.mxu0 %v470
    %535 = vmatprep.subr.bf16.mxu0 %v474
    %536 = vmatpush1.bf16.msra.mxu0 %v473
    %537 = vmatprep.subr.bf16.mxu0 %v477
    %538 = vmatpush1.bf16.msra.mxu0 %v476
    %539 = vmatprep.subr.bf16.mxu0 %v480
    %540 = vmatpush1.bf16.msra.mxu0 %v479
    %541 = vmatprep.subr.bf16.mxu0 %v483
    %542 = vmatpush1.bf16.msra.mxu0 %v482
    %543 = vmatprep.subr.bf16.mxu0 %v486
    %544 = vmatpush1.bf16.msra.mxu0 %v485
    %545 = vmatprep.subr.bf16.mxu0 %v489
    %546 = vmatpush1.bf16.msra.mxu0 %v488
    %547 = vmatprep.subr.bf16.mxu0 %v492
    %548 = vmatpush1.bf16.msra.mxu0 %v491
    %549 = vmatprep.subr.bf16.mxu0 0
    %550 = vmatpush1.bf16.msra.mxu0 0
    %551 = vmatprep.subr.bf16.mxu0 0
    %552 = vmatpush1.bf16.msra.mxu0 0
    %553 = vmatprep.subr.bf16.mxu0 0
    %554 = vmatpush1.bf16.msra.mxu0 0
    %555 = vmatprep.subr.bf16.mxu0 0
    %556 = vmatpush1.bf16.msra.mxu0 0
    %557 = vmatprep.subr.bf16.mxu0 0
    %558 = vmatpush1.bf16.msra.mxu0 0
    %559 = vmatprep.subr.bf16.mxu0 0
    %560 = vmatpush1.bf16.msra.mxu0 0
    %561 = vmatprep.subr.bf16.mxu0 0
    %562 = vmatpush1.bf16.msra.mxu0 0
    %563 = vmatprep.mubr.bf16.mxu0 %v523
    %564 = vmatmul.mubr.bf16.gmra.mrb[0].mxu0 %v339
    %v565 = vpop.f32.mrb[0].mxu0
    %v566 = vadd.f32 0.0, %v565
    %v567 = vpop.f32.mrb[0].mxu0
    %v568 = vadd.f32 0.0, %v567
    %v569 = vpop.f32.mrb[0].mxu0
    %v570 = vadd.f32 0.0, %v569
    %v571 = vpop.f32.mrb[0].mxu0
    %v572 = vadd.f32 0.0, %v571
    %573 = vmatprep.mubr.bf16.mxu0 %v526
    %574 = vmatmul.mubr.bf16.gmra.mrb[0].mxu0 %v359
    %v575 = vpop.f32.mrb[0].mxu0
    %v576 = vadd.f32 0.0, %v575
    %v577 = vpop.f32.mrb[0].mxu0
    %v578 = vadd.f32 0.0, %v577
    %v579 = vpop.f32.mrb[0].mxu0
    %v580 = vadd.f32 0.0, %v579
    %v581 = vpop.f32.mrb[0].mxu0
    %v582 = vadd.f32 0.0, %v581
    %583 = vmatprep.mubr.bf16.mxu0 %v529
    %584 = vmatmul.mubr.bf16.gmra.mrb[0].mxu0 %v370
    %v585 = vpop.f32.mrb[0].mxu0
    %v586 = vadd.f32 0.0, %v585
    %v587 = vpop.f32.mrb[0].mxu0
    %v588 = vadd.f32 0.0, %v587
    %v589 = vpop.f32.mrb[0].mxu0
    %v590 = vadd.f32 0.0, %v589
    %v591 = vpop.f32.mrb[0].mxu0
    %v592 = vadd.f32 0.0, %v591
    %593 = vdwg.mxu0
    %594 = vmatprep.subr.bf16.mxu0 0
    %595 = vmatpush1.bf16.msra.mxu0 %v469
    %596 = vmatprep.subr.bf16.mxu0 0
    %597 = vmatpush1.bf16.msra.mxu0 %v472
    %598 = vmatprep.subr.bf16.mxu0 0
    %599 = vmatpush1.bf16.msra.mxu0 %v475
    %600 = vmatprep.subr.bf16.mxu0 0
    %601 = vmatpush1.bf16.msra.mxu0 %v478
    %602 = vmatprep.subr.bf16.mxu0 0
    %603 = vmatpush1.bf16.msra.mxu0 %v481
    %604 = vmatprep.subr.bf16.mxu0 0
    %605 = vmatpush1.bf16.msra.mxu0 %v484
    %606 = vmatprep.subr.bf16.mxu0 0
    %607 = vmatpush1.bf16.msra.mxu0 %v487
    %608 = vmatprep.subr.bf16.mxu0 0
    %609 = vmatpush1.bf16.msra.mxu0 %v490
    %610 = vmatprep.subr.bf16.mxu0 0
    %611 = vmatpush1.bf16.msra.mxu0 %v493
    %612 = vmatprep.subr.bf16.mxu0 0
    %613 = vmatpush1.bf16.msra.mxu0 0
    %614 = vmatprep.subr.bf16.mxu0 0
    %615 = vmatpush1.bf16.msra.mxu0 0
    %616 = vmatprep.subr.bf16.mxu0 0
    %617 = vmatpush1.bf16.msra.mxu0 0
    %618 = vmatprep.subr.bf16.mxu0 0
    %619 = vmatpush1.bf16.msra.mxu0 0
    %620 = vmatprep.subr.bf16.mxu0 0
    %621 = vmatpush1.bf16.msra.mxu0 0
    %622 = vmatprep.subr.bf16.mxu0 0
    %623 = vmatpush1.bf16.msra.mxu0 0
    %624 = vmatprep.subr.bf16.mxu0 0
    %625 = vmatpush1.bf16.msra.mxu0 0
    %626 = vmatprep.mubr.bf16.mxu0 %v523
    %627 = vmatmul.mubr.bf16.gmra.mrb[0].mxu0 %v339
    %v628 = vpop.f32.mrb[0].mxu0
    %v629 = vadd.f32 0.0, %v628
    %v630 = vpop.f32.mrb[0].mxu0
    %v631 = vpop.f32.mrb[0].mxu0
    %v632 = vadd.f32 0.0, %v631
    %v633 = vpop.f32.mrb[0].mxu0
    %634 = vmatprep.mubr.bf16.mxu0 %v526
    %635 = vmatmul.mubr.bf16.gmra.mrb[0].mxu0 %v359
    %v636 = vpop.f32.mrb[0].mxu0
    %v637 = vadd.f32 0.0, %v636
    %v638 = vpop.f32.mrb[0].mxu0
    %v639 = vpop.f32.mrb[0].mxu0
    %v640 = vadd.f32 0.0, %v639
    %v641 = vpop.f32.mrb[0].mxu0
    %642 = vmatprep.mubr.bf16.mxu0 %v529
    %643 = vmatmul.mubr.bf16.gmra.mrb[0].mxu0 %v370
    %v644 = vpop.f32.mrb[0].mxu0
    %v645 = vadd.f32 0.0, %v644
    %v646 = vpop.f32.mrb[0].mxu0
    %v647 = vpop.f32.mrb[0].mxu0
    %v648 = vadd.f32 0.0, %v647
    %v649 = vpop.f32.mrb[0].mxu0
    %650 = vdwg.mxu0
    %v687 = vunpack.c.l.b16 %v254
    %v688 = vunpack.c.h.b16 %v254
    %v689 = vunpack.c.l.b16 %v255
    %v690 = vunpack.c.l.b16 %v256
    %v691 = vunpack.c.h.b16 %v256
    %v692 = vunpack.c.l.b16 %v257
    %v693 = vunpack.c.l.b16 %v258
    %v694 = vunpack.c.h.b16 %v258
    %v695 = vunpack.c.l.b16 %v259
    %v696 = vunpack.c.l.b16 %v260
    %v697 = vunpack.c.h.b16 %v260
    %v698 = vunpack.c.l.b16 %v261
    %v699 = vunpack.c.l.b16 %v262
    %v700 = vunpack.c.h.b16 %v262
    %v701 = vunpack.c.l.b16 %v263
    %v702 = vunpack.c.l.b16 %v264
    %v703 = vunpack.c.h.b16 %v264
    %v704 = vunpack.c.l.b16 %v265
    %v705 = vunpack.c.l.b16 %v266
    %v706 = vunpack.c.h.b16 %v266
    %v707 = vunpack.c.l.b16 %v267
    %v708 = vunpack.c.l.b16 %v268
    %v709 = vunpack.c.h.b16 %v268
    %v710 = vunpack.c.l.b16 %v269
    %v711 = vunpack.c.l.b16 %v270
    %v712 = vunpack.c.h.b16 %v270
    %v713 = vunpack.c.l.b16 %v271
    %v714 = vunpack.c.l.b16 %v272
    %v715 = vunpack.c.h.b16 %v272
    %v716 = vunpack.c.l.b16 %v273
    %v717 = vunpack.c.l.b16 %v274
    %v718 = vunpack.c.h.b16 %v274
    %v719 = vunpack.c.l.b16 %v275
    %v720 = vunpack.c.l.b16 %v276
    %v721 = vunpack.c.h.b16 %v276
    %v722 = vunpack.c.l.b16 %v277
    %v723 = vunpack.c.l.b16 %v278
    %v724 = vunpack.c.h.b16 %v278
    %v725 = vunpack.c.l.b16 %v279
    %v726 = vunpack.c.l.b16 %v280
    %v727 = vunpack.c.h.b16 %v280
    %v728 = vunpack.c.l.b16 %v281
    %v729 = vunpack.c.l.b16 %v282
    %v730 = vunpack.c.h.b16 %v282
    %v731 = vunpack.c.l.b16 %v283
    %v732 = vunpack.c.l.b16 %v284
    %v733 = vunpack.c.h.b16 %v284
    %v734 = vunpack.c.l.b16 %v285
    %v735 = vunpack.c.l.b16 %v286
    %v736 = vunpack.c.h.b16 %v286
    %v737 = vunpack.c.l.b16 %v287
    %v738 = vunpack.c.l.b16 %v288
    %v739 = vunpack.c.h.b16 %v288
    %v740 = vunpack.c.l.b16 %v289
    %v741 = vpack.c.b16 %v690, %v687
    %v742 = vpack.c.b16 %v691, %v688
    %v743 = vpack.c.b16 %v692, %v689
    %v744 = vpack.c.b16 %v696, %v693
    %v745 = vpack.c.b16 %v697, %v694
    %v746 = vpack.c.b16 %v698, %v695
    %v747 = vpack.c.b16 %v702, %v699
    %v748 = vpack.c.b16 %v703, %v700
    %v749 = vpack.c.b16 %v704, %v701
    %v750 = vpack.c.b16 %v708, %v705
    %v751 = vpack.c.b16 %v709, %v706
    %v752 = vpack.c.b16 %v710, %v707
    %v753 = vpack.c.b16 %v714, %v711
    %v754 = vpack.c.b16 %v715, %v712
    %v755 = vpack.c.b16 %v716, %v713
    %v756 = vpack.c.b16 %v720, %v717
    %v757 = vpack.c.b16 %v721, %v718
    %v758 = vpack.c.b16 %v722, %v719
    %v759 = vpack.c.b16 %v726, %v723
    %v760 = vpack.c.b16 %v727, %v724
    %v761 = vpack.c.b16 %v728, %v725
    %v762 = vpack.c.b16 %v732, %v729
    %v763 = vpack.c.b16 %v733, %v730
    %v764 = vpack.c.b16 %v734, %v731
    %v765 = vpack.c.b16 %v738, %v735
    %v766 = vpack.c.b16 %v739, %v736
    %v767 = vpack.c.b16 %v740, %v737
    %v795 = vsel %vm521, %v249, 0
    %v797 = vsel %vm521, %v251, 0
    %v799 = vsel %vm521, %v253, 0
    %801 = vmatprep.subr.bf16.mxu0 %v742
    %802 = vmatpush1.bf16.msra.mxu0 %v741
    %803 = vmatprep.subr.bf16.mxu0 %v745
    %804 = vmatpush1.bf16.msra.mxu0 %v744
    %805 = vmatprep.subr.bf16.mxu0 %v748
    %806 = vmatpush1.bf16.msra.mxu0 %v747
    %807 = vmatprep.subr.bf16.mxu0 %v751
    %808 = vmatpush1.bf16.msra.mxu0 %v750
    %809 = vmatprep.subr.bf16.mxu0 %v754
    %810 = vmatpush1.bf16.msra.mxu0 %v753
    %811 = vmatprep.subr.bf16.mxu0 %v757
    %812 = vmatpush1.bf16.msra.mxu0 %v756
    %813 = vmatprep.subr.bf16.mxu0 %v760
    %814 = vmatpush1.bf16.msra.mxu0 %v759
    %815 = vmatprep.subr.bf16.mxu0 %v763
    %816 = vmatpush1.bf16.msra.mxu0 %v762
    %817 = vmatprep.subr.bf16.mxu0 %v766
    %818 = vmatpush1.bf16.msra.mxu0 %v765
    %819 = vmatprep.subr.bf16.mxu0 0
    %820 = vmatpush1.bf16.msra.mxu0 0
    %821 = vmatprep.subr.bf16.mxu0 0
    %822 = vmatpush1.bf16.msra.mxu0 0
    %823 = vmatprep.subr.bf16.mxu0 0
    %824 = vmatpush1.bf16.msra.mxu0 0
    %825 = vmatprep.subr.bf16.mxu0 0
    %826 = vmatpush1.bf16.msra.mxu0 0
    %827 = vmatprep.subr.bf16.mxu0 0
    %828 = vmatpush1.bf16.msra.mxu0 0
    %829 = vmatprep.subr.bf16.mxu0 0
    %830 = vmatpush1.bf16.msra.mxu0 0
    %831 = vmatprep.subr.bf16.mxu0 0
    %832 = vmatpush1.bf16.msra.mxu0 0
    %833 = vmatprep.mubr.bf16.mxu0 %v795
    %834 = vmatmul.mubr.bf16.gmra.mrb[0].mxu0 %v248
    %v835 = vpop.f32.mrb[0].mxu0
    %v836 = vadd.f32 %v566, %v835
    %v837 = vpop.f32.mrb[0].mxu0
    %v838 = vadd.f32 %v568, %v837
    %v839 = vpop.f32.mrb[0].mxu0
    %v840 = vadd.f32 %v570, %v839
    %v841 = vpop.f32.mrb[0].mxu0
    %v842 = vadd.f32 %v572, %v841
    %843 = vmatprep.mubr.bf16.mxu0 %v797
    %844 = vmatmul.mubr.bf16.gmra.mrb[0].mxu0 %v250
    %v845 = vpop.f32.mrb[0].mxu0
    %v846 = vadd.f32 %v576, %v845
    %v847 = vpop.f32.mrb[0].mxu0
    %v848 = vadd.f32 %v578, %v847
    %v849 = vpop.f32.mrb[0].mxu0
    %v850 = vadd.f32 %v580, %v849
    %v851 = vpop.f32.mrb[0].mxu0
    %v852 = vadd.f32 %v582, %v851
    %853 = vmatprep.mubr.bf16.mxu0 %v799
    %854 = vmatmul.mubr.bf16.gmra.mrb[0].mxu0 %v252
    %v855 = vpop.f32.mrb[0].mxu0
    %v856 = vadd.f32 %v586, %v855
    %v857 = vpop.f32.mrb[0].mxu0
    %v858 = vadd.f32 %v588, %v857
    %v859 = vpop.f32.mrb[0].mxu0
    %v860 = vadd.f32 %v590, %v859
    %v861 = vpop.f32.mrb[0].mxu0
    %v862 = vadd.f32 %v592, %v861
    %863 = vdwg.mxu0
    %864 = vmatprep.subr.bf16.mxu0 0
    %865 = vmatpush1.bf16.msra.mxu0 %v743
    %866 = vmatprep.subr.bf16.mxu0 0
    %867 = vmatpush1.bf16.msra.mxu0 %v746
    %868 = vmatprep.subr.bf16.mxu0 0
    %869 = vmatpush1.bf16.msra.mxu0 %v749
    %870 = vmatprep.subr.bf16.mxu0 0
    %871 = vmatpush1.bf16.msra.mxu0 %v752
    %872 = vmatprep.subr.bf16.mxu0 0
    %873 = vmatpush1.bf16.msra.mxu0 %v755
    %874 = vmatprep.subr.bf16.mxu0 0
    %875 = vmatpush1.bf16.msra.mxu0 %v758
    %876 = vmatprep.subr.bf16.mxu0 0
    %877 = vmatpush1.bf16.msra.mxu0 %v761
    %878 = vmatprep.subr.bf16.mxu0 0
    %879 = vmatpush1.bf16.msra.mxu0 %v764
    %880 = vmatprep.subr.bf16.mxu0 0
    %881 = vmatpush1.bf16.msra.mxu0 %v767
    %882 = vmatprep.subr.bf16.mxu0 0
    %883 = vmatpush1.bf16.msra.mxu0 0
    %884 = vmatprep.subr.bf16.mxu0 0
    %885 = vmatpush1.bf16.msra.mxu0 0
    %886 = vmatprep.subr.bf16.mxu0 0
    %887 = vmatpush1.bf16.msra.mxu0 0
    %888 = vmatprep.subr.bf16.mxu0 0
    %889 = vmatpush1.bf16.msra.mxu0 0
    %890 = vmatprep.subr.bf16.mxu0 0
    %891 = vmatpush1.bf16.msra.mxu0 0
    %892 = vmatprep.subr.bf16.mxu0 0
    %893 = vmatpush1.bf16.msra.mxu0 0
    %894 = vmatprep.subr.bf16.mxu0 0
    %895 = vmatpush1.bf16.msra.mxu0 0
    %896 = vmatprep.mubr.bf16.mxu0 %v795
    %897 = vmatmul.mubr.bf16.gmra.mrb[0].mxu0 %v248
    %v898 = vpop.f32.mrb[0].mxu0
    %v899 = vadd.f32 %v629, %v898
    %v900 = vpop.f32.mrb[0].mxu0
    %v901 = vpop.f32.mrb[0].mxu0
    %v902 = vadd.f32 %v632, %v901
    %v903 = vpop.f32.mrb[0].mxu0
    %904 = vmatprep.mubr.bf16.mxu0 %v797
    %905 = vmatmul.mubr.bf16.gmra.mrb[0].mxu0 %v250
    %v906 = vpop.f32.mrb[0].mxu0
    %v907 = vadd.f32 %v637, %v906
    %v908 = vpop.f32.mrb[0].mxu0
    %v909 = vpop.f32.mrb[0].mxu0
    %v910 = vadd.f32 %v640, %v909
    %v911 = vpop.f32.mrb[0].mxu0
    %912 = vmatprep.mubr.bf16.mxu0 %v799
    %913 = vmatmul.mubr.bf16.gmra.mrb[0].mxu0 %v252
    %v914 = vpop.f32.mrb[0].mxu0
    %v915 = vadd.f32 %v645, %v914
    %v916 = vpop.f32.mrb[0].mxu0
    %v917 = vpop.f32.mrb[0].mxu0
    %v918 = vadd.f32 %v648, %v917
    %v919 = vpop.f32.mrb[0].mxu0
    %920 = vdwg.mxu0
    %s921 = scalar_lea.vmem %s1, 432
    %v922 = vld [vmem:[%s921] sm:$0xff]
    %v923 = vld [vmem:[%s921 + $0x8] sm:$0xf]
    %v924 = vld [vmem:[%s921 + $0xc] sm:$0xff]
    %v925 = vld [vmem:[%s921 + $0x14] sm:$0xf]
    %v926 = vld [vmem:[%s921 + $0x18] sm:$0xff]
    %v927 = vld [vmem:[%s921 + $0x20] sm:$0xf]
    %v928 = vld [vmem:[%s921 + $0x24] sm:$0xff]
    %v929 = vld [vmem:[%s921 + $0x2c] sm:$0xf]
    %v930 = vld [vmem:[%s921 + $0x30] sm:$0xff]
    %v931 = vld [vmem:[%s921 + $0x38] sm:$0xf]
    %v932 = vld [vmem:[%s921 + $0x3c] sm:$0xff]
    %v933 = vld [vmem:[%s921 + $0x44] sm:$0xf]
    %v934 = vld [vmem:[%s921 + $0x48] sm:$0xff]
    %v935 = vld [vmem:[%s921 + $0x50] sm:$0xf]
    %v936 = vld [vmem:[%s921 + $0x54] sm:$0xff]
    %v937 = vld [vmem:[%s921 + $0x5c] sm:$0xf]
    %v938 = vld [vmem:[%s921 + $0x60] sm:$0xff]
    %v939 = vld [vmem:[%s921 + $0x68] sm:$0xf]
    %v940 = vld [vmem:[%s921 + $0x6c] sm:$0xff]
    %v941 = vld [vmem:[%s921 + $0x74] sm:$0xf]
    %v942 = vld [vmem:[%s921 + $0x78] sm:$0xff]
    %v943 = vld [vmem:[%s921 + $0x80] sm:$0xf]
    %v944 = vld [vmem:[%s921 + $0x84] sm:$0xff]
    %v945 = vld [vmem:[%s921 + $0x8c] sm:$0xf]
    %v946 = vld [vmem:[%s921 + $0x90] sm:$0xff]
    %v947 = vld [vmem:[%s921 + $0x98] sm:$0xf]
    %v948 = vld [vmem:[%s921 + $0x9c] sm:$0xff]
    %v949 = vld [vmem:[%s921 + $0xa4] sm:$0xf]
    %v950 = vld [vmem:[%s921 + $0xa8] sm:$0xff]
    %v951 = vld [vmem:[%s921 + $0xb0] sm:$0xf]
    %v952 = vld [vmem:[%s921 + $0xb4] sm:$0xff]
    %v953 = vld [vmem:[%s921 + $0xbc] sm:$0xf]
    %v954 = vld [vmem:[%s921 + $0xc0] sm:$0xff]
    %v955 = vld [vmem:[%s921 + $0xc8] sm:$0xf]
    %v956 = vld [vmem:[%s921 + $0xcc] sm:$0xff]
    %v957 = vld [vmem:[%s921 + $0xd4] sm:$0xf]
    %vm964 = vcmask 1046528
    %v965 = vrot.slane %v248, 1
    %v966 = vrot.slane %v250, 1
    %v967 = vsel %vm964, %v965, %v966
    %v968 = vrot.slane %v249, 1
    %v969 = vrot.slane %v251, 1
    %v970 = vsel %vm964, %v968, %v969
    %v971 = vrot.slane %v252, 1
    %v972 = vsel %vm964, %v966, %v971
    %v973 = vrot.slane %v253, 1
    %v974 = vsel %vm964, %v969, %v973
    %v1014 = vunpack.c.l.b16 %v922
    %v1015 = vunpack.c.h.b16 %v922
    %v1016 = vunpack.c.l.b16 %v923
    %v1017 = vunpack.c.l.b16 %v924
    %v1018 = vunpack.c.h.b16 %v924
    %v1019 = vunpack.c.l.b16 %v925
    %v1020 = vunpack.c.l.b16 %v926
    %v1021 = vunpack.c.h.b16 %v926
    %v1022 = vunpack.c.l.b16 %v927
    %v1023 = vunpack.c.l.b16 %v928
    %v1024 = vunpack.c.h.b16 %v928
    %v1025 = vunpack.c.l.b16 %v929
    %v1026 = vunpack.c.l.b16 %v930
    %v1027 = vunpack.c.h.b16 %v930
    %v1028 = vunpack.c.l.b16 %v931
    %v1029 = vunpack.c.l.b16 %v932
    %v1030 = vunpack.c.h.b16 %v932
    %v1031 = vunpack.c.l.b16 %v933
    %v1032 = vunpack.c.l.b16 %v934
    %v1033 = vunpack.c.h.b16 %v934
    %v1034 = vunpack.c.l.b16 %v935
    %v1035 = vunpack.c.l.b16 %v936
    %v1036 = vunpack.c.h.b16 %v936
    %v1037 = vunpack.c.l.b16 %v937
    %v1038 = vunpack.c.l.b16 %v938
    %v1039 = vunpack.c.h.b16 %v938
    %v1040 = vunpack.c.l.b16 %v939
    %v1041 = vunpack.c.l.b16 %v940
    %v1042 = vunpack.c.h.b16 %v940
    %v1043 = vunpack.c.l.b16 %v941
    %v1044 = vunpack.c.l.b16 %v942
    %v1045 = vunpack.c.h.b16 %v942
    %v1046 = vunpack.c.l.b16 %v943
    %v1047 = vunpack.c.l.b16 %v944
    %v1048 = vunpack.c.h.b16 %v944
    %v1049 = vunpack.c.l.b16 %v945
    %v1050 = vunpack.c.l.b16 %v946
    %v1051 = vunpack.c.h.b16 %v946
    %v1052 = vunpack.c.l.b16 %v947
    %v1053 = vunpack.c.l.b16 %v948
    %v1054 = vunpack.c.h.b16 %v948
    %v1055 = vunpack.c.l.b16 %v949
    %v1056 = vunpack.c.l.b16 %v950
    %v1057 = vunpack.c.h.b16 %v950
    %v1058 = vunpack.c.l.b16 %v951
    %v1059 = vunpack.c.l.b16 %v952
    %v1060 = vunpack.c.h.b16 %v952
    %v1061 = vunpack.c.l.b16 %v953
    %v1062 = vunpack.c.l.b16 %v954
    %v1063 = vunpack.c.h.b16 %v954
    %v1064 = vunpack.c.l.b16 %v955
    %v1065 = vunpack.c.l.b16 %v956
    %v1066 = vunpack.c.h.b16 %v956
    %v1067 = vunpack.c.l.b16 %v957
    %v1068 = vpack.c.b16 %v1017, %v1014
    %v1069 = vpack.c.b16 %v1018, %v1015
    %v1070 = vpack.c.b16 %v1019, %v1016
    %v1071 = vpack.c.b16 %v1023, %v1020
    %v1072 = vpack.c.b16 %v1024, %v1021
    %v1073 = vpack.c.b16 %v1025, %v1022
    %v1074 = vpack.c.b16 %v1029, %v1026
    %v1075 = vpack.c.b16 %v1030, %v1027
    %v1076 = vpack.c.b16 %v1031, %v1028
    %v1077 = vpack.c.b16 %v1035, %v1032
    %v1078 = vpack.c.b16 %v1036, %v1033
    %v1079 = vpack.c.b16 %v1037, %v1034
    %v1080 = vpack.c.b16 %v1041, %v1038
    %v1081 = vpack.c.b16 %v1042, %v1039
    %v1082 = vpack.c.b16 %v1043, %v1040
    %v1083 = vpack.c.b16 %v1047, %v1044
    %v1084 = vpack.c.b16 %v1048, %v1045
    %v1085 = vpack.c.b16 %v1049, %v1046
    %v1086 = vpack.c.b16 %v1053, %v1050
    %v1087 = vpack.c.b16 %v1054, %v1051
    %v1088 = vpack.c.b16 %v1055, %v1052
    %v1089 = vpack.c.b16 %v1059, %v1056
    %v1090 = vpack.c.b16 %v1060, %v1057
    %v1091 = vpack.c.b16 %v1061, %v1058
    %v1092 = vpack.c.b16 %v1065, %v1062
    %v1093 = vpack.c.b16 %v1066, %v1063
    %v1094 = vpack.c.b16 %v1067, %v1064
    %v1123 = vsel %vm521, %v970, 0
    %v1126 = vsel %vm521, %v974, 0
    %v1129 = vsel %vm521, %v973, 0
    %1131 = vmatprep.subr.bf16.mxu0 %v1069
    %1132 = vmatpush1.bf16.msra.mxu0 %v1068
    %1133 = vmatprep.subr.bf16.mxu0 %v1072
    %1134 = vmatpush1.bf16.msra.mxu0 %v1071
    %1135 = vmatprep.subr.bf16.mxu0 %v1075
    %1136 = vmatpush1.bf16.msra.mxu0 %v1074
    %1137 = vmatprep.subr.bf16.mxu0 %v1078
    %1138 = vmatpush1.bf16.msra.mxu0 %v1077
    %1139 = vmatprep.subr.bf16.mxu0 %v1081
    %1140 = vmatpush1.bf16.msra.mxu0 %v1080
    %1141 = vmatprep.subr.bf16.mxu0 %v1084
    %1142 = vmatpush1.bf16.msra.mxu0 %v1083
    %1143 = vmatprep.subr.bf16.mxu0 %v1087
    %1144 = vmatpush1.bf16.msra.mxu0 %v1086
    %1145 = vmatprep.subr.bf16.mxu0 %v1090
    %1146 = vmatpush1.bf16.msra.mxu0 %v1089
    %1147 = vmatprep.subr.bf16.mxu0 %v1093
    %1148 = vmatpush1.bf16.msra.mxu0 %v1092
    %1149 = vmatprep.subr.bf16.mxu0 0
    %1150 = vmatpush1.bf16.msra.mxu0 0
    %1151 = vmatprep.subr.bf16.mxu0 0
    %1152 = vmatpush1.bf16.msra.mxu0 0
    %1153 = vmatprep.subr.bf16.mxu0 0
    %1154 = vmatpush1.bf16.msra.mxu0 0
    %1155 = vmatprep.subr.bf16.mxu0 0
    %1156 = vmatpush1.bf16.msra.mxu0 0
    %1157 = vmatprep.subr.bf16.mxu0 0
    %1158 = vmatpush1.bf16.msra.mxu0 0
    %1159 = vmatprep.subr.bf16.mxu0 0
    %1160 = vmatpush1.bf16.msra.mxu0 0
    %1161 = vmatprep.subr.bf16.mxu0 0
    %1162 = vmatpush1.bf16.msra.mxu0 0
    %1163 = vmatprep.mubr.bf16.mxu0 %v1123
    %1164 = vmatmul.mubr.bf16.gmra.mrb[0].mxu0 %v967
    %v1165 = vpop.f32.mrb[0].mxu0
    %v1166 = vadd.f32 0.0, %v1165
    %v1167 = vpop.f32.mrb[0].mxu0
    %v1168 = vadd.f32 0.0, %v1167
    %v1169 = vpop.f32.mrb[0].mxu0
    %v1170 = vadd.f32 0.0, %v1169
    %v1171 = vpop.f32.mrb[0].mxu0
    %v1172 = vadd.f32 0.0, %v1171
    %1173 = vmatprep.mubr.bf16.mxu0 %v1126
    %1174 = vmatmul.mubr.bf16.gmra.mrb[0].mxu0 %v972
    %v1175 = vpop.f32.mrb[0].mxu0
    %v1176 = vadd.f32 0.0, %v1175
    %v1177 = vpop.f32.mrb[0].mxu0
    %v1178 = vadd.f32 0.0, %v1177
    %v1179 = vpop.f32.mrb[0].mxu0
    %v1180 = vadd.f32 0.0, %v1179
    %v1181 = vpop.f32.mrb[0].mxu0
    %v1182 = vadd.f32 0.0, %v1181
    %1183 = vmatprep.mubr.bf16.mxu0 %v1129
    %1184 = vmatmul.mubr.bf16.gmra.mrb[0].mxu0 %v971
    %v1185 = vpop.f32.mrb[0].mxu0
    %v1186 = vadd.f32 0.0, %v1185
    %v1187 = vpop.f32.mrb[0].mxu0
    %v1188 = vadd.f32 0.0, %v1187
    %v1189 = vpop.f32.mrb[0].mxu0
    %v1190 = vadd.f32 0.0, %v1189
    %v1191 = vpop.f32.mrb[0].mxu0
    %v1192 = vadd.f32 0.0, %v1191
    %1193 = vdwg.mxu0
    %1194 = vmatprep.subr.bf16.mxu0 0
    %1195 = vmatpush1.bf16.msra.mxu0 %v1070
    %1196 = vmatprep.subr.bf16.mxu0 0
    %1197 = vmatpush1.bf16.msra.mxu0 %v1073
    %1198 = vmatprep.subr.bf16.mxu0 0
    %1199 = vmatpush1.bf16.msra.mxu0 %v1076
    %1200 = vmatprep.subr.bf16.mxu0 0
    %1201 = vmatpush1.bf16.msra.mxu0 %v1079
    %1202 = vmatprep.subr.bf16.mxu0 0
    %1203 = vmatpush1.bf16.msra.mxu0 %v1082
    %1204 = vmatprep.subr.bf16.mxu0 0
    %1205 = vmatpush1.bf16.msra.mxu0 %v1085
    %1206 = vmatprep.subr.bf16.mxu0 0
    %1207 = vmatpush1.bf16.msra.mxu0 %v1088
    %1208 = vmatprep.subr.bf16.mxu0 0
    %1209 = vmatpush1.bf16.msra.mxu0 %v1091
    %1210 = vmatprep.subr.bf16.mxu0 0
    %1211 = vmatpush1.bf16.msra.mxu0 %v1094
    %1212 = vmatprep.subr.bf16.mxu0 0
    %1213 = vmatpush1.bf16.msra.mxu0 0
    %1214 = vmatprep.subr.bf16.mxu0 0
    %1215 = vmatpush1.bf16.msra.mxu0 0
    %1216 = vmatprep.subr.bf16.mxu0 0
    %1217 = vmatpush1.bf16.msra.mxu0 0
    %1218 = vmatprep.subr.bf16.mxu0 0
    %1219 = vmatpush1.bf16.msra.mxu0 0
    %1220 = vmatprep.subr.bf16.mxu0 0
    %1221 = vmatpush1.bf16.msra.mxu0 0
    %1222 = vmatprep.subr.bf16.mxu0 0
    %1223 = vmatpush1.bf16.msra.mxu0 0
    %1224 = vmatprep.subr.bf16.mxu0 0
    %1225 = vmatpush1.bf16.msra.mxu0 0
    %1226 = vmatprep.mubr.bf16.mxu0 %v1123
    %1227 = vmatmul.mubr.bf16.gmra.mrb[0].mxu0 %v967
    %v1228 = vpop.f32.mrb[0].mxu0
    %v1229 = vadd.f32 0.0, %v1228
    %v1230 = vpop.f32.mrb[0].mxu0
    %v1231 = vpop.f32.mrb[0].mxu0
    %v1232 = vadd.f32 0.0, %v1231
    %v1233 = vpop.f32.mrb[0].mxu0
    %1234 = vmatprep.mubr.bf16.mxu0 %v1126
    %1235 = vmatmul.mubr.bf16.gmra.mrb[0].mxu0 %v972
    %v1236 = vpop.f32.mrb[0].mxu0
    %v1237 = vadd.f32 0.0, %v1236
    %v1238 = vpop.f32.mrb[0].mxu0
    %v1239 = vpop.f32.mrb[0].mxu0
    %v1240 = vadd.f32 0.0, %v1239
    %v1241 = vpop.f32.mrb[0].mxu0
    %1242 = vmatprep.mubr.bf16.mxu0 %v1129
    %1243 = vmatmul.mubr.bf16.gmra.mrb[0].mxu0 %v971
    %v1244 = vpop.f32.mrb[0].mxu0
    %v1245 = vadd.f32 0.0, %v1244
    %v1246 = vpop.f32.mrb[0].mxu0
    %v1247 = vpop.f32.mrb[0].mxu0
    %v1248 = vadd.f32 0.0, %v1247
    %v1249 = vpop.f32.mrb[0].mxu0
    %1250 = vdwg.mxu0
    %v1251 = vadd.f32 %v836, %v1166
    %v1252 = vadd.f32 %v838, %v1168
    %v1253 = vadd.f32 %v899, %v1229
    %v1254 = vadd.f32 %v840, %v1170
    %v1255 = vadd.f32 %v842, %v1172
    %v1256 = vadd.f32 %v902, %v1232
    %v1257 = vadd.f32 %v846, %v1176
    %v1258 = vadd.f32 %v848, %v1178
    %v1259 = vadd.f32 %v907, %v1237
    %v1260 = vadd.f32 %v850, %v1180
    %v1261 = vadd.f32 %v852, %v1182
    %v1262 = vadd.f32 %v910, %v1240
    %v1263 = vadd.f32 %v856, %v1186
    %v1264 = vadd.f32 %v858, %v1188
    %v1265 = vadd.f32 %v915, %v1245
    %v1266 = vadd.f32 %v860, %v1190
    %v1267 = vadd.f32 %v862, %v1192
    %v1268 = vadd.f32 %v918, %v1248
    %v1269 = vpack.c.bf16 %v238, %v236
    %v1270 = vpack.c.bf16 %v239, %v237
    %v1271 = vpack.c.bf16 %v242, %v240
    %v1272 = vpack.c.bf16 %v243, %v241
    %v1273 = vpack.c.bf16 %v246, %v244
    %v1274 = vpack.c.bf16 %v247, %v245
    %v1276 = vshrl.u32 %v1269, 16
    %v1278 = vshll.u32 %v1269, 16
    %v1280 = vrot.slane %v1278, 1
    %v1281 = vor.u32 %v1276, %v1280
    %v1283 = vshll.u32 %v1271, 16
    %v1285 = vrot.slane %v1283, 1
    %v1286 = vsel %vm327, %v1281, %v1285
    %v1288 = vshrl.u32 %v1270, 16
    %v1290 = vshll.u32 %v1270, 16
    %v1292 = vrot.slane %v1290, 1
    %v1293 = vor.u32 %v1288, %v1292
    %v1295 = vshll.u32 %v1272, 16
    %v1297 = vrot.slane %v1295, 1
    %v1298 = vsel %vm327, %v1293, %v1297
    %v1299 = vshrl.u32 %v1271, 16
    %v1301 = vor.u32 %v1299, %v1285
    %v1303 = vshll.u32 %v1273, 16
    %v1305 = vrot.slane %v1303, 1
    %v1306 = vsel %vm327, %v1301, %v1305
    %v1307 = vshrl.u32 %v1272, 16
    %v1309 = vor.u32 %v1307, %v1297
    %v1311 = vshll.u32 %v1274, 16
    %v1313 = vrot.slane %v1311, 1
    %v1314 = vsel %vm327, %v1309, %v1313
    %v1315 = vshrl.u32 %v1273, 16
    %v1317 = vor.u32 %v1315, %v1305
    %v1318 = vshrl.u32 %v1274, 16
    %v1320 = vor.u32 %v1318, %v1313
    %v1325 = vsel %vm521, %v1298, 0
    %v1328 = vsel %vm521, %v1314, 0
    %v1331 = vsel %vm521, %v1320, 0
    %1333 = vmatprep.subr.bf16.mxu0 %v468
    %1334 = vmatpush1.bf16.msra.mxu0 %v467
    %1335 = vmatprep.subr.bf16.mxu0 %v471
    %1336 = vmatpush1.bf16.msra.mxu0 %v470
    %1337 = vmatprep.subr.bf16.mxu0 %v474
    %1338 = vmatpush1.bf16.msra.mxu0 %v473
    %1339 = vmatprep.subr.bf16.mxu0 %v477
    %1340 = vmatpush1.bf16.msra.mxu0 %v476
    %1341 = vmatprep.subr.bf16.mxu0 %v480
    %1342 = vmatpush1.bf16.msra.mxu0 %v479
    %1343 = vmatprep.subr.bf16.mxu0 %v483
    %1344 = vmatpush1.bf16.msra.mxu0 %v482
    %1345 = vmatprep.subr.bf16.mxu0 %v486
    %1346 = vmatpush1.bf16.msra.mxu0 %v485
    %1347 = vmatprep.subr.bf16.mxu0 %v489
    %1348 = vmatpush1.bf16.msra.mxu0 %v488
    %1349 = vmatprep.subr.bf16.mxu0 %v492
    %1350 = vmatpush1.bf16.msra.mxu0 %v491
    %1351 = vmatprep.subr.bf16.mxu0 0
    %1352 = vmatpush1.bf16.msra.mxu0 0
    %1353 = vmatprep.subr.bf16.mxu0 0
    %1354 = vmatpush1.bf16.msra.mxu0 0
    %1355 = vmatprep.subr.bf16.mxu0 0
    %1356 = vmatpush1.bf16.msra.mxu0 0
    %1357 = vmatprep.subr.bf16.mxu0 0
    %1358 = vmatpush1.bf16.msra.mxu0 0
    %1359 = vmatprep.subr.bf16.mxu0 0
    %1360 = vmatpush1.bf16.msra.mxu0 0
    %1361 = vmatprep.subr.bf16.mxu0 0
    %1362 = vmatpush1.bf16.msra.mxu0 0
    %1363 = vmatprep.subr.bf16.mxu0 0
    %1364 = vmatpush1.bf16.msra.mxu0 0
    %1365 = vmatprep.mubr.bf16.mxu0 %v1325
    %1366 = vmatmul.mubr.bf16.gmra.mrb[0].mxu0 %v1286
    %v1367 = vpop.f32.mrb[0].mxu0
    %v1368 = vadd.f32 0.0, %v1367
    %v1369 = vpop.f32.mrb[0].mxu0
    %v1370 = vadd.f32 0.0, %v1369
    %v1371 = vpop.f32.mrb[0].mxu0
    %v1372 = vadd.f32 0.0, %v1371
    %v1373 = vpop.f32.mrb[0].mxu0
    %v1374 = vadd.f32 0.0, %v1373
    %1375 = vmatprep.mubr.bf16.mxu0 %v1328
    %1376 = vmatmul.mubr.bf16.gmra.mrb[0].mxu0 %v1306
    %v1377 = vpop.f32.mrb[0].mxu0
    %v1378 = vadd.f32 0.0, %v1377
    %v1379 = vpop.f32.mrb[0].mxu0
    %v1380 = vadd.f32 0.0, %v1379
    %v1381 = vpop.f32.mrb[0].mxu0
    %v1382 = vadd.f32 0.0, %v1381
    %v1383 = vpop.f32.mrb[0].mxu0
    %v1384 = vadd.f32 0.0, %v1383
    %1385 = vmatprep.mubr.bf16.mxu0 %v1331
    %1386 = vmatmul.mubr.bf16.gmra.mrb[0].mxu0 %v1317
    %v1387 = vpop.f32.mrb[0].mxu0
    %v1388 = vadd.f32 0.0, %v1387
    %v1389 = vpop.f32.mrb[0].mxu0
    %v1390 = vadd.f32 0.0, %v1389
    %v1391 = vpop.f32.mrb[0].mxu0
    %v1392 = vadd.f32 0.0, %v1391
    %v1393 = vpop.f32.mrb[0].mxu0
    %v1394 = vadd.f32 0.0, %v1393
    %1395 = vdwg.mxu0
    %1396 = vmatprep.subr.bf16.mxu0 0
    %1397 = vmatpush1.bf16.msra.mxu0 %v469
    %1398 = vmatprep.subr.bf16.mxu0 0
    %1399 = vmatpush1.bf16.msra.mxu0 %v472
    %1400 = vmatprep.subr.bf16.mxu0 0
    %1401 = vmatpush1.bf16.msra.mxu0 %v475
    %1402 = vmatprep.subr.bf16.mxu0 0
    %1403 = vmatpush1.bf16.msra.mxu0 %v478
    %1404 = vmatprep.subr.bf16.mxu0 0
    %1405 = vmatpush1.bf16.msra.mxu0 %v481
    %1406 = vmatprep.subr.bf16.mxu0 0
    %1407 = vmatpush1.bf16.msra.mxu0 %v484
    %1408 = vmatprep.subr.bf16.mxu0 0
    %1409 = vmatpush1.bf16.msra.mxu0 %v487
    %1410 = vmatprep.subr.bf16.mxu0 0
    %1411 = vmatpush1.bf16.msra.mxu0 %v490
    %1412 = vmatprep.subr.bf16.mxu0 0
    %1413 = vmatpush1.bf16.msra.mxu0 %v493
    %1414 = vmatprep.subr.bf16.mxu0 0
    %1415 = vmatpush1.bf16.msra.mxu0 0
    %1416 = vmatprep.subr.bf16.mxu0 0
    %1417 = vmatpush1.bf16.msra.mxu0 0
    %1418 = vmatprep.subr.bf16.mxu0 0
    %1419 = vmatpush1.bf16.msra.mxu0 0
    %1420 = vmatprep.subr.bf16.mxu0 0
    %1421 = vmatpush1.bf16.msra.mxu0 0
    %1422 = vmatprep.subr.bf16.mxu0 0
    %1423 = vmatpush1.bf16.msra.mxu0 0
    %1424 = vmatprep.subr.bf16.mxu0 0
    %1425 = vmatpush1.bf16.msra.mxu0 0
    %1426 = vmatprep.subr.bf16.mxu0 0
    %1427 = vmatpush1.bf16.msra.mxu0 0
    %1428 = vmatprep.mubr.bf16.mxu0 %v1325
    %1429 = vmatmul.mubr.bf16.gmra.mrb[0].mxu0 %v1286
    %v1430 = vpop.f32.mrb[0].mxu0
    %v1431 = vadd.f32 0.0, %v1430
    %v1432 = vpop.f32.mrb[0].mxu0
    %v1433 = vpop.f32.mrb[0].mxu0
    %v1434 = vadd.f32 0.0, %v1433
    %v1435 = vpop.f32.mrb[0].mxu0
    %1436 = vmatprep.mubr.bf16.mxu0 %v1328
    %1437 = vmatmul.mubr.bf16.gmra.mrb[0].mxu0 %v1306
    %v1438 = vpop.f32.mrb[0].mxu0
    %v1439 = vadd.f32 0.0, %v1438
    %v1440 = vpop.f32.mrb[0].mxu0
    %v1441 = vpop.f32.mrb[0].mxu0
    %v1442 = vadd.f32 0.0, %v1441
    %v1443 = vpop.f32.mrb[0].mxu0
    %1444 = vmatprep.mubr.bf16.mxu0 %v1331
    %1445 = vmatmul.mubr.bf16.gmra.mrb[0].mxu0 %v1317
    %v1446 = vpop.f32.mrb[0].mxu0
    %v1447 = vadd.f32 0.0, %v1446
    %v1448 = vpop.f32.mrb[0].mxu0
    %v1449 = vpop.f32.mrb[0].mxu0
    %v1450 = vadd.f32 0.0, %v1449
    %v1451 = vpop.f32.mrb[0].mxu0
    %1452 = vdwg.mxu0
    %v1453 = vsel %vm521, %v1270, 0
    %v1455 = vsel %vm521, %v1272, 0
    %v1457 = vsel %vm521, %v1274, 0
    %1459 = vmatprep.subr.bf16.mxu0 %v742
    %1460 = vmatpush1.bf16.msra.mxu0 %v741
    %1461 = vmatprep.subr.bf16.mxu0 %v745
    %1462 = vmatpush1.bf16.msra.mxu0 %v744
    %1463 = vmatprep.subr.bf16.mxu0 %v748
    %1464 = vmatpush1.bf16.msra.mxu0 %v747
    %1465 = vmatprep.subr.bf16.mxu0 %v751
    %1466 = vmatpush1.bf16.msra.mxu0 %v750
    %1467 = vmatprep.subr.bf16.mxu0 %v754
    %1468 = vmatpush1.bf16.msra.mxu0 %v753
    %1469 = vmatprep.subr.bf16.mxu0 %v757
    %1470 = vmatpush1.bf16.msra.mxu0 %v756
    %1471 = vmatprep.subr.bf16.mxu0 %v760
    %1472 = vmatpush1.bf16.msra.mxu0 %v759
    %1473 = vmatprep.subr.bf16.mxu0 %v763
    %1474 = vmatpush1.bf16.msra.mxu0 %v762
    %1475 = vmatprep.subr.bf16.mxu0 %v766
    %1476 = vmatpush1.bf16.msra.mxu0 %v765
    %1477 = vmatprep.subr.bf16.mxu0 0
    %1478 = vmatpush1.bf16.msra.mxu0 0
    %1479 = vmatprep.subr.bf16.mxu0 0
    %1480 = vmatpush1.bf16.msra.mxu0 0
    %1481 = vmatprep.subr.bf16.mxu0 0
    %1482 = vmatpush1.bf16.msra.mxu0 0
    %1483 = vmatprep.subr.bf16.mxu0 0
    %1484 = vmatpush1.bf16.msra.mxu0 0
    %1485 = vmatprep.subr.bf16.mxu0 0
    %1486 = vmatpush1.bf16.msra.mxu0 0
    %1487 = vmatprep.subr.bf16.mxu0 0
    %1488 = vmatpush1.bf16.msra.mxu0 0
    %1489 = vmatprep.subr.bf16.mxu0 0
    %1490 = vmatpush1.bf16.msra.mxu0 0
    %1491 = vmatprep.mubr.bf16.mxu0 %v1453
    %1492 = vmatmul.mubr.bf16.gmra.mrb[0].mxu0 %v1269
    %v1493 = vpop.f32.mrb[0].mxu0
    %v1494 = vadd.f32 %v1368, %v1493
    %v1495 = vpop.f32.mrb[0].mxu0
    %v1496 = vadd.f32 %v1370, %v1495
    %v1497 = vpop.f32.mrb[0].mxu0
    %v1498 = vadd.f32 %v1372, %v1497
    %v1499 = vpop.f32.mrb[0].mxu0
    %v1500 = vadd.f32 %v1374, %v1499
    %1501 = vmatprep.mubr.bf16.mxu0 %v1455
    %1502 = vmatmul.mubr.bf16.gmra.mrb[0].mxu0 %v1271
    %v1503 = vpop.f32.mrb[0].mxu0
    %v1504 = vadd.f32 %v1378, %v1503
    %v1505 = vpop.f32.mrb[0].mxu0
    %v1506 = vadd.f32 %v1380, %v1505
    %v1507 = vpop.f32.mrb[0].mxu0
    %v1508 = vadd.f32 %v1382, %v1507
    %v1509 = vpop.f32.mrb[0].mxu0
    %v1510 = vadd.f32 %v1384, %v1509
    %1511 = vmatprep.mubr.bf16.mxu0 %v1457
    %1512 = vmatmul.mubr.bf16.gmra.mrb[0].mxu0 %v1273
    %v1513 = vpop.f32.mrb[0].mxu0
    %v1514 = vadd.f32 %v1388, %v1513
    %v1515 = vpop.f32.mrb[0].mxu0
    %v1516 = vadd.f32 %v1390, %v1515
    %v1517 = vpop.f32.mrb[0].mxu0
    %v1518 = vadd.f32 %v1392, %v1517
    %v1519 = vpop.f32.mrb[0].mxu0
    %v1520 = vadd.f32 %v1394, %v1519
    %1521 = vdwg.mxu0
    %1522 = vmatprep.subr.bf16.mxu0 0
    %1523 = vmatpush1.bf16.msra.mxu0 %v743
    %1524 = vmatprep.subr.bf16.mxu0 0
    %1525 = vmatpush1.bf16.msra.mxu0 %v746
    %1526 = vmatprep.subr.bf16.mxu0 0
    %1527 = vmatpush1.bf16.msra.mxu0 %v749
    %1528 = vmatprep.subr.bf16.mxu0 0
    %1529 = vmatpush1.bf16.msra.mxu0 %v752
    %1530 = vmatprep.subr.bf16.mxu0 0
    %1531 = vmatpush1.bf16.msra.mxu0 %v755
    %1532 = vmatprep.subr.bf16.mxu0 0
    %1533 = vmatpush1.bf16.msra.mxu0 %v758
    %1534 = vmatprep.subr.bf16.mxu0 0
    %1535 = vmatpush1.bf16.msra.mxu0 %v761
    %1536 = vmatprep.subr.bf16.mxu0 0
    %1537 = vmatpush1.bf16.msra.mxu0 %v764
    %1538 = vmatprep.subr.bf16.mxu0 0
    %1539 = vmatpush1.bf16.msra.mxu0 %v767
    %1540 = vmatprep.subr.bf16.mxu0 0
    %1541 = vmatpush1.bf16.msra.mxu0 0
    %1542 = vmatprep.subr.bf16.mxu0 0
    %1543 = vmatpush1.bf16.msra.mxu0 0
    %1544 = vmatprep.subr.bf16.mxu0 0
    %1545 = vmatpush1.bf16.msra.mxu0 0
    %1546 = vmatprep.subr.bf16.mxu0 0
    %1547 = vmatpush1.bf16.msra.mxu0 0
    %1548 = vmatprep.subr.bf16.mxu0 0
    %1549 = vmatpush1.bf16.msra.mxu0 0
    %1550 = vmatprep.subr.bf16.mxu0 0
    %1551 = vmatpush1.bf16.msra.mxu0 0
    %1552 = vmatprep.subr.bf16.mxu0 0
    %1553 = vmatpush1.bf16.msra.mxu0 0
    %1554 = vmatprep.mubr.bf16.mxu0 %v1453
    %1555 = vmatmul.mubr.bf16.gmra.mrb[0].mxu0 %v1269
    %v1556 = vpop.f32.mrb[0].mxu0
    %v1557 = vadd.f32 %v1431, %v1556
    %v1558 = vpop.f32.mrb[0].mxu0
    %v1559 = vpop.f32.mrb[0].mxu0
    %v1560 = vadd.f32 %v1434, %v1559
    %v1561 = vpop.f32.mrb[0].mxu0
    %1562 = vmatprep.mubr.bf16.mxu0 %v1455
    %1563 = vmatmul.mubr.bf16.gmra.mrb[0].mxu0 %v1271
    %v1564 = vpop.f32.mrb[0].mxu0
    %v1565 = vadd.f32 %v1439, %v1564
    %v1566 = vpop.f32.mrb[0].mxu0
    %v1567 = vpop.f32.mrb[0].mxu0
    %v1568 = vadd.f32 %v1442, %v1567
    %v1569 = vpop.f32.mrb[0].mxu0
    %1570 = vmatprep.mubr.bf16.mxu0 %v1457
    %1571 = vmatmul.mubr.bf16.gmra.mrb[0].mxu0 %v1273
    %v1572 = vpop.f32.mrb[0].mxu0
    %v1573 = vadd.f32 %v1447, %v1572
    %v1574 = vpop.f32.mrb[0].mxu0
    %v1575 = vpop.f32.mrb[0].mxu0
    %v1576 = vadd.f32 %v1450, %v1575
    %v1577 = vpop.f32.mrb[0].mxu0
    %1578 = vdwg.mxu0
    %v1585 = vrot.slane %v1269, 1
    %v1586 = vrot.slane %v1271, 1
    %v1587 = vsel %vm964, %v1585, %v1586
    %v1588 = vrot.slane %v1270, 1
    %v1589 = vrot.slane %v1272, 1
    %v1590 = vsel %vm964, %v1588, %v1589
    %v1591 = vrot.slane %v1273, 1
    %v1592 = vsel %vm964, %v1586, %v1591
    %v1593 = vrot.slane %v1274, 1
    %v1594 = vsel %vm964, %v1589, %v1593
    %v1599 = vsel %vm521, %v1590, 0
    %v1602 = vsel %vm521, %v1594, 0
    %v1605 = vsel %vm521, %v1593, 0
    %1607 = vmatprep.subr.bf16.mxu0 %v1069
    %1608 = vmatpush1.bf16.msra.mxu0 %v1068
    %1609 = vmatprep.subr.bf16.mxu0 %v1072
    %1610 = vmatpush1.bf16.msra.mxu0 %v1071
    %1611 = vmatprep.subr.bf16.mxu0 %v1075
    %1612 = vmatpush1.bf16.msra.mxu0 %v1074
    %1613 = vmatprep.subr.bf16.mxu0 %v1078
    %1614 = vmatpush1.bf16.msra.mxu0 %v1077
    %1615 = vmatprep.subr.bf16.mxu0 %v1081
    %1616 = vmatpush1.bf16.msra.mxu0 %v1080
    %1617 = vmatprep.subr.bf16.mxu0 %v1084
    %1618 = vmatpush1.bf16.msra.mxu0 %v1083
    %1619 = vmatprep.subr.bf16.mxu0 %v1087
    %1620 = vmatpush1.bf16.msra.mxu0 %v1086
    %1621 = vmatprep.subr.bf16.mxu0 %v1090
    %1622 = vmatpush1.bf16.msra.mxu0 %v1089
    %1623 = vmatprep.subr.bf16.mxu0 %v1093
    %1624 = vmatpush1.bf16.msra.mxu0 %v1092
    %1625 = vmatprep.subr.bf16.mxu0 0
    %1626 = vmatpush1.bf16.msra.mxu0 0
    %1627 = vmatprep.subr.bf16.mxu0 0
    %1628 = vmatpush1.bf16.msra.mxu0 0
    %1629 = vmatprep.subr.bf16.mxu0 0
    %1630 = vmatpush1.bf16.msra.mxu0 0
    %1631 = vmatprep.subr.bf16.mxu0 0
    %1632 = vmatpush1.bf16.msra.mxu0 0
    %1633 = vmatprep.subr.bf16.mxu0 0
    %1634 = vmatpush1.bf16.msra.mxu0 0
    %1635 = vmatprep.subr.bf16.mxu0 0
    %1636 = vmatpush1.bf16.msra.mxu0 0
    %1637 = vmatprep.subr.bf16.mxu0 0
    %1638 = vmatpush1.bf16.msra.mxu0 0
    %1639 = vmatprep.mubr.bf16.mxu0 %v1599
    %1640 = vmatmul.mubr.bf16.gmra.mrb[0].mxu0 %v1587
    %v1641 = vpop.f32.mrb[0].mxu0
    %v1642 = vadd.f32 0.0, %v1641
    %v1643 = vpop.f32.mrb[0].mxu0
    %v1644 = vadd.f32 0.0, %v1643
    %v1645 = vpop.f32.mrb[0].mxu0
    %v1646 = vadd.f32 0.0, %v1645
    %v1647 = vpop.f32.mrb[0].mxu0
    %v1648 = vadd.f32 0.0, %v1647
    %1649 = vmatprep.mubr.bf16.mxu0 %v1602
    %1650 = vmatmul.mubr.bf16.gmra.mrb[0].mxu0 %v1592
    %v1651 = vpop.f32.mrb[0].mxu0
    %v1652 = vadd.f32 0.0, %v1651
    %v1653 = vpop.f32.mrb[0].mxu0
    %v1654 = vadd.f32 0.0, %v1653
    %v1655 = vpop.f32.mrb[0].mxu0
    %v1656 = vadd.f32 0.0, %v1655
    %v1657 = vpop.f32.mrb[0].mxu0
    %v1658 = vadd.f32 0.0, %v1657
    %1659 = vmatprep.mubr.bf16.mxu0 %v1605
    %1660 = vmatmul.mubr.bf16.gmra.mrb[0].mxu0 %v1591
    %v1661 = vpop.f32.mrb[0].mxu0
    %v1662 = vadd.f32 0.0, %v1661
    %v1663 = vpop.f32.mrb[0].mxu0
    %v1664 = vadd.f32 0.0, %v1663
    %v1665 = vpop.f32.mrb[0].mxu0
    %v1666 = vadd.f32 0.0, %v1665
    %v1667 = vpop.f32.mrb[0].mxu0
    %v1668 = vadd.f32 0.0, %v1667
    %1669 = vdwg.mxu0
    %1670 = vmatprep.subr.bf16.mxu0 0
    %1671 = vmatpush1.bf16.msra.mxu0 %v1070
    %1672 = vmatprep.subr.bf16.mxu0 0
    %1673 = vmatpush1.bf16.msra.mxu0 %v1073
    %1674 = vmatprep.subr.bf16.mxu0 0
    %1675 = vmatpush1.bf16.msra.mxu0 %v1076
    %1676 = vmatprep.subr.bf16.mxu0 0
    %1677 = vmatpush1.bf16.msra.mxu0 %v1079
    %1678 = vmatprep.subr.bf16.mxu0 0
    %1679 = vmatpush1.bf16.msra.mxu0 %v1082
    %1680 = vmatprep.subr.bf16.mxu0 0
    %1681 = vmatpush1.bf16.msra.mxu0 %v1085
    %1682 = vmatprep.subr.bf16.mxu0 0
    %1683 = vmatpush1.bf16.msra.mxu0 %v1088
    %1684 = vmatprep.subr.bf16.mxu0 0
    %1685 = vmatpush1.bf16.msra.mxu0 %v1091
    %1686 = vmatprep.subr.bf16.mxu0 0
    %1687 = vmatpush1.bf16.msra.mxu0 %v1094
    %1688 = vmatprep.subr.bf16.mxu0 0
    %1689 = vmatpush1.bf16.msra.mxu0 0
    %1690 = vmatprep.subr.bf16.mxu0 0
    %1691 = vmatpush1.bf16.msra.mxu0 0
    %1692 = vmatprep.subr.bf16.mxu0 0
    %1693 = vmatpush1.bf16.msra.mxu0 0
    %1694 = vmatprep.subr.bf16.mxu0 0
    %1695 = vmatpush1.bf16.msra.mxu0 0
    %1696 = vmatprep.subr.bf16.mxu0 0
    %1697 = vmatpush1.bf16.msra.mxu0 0
    %1698 = vmatprep.subr.bf16.mxu0 0
    %1699 = vmatpush1.bf16.msra.mxu0 0
    %1700 = vmatprep.subr.bf16.mxu0 0
    %1701 = vmatpush1.bf16.msra.mxu0 0
    %1702 = vmatprep.mubr.bf16.mxu0 %v1599
    %1703 = vmatmul.mubr.bf16.gmra.mrb[0].mxu0 %v1587
    %v1704 = vpop.f32.mrb[0].mxu0
    %v1705 = vadd.f32 0.0, %v1704
    %v1706 = vpop.f32.mrb[0].mxu0
    %v1707 = vpop.f32.mrb[0].mxu0
    %v1708 = vadd.f32 0.0, %v1707
    %v1709 = vpop.f32.mrb[0].mxu0
    %1710 = vmatprep.mubr.bf16.mxu0 %v1602
    %1711 = vmatmul.mubr.bf16.gmra.mrb[0].mxu0 %v1592
    %v1712 = vpop.f32.mrb[0].mxu0
    %v1713 = vadd.f32 0.0, %v1712
    %v1714 = vpop.f32.mrb[0].mxu0
    %v1715 = vpop.f32.mrb[0].mxu0
    %v1716 = vadd.f32 0.0, %v1715
    %v1717 = vpop.f32.mrb[0].mxu0
    %1718 = vmatprep.mubr.bf16.mxu0 %v1605
    %1719 = vmatmul.mubr.bf16.gmra.mrb[0].mxu0 %v1591
    %v1720 = vpop.f32.mrb[0].mxu0
    %v1721 = vadd.f32 0.0, %v1720
    %v1722 = vpop.f32.mrb[0].mxu0
    %v1723 = vpop.f32.mrb[0].mxu0
    %v1724 = vadd.f32 0.0, %v1723
    %v1725 = vpop.f32.mrb[0].mxu0
    %1726 = vdwg.mxu0
    %v1727 = vadd.f32 %v1494, %v1642
    %v1728 = vadd.f32 %v1496, %v1644
    %v1729 = vadd.f32 %v1557, %v1705
    %v1730 = vadd.f32 %v1498, %v1646
    %v1731 = vadd.f32 %v1500, %v1648
    %v1732 = vadd.f32 %v1560, %v1708
    %v1733 = vadd.f32 %v1504, %v1652
    %v1734 = vadd.f32 %v1506, %v1654
    %v1735 = vadd.f32 %v1565, %v1713
    %v1736 = vadd.f32 %v1508, %v1656
    %v1737 = vadd.f32 %v1510, %v1658
    %v1738 = vadd.f32 %v1568, %v1716
    %v1739 = vadd.f32 %v1514, %v1662
    %v1740 = vadd.f32 %v1516, %v1664
    %v1741 = vadd.f32 %v1573, %v1721
    %v1742 = vadd.f32 %v1518, %v1666
    %v1743 = vadd.f32 %v1520, %v1668
    %v1744 = vadd.f32 %v1576, %v1724
    %v1745 = vadd.f32 %v1251, %v1254
    %v1746 = vadd.f32 %v1745, %v1257
    %v1747 = vadd.f32 %v1746, %v1260
    %v1748 = vadd.f32 %v1747, %v1263
    %vm1749 = vcmask 1045504
    %v1750 = vsel %vm1749, %v1266, 0.0
    %v1751 = vadd.f32 %v1748, %v1750
    %v1752 = vrot.slane %v1751, 4
    %v1753 = vadd.f32 %v1751, %v1752
    %v1754 = vrot.slane %v1753, 2
    %v1755 = vadd.f32 %v1753, %v1754
    %v1756 = vrot.slane %v1755, 1
    %v1757 = vadd.f32 %v1755, %v1756
    %v1758 = vadd.f32 %v1252, %v1255
    %v1759 = vadd.f32 %v1758, %v1258
    %v1760 = vadd.f32 %v1759, %v1261
    %v1761 = vadd.f32 %v1760, %v1264
    %v1762 = vsel %vm1749, %v1267, 0.0
    %v1763 = vadd.f32 %v1761, %v1762
    %v1764 = vrot.slane %v1763, 4
    %v1765 = vadd.f32 %v1763, %v1764
    %v1766 = vrot.slane %v1765, 2
    %v1767 = vadd.f32 %v1765, %v1766
    %v1768 = vrot.slane %v1767, 1
    %v1769 = vadd.f32 %v1767, %v1768
    %vm1770 = vcmask 162816
    %v1771 = vsel %vm1770, %v1253, 0.0
    %v1772 = vsel %vm1770, %v1256, 0.0
    %v1773 = vadd.f32 %v1771, %v1772
    %v1774 = vsel %vm1770, %v1259, 0.0
    %v1775 = vadd.f32 %v1773, %v1774
    %v1776 = vsel %vm1770, %v1262, 0.0
    %v1777 = vadd.f32 %v1775, %v1776
    %v1778 = vsel %vm1770, %v1265, 0.0
    %v1779 = vadd.f32 %v1777, %v1778
    %vm1780 = vcmask 160768
    %v1781 = vsel %vm1780, %v1268, 0.0
    %v1782 = vadd.f32 %v1779, %v1781
    %v1783 = vrot.slane %v1782, 4
    %v1784 = vadd.f32 %v1782, %v1783
    %v1785 = vrot.slane %v1784, 2
    %v1786 = vadd.f32 %v1784, %v1785
    %v1787 = vrot.slane %v1786, 1
    %v1788 = vadd.f32 %v1786, %v1787
    %v1789 = vadd.f32 %v1757, 0.0
    %v1790 = vadd.f32 %v1769, 0.0
    %v1791 = vadd.f32 %v1788, 0.0
    %v1792 = vmul.f32 %v1251, %v1251
    %v1793 = vmul.f32 %v1252, %v1252
    %v1794 = vmul.f32 %v1253, %v1253
    %v1795 = vmul.f32 %v1254, %v1254
    %v1796 = vmul.f32 %v1255, %v1255
    %v1797 = vmul.f32 %v1256, %v1256
    %v1798 = vmul.f32 %v1257, %v1257
    %v1799 = vmul.f32 %v1258, %v1258
    %v1800 = vmul.f32 %v1259, %v1259
    %v1801 = vmul.f32 %v1260, %v1260
    %v1802 = vmul.f32 %v1261, %v1261
    %v1803 = vmul.f32 %v1262, %v1262
    %v1804 = vmul.f32 %v1263, %v1263
    %v1805 = vmul.f32 %v1264, %v1264
    %v1806 = vmul.f32 %v1265, %v1265
    %v1807 = vmul.f32 %v1266, %v1266
    %v1808 = vmul.f32 %v1267, %v1267
    %v1809 = vmul.f32 %v1268, %v1268
    %v1810 = vadd.f32 %v1792, %v1795
    %v1811 = vadd.f32 %v1810, %v1798
    %v1812 = vadd.f32 %v1811, %v1801
    %v1813 = vadd.f32 %v1812, %v1804
    %v1814 = vsel %vm1749, %v1807, 0.0
    %v1815 = vadd.f32 %v1813, %v1814
    %v1816 = vrot.slane %v1815, 4
    %v1817 = vadd.f32 %v1815, %v1816
    %v1818 = vrot.slane %v1817, 2
    %v1819 = vadd.f32 %v1817, %v1818
    %v1820 = vrot.slane %v1819, 1
    %v1821 = vadd.f32 %v1819, %v1820
    %v1822 = vadd.f32 %v1793, %v1796
    %v1823 = vadd.f32 %v1822, %v1799
    %v1824 = vadd.f32 %v1823, %v1802
    %v1825 = vadd.f32 %v1824, %v1805
    %v1826 = vsel %vm1749, %v1808, 0.0
    %v1827 = vadd.f32 %v1825, %v1826
    %v1828 = vrot.slane %v1827, 4
    %v1829 = vadd.f32 %v1827, %v1828
    %v1830 = vrot.slane %v1829, 2
    %v1831 = vadd.f32 %v1829, %v1830
    %v1832 = vrot.slane %v1831, 1
    %v1833 = vadd.f32 %v1831, %v1832
    %v1834 = vsel %vm1770, %v1794, 0.0
    %v1835 = vsel %vm1770, %v1797, 0.0
    %v1836 = vadd.f32 %v1834, %v1835
    %v1837 = vsel %vm1770, %v1800, 0.0
    %v1838 = vadd.f32 %v1836, %v1837
    %v1839 = vsel %vm1770, %v1803, 0.0
    %v1840 = vadd.f32 %v1838, %v1839
    %v1841 = vsel %vm1770, %v1806, 0.0
    %v1842 = vadd.f32 %v1840, %v1841
    %v1843 = vsel %vm1780, %v1809, 0.0
    %v1844 = vadd.f32 %v1842, %v1843
    %v1845 = vrot.slane %v1844, 4
    %v1846 = vadd.f32 %v1844, %v1845
    %v1847 = vrot.slane %v1846, 2
    %v1848 = vadd.f32 %v1846, %v1847
    %v1849 = vrot.slane %v1848, 1
    %v1850 = vadd.f32 %v1848, %v1849
    %v1851 = vadd.f32 %v1821, 0.0
    %v1852 = vadd.f32 %v1833, 0.0
    %v1853 = vadd.f32 %v1850, 0.0
    %v1854 = vadd.f32 %v1727, %v1730
    %v1855 = vadd.f32 %v1854, %v1733
    %v1856 = vadd.f32 %v1855, %v1736
    %v1857 = vadd.f32 %v1856, %v1739
    %v1858 = vsel %vm1749, %v1742, 0.0
    %v1859 = vadd.f32 %v1857, %v1858
    %v1860 = vrot.slane %v1859, 4
    %v1861 = vadd.f32 %v1859, %v1860
    %v1862 = vrot.slane %v1861, 2
    %v1863 = vadd.f32 %v1861, %v1862
    %v1864 = vrot.slane %v1863, 1
    %v1865 = vadd.f32 %v1863, %v1864
    %v1866 = vadd.f32 %v1728, %v1731
    %v1867 = vadd.f32 %v1866, %v1734
    %v1868 = vadd.f32 %v1867, %v1737
    %v1869 = vadd.f32 %v1868, %v1740
    %v1870 = vsel %vm1749, %v1743, 0.0
    %v1871 = vadd.f32 %v1869, %v1870
    %v1872 = vrot.slane %v1871, 4
    %v1873 = vadd.f32 %v1871, %v1872
    %v1874 = vrot.slane %v1873, 2
    %v1875 = vadd.f32 %v1873, %v1874
    %v1876 = vrot.slane %v1875, 1
    %v1877 = vadd.f32 %v1875, %v1876
    %v1878 = vsel %vm1770, %v1729, 0.0
    %v1879 = vsel %vm1770, %v1732, 0.0
    %v1880 = vadd.f32 %v1878, %v1879
    %v1881 = vsel %vm1770, %v1735, 0.0
    %v1882 = vadd.f32 %v1880, %v1881
    %v1883 = vsel %vm1770, %v1738, 0.0
    %v1884 = vadd.f32 %v1882, %v1883
    %v1885 = vsel %vm1770, %v1741, 0.0
    %v1886 = vadd.f32 %v1884, %v1885
    %v1887 = vsel %vm1780, %v1744, 0.0
    %v1888 = vadd.f32 %v1886, %v1887
    %v1889 = vrot.slane %v1888, 4
    %v1890 = vadd.f32 %v1888, %v1889
    %v1891 = vrot.slane %v1890, 2
    %v1892 = vadd.f32 %v1890, %v1891
    %v1893 = vrot.slane %v1892, 1
    %v1894 = vadd.f32 %v1892, %v1893
    %v1895 = vadd.f32 %v1789, %v1865
    %v1896 = vadd.f32 %v1790, %v1877
    %v1897 = vadd.f32 %v1791, %v1894
    %v1898 = vmul.f32 %v1727, %v1727
    %v1899 = vmul.f32 %v1728, %v1728
    %v1900 = vmul.f32 %v1729, %v1729
    %v1901 = vmul.f32 %v1730, %v1730
    %v1902 = vmul.f32 %v1731, %v1731
    %v1903 = vmul.f32 %v1732, %v1732
    %v1904 = vmul.f32 %v1733, %v1733
    %v1905 = vmul.f32 %v1734, %v1734
    %v1906 = vmul.f32 %v1735, %v1735
    %v1907 = vmul.f32 %v1736, %v1736
    %v1908 = vmul.f32 %v1737, %v1737
    %v1909 = vmul.f32 %v1738, %v1738
    %v1910 = vmul.f32 %v1739, %v1739
    %v1911 = vmul.f32 %v1740, %v1740
    %v1912 = vmul.f32 %v1741, %v1741
    %v1913 = vmul.f32 %v1742, %v1742
    %v1914 = vmul.f32 %v1743, %v1743
    %v1915 = vmul.f32 %v1744, %v1744
    %v1916 = vadd.f32 %v1898, %v1901
    %v1917 = vadd.f32 %v1916, %v1904
    %v1918 = vadd.f32 %v1917, %v1907
    %v1919 = vadd.f32 %v1918, %v1910
    %v1920 = vsel %vm1749, %v1913, 0.0
    %v1921 = vadd.f32 %v1919, %v1920
    %v1922 = vrot.slane %v1921, 4
    %v1923 = vadd.f32 %v1921, %v1922
    %v1924 = vrot.slane %v1923, 2
    %v1925 = vadd.f32 %v1923, %v1924
    %v1926 = vrot.slane %v1925, 1
    %v1927 = vadd.f32 %v1925, %v1926
    %v1928 = vadd.f32 %v1899, %v1902
    %v1929 = vadd.f32 %v1928, %v1905
    %v1930 = vadd.f32 %v1929, %v1908
    %v1931 = vadd.f32 %v1930, %v1911
    %v1932 = vsel %vm1749, %v1914, 0.0
    %v1933 = vadd.f32 %v1931, %v1932
    %v1934 = vrot.slane %v1933, 4
    %v1935 = vadd.f32 %v1933, %v1934
    %v1936 = vrot.slane %v1935, 2
    %v1937 = vadd.f32 %v1935, %v1936
    %v1938 = vrot.slane %v1937, 1
    %v1939 = vadd.f32 %v1937, %v1938
    %v1940 = vsel %vm1770, %v1900, 0.0
    %v1941 = vsel %vm1770, %v1903, 0.0
    %v1942 = vadd.f32 %v1940, %v1941
    %v1943 = vsel %vm1770, %v1906, 0.0
    %v1944 = vadd.f32 %v1942, %v1943
    %v1945 = vsel %vm1770, %v1909, 0.0
    %v1946 = vadd.f32 %v1944, %v1945
    %v1947 = vsel %vm1770, %v1912, 0.0
    %v1948 = vadd.f32 %v1946, %v1947
    %v1949 = vsel %vm1780, %v1915, 0.0
    %v1950 = vadd.f32 %v1948, %v1949
    %v1951 = vrot.slane %v1950, 4
    %v1952 = vadd.f32 %v1950, %v1951
    %v1953 = vrot.slane %v1952, 2
    %v1954 = vadd.f32 %v1952, %v1953
    %v1955 = vrot.slane %v1954, 1
    %v1956 = vadd.f32 %v1954, %v1955
    %v1957 = vadd.f32 %v1851, %v1927
    %v1958 = vadd.f32 %v1852, %v1939
    %v1959 = vadd.f32 %v1853, %v1956
    %v1960 = vld [vmem:[%s2] sm:$0xff]
    %v1961 = vld [vmem:[%s2 + $0x8] sm:$0xff]
    %v1962 = vld [vmem:[%s2 + $0x10] sm:$0xff]
    %v1963 = vld [vmem:[%s2 + $0x18] sm:$0xff]
    %v1964 = vld [vmem:[%s2 + $0x20] sm:$0xff]
    %v1965 = vld [vmem:[%s2 + $0x28] sm:$0xff]
    %v1966 = vld [vmem:[%s2 + $0x30] sm:$0xff]
    %v1967 = vld [vmem:[%s2 + $0x38] sm:$0xff]
    %v1968 = vld [vmem:[%s2 + $0x40] sm:$0xff]
    %v1969 = vld [vmem:[%s2 + $0x48] sm:$0xff]
    %v1970 = vld [vmem:[%s2 + $0x50] sm:$0xff]
    %v1971 = vld [vmem:[%s2 + $0x58] sm:$0xff]
    %v1972 = vld [vmem:[%s2 + $0x60] sm:$0xff]
    %v1973 = vld [vmem:[%s2 + $0x68] sm:$0xff]
    %v1974 = vld [vmem:[%s2 + $0x70] sm:$0xff]
    %v1975 = vld [vmem:[%s2 + $0x78] sm:$0xff]
    %v1976 = vld [vmem:[%s2 + $0x80] sm:$0xff]
    %v1977 = vld [vmem:[%s2 + $0x88] sm:$0xff]
    %v1978 = vld [vmem:[%s2 + $0x90] sm:$0xff]
    %v1979 = vld [vmem:[%s2 + $0x98] sm:$0xff]
    %v1980 = vld [vmem:[%s2 + $0xa0] sm:$0xff]
    %v1981 = vld [vmem:[%s2 + $0xa8] sm:$0xff]
    %v1982 = vld [vmem:[%s2 + $0xb0] sm:$0xff]
    %v1983 = vld [vmem:[%s2 + $0xb8] sm:$0xff]
    %v1984 = vld [vmem:[%s2 + $0xc0] sm:$0xff]
    %v1985 = vld [vmem:[%s2 + $0xc8] sm:$0xff]
    %v1986 = vld [vmem:[%s2 + $0xd0] sm:$0xff]
    %v1987 = vld [vmem:[%s2 + $0xd8] sm:$0xff]
    %v1988 = vld [vmem:[%s2 + $0xe0] sm:$0xff]
    %v1989 = vld [vmem:[%s2 + $0xe8] sm:$0xff]
    %v1990 = vld [vmem:[%s2 + $0xf0] sm:$0xff]
    %v1991 = vld [vmem:[%s2 + $0xf8] sm:$0xff]
    %v1992 = vld [vmem:[%s2 + $0x100] sm:$0xff]
    %v1993 = vld [vmem:[%s2 + $0x108] sm:$0xff]
    %v1994 = vld [vmem:[%s2 + $0x110] sm:$0xf]
    %v1995 = vld [vmem:[#allocation3] sm:$0x3f]
    %v1996 = vld [vmem:[#allocation3 + $0x8] sm:$0x3f]
    %v1997 = vld [vmem:[#allocation3 + $0x10] sm:$0x3f]
    %v1999 = vsel %vm1770, %v1897, 0
    %vm2001 = vcmask 1043456
    %v2003 = vsel %vm2001, %v1994, 0
    %2005 = vmatprep.subr.mxu0 0.0
    %2006 = vmatpush1.msra.mxu0 %v1960
    %2007 = vmatprep.subr.mxu0 0.0
    %2008 = vmatpush1.msra.mxu0 %v1961
    %2009 = vmatprep.subr.mxu0 0.0
    %2010 = vmatpush1.msra.mxu0 %v1962
    %2011 = vmatprep.subr.mxu0 0.0
    %2012 = vmatpush1.msra.mxu0 %v1963
    %2013 = vmatprep.subr.mxu0 0.0
    %2014 = vmatpush1.msra.mxu0 %v1964
    %2015 = vmatprep.subr.mxu0 0.0
    %2016 = vmatpush1.msra.mxu0 %v1965
    %2017 = vmatprep.subr.mxu0 0.0
    %2018 = vmatpush1.msra.mxu0 %v1966
    %2019 = vmatprep.subr.mxu0 0.0
    %2020 = vmatpush1.msra.mxu0 %v1967
    %2021 = vmatprep.subr.mxu0 0.0
    %2022 = vmatpush1.msra.mxu0 %v1968
    %2023 = vmatprep.subr.mxu0 0.0
    %2024 = vmatpush1.msra.mxu0 %v1969
    %2025 = vmatprep.subr.mxu0 0.0
    %2026 = vmatpush1.msra.mxu0 %v1970
    %2027 = vmatprep.subr.mxu0 0.0
    %2028 = vmatpush1.msra.mxu0 %v1971
    %2029 = vmatprep.subr.mxu0 0.0
    %2030 = vmatpush1.msra.mxu0 %v1972
    %2031 = vmatprep.subr.mxu0 0.0
    %2032 = vmatpush1.msra.mxu0 %v1973
    %2033 = vmatprep.subr.mxu0 0.0
    %2034 = vmatpush1.msra.mxu0 %v1974
    %2035 = vmatprep.subr.mxu0 0.0
    %2036 = vmatpush1.msra.mxu0 %v1975
    %2037 = vmatprep.subr.mxu0 0.0
    %2038 = vmatpush1.msra.mxu0 %v1976
    %2039 = vmatprep.subr.mxu0 0.0
    %2040 = vmatpush1.msra.mxu0 %v1977
    %2041 = vmatprep.subr.mxu0 0.0
    %2042 = vmatpush1.msra.mxu0 %v1978
    %2043 = vmatprep.subr.mxu0 0.0
    %2044 = vmatpush1.msra.mxu0 %v1979
    %2045 = vmatprep.subr.mxu0 0.0
    %2046 = vmatpush1.msra.mxu0 %v1980
    %2047 = vmatprep.subr.mxu0 0.0
    %2048 = vmatpush1.msra.mxu0 %v1981
    %2049 = vmatprep.subr.mxu0 0.0
    %2050 = vmatpush1.msra.mxu0 %v1982
    %2051 = vmatprep.subr.mxu0 0.0
    %2052 = vmatpush1.msra.mxu0 %v1983
    %2053 = vmatprep.subr.mxu0 0.0
    %2054 = vmatpush1.msra.mxu0 %v1984
    %2055 = vmatprep.subr.mxu0 0.0
    %2056 = vmatpush1.msra.mxu0 %v1985
    %2057 = vmatprep.subr.mxu0 0.0
    %2058 = vmatpush1.msra.mxu0 %v1986
    %2059 = vmatprep.subr.mxu0 0.0
    %2060 = vmatpush1.msra.mxu0 %v1987
    %2061 = vmatprep.subr.mxu0 0.0
    %2062 = vmatpush1.msra.mxu0 %v1988
    %2063 = vmatprep.subr.mxu0 0.0
    %2064 = vmatpush1.msra.mxu0 %v1989
    %2065 = vmatprep.subr.mxu0 0.0
    %2066 = vmatpush1.msra.mxu0 %v1990
    %2067 = vmatprep.subr.mxu0 0.0
    %2068 = vmatpush1.msra.mxu0 %v1991
    %2069 = vmatprep.mubr.f32.mxu0 %v1896
    %2070 = vmatmul.mubr.f32.gmra.mrb[0].mxu0 %v1895
    %v2071 = vpop.f32.mrb[0].mxu0
    %v2072 = vadd.f32 0.0, %v2071
    %v2073 = vpop.f32.mrb[0].mxu0
    %2074 = vdwg.mxu0
    %2075 = vmatprep.subr.mxu0 0.0
    %2076 = vmatpush1.msra.mxu0 %v1992
    %2077 = vmatprep.subr.mxu0 0.0
    %2078 = vmatpush1.msra.mxu0 %v1993
    %2079 = vmatprep.subr.mxu0 0.0
    %2080 = vmatpush1.msra.mxu0 %v2003
    %2081 = vmatprep.subr.mxu0 0.0
    %2082 = vmatpush1.msra.mxu0 0.0
    %2083 = vmatprep.subr.mxu0 0.0
    %2084 = vmatpush1.msra.mxu0 0.0
    %2085 = vmatprep.subr.mxu0 0.0
    %2086 = vmatpush1.msra.mxu0 0.0
    %2087 = vmatprep.subr.mxu0 0.0
    %2088 = vmatpush1.msra.mxu0 0.0
    %2089 = vmatprep.subr.mxu0 0.0
    %2090 = vmatpush1.msra.mxu0 0.0
    %2091 = vmatprep.subr.mxu0 0.0
    %2092 = vmatpush1.msra.mxu0 0.0
    %2093 = vmatprep.subr.mxu0 0.0
    %2094 = vmatpush1.msra.mxu0 0.0
    %2095 = vmatprep.subr.mxu0 0.0
    %2096 = vmatpush1.msra.mxu0 0.0
    %2097 = vmatprep.subr.mxu0 0.0
    %2098 = vmatpush1.msra.mxu0 0.0
    %2099 = vmatprep.subr.mxu0 0.0
    %2100 = vmatpush1.msra.mxu0 0.0
    %2101 = vmatprep.subr.mxu0 0.0
    %2102 = vmatpush1.msra.mxu0 0.0
    %2103 = vmatprep.subr.mxu0 0.0
    %2104 = vmatpush1.msra.mxu0 0.0
    %2105 = vmatprep.subr.mxu0 0.0
    %2106 = vmatpush1.msra.mxu0 0.0
    %2107 = vmatprep.subr.mxu0 0.0
    %2108 = vmatpush1.msra.mxu0 0.0
    %2109 = vmatprep.subr.mxu0 0.0
    %2110 = vmatpush1.msra.mxu0 0.0
    %2111 = vmatprep.subr.mxu0 0.0
    %2112 = vmatpush1.msra.mxu0 0.0
    %2113 = vmatprep.subr.mxu0 0.0
    %2114 = vmatpush1.msra.mxu0 0.0
    %2115 = vmatprep.subr.mxu0 0.0
    %2116 = vmatpush1.msra.mxu0 0.0
    %2117 = vmatprep.subr.mxu0 0.0
    %2118 = vmatpush1.msra.mxu0 0.0
    %2119 = vmatprep.subr.mxu0 0.0
    %2120 = vmatpush1.msra.mxu0 0.0
    %2121 = vmatprep.subr.mxu0 0.0
    %2122 = vmatpush1.msra.mxu0 0.0
    %2123 = vmatprep.subr.mxu0 0.0
    %2124 = vmatpush1.msra.mxu0 0.0
    %2125 = vmatprep.subr.mxu0 0.0
    %2126 = vmatpush1.msra.mxu0 0.0
    %2127 = vmatprep.subr.mxu0 0.0
    %2128 = vmatpush1.msra.mxu0 0.0
    %2129 = vmatprep.subr.mxu0 0.0
    %2130 = vmatpush1.msra.mxu0 0.0
    %2131 = vmatprep.subr.mxu0 0.0
    %2132 = vmatpush1.msra.mxu0 0.0
    %2133 = vmatprep.subr.mxu0 0.0
    %2134 = vmatpush1.msra.mxu0 0.0
    %2135 = vmatprep.subr.mxu0 0.0
    %2136 = vmatpush1.msra.mxu0 0.0
    %2137 = vmatprep.subr.mxu0 0.0
    %2138 = vmatpush1.msra.mxu0 0.0
    %2139 = vmatprep.mubr.f32.mxu0 0.0
    %2140 = vmatmul.mubr.f32.gmra.mrb[0].mxu0 %v1999
    %v2141 = vpop.f32.mrb[0].mxu0
    %v2142 = vadd.f32 %v2072, %v2141
    %v2143 = vpop.f32.mrb[0].mxu0
    %2144 = vdwg.mxu0
    %v2145 = vmul.f32 %v2142, 0.0002362949
    %v2147 = vsel %vm1770, %v1959, 0
    %2149 = vmatprep.subr.mxu0 0.0
    %2150 = vmatpush1.msra.mxu0 %v1960
    %2151 = vmatprep.subr.mxu0 0.0
    %2152 = vmatpush1.msra.mxu0 %v1961
    %2153 = vmatprep.subr.mxu0 0.0
    %2154 = vmatpush1.msra.mxu0 %v1962
    %2155 = vmatprep.subr.mxu0 0.0
    %2156 = vmatpush1.msra.mxu0 %v1963
    %2157 = vmatprep.subr.mxu0 0.0
    %2158 = vmatpush1.msra.mxu0 %v1964
    %2159 = vmatprep.subr.mxu0 0.0
    %2160 = vmatpush1.msra.mxu0 %v1965
    %2161 = vmatprep.subr.mxu0 0.0
    %2162 = vmatpush1.msra.mxu0 %v1966
    %2163 = vmatprep.subr.mxu0 0.0
    %2164 = vmatpush1.msra.mxu0 %v1967
    %2165 = vmatprep.subr.mxu0 0.0
    %2166 = vmatpush1.msra.mxu0 %v1968
    %2167 = vmatprep.subr.mxu0 0.0
    %2168 = vmatpush1.msra.mxu0 %v1969
    %2169 = vmatprep.subr.mxu0 0.0
    %2170 = vmatpush1.msra.mxu0 %v1970
    %2171 = vmatprep.subr.mxu0 0.0
    %2172 = vmatpush1.msra.mxu0 %v1971
    %2173 = vmatprep.subr.mxu0 0.0
    %2174 = vmatpush1.msra.mxu0 %v1972
    %2175 = vmatprep.subr.mxu0 0.0
    %2176 = vmatpush1.msra.mxu0 %v1973
    %2177 = vmatprep.subr.mxu0 0.0
    %2178 = vmatpush1.msra.mxu0 %v1974
    %2179 = vmatprep.subr.mxu0 0.0
    %2180 = vmatpush1.msra.mxu0 %v1975
    %2181 = vmatprep.subr.mxu0 0.0
    %2182 = vmatpush1.msra.mxu0 %v1976
    %2183 = vmatprep.subr.mxu0 0.0
    %2184 = vmatpush1.msra.mxu0 %v1977
    %2185 = vmatprep.subr.mxu0 0.0
    %2186 = vmatpush1.msra.mxu0 %v1978
    %2187 = vmatprep.subr.mxu0 0.0
    %2188 = vmatpush1.msra.mxu0 %v1979
    %2189 = vmatprep.subr.mxu0 0.0
    %2190 = vmatpush1.msra.mxu0 %v1980
    %2191 = vmatprep.subr.mxu0 0.0
    %2192 = vmatpush1.msra.mxu0 %v1981
    %2193 = vmatprep.subr.mxu0 0.0
    %2194 = vmatpush1.msra.mxu0 %v1982
    %2195 = vmatprep.subr.mxu0 0.0
    %2196 = vmatpush1.msra.mxu0 %v1983
    %2197 = vmatprep.subr.mxu0 0.0
    %2198 = vmatpush1.msra.mxu0 %v1984
    %2199 = vmatprep.subr.mxu0 0.0
    %2200 = vmatpush1.msra.mxu0 %v1985
    %2201 = vmatprep.subr.mxu0 0.0
    %2202 = vmatpush1.msra.mxu0 %v1986
    %2203 = vmatprep.subr.mxu0 0.0
    %2204 = vmatpush1.msra.mxu0 %v1987
    %2205 = vmatprep.subr.mxu0 0.0
    %2206 = vmatpush1.msra.mxu0 %v1988
    %2207 = vmatprep.subr.mxu0 0.0
    %2208 = vmatpush1.msra.mxu0 %v1989
    %2209 = vmatprep.subr.mxu0 0.0
    %2210 = vmatpush1.msra.mxu0 %v1990
    %2211 = vmatprep.subr.mxu0 0.0
    %2212 = vmatpush1.msra.mxu0 %v1991
    %2213 = vmatprep.mubr.f32.mxu0 %v1958
    %2214 = vmatmul.mubr.f32.gmra.mrb[0].mxu0 %v1957
    %v2215 = vpop.f32.mrb[0].mxu0
    %v2216 = vadd.f32 0.0, %v2215
    %v2217 = vpop.f32.mrb[0].mxu0
    %2218 = vdwg.mxu0
    %2219 = vmatprep.subr.mxu0 0.0
    %2220 = vmatpush1.msra.mxu0 %v1992
    %2221 = vmatprep.subr.mxu0 0.0
    %2222 = vmatpush1.msra.mxu0 %v1993
    %2223 = vmatprep.subr.mxu0 0.0
    %2224 = vmatpush1.msra.mxu0 %v2003
    %2225 = vmatprep.subr.mxu0 0.0
    %2226 = vmatpush1.msra.mxu0 0.0
    %2227 = vmatprep.subr.mxu0 0.0
    %2228 = vmatpush1.msra.mxu0 0.0
    %2229 = vmatprep.subr.mxu0 0.0
    %2230 = vmatpush1.msra.mxu0 0.0
    %2231 = vmatprep.subr.mxu0 0.0
    %2232 = vmatpush1.msra.mxu0 0.0
    %2233 = vmatprep.subr.mxu0 0.0
    %2234 = vmatpush1.msra.mxu0 0.0
    %2235 = vmatprep.subr.mxu0 0.0
    %2236 = vmatpush1.msra.mxu0 0.0
    %2237 = vmatprep.subr.mxu0 0.0
    %2238 = vmatpush1.msra.mxu0 0.0
    %2239 = vmatprep.subr.mxu0 0.0
    %2240 = vmatpush1.msra.mxu0 0.0
    %2241 = vmatprep.subr.mxu0 0.0
    %2242 = vmatpush1.msra.mxu0 0.0
    %2243 = vmatprep.subr.mxu0 0.0
    %2244 = vmatpush1.msra.mxu0 0.0
    %2245 = vmatprep.subr.mxu0 0.0
    %2246 = vmatpush1.msra.mxu0 0.0
    %2247 = vmatprep.subr.mxu0 0.0
    %2248 = vmatpush1.msra.mxu0 0.0
    %2249 = vmatprep.subr.mxu0 0.0
    %2250 = vmatpush1.msra.mxu0 0.0
    %2251 = vmatprep.subr.mxu0 0.0
    %2252 = vmatpush1.msra.mxu0 0.0
    %2253 = vmatprep.subr.mxu0 0.0
    %2254 = vmatpush1.msra.mxu0 0.0
    %2255 = vmatprep.subr.mxu0 0.0
    %2256 = vmatpush1.msra.mxu0 0.0
    %2257 = vmatprep.subr.mxu0 0.0
    %2258 = vmatpush1.msra.mxu0 0.0
    %2259 = vmatprep.subr.mxu0 0.0
    %2260 = vmatpush1.msra.mxu0 0.0
    %2261 = vmatprep.subr.mxu0 0.0
    %2262 = vmatpush1.msra.mxu0 0.0
    %2263 = vmatprep.subr.mxu0 0.0
    %2264 = vmatpush1.msra.mxu0 0.0
    %2265 = vmatprep.subr.mxu0 0.0
    %2266 = vmatpush1.msra.mxu0 0.0
    %2267 = vmatprep.subr.mxu0 0.0
    %2268 = vmatpush1.msra.mxu0 0.0
    %2269 = vmatprep.subr.mxu0 0.0
    %2270 = vmatpush1.msra.mxu0 0.0
    %2271 = vmatprep.subr.mxu0 0.0
    %2272 = vmatpush1.msra.mxu0 0.0
    %2273 = vmatprep.subr.mxu0 0.0
    %2274 = vmatpush1.msra.mxu0 0.0
    %2275 = vmatprep.subr.mxu0 0.0
    %2276 = vmatpush1.msra.mxu0 0.0
    %2277 = vmatprep.subr.mxu0 0.0
    %2278 = vmatpush1.msra.mxu0 0.0
    %2279 = vmatprep.subr.mxu0 0.0
    %2280 = vmatpush1.msra.mxu0 0.0
    %2281 = vmatprep.subr.mxu0 0.0
    %2282 = vmatpush1.msra.mxu0 0.0
    %2283 = vmatprep.mubr.f32.mxu0 0.0
    %2284 = vmatmul.mubr.f32.gmra.mrb[0].mxu0 %v2147
    %v2285 = vpop.f32.mrb[0].mxu0
    %v2286 = vadd.f32 %v2216, %v2285
    %v2287 = vpop.f32.mrb[0].mxu0
    %2288 = vdwg.mxu0
    %v2289 = vmul.f32 %v2286, 0.0002362949
    %v2290 = vmul.f32 %v2145, %v2145
    %v2291 = vsub.f32 %v2289, %v2290
    %vm2292 = vcmask 48128
    %v2294 = vsel %vm2292, %v2145, 0
    %v2297 = vsel %vm1749, %v1995, 0
    %v2300 = vsel %vm1749, %v1996, 0
    %v2303 = vsel %vm1749, %v1997, 0
    %2305 = vmatprep.subr.mxu0 %v2300
    %2306 = vmatpush1.msra.mxu0 %v2297
    %2307 = vmatprep.subr.mxu0 0.0
    %2308 = vmatpush1.msra.mxu0 0.0
    %2309 = vmatprep.subr.mxu0 0.0
    %2310 = vmatpush1.msra.mxu0 0.0
    %2311 = vmatprep.subr.mxu0 0.0
    %2312 = vmatpush1.msra.mxu0 0.0
    %2313 = vmatprep.subr.mxu0 0.0
    %2314 = vmatpush1.msra.mxu0 0.0
    %2315 = vmatprep.subr.mxu0 0.0
    %2316 = vmatpush1.msra.mxu0 0.0
    %2317 = vmatprep.subr.mxu0 0.0
    %2318 = vmatpush1.msra.mxu0 0.0
    %2319 = vmatprep.subr.mxu0 0.0
    %2320 = vmatpush1.msra.mxu0 0.0
    %2321 = vmatprep.subr.mxu0 0.0
    %2322 = vmatpush1.msra.mxu0 0.0
    %2323 = vmatprep.subr.mxu0 0.0
    %2324 = vmatpush1.msra.mxu0 0.0
    %2325 = vmatprep.subr.mxu0 0.0
    %2326 = vmatpush1.msra.mxu0 0.0
    %2327 = vmatprep.subr.mxu0 0.0
    %2328 = vmatpush1.msra.mxu0 0.0
    %2329 = vmatprep.subr.mxu0 0.0
    %2330 = vmatpush1.msra.mxu0 0.0
    %2331 = vmatprep.subr.mxu0 0.0
    %2332 = vmatpush1.msra.mxu0 0.0
    %2333 = vmatprep.subr.mxu0 0.0
    %2334 = vmatpush1.msra.mxu0 0.0
    %2335 = vmatprep.subr.mxu0 0.0
    %2336 = vmatpush1.msra.mxu0 0.0
    %2337 = vmatprep.subr.mxu0 0.0
    %2338 = vmatpush1.msra.mxu0 0.0
    %2339 = vmatprep.subr.mxu0 0.0
    %2340 = vmatpush1.msra.mxu0 0.0
    %2341 = vmatprep.subr.mxu0 0.0
    %2342 = vmatpush1.msra.mxu0 0.0
    %2343 = vmatprep.subr.mxu0 0.0
    %2344 = vmatpush1.msra.mxu0 0.0
    %2345 = vmatprep.subr.mxu0 0.0
    %2346 = vmatpush1.msra.mxu0 0.0
    %2347 = vmatprep.subr.mxu0 0.0
    %2348 = vmatpush1.msra.mxu0 0.0
    %2349 = vmatprep.subr.mxu0 0.0
    %2350 = vmatpush1.msra.mxu0 0.0
    %2351 = vmatprep.subr.mxu0 0.0
    %2352 = vmatpush1.msra.mxu0 0.0
    %2353 = vmatprep.subr.mxu0 0.0
    %2354 = vmatpush1.msra.mxu0 0.0
    %2355 = vmatprep.subr.mxu0 0.0
    %2356 = vmatpush1.msra.mxu0 0.0
    %2357 = vmatprep.subr.mxu0 0.0
    %2358 = vmatpush1.msra.mxu0 0.0
    %2359 = vmatprep.subr.mxu0 0.0
    %2360 = vmatpush1.msra.mxu0 0.0
    %2361 = vmatprep.subr.mxu0 0.0
    %2362 = vmatpush1.msra.mxu0 0.0
    %2363 = vmatprep.subr.mxu0 0.0
    %2364 = vmatpush1.msra.mxu0 0.0
    %2365 = vmatprep.subr.mxu0 0.0
    %2366 = vmatpush1.msra.mxu0 0.0
    %2367 = vmatprep.subr.mxu0 0.0
    %2368 = vmatpush1.msra.mxu0 0.0
    %2369 = vmatprep.mubr.f32.mxu0 0.0
    %2370 = vmatmul.mubr.f32.gmra.mrb[0].mxu0 %v2294
    %v2371 = vpop.f32.mrb[0].mxu0
    %v2372 = vadd.f32 0.0, %v2371
    %v2373 = vpop.f32.mrb[0].mxu0
    %v2374 = vadd.f32 0.0, %v2373
    %2375 = vdwg.mxu0
    %2376 = vmatprep.subr.mxu0 0.0
    %2377 = vmatpush1.msra.mxu0 %v2303
    %2378 = vmatprep.subr.mxu0 0.0
    %2379 = vmatpush1.msra.mxu0 0.0
    %2380 = vmatprep.subr.mxu0 0.0
    %2381 = vmatpush1.msra.mxu0 0.0
    %2382 = vmatprep.subr.mxu0 0.0
    %2383 = vmatpush1.msra.mxu0 0.0
    %2384 = vmatprep.subr.mxu0 0.0
    %2385 = vmatpush1.msra.mxu0 0.0
    %2386 = vmatprep.subr.mxu0 0.0
    %2387 = vmatpush1.msra.mxu0 0.0
    %2388 = vmatprep.subr.mxu0 0.0
    %2389 = vmatpush1.msra.mxu0 0.0
    %2390 = vmatprep.subr.mxu0 0.0
    %2391 = vmatpush1.msra.mxu0 0.0
    %2392 = vmatprep.subr.mxu0 0.0
    %2393 = vmatpush1.msra.mxu0 0.0
    %2394 = vmatprep.subr.mxu0 0.0
    %2395 = vmatpush1.msra.mxu0 0.0
    %2396 = vmatprep.subr.mxu0 0.0
    %2397 = vmatpush1.msra.mxu0 0.0
    %2398 = vmatprep.subr.mxu0 0.0
    %2399 = vmatpush1.msra.mxu0 0.0
    %2400 = vmatprep.subr.mxu0 0.0
    %2401 = vmatpush1.msra.mxu0 0.0
    %2402 = vmatprep.subr.mxu0 0.0
    %2403 = vmatpush1.msra.mxu0 0.0
    %2404 = vmatprep.subr.mxu0 0.0
    %2405 = vmatpush1.msra.mxu0 0.0
    %2406 = vmatprep.subr.mxu0 0.0
    %2407 = vmatpush1.msra.mxu0 0.0
    %2408 = vmatprep.subr.mxu0 0.0
    %2409 = vmatpush1.msra.mxu0 0.0
    %2410 = vmatprep.subr.mxu0 0.0
    %2411 = vmatpush1.msra.mxu0 0.0
    %2412 = vmatprep.subr.mxu0 0.0
    %2413 = vmatpush1.msra.mxu0 0.0
    %2414 = vmatprep.subr.mxu0 0.0
    %2415 = vmatpush1.msra.mxu0 0.0
    %2416 = vmatprep.subr.mxu0 0.0
    %2417 = vmatpush1.msra.mxu0 0.0
    %2418 = vmatprep.subr.mxu0 0.0
    %2419 = vmatpush1.msra.mxu0 0.0
    %2420 = vmatprep.subr.mxu0 0.0
    %2421 = vmatpush1.msra.mxu0 0.0
    %2422 = vmatprep.subr.mxu0 0.0
    %2423 = vmatpush1.msra.mxu0 0.0
    %2424 = vmatprep.subr.mxu0 0.0
    %2425 = vmatpush1.msra.mxu0 0.0
    %2426 = vmatprep.subr.mxu0 0.0
    %2427 = vmatpush1.msra.mxu0 0.0
    %2428 = vmatprep.subr.mxu0 0.0
    %2429 = vmatpush1.msra.mxu0 0.0
    %2430 = vmatprep.subr.mxu0 0.0
    %2431 = vmatpush1.msra.mxu0 0.0
    %2432 = vmatprep.subr.mxu0 0.0
    %2433 = vmatpush1.msra.mxu0 0.0
    %2434 = vmatprep.subr.mxu0 0.0
    %2435 = vmatpush1.msra.mxu0 0.0
    %2436 = vmatprep.subr.mxu0 0.0
    %2437 = vmatpush1.msra.mxu0 0.0
    %2438 = vmatprep.subr.mxu0 0.0
    %2439 = vmatpush1.msra.mxu0 0.0
    %2440 = vmatprep.mubr.f32.mxu0 0.0
    %2441 = vmatmul.mubr.f32.gmra.mrb[0].mxu0 %v2294
    %v2442 = vpop.f32.mrb[0].mxu0
    %v2443 = vadd.f32 0.0, %v2442
    %v2444 = vpop.f32.mrb[0].mxu0
    %2445 = vdwg.mxu0
    %v2446 = vld [vmem:[#allocation6] sm:$0x3f]
    %v2448 = vsel %vm2292, %v2291, 0
    %2450 = vmatprep.subr.mxu0 %v2300
    %2451 = vmatpush1.msra.mxu0 %v2297
    %2452 = vmatprep.subr.mxu0 0.0
    %2453 = vmatpush1.msra.mxu0 0.0
    %2454 = vmatprep.subr.mxu0 0.0
    %2455 = vmatpush1.msra.mxu0 0.0
    %2456 = vmatprep.subr.mxu0 0.0
    %2457 = vmatpush1.msra.mxu0 0.0
    %2458 = vmatprep.subr.mxu0 0.0
    %2459 = vmatpush1.msra.mxu0 0.0
    %2460 = vmatprep.subr.mxu0 0.0
    %2461 = vmatpush1.msra.mxu0 0.0
    %2462 = vmatprep.subr.mxu0 0.0
    %2463 = vmatpush1.msra.mxu0 0.0
    %2464 = vmatprep.subr.mxu0 0.0
    %2465 = vmatpush1.msra.mxu0 0.0
    %2466 = vmatprep.subr.mxu0 0.0
    %2467 = vmatpush1.msra.mxu0 0.0
    %2468 = vmatprep.subr.mxu0 0.0
    %2469 = vmatpush1.msra.mxu0 0.0
    %2470 = vmatprep.subr.mxu0 0.0
    %2471 = vmatpush1.msra.mxu0 0.0
    %2472 = vmatprep.subr.mxu0 0.0
    %2473 = vmatpush1.msra.mxu0 0.0
    %2474 = vmatprep.subr.mxu0 0.0
    %2475 = vmatpush1.msra.mxu0 0.0
    %2476 = vmatprep.subr.mxu0 0.0
    %2477 = vmatpush1.msra.mxu0 0.0
    %2478 = vmatprep.subr.mxu0 0.0
    %2479 = vmatpush1.msra.mxu0 0.0
    %2480 = vmatprep.subr.mxu0 0.0
    %2481 = vmatpush1.msra.mxu0 0.0
    %2482 = vmatprep.subr.mxu0 0.0
    %2483 = vmatpush1.msra.mxu0 0.0
    %2484 = vmatprep.subr.mxu0 0.0
    %2485 = vmatpush1.msra.mxu0 0.0
    %2486 = vmatprep.subr.mxu0 0.0
    %2487 = vmatpush1.msra.mxu0 0.0
    %2488 = vmatprep.subr.mxu0 0.0
    %2489 = vmatpush1.msra.mxu0 0.0
    %2490 = vmatprep.subr.mxu0 0.0
    %2491 = vmatpush1.msra.mxu0 0.0
    %2492 = vmatprep.subr.mxu0 0.0
    %2493 = vmatpush1.msra.mxu0 0.0
    %2494 = vmatprep.subr.mxu0 0.0
    %2495 = vmatpush1.msra.mxu0 0.0
    %2496 = vmatprep.subr.mxu0 0.0
    %2497 = vmatpush1.msra.mxu0 0.0
    %2498 = vmatprep.subr.mxu0 0.0
    %2499 = vmatpush1.msra.mxu0 0.0
    %2500 = vmatprep.subr.mxu0 0.0
    %2501 = vmatpush1.msra.mxu0 0.0
    %2502 = vmatprep.subr.mxu0 0.0
    %2503 = vmatpush1.msra.mxu0 0.0
    %2504 = vmatprep.subr.mxu0 0.0
    %2505 = vmatpush1.msra.mxu0 0.0
    %2506 = vmatprep.subr.mxu0 0.0
    %2507 = vmatpush1.msra.mxu0 0.0
    %2508 = vmatprep.subr.mxu0 0.0
    %2509 = vmatpush1.msra.mxu0 0.0
    %2510 = vmatprep.subr.mxu0 0.0
    %2511 = vmatpush1.msra.mxu0 0.0
    %2512 = vmatprep.subr.mxu0 0.0
    %2513 = vmatpush1.msra.mxu0 0.0
    %2514 = vmatprep.mubr.f32.mxu0 0.0
    %2515 = vmatmul.mubr.f32.gmra.mrb[0].mxu0 %v2448
    %v2516 = vpop.f32.mrb[0].mxu0
    %v2517 = vadd.f32 1e-05, %v2516
    %v2518 = vpop.f32.mrb[0].mxu0
    %v2519 = vadd.f32 1e-05, %v2518
    %2520 = vdwg.mxu0
    %2521 = vmatprep.subr.mxu0 0.0
    %2522 = vmatpush1.msra.mxu0 %v2303
    %2523 = vmatprep.subr.mxu0 0.0
    %2524 = vmatpush1.msra.mxu0 0.0
    %2525 = vmatprep.subr.mxu0 0.0
    %2526 = vmatpush1.msra.mxu0 0.0
    %2527 = vmatprep.subr.mxu0 0.0
    %2528 = vmatpush1.msra.mxu0 0.0
    %2529 = vmatprep.subr.mxu0 0.0
    %2530 = vmatpush1.msra.mxu0 0.0
    %2531 = vmatprep.subr.mxu0 0.0
    %2532 = vmatpush1.msra.mxu0 0.0
    %2533 = vmatprep.subr.mxu0 0.0
    %2534 = vmatpush1.msra.mxu0 0.0
    %2535 = vmatprep.subr.mxu0 0.0
    %2536 = vmatpush1.msra.mxu0 0.0
    %2537 = vmatprep.subr.mxu0 0.0
    %2538 = vmatpush1.msra.mxu0 0.0
    %2539 = vmatprep.subr.mxu0 0.0
    %2540 = vmatpush1.msra.mxu0 0.0
    %2541 = vmatprep.subr.mxu0 0.0
    %2542 = vmatpush1.msra.mxu0 0.0
    %2543 = vmatprep.subr.mxu0 0.0
    %2544 = vmatpush1.msra.mxu0 0.0
    %2545 = vmatprep.subr.mxu0 0.0
    %2546 = vmatpush1.msra.mxu0 0.0
    %2547 = vmatprep.subr.mxu0 0.0
    %2548 = vmatpush1.msra.mxu0 0.0
    %2549 = vmatprep.subr.mxu0 0.0
    %2550 = vmatpush1.msra.mxu0 0.0
    %2551 = vmatprep.subr.mxu0 0.0
    %2552 = vmatpush1.msra.mxu0 0.0
    %2553 = vmatprep.subr.mxu0 0.0
    %2554 = vmatpush1.msra.mxu0 0.0
    %2555 = vmatprep.subr.mxu0 0.0
    %2556 = vmatpush1.msra.mxu0 0.0
    %2557 = vmatprep.subr.mxu0 0.0
    %2558 = vmatpush1.msra.mxu0 0.0
    %2559 = vmatprep.subr.mxu0 0.0
    %2560 = vmatpush1.msra.mxu0 0.0
    %2561 = vmatprep.subr.mxu0 0.0
    %2562 = vmatpush1.msra.mxu0 0.0
    %2563 = vmatprep.subr.mxu0 0.0
    %2564 = vmatpush1.msra.mxu0 0.0
    %2565 = vmatprep.subr.mxu0 0.0
    %2566 = vmatpush1.msra.mxu0 0.0
    %2567 = vmatprep.subr.mxu0 0.0
    %2568 = vmatpush1.msra.mxu0 0.0
    %2569 = vmatprep.subr.mxu0 0.0
    %2570 = vmatpush1.msra.mxu0 0.0
    %2571 = vmatprep.subr.mxu0 0.0
    %2572 = vmatpush1.msra.mxu0 0.0
    %2573 = vmatprep.subr.mxu0 0.0
    %2574 = vmatpush1.msra.mxu0 0.0
    %2575 = vmatprep.subr.mxu0 0.0
    %2576 = vmatpush1.msra.mxu0 0.0
    %2577 = vmatprep.subr.mxu0 0.0
    %2578 = vmatpush1.msra.mxu0 0.0
    %2579 = vmatprep.subr.mxu0 0.0
    %2580 = vmatpush1.msra.mxu0 0.0
    %2581 = vmatprep.subr.mxu0 0.0
    %2582 = vmatpush1.msra.mxu0 0.0
    %2583 = vmatprep.subr.mxu0 0.0
    %2584 = vmatpush1.msra.mxu0 0.0
    %2585 = vmatprep.mubr.f32.mxu0 0.0
    %2586 = vmatmul.mubr.f32.gmra.mrb[0].mxu0 %v2448
    %v2587 = vpop.f32.mrb[0].mxu0
    %v2588 = vadd.f32 1e-05, %v2587
    %v2589 = vpop.f32.mrb[0].mxu0
    %2590 = vdwg.mxu0
    %v2591 = vrsqrt.pop %v2517
    %v2592 = vrsqrt.pop %v2519
    %v2593 = vrsqrt.pop %v2588
    %v2597 = vcombine.low %v2591, %v2592
    %v2599 = vunpack.c.l.s4 1983009808
    %v2600 = vunpack.c.0.s8 %v2599
    %v2601 = vlaneseq
    %v2602 = vshrl.u32 %v2601, 7
    %v2603 = vsub.s32 %v2600, %v2602
    %v2604 = vrot.slane %v2597, %v2603
    %v2606 = vunpack.c.l.s4 1983009808
    %v2607 = vunpack.c.0.s8 %v2606
    %v2608 = vlaneseq
    %v2609 = vshrl.u32 %v2608, 7
    %v2610 = vsub.s32 %v2607, %v2609
    %v2611 = vrot.slane %v2593, %v2610
    %v2612 = vcombine.low %v2604, %v2611
    %v2614 = vmul.f32 %v2446, %v2612
    %v2616 = vlaneseq
    %v2617 = vshrl.u32 %v2616, 7
    %v2618 = vsub.s32 0, %v2617
    %v2619 = vrot.slane %v2614, %v2618
    %v2620 = vlaneseq
    %v2621 = vshrl.u32 %v2620, 7
    %v2622 = vsub.s32 2, %v2621
    %v2623 = vrot.slane %v2614, %v2622
    %v2624 = vlaneseq
    %v2625 = vshrl.u32 %v2624, 7
    %v2626 = vsub.s32 4, %v2625
    %v2627 = vrot.slane %v2614, %v2626
    %v2631 = vmul.f32 %v2372, %v2619
    %v2632 = vmul.f32 %v2374, %v2623
    %v2633 = vmul.f32 %v2443, %v2627
    %v2637 = vcombine.low %v2631, %v2632
    %v2639 = vunpack.c.l.s4 1983009808
    %v2640 = vunpack.c.0.s8 %v2639
    %v2641 = vlaneseq
    %v2642 = vshrl.u32 %v2641, 7
    %v2643 = vsub.s32 %v2640, %v2642
    %v2644 = vrot.slane %v2637, %v2643
    %v2646 = vunpack.c.l.s4 1983009808
    %v2647 = vunpack.c.0.s8 %v2646
    %v2648 = vlaneseq
    %v2649 = vshrl.u32 %v2648, 7
    %v2650 = vsub.s32 %v2647, %v2649
    %v2651 = vrot.slane %v2633, %v2650
    %v2652 = vcombine.low %v2644, %v2651
    %v2653 = vrot.slane %v2652, 7
    %v2655 = vsub.f32 %v2446, %v2653
    %v2656 = vld [vmem:[#allocation8] sm:$0xff]
    %v2657 = vld [vmem:[#allocation8 + $0x8] sm:$0xff]
    %v2658 = vld [vmem:[#allocation8 + $0x10] sm:$0x7f]
    %v2659 = vld [vmem:[%s6] sm:$0xff]
    %v2660 = vld [vmem:[%s6 + $0x8] sm:$0xff]
    %v2661 = vld [vmem:[%s6 + $0x10] sm:$0xff]
    %v2662 = vld [vmem:[%s6 + $0x18] sm:$0xff]
    %v2663 = vld [vmem:[%s6 + $0x20] sm:$0xff]
    %v2664 = vld [vmem:[%s6 + $0x28] sm:$0xff]
    %v2665 = vld [vmem:[%s6 + $0x30] sm:$0xff]
    %v2666 = vld [vmem:[%s6 + $0x38] sm:$0xff]
    %v2667 = vld [vmem:[%s6 + $0x40] sm:$0xff]
    %v2668 = vld [vmem:[%s6 + $0x48] sm:$0xff]
    %v2669 = vld [vmem:[%s6 + $0x50] sm:$0xff]
    %v2670 = vld [vmem:[%s6 + $0x58] sm:$0xff]
    %v2671 = vld [vmem:[%s6 + $0x60] sm:$0xff]
    %v2672 = vld [vmem:[%s6 + $0x68] sm:$0xff]
    %v2673 = vld [vmem:[%s6 + $0x70] sm:$0xff]
    %v2674 = vld [vmem:[%s6 + $0x78] sm:$0xff]
    %v2675 = vld [vmem:[%s6 + $0x80] sm:$0xff]
    %v2676 = vld [vmem:[%s6 + $0x88] sm:$0xff]
    %v2677 = vld [vmem:[%s6 + $0x90] sm:$0xff]
    %v2678 = vld [vmem:[%s6 + $0x98] sm:$0xff]
    %v2679 = vld [vmem:[%s6 + $0xa0] sm:$0xff]
    %v2680 = vld [vmem:[%s6 + $0xa8] sm:$0xff]
    %v2681 = vld [vmem:[%s6 + $0xb0] sm:$0xff]
    %v2682 = vld [vmem:[%s6 + $0xb8] sm:$0xff]
    %v2683 = vld [vmem:[%s6 + $0xc0] sm:$0xff]
    %v2684 = vld [vmem:[%s6 + $0xc8] sm:$0xff]
    %v2685 = vld [vmem:[%s6 + $0xd0] sm:$0xff]
    %v2686 = vld [vmem:[%s6 + $0xd8] sm:$0xff]
    %v2687 = vld [vmem:[%s6 + $0xe0] sm:$0xff]
    %v2688 = vld [vmem:[%s6 + $0xe8] sm:$0xff]
    %v2689 = vld [vmem:[%s6 + $0xf0] sm:$0xff]
    %v2690 = vld [vmem:[%s6 + $0xf8] sm:$0xff]
    %v2691 = vld [vmem:[%s6 + $0x100] sm:$0xff]
    %v2692 = vld [vmem:[%s6 + $0x108] sm:$0xff]
    %v2693 = vld [vmem:[%s6 + $0x110] sm:$0xff]
    %v2694 = vld [vmem:[%s6 + $0x118] sm:$0xff]
    %v2695 = vld [vmem:[%s6 + $0x120] sm:$0xff]
    %v2696 = vld [vmem:[%s6 + $0x128] sm:$0xff]
    %v2697 = vld [vmem:[%s6 + $0x130] sm:$0xff]
    %v2698 = vld [vmem:[%s6 + $0x138] sm:$0xff]
    %v2699 = vld [vmem:[%s6 + $0x140] sm:$0xff]
    %v2700 = vld [vmem:[%s6 + $0x148] sm:$0xff]
    %v2701 = vld [vmem:[%s6 + $0x150] sm:$0xff]
    %v2702 = vld [vmem:[%s6 + $0x158] sm:$0xff]
    %v2703 = vld [vmem:[%s6 + $0x160] sm:$0xff]
    %v2704 = vld [vmem:[%s6 + $0x168] sm:$0xff]
    %v2705 = vld [vmem:[%s6 + $0x170] sm:$0xff]
    %v2706 = vld [vmem:[%s6 + $0x178] sm:$0xff]
    %v2707 = vld [vmem:[%s6 + $0x180] sm:$0xff]
    %v2708 = vld [vmem:[%s6 + $0x188] sm:$0xff]
    %v2709 = vld [vmem:[%s6 + $0x190] sm:$0xff]
    %v2710 = vld [vmem:[%s6 + $0x198] sm:$0xff]
    %v2711 = vld [vmem:[%s6 + $0x1a0] sm:$0xff]
    %v2712 = vld [vmem:[%s6 + $0x1a8] sm:$0xff]
    %v2713 = vld [vmem:[%s6 + $0x1b0] sm:$0xff]
    %v2714 = vld [vmem:[%s6 + $0x1b8] sm:$0xff]
    %v2715 = vld [vmem:[%s6 + $0x1c0] sm:$0xff]
    %v2716 = vld [vmem:[%s6 + $0x1c8] sm:$0xff]
    %v2717 = vld [vmem:[%s6 + $0x1d0] sm:$0xff]
    %v2718 = vld [vmem:[%s6 + $0x1d8] sm:$0xff]
    %v2719 = vld [vmem:[%s6 + $0x1e0] sm:$0xff]
    %v2720 = vld [vmem:[%s6 + $0x1e8] sm:$0xff]
    %v2721 = vld [vmem:[%s6 + $0x1f0] sm:$0xff]
    %v2722 = vld [vmem:[%s6 + $0x1f8] sm:$0xff]
    %v2723 = vld [vmem:[%s6 + $0x200] sm:$0xff]
    %v2724 = vld [vmem:[%s6 + $0x208] sm:$0xff]
    %v2725 = vld [vmem:[%s6 + $0x210] sm:$0x3f]
    %v2726 = vld [vmem:[%s6 + $0x218] sm:$0x3f]
    %v2727 = vlaneseq
    %v2728 = vshrl.u32 %v2727, 7
    %v2729 = vsub.s32 0, %v2728
    %v2730 = vrot.slane %v2619, %v2729
    %v2731 = vlaneseq
    %v2732 = vshrl.u32 %v2731, 7
    %v2733 = vsub.s32 0, %v2732
    %v2734 = vrot.slane %v2623, %v2733
    %v2735 = vlaneseq
    %v2736 = vshrl.u32 %v2735, 7
    %v2737 = vsub.s32 0, %v2736
    %v2738 = vrot.slane %v2627, %v2737
    %v2739 = vmul.f32 %v1251, %v2730
    %v2740 = vmul.f32 %v1252, %v2734
    %v2741 = vmul.f32 %v1253, %v2738
    %v2742 = vmul.f32 %v1254, %v2730
    %v2743 = vmul.f32 %v1255, %v2734
    %v2744 = vmul.f32 %v1256, %v2738
    %v2745 = vmul.f32 %v1257, %v2730
    %v2746 = vmul.f32 %v1258, %v2734
    %v2747 = vmul.f32 %v1259, %v2738
    %v2748 = vmul.f32 %v1260, %v2730
    %v2749 = vmul.f32 %v1261, %v2734
    %v2750 = vmul.f32 %v1262, %v2738
    %v2751 = vmul.f32 %v1263, %v2730
    %v2752 = vmul.f32 %v1264, %v2734
    %v2753 = vmul.f32 %v1265, %v2738
    %v2754 = vmul.f32 %v1266, %v2730
    %v2755 = vmul.f32 %v1267, %v2734
    %v2756 = vmul.f32 %v1268, %v2738
    %v2758 = vlaneseq
    %v2759 = vshrl.u32 %v2758, 7
    %v2760 = vsub.s32 1, %v2759
    %v2761 = vrot.slane %v2655, %v2760
    %v2762 = vlaneseq
    %v2763 = vshrl.u32 %v2762, 7
    %v2764 = vsub.s32 3, %v2763
    %v2765 = vrot.slane %v2655, %v2764
    %v2766 = vlaneseq
    %v2767 = vshrl.u32 %v2766, 7
    %v2768 = vsub.s32 5, %v2767
    %v2769 = vrot.slane %v2655, %v2768
    %v2773 = vlaneseq
    %v2774 = vshrl.u32 %v2773, 7
    %v2775 = vsub.s32 1, %v2774
    %v2776 = vrot.slane %v2761, %v2775
    %v2777 = vlaneseq
    %v2778 = vshrl.u32 %v2777, 7
    %v2779 = vsub.s32 1, %v2778
    %v2780 = vrot.slane %v2765, %v2779
    %v2781 = vlaneseq
    %v2782 = vshrl.u32 %v2781, 7
    %v2783 = vsub.s32 1, %v2782
    %v2784 = vrot.slane %v2769, %v2783
    %v2785 = vadd.f32 %v2739, %v2776
    %v2786 = vadd.f32 %v2740, %v2780
    %v2787 = vadd.f32 %v2741, %v2784
    %v2788 = vadd.f32 %v2742, %v2776
    %v2789 = vadd.f32 %v2743, %v2780
    %v2790 = vadd.f32 %v2744, %v2784
    %v2791 = vadd.f32 %v2745, %v2776
    %v2792 = vadd.f32 %v2746, %v2780
    %v2793 = vadd.f32 %v2747, %v2784
    %v2794 = vadd.f32 %v2748, %v2776
    %v2795 = vadd.f32 %v2749, %v2780
    %v2796 = vadd.f32 %v2750, %v2784
    %v2797 = vadd.f32 %v2751, %v2776
    %v2798 = vadd.f32 %v2752, %v2780
    %v2799 = vadd.f32 %v2753, %v2784
    %v2800 = vadd.f32 %v2754, %v2776
    %v2801 = vadd.f32 %v2755, %v2780
    %v2802 = vadd.f32 %v2756, %v2784
    %vm2821 = vcmask 1046528
    %v2822 = vrot.slane %v2785, 1
    %v2823 = vrot.slane %v2788, 1
    %v2824 = vsel %vm2821, %v2822, %v2823
    %v2825 = vrot.slane %v2786, 1
    %v2826 = vrot.slane %v2789, 1
    %v2827 = vsel %vm2821, %v2825, %v2826
    %v2828 = vrot.slane %v2787, 1
    %v2829 = vrot.slane %v2790, 1
    %v2830 = vsel %vm2821, %v2828, %v2829
    %v2831 = vrot.slane %v2791, 1
    %v2832 = vsel %vm2821, %v2823, %v2831
    %v2833 = vrot.slane %v2792, 1
    %v2834 = vsel %vm2821, %v2826, %v2833
    %v2835 = vrot.slane %v2793, 1
    %v2836 = vsel %vm2821, %v2829, %v2835
    %v2837 = vrot.slane %v2794, 1
    %v2838 = vsel %vm2821, %v2831, %v2837
    %v2839 = vrot.slane %v2795, 1
    %v2840 = vsel %vm2821, %v2833, %v2839
    %v2841 = vrot.slane %v2796, 1
    %v2842 = vsel %vm2821, %v2835, %v2841
    %v2843 = vrot.slane %v2797, 1
    %v2844 = vsel %vm2821, %v2837, %v2843
    %v2845 = vrot.slane %v2798, 1
    %v2846 = vsel %vm2821, %v2839, %v2845
    %v2847 = vrot.slane %v2799, 1
    %v2848 = vsel %vm2821, %v2841, %v2847
    %v2849 = vrot.slane %v2800, 1
    %v2850 = vsel %vm2821, %v2843, %v2849
    %v2851 = vrot.slane %v2801, 1
    %v2852 = vsel %vm2821, %v2845, %v2851
    %v2853 = vrot.slane %v2802, 1
    %v2854 = vsel %vm2821, %v2847, %v2853
    %v2873 = vmax.f32 %v2785, %v2824
    %v2874 = vmax.f32 %v2786, %v2827
    %v2875 = vmax.f32 %v2787, %v2830
    %v2876 = vmax.f32 %v2788, %v2832
    %v2877 = vmax.f32 %v2789, %v2834
    %v2878 = vmax.f32 %v2790, %v2836
    %v2879 = vmax.f32 %v2791, %v2838
    %v2880 = vmax.f32 %v2792, %v2840
    %v2881 = vmax.f32 %v2793, %v2842
    %v2882 = vmax.f32 %v2794, %v2844
    %v2883 = vmax.f32 %v2795, %v2846
    %v2884 = vmax.f32 %v2796, %v2848
    %v2885 = vmax.f32 %v2797, %v2850
    %v2886 = vmax.f32 %v2798, %v2852
    %v2887 = vmax.f32 %v2799, %v2854
    %v2888 = vmax.f32 %v2800, %v2849
    %v2889 = vmax.f32 %v2801, %v2851
    %v2890 = vmax.f32 %v2802, %v2853
    %2909 = vrot.lane.b32.xlu0 %v2873, 122
    %v2910 = vpop.permute.xlu0 %2909
    %2911 = vrot.lane.b32.xlu0 %v2874, 122
    %v2912 = vpop.permute.xlu0 %2911
    %2913 = vrot.lane.b32.xlu0 %v2875, 122
    %v2914 = vpop.permute.xlu0 %2913
    %2915 = vrot.lane.b32.xlu0 %v2876, 122
    %v2916 = vpop.permute.xlu0 %2915
    %2917 = vrot.lane.b32.xlu0 %v2877, 122
    %v2918 = vpop.permute.xlu0 %2917
    %2919 = vrot.lane.b32.xlu0 %v2878, 122
    %v2920 = vpop.permute.xlu0 %2919
    %2921 = vrot.lane.b32.xlu0 %v2879, 122
    %v2922 = vpop.permute.xlu0 %2921
    %2923 = vrot.lane.b32.xlu0 %v2880, 122
    %v2924 = vpop.permute.xlu0 %2923
    %2925 = vrot.lane.b32.xlu0 %v2881, 122
    %v2926 = vpop.permute.xlu0 %2925
    %2927 = vrot.lane.b32.xlu0 %v2882, 122
    %v2928 = vpop.permute.xlu0 %2927
    %2929 = vrot.lane.b32.xlu0 %v2883, 122
    %v2930 = vpop.permute.xlu0 %2929
    %2931 = vrot.lane.b32.xlu0 %v2884, 122
    %v2932 = vpop.permute.xlu0 %2931
    %2933 = vrot.lane.b32.xlu0 %v2885, 122
    %v2934 = vpop.permute.xlu0 %2933
    %2935 = vrot.lane.b32.xlu0 %v2886, 122
    %v2936 = vpop.permute.xlu0 %2935
    %2937 = vrot.lane.b32.xlu0 %v2887, 122
    %v2938 = vpop.permute.xlu0 %2937
    %2939 = vrot.lane.b32.xlu0 %v2888, 122
    %v2940 = vpop.permute.xlu0 %2939
    %2941 = vrot.lane.b32.xlu0 %v2889, 122
    %v2942 = vpop.permute.xlu0 %2941
    %2943 = vrot.lane.b32.xlu0 %v2890, 122
    %v2944 = vpop.permute.xlu0 %2943
    %vm2945 = vcmask 998400
    %v2946 = vsel %vm2945, %v2910, %v2912
    %v2947 = vsel %vm2945, %v2912, %v2914
    %v2948 = vsel %vm2945, %v2916, %v2918
    %v2949 = vsel %vm2945, %v2918, %v2920
    %v2950 = vsel %vm2945, %v2922, %v2924
    %v2951 = vsel %vm2945, %v2924, %v2926
    %v2952 = vsel %vm2945, %v2928, %v2930
    %v2953 = vsel %vm2945, %v2930, %v2932
    %v2954 = vsel %vm2945, %v2934, %v2936
    %v2955 = vsel %vm2945, %v2936, %v2938
    %v2956 = vsel %vm2945, %v2940, %v2942
    %v2957 = vsel %vm2945, %v2942, %v2944
    %v2976 = vmax.f32 %v2873, %v2946
    %v2977 = vmax.f32 %v2874, %v2947
    %v2978 = vmax.f32 %v2875, %v2914
    %v2979 = vmax.f32 %v2876, %v2948
    %v2980 = vmax.f32 %v2877, %v2949
    %v2981 = vmax.f32 %v2878, %v2920
    %v2982 = vmax.f32 %v2879, %v2950
    %v2983 = vmax.f32 %v2880, %v2951
    %v2984 = vmax.f32 %v2881, %v2926
    %v2985 = vmax.f32 %v2882, %v2952
    %v2986 = vmax.f32 %v2883, %v2953
    %v2987 = vmax.f32 %v2884, %v2932
    %v2988 = vmax.f32 %v2885, %v2954
    %v2989 = vmax.f32 %v2886, %v2955
    %v2990 = vmax.f32 %v2887, %v2938
    %v2991 = vmax.f32 %v2888, %v2956
    %v2992 = vmax.f32 %v2889, %v2957
    %v2993 = vmax.f32 %v2890, %v2944
    %v2994 = vmax.f32 %v2976, 0.0
    %v2995 = vmax.f32 %v2977, 0.0
    %v2996 = vmax.f32 %v2978, 0.0
    %v2997 = vmax.f32 %v2979, 0.0
    %v2998 = vmax.f32 %v2980, 0.0
    %v2999 = vmax.f32 %v2981, 0.0
    %v3000 = vmax.f32 %v2982, 0.0
    %v3001 = vmax.f32 %v2983, 0.0
    %v3002 = vmax.f32 %v2984, 0.0
    %v3003 = vmax.f32 %v2985, 0.0
    %v3004 = vmax.f32 %v2986, 0.0
    %v3005 = vmax.f32 %v2987, 0.0
    %v3006 = vmax.f32 %v2988, 0.0
    %v3007 = vmax.f32 %v2989, 0.0
    %v3008 = vmax.f32 %v2990, 0.0
    %v3009 = vmax.f32 %v2991, 0.0
    %v3010 = vmax.f32 %v2992, 0.0
    %v3011 = vmax.f32 %v2993, 0.0
    %vm3012 = vcmask 367616
    %v3014 = vsel %vm3012, %v2656, 0
    %v3017 = vsel %vm3012, %v2657, 0
    %v3020 = vsel %vm3012, %v2658, 0
    %vm3022 = vcmask 1044480
    %v3024 = vsel %vm3022, %v3009, 0
    %v3027 = vsel %vm3022, %v3010, 0
    %v3030 = vsel %vm3022, %v3011, 0
    %3032 = vmatprep.subr.mxu0 %v2995
    %3033 = vmatpush1.msra.mxu0 %v2994
    %3034 = vmatprep.subr.mxu0 %v2998
    %3035 = vmatpush1.msra.mxu0 %v2997
    %3036 = vmatprep.subr.mxu0 %v3001
    %3037 = vmatpush1.msra.mxu0 %v3000
    %3038 = vmatprep.subr.mxu0 %v3004
    %3039 = vmatpush1.msra.mxu0 %v3003
    %3040 = vmatprep.subr.mxu0 %v3007
    %3041 = vmatpush1.msra.mxu0 %v3006
    %3042 = vmatprep.subr.mxu0 %v3027
    %3043 = vmatpush1.msra.mxu0 %v3024
    %3044 = vmatprep.subr.mxu0 0.0
    %3045 = vmatpush1.msra.mxu0 0.0
    %3046 = vmatprep.subr.mxu0 0.0
    %3047 = vmatpush1.msra.mxu0 0.0
    %3048 = vmatprep.subr.mxu0 0.0
    %3049 = vmatpush1.msra.mxu0 0.0
    %3050 = vmatprep.subr.mxu0 0.0
    %3051 = vmatpush1.msra.mxu0 0.0
    %3052 = vmatprep.subr.mxu0 0.0
    %3053 = vmatpush1.msra.mxu0 0.0
    %3054 = vmatprep.subr.mxu0 0.0
    %3055 = vmatpush1.msra.mxu0 0.0
    %3056 = vmatprep.subr.mxu0 0.0
    %3057 = vmatpush1.msra.mxu0 0.0
    %3058 = vmatprep.subr.mxu0 0.0
    %3059 = vmatpush1.msra.mxu0 0.0
    %3060 = vmatprep.subr.mxu0 0.0
    %3061 = vmatpush1.msra.mxu0 0.0
    %3062 = vmatprep.subr.mxu0 0.0
    %3063 = vmatpush1.msra.mxu0 0.0
    %3064 = vmatprep.subr.mxu0 0.0
    %3065 = vmatpush1.msra.mxu0 0.0
    %3066 = vmatprep.subr.mxu0 0.0
    %3067 = vmatpush1.msra.mxu0 0.0
    %3068 = vmatprep.subr.mxu0 0.0
    %3069 = vmatpush1.msra.mxu0 0.0
    %3070 = vmatprep.subr.mxu0 0.0
    %3071 = vmatpush1.msra.mxu0 0.0
    %3072 = vmatprep.subr.mxu0 0.0
    %3073 = vmatpush1.msra.mxu0 0.0
    %3074 = vmatprep.subr.mxu0 0.0
    %3075 = vmatpush1.msra.mxu0 0.0
    %3076 = vmatprep.subr.mxu0 0.0
    %3077 = vmatpush1.msra.mxu0 0.0
    %3078 = vmatprep.subr.mxu0 0.0
    %3079 = vmatpush1.msra.mxu0 0.0
    %3080 = vmatprep.subr.mxu0 0.0
    %3081 = vmatpush1.msra.mxu0 0.0
    %3082 = vmatprep.subr.mxu0 0.0
    %3083 = vmatpush1.msra.mxu0 0.0
    %3084 = vmatprep.subr.mxu0 0.0
    %3085 = vmatpush1.msra.mxu0 0.0
    %3086 = vmatprep.subr.mxu0 0.0
    %3087 = vmatpush1.msra.mxu0 0.0
    %3088 = vmatprep.subr.mxu0 0.0
    %3089 = vmatpush1.msra.mxu0 0.0
    %3090 = vmatprep.subr.mxu0 0.0
    %3091 = vmatpush1.msra.mxu0 0.0
    %3092 = vmatprep.subr.mxu0 0.0
    %3093 = vmatpush1.msra.mxu0 0.0
    %3094 = vmatprep.subr.mxu0 0.0
    %3095 = vmatpush1.msra.mxu0 0.0
    %3096 = vmatprep.mubr.f32.mxu0 0.0
    %3097 = vmatmul.mubr.f32.gmra.mrb[0].mxu0 %v3014
    %v3098 = vpop.f32.mrb[0].mxu0
    %v3099 = vadd.f32 0.0, %v3098
    %v3100 = vpop.f32.mrb[0].mxu0
    %v3101 = vadd.f32 0.0, %v3100
    %3102 = vmatprep.mubr.f32.mxu0 0.0
    %3103 = vmatmul.mubr.f32.gmra.mrb[0].mxu0 %v3017
    %v3104 = vpop.f32.mrb[0].mxu0
    %v3105 = vadd.f32 0.0, %v3104
    %v3106 = vpop.f32.mrb[0].mxu0
    %v3107 = vadd.f32 0.0, %v3106
    %3108 = vmatprep.mubr.f32.mxu0 0.0
    %3109 = vmatmul.mubr.f32.gmra.mrb[0].mxu0 %v3020
    %v3110 = vpop.f32.mrb[0].mxu0
    %v3111 = vadd.f32 0.0, %v3110
    %v3112 = vpop.f32.mrb[0].mxu0
    %v3113 = vadd.f32 0.0, %v3112
    %3114 = vdwg.mxu0
    %3115 = vmatprep.subr.mxu0 0.0
    %3116 = vmatpush1.msra.mxu0 %v2996
    %3117 = vmatprep.subr.mxu0 0.0
    %3118 = vmatpush1.msra.mxu0 %v2999
    %3119 = vmatprep.subr.mxu0 0.0
    %3120 = vmatpush1.msra.mxu0 %v3002
    %3121 = vmatprep.subr.mxu0 0.0
    %3122 = vmatpush1.msra.mxu0 %v3005
    %3123 = vmatprep.subr.mxu0 0.0
    %3124 = vmatpush1.msra.mxu0 %v3008
    %3125 = vmatprep.subr.mxu0 0.0
    %3126 = vmatpush1.msra.mxu0 %v3030
    %3127 = vmatprep.subr.mxu0 0.0
    %3128 = vmatpush1.msra.mxu0 0.0
    %3129 = vmatprep.subr.mxu0 0.0
    %3130 = vmatpush1.msra.mxu0 0.0
    %3131 = vmatprep.subr.mxu0 0.0
    %3132 = vmatpush1.msra.mxu0 0.0
    %3133 = vmatprep.subr.mxu0 0.0
    %3134 = vmatpush1.msra.mxu0 0.0
    %3135 = vmatprep.subr.mxu0 0.0
    %3136 = vmatpush1.msra.mxu0 0.0
    %3137 = vmatprep.subr.mxu0 0.0
    %3138 = vmatpush1.msra.mxu0 0.0
    %3139 = vmatprep.subr.mxu0 0.0
    %3140 = vmatpush1.msra.mxu0 0.0
    %3141 = vmatprep.subr.mxu0 0.0
    %3142 = vmatpush1.msra.mxu0 0.0
    %3143 = vmatprep.subr.mxu0 0.0
    %3144 = vmatpush1.msra.mxu0 0.0
    %3145 = vmatprep.subr.mxu0 0.0
    %3146 = vmatpush1.msra.mxu0 0.0
    %3147 = vmatprep.subr.mxu0 0.0
    %3148 = vmatpush1.msra.mxu0 0.0
    %3149 = vmatprep.subr.mxu0 0.0
    %3150 = vmatpush1.msra.mxu0 0.0
    %3151 = vmatprep.subr.mxu0 0.0
    %3152 = vmatpush1.msra.mxu0 0.0
    %3153 = vmatprep.subr.mxu0 0.0
    %3154 = vmatpush1.msra.mxu0 0.0
    %3155 = vmatprep.subr.mxu0 0.0
    %3156 = vmatpush1.msra.mxu0 0.0
    %3157 = vmatprep.subr.mxu0 0.0
    %3158 = vmatpush1.msra.mxu0 0.0
    %3159 = vmatprep.subr.mxu0 0.0
    %3160 = vmatpush1.msra.mxu0 0.0
    %3161 = vmatprep.subr.mxu0 0.0
    %3162 = vmatpush1.msra.mxu0 0.0
    %3163 = vmatprep.subr.mxu0 0.0
    %3164 = vmatpush1.msra.mxu0 0.0
    %3165 = vmatprep.subr.mxu0 0.0
    %3166 = vmatpush1.msra.mxu0 0.0
    %3167 = vmatprep.subr.mxu0 0.0
    %3168 = vmatpush1.msra.mxu0 0.0
    %3169 = vmatprep.subr.mxu0 0.0
    %3170 = vmatpush1.msra.mxu0 0.0
    %3171 = vmatprep.subr.mxu0 0.0
    %3172 = vmatpush1.msra.mxu0 0.0
    %3173 = vmatprep.subr.mxu0 0.0
    %3174 = vmatpush1.msra.mxu0 0.0
    %3175 = vmatprep.subr.mxu0 0.0
    %3176 = vmatpush1.msra.mxu0 0.0
    %3177 = vmatprep.subr.mxu0 0.0
    %3178 = vmatpush1.msra.mxu0 0.0
    %3179 = vmatprep.mubr.f32.mxu0 0.0
    %3180 = vmatmul.mubr.f32.gmra.mrb[0].mxu0 %v3014
    %v3181 = vpop.f32.mrb[0].mxu0
    %v3182 = vadd.f32 0.0, %v3181
    %v3183 = vpop.f32.mrb[0].mxu0
    %3184 = vmatprep.mubr.f32.mxu0 0.0
    %3185 = vmatmul.mubr.f32.gmra.mrb[0].mxu0 %v3017
    %v3186 = vpop.f32.mrb[0].mxu0
    %v3187 = vadd.f32 0.0, %v3186
    %v3188 = vpop.f32.mrb[0].mxu0
    %3189 = vmatprep.mubr.f32.mxu0 0.0
    %3190 = vmatmul.mubr.f32.gmra.mrb[0].mxu0 %v3020
    %v3191 = vpop.f32.mrb[0].mxu0
    %v3192 = vadd.f32 0.0, %v3191
    %v3193 = vpop.f32.mrb[0].mxu0
    %3194 = vdwg.mxu0
    %vm3195 = vcmask 113664
    %v3197 = vsel %vm3195, %v3182, 0
    %v3200 = vsel %vm3195, %v3187, 0
    %v3203 = vsel %vm3195, %v3192, 0
    %v3206 = vsel %vm1749, %v2725, 0
    %v3209 = vsel %vm1749, %v2726, 0
    %3211 = vmatprep.subr.mxu0 %v2660
    %3212 = vmatpush1.msra.mxu0 %v2659
    %3213 = vmatprep.subr.mxu0 %v2662
    %3214 = vmatpush1.msra.mxu0 %v2661
    %3215 = vmatprep.subr.mxu0 %v2664
    %3216 = vmatpush1.msra.mxu0 %v2663
    %3217 = vmatprep.subr.mxu0 %v2666
    %3218 = vmatpush1.msra.mxu0 %v2665
    %3219 = vmatprep.subr.mxu0 %v2668
    %3220 = vmatpush1.msra.mxu0 %v2667
    %3221 = vmatprep.subr.mxu0 %v2670
    %3222 = vmatpush1.msra.mxu0 %v2669
    %3223 = vmatprep.subr.mxu0 %v2672
    %3224 = vmatpush1.msra.mxu0 %v2671
    %3225 = vmatprep.subr.mxu0 %v2674
    %3226 = vmatpush1.msra.mxu0 %v2673
    %3227 = vmatprep.subr.mxu0 %v2676
    %3228 = vmatpush1.msra.mxu0 %v2675
    %3229 = vmatprep.subr.mxu0 %v2678
    %3230 = vmatpush1.msra.mxu0 %v2677
    %3231 = vmatprep.subr.mxu0 %v2680
    %3232 = vmatpush1.msra.mxu0 %v2679
    %3233 = vmatprep.subr.mxu0 %v2682
    %3234 = vmatpush1.msra.mxu0 %v2681
    %3235 = vmatprep.subr.mxu0 %v2684
    %3236 = vmatpush1.msra.mxu0 %v2683
    %3237 = vmatprep.subr.mxu0 %v2686
    %3238 = vmatpush1.msra.mxu0 %v2685
    %3239 = vmatprep.subr.mxu0 %v2688
    %3240 = vmatpush1.msra.mxu0 %v2687
    %3241 = vmatprep.subr.mxu0 %v2690
    %3242 = vmatpush1.msra.mxu0 %v2689
    %3243 = vmatprep.subr.mxu0 %v2692
    %3244 = vmatpush1.msra.mxu0 %v2691
    %3245 = vmatprep.subr.mxu0 %v2694
    %3246 = vmatpush1.msra.mxu0 %v2693
    %3247 = vmatprep.subr.mxu0 %v2696
    %3248 = vmatpush1.msra.mxu0 %v2695
    %3249 = vmatprep.subr.mxu0 %v2698
    %3250 = vmatpush1.msra.mxu0 %v2697
    %3251 = vmatprep.subr.mxu0 %v2700
    %3252 = vmatpush1.msra.mxu0 %v2699
    %3253 = vmatprep.subr.mxu0 %v2702
    %3254 = vmatpush1.msra.mxu0 %v2701
    %3255 = vmatprep.subr.mxu0 %v2704
    %3256 = vmatpush1.msra.mxu0 %v2703
    %3257 = vmatprep.subr.mxu0 %v2706
    %3258 = vmatpush1.msra.mxu0 %v2705
    %3259 = vmatprep.subr.mxu0 %v2708
    %3260 = vmatpush1.msra.mxu0 %v2707
    %3261 = vmatprep.subr.mxu0 %v2710
    %3262 = vmatpush1.msra.mxu0 %v2709
    %3263 = vmatprep.subr.mxu0 %v2712
    %3264 = vmatpush1.msra.mxu0 %v2711
    %3265 = vmatprep.subr.mxu0 %v2714
    %3266 = vmatpush1.msra.mxu0 %v2713
    %3267 = vmatprep.subr.mxu0 %v2716
    %3268 = vmatpush1.msra.mxu0 %v2715
    %3269 = vmatprep.subr.mxu0 %v2718
    %3270 = vmatpush1.msra.mxu0 %v2717
    %3271 = vmatprep.subr.mxu0 %v2720
    %3272 = vmatpush1.msra.mxu0 %v2719
    %3273 = vmatprep.subr.mxu0 %v2722
    %3274 = vmatpush1.msra.mxu0 %v2721
    %3275 = vmatprep.mubr.f32.mxu0 %v3101
    %3276 = vmatmul.mubr.f32.gmra.mrb[0].mxu0 %v3099
    %v3277 = vpop.f32.mrb[0].mxu0
    %v3278 = vadd.f32 0.0, %v3277
    %v3279 = vpop.f32.mrb[0].mxu0
    %v3280 = vadd.f32 0.0, %v3279
    %3281 = vmatprep.mubr.f32.mxu0 %v3107
    %3282 = vmatmul.mubr.f32.gmra.mrb[0].mxu0 %v3105
    %v3283 = vpop.f32.mrb[0].mxu0
    %v3284 = vadd.f32 0.0, %v3283
    %v3285 = vpop.f32.mrb[0].mxu0
    %v3286 = vadd.f32 0.0, %v3285
    %3287 = vmatprep.mubr.f32.mxu0 %v3113
    %3288 = vmatmul.mubr.f32.gmra.mrb[0].mxu0 %v3111
    %v3289 = vpop.f32.mrb[0].mxu0
    %v3290 = vadd.f32 0.0, %v3289
    %v3291 = vpop.f32.mrb[0].mxu0
    %v3292 = vadd.f32 0.0, %v3291
    %3293 = vdwg.mxu0
    %3294 = vmatprep.subr.mxu0 %v2724
    %3295 = vmatpush1.msra.mxu0 %v2723
    %3296 = vmatprep.subr.mxu0 %v3209
    %3297 = vmatpush1.msra.mxu0 %v3206
    %3298 = vmatprep.subr.mxu0 0.0
    %3299 = vmatpush1.msra.mxu0 0.0
    %3300 = vmatprep.subr.mxu0 0.0
    %3301 = vmatpush1.msra.mxu0 0.0
    %3302 = vmatprep.subr.mxu0 0.0
    %3303 = vmatpush1.msra.mxu0 0.0
    %3304 = vmatprep.subr.mxu0 0.0
    %3305 = vmatpush1.msra.mxu0 0.0
    %3306 = vmatprep.subr.mxu0 0.0
    %3307 = vmatpush1.msra.mxu0 0.0
    %3308 = vmatprep.subr.mxu0 0.0
    %3309 = vmatpush1.msra.mxu0 0.0
    %3310 = vmatprep.subr.mxu0 0.0
    %3311 = vmatpush1.msra.mxu0 0.0
    %3312 = vmatprep.subr.mxu0 0.0
    %3313 = vmatpush1.msra.mxu0 0.0
    %3314 = vmatprep.subr.mxu0 0.0
    %3315 = vmatpush1.msra.mxu0 0.0
    %3316 = vmatprep.subr.mxu0 0.0
    %3317 = vmatpush1.msra.mxu0 0.0
    %3318 = vmatprep.subr.mxu0 0.0
    %3319 = vmatpush1.msra.mxu0 0.0
    %3320 = vmatprep.subr.mxu0 0.0
    %3321 = vmatpush1.msra.mxu0 0.0
    %3322 = vmatprep.subr.mxu0 0.0
    %3323 = vmatpush1.msra.mxu0 0.0
    %3324 = vmatprep.subr.mxu0 0.0
    %3325 = vmatpush1.msra.mxu0 0.0
    %3326 = vmatprep.subr.mxu0 0.0
    %3327 = vmatpush1.msra.mxu0 0.0
    %3328 = vmatprep.subr.mxu0 0.0
    %3329 = vmatpush1.msra.mxu0 0.0
    %3330 = vmatprep.subr.mxu0 0.0
    %3331 = vmatpush1.msra.mxu0 0.0
    %3332 = vmatprep.subr.mxu0 0.0
    %3333 = vmatpush1.msra.mxu0 0.0
    %3334 = vmatprep.subr.mxu0 0.0
    %3335 = vmatpush1.msra.mxu0 0.0
    %3336 = vmatprep.subr.mxu0 0.0
    %3337 = vmatpush1.msra.mxu0 0.0
    %3338 = vmatprep.subr.mxu0 0.0
    %3339 = vmatpush1.msra.mxu0 0.0
    %3340 = vmatprep.subr.mxu0 0.0
    %3341 = vmatpush1.msra.mxu0 0.0
    %3342 = vmatprep.subr.mxu0 0.0
    %3343 = vmatpush1.msra.mxu0 0.0
    %3344 = vmatprep.subr.mxu0 0.0
    %3345 = vmatpush1.msra.mxu0 0.0
    %3346 = vmatprep.subr.mxu0 0.0
    %3347 = vmatpush1.msra.mxu0 0.0
    %3348 = vmatprep.subr.mxu0 0.0
    %3349 = vmatpush1.msra.mxu0 0.0
    %3350 = vmatprep.subr.mxu0 0.0
    %3351 = vmatpush1.msra.mxu0 0.0
    %3352 = vmatprep.subr.mxu0 0.0
    %3353 = vmatpush1.msra.mxu0 0.0
    %3354 = vmatprep.subr.mxu0 0.0
    %3355 = vmatpush1.msra.mxu0 0.0
    %3356 = vmatprep.subr.mxu0 0.0
    %3357 = vmatpush1.msra.mxu0 0.0
    %3358 = vmatprep.mubr.f32.mxu0 0.0
    %3359 = vmatmul.mubr.f32.gmra.mrb[0].mxu0 %v3197
    %v3360 = vpop.f32.mrb[0].mxu0
    %v3361 = vadd.f32 %v3278, %v3360
    %v3362 = vpop.f32.mrb[0].mxu0
    %v3363 = vadd.f32 %v3280, %v3362
    %3364 = vmatprep.mubr.f32.mxu0 0.0
    %3365 = vmatmul.mubr.f32.gmra.mrb[0].mxu0 %v3200
    %v3366 = vpop.f32.mrb[0].mxu0
    %v3367 = vadd.f32 %v3284, %v3366
    %v3368 = vpop.f32.mrb[0].mxu0
    %v3369 = vadd.f32 %v3286, %v3368
    %3370 = vmatprep.mubr.f32.mxu0 0.0
    %3371 = vmatmul.mubr.f32.gmra.mrb[0].mxu0 %v3203
    %v3372 = vpop.f32.mrb[0].mxu0
    %v3373 = vadd.f32 %v3290, %v3372
    %v3374 = vpop.f32.mrb[0].mxu0
    %v3375 = vadd.f32 %v3292, %v3374
    %3376 = vdwg.mxu0
    %v3377 = vmul.f32 %v1727, %v2730
    %v3378 = vmul.f32 %v1728, %v2734
    %v3379 = vmul.f32 %v1729, %v2738
    %v3380 = vmul.f32 %v1730, %v2730
    %v3381 = vmul.f32 %v1731, %v2734
    %v3382 = vmul.f32 %v1732, %v2738
    %v3383 = vmul.f32 %v1733, %v2730
    %v3384 = vmul.f32 %v1734, %v2734
    %v3385 = vmul.f32 %v1735, %v2738
    %v3386 = vmul.f32 %v1736, %v2730
    %v3387 = vmul.f32 %v1737, %v2734
    %v3388 = vmul.f32 %v1738, %v2738
    %v3389 = vmul.f32 %v1739, %v2730
    %v3390 = vmul.f32 %v1740, %v2734
    %v3391 = vmul.f32 %v1741, %v2738
    %v3392 = vmul.f32 %v1742, %v2730
    %v3393 = vmul.f32 %v1743, %v2734
    %v3394 = vmul.f32 %v1744, %v2738
    %v3395 = vadd.f32 %v3377, %v2776
    %v3396 = vadd.f32 %v3378, %v2780
    %v3397 = vadd.f32 %v3379, %v2784
    %v3398 = vadd.f32 %v3380, %v2776
    %v3399 = vadd.f32 %v3381, %v2780
    %v3400 = vadd.f32 %v3382, %v2784
    %v3401 = vadd.f32 %v3383, %v2776
    %v3402 = vadd.f32 %v3384, %v2780
    %v3403 = vadd.f32 %v3385, %v2784
    %v3404 = vadd.f32 %v3386, %v2776
    %v3405 = vadd.f32 %v3387, %v2780
    %v3406 = vadd.f32 %v3388, %v2784
    %v3407 = vadd.f32 %v3389, %v2776
    %v3408 = vadd.f32 %v3390, %v2780
    %v3409 = vadd.f32 %v3391, %v2784
    %v3410 = vadd.f32 %v3392, %v2776
    %v3411 = vadd.f32 %v3393, %v2780
    %v3412 = vadd.f32 %v3394, %v2784
    %v3431 = vrot.slane %v3395, 1
    %v3432 = vrot.slane %v3398, 1
    %v3433 = vsel %vm2821, %v3431, %v3432
    %v3434 = vrot.slane %v3396, 1
    %v3435 = vrot.slane %v3399, 1
    %v3436 = vsel %vm2821, %v3434, %v3435
    %v3437 = vrot.slane %v3397, 1
    %v3438 = vrot.slane %v3400, 1
    %v3439 = vsel %vm2821, %v3437, %v3438
    %v3440 = vrot.slane %v3401, 1
    %v3441 = vsel %vm2821, %v3432, %v3440
    %v3442 = vrot.slane %v3402, 1
    %v3443 = vsel %vm2821, %v3435, %v3442
    %v3444 = vrot.slane %v3403, 1
    %v3445 = vsel %vm2821, %v3438, %v3444
    %v3446 = vrot.slane %v3404, 1
    %v3447 = vsel %vm2821, %v3440, %v3446
    %v3448 = vrot.slane %v3405, 1
    %v3449 = vsel %vm2821, %v3442, %v3448
    %v3450 = vrot.slane %v3406, 1
    %v3451 = vsel %vm2821, %v3444, %v3450
    %v3452 = vrot.slane %v3407, 1
    %v3453 = vsel %vm2821, %v3446, %v3452
    %v3454 = vrot.slane %v3408, 1
    %v3455 = vsel %vm2821, %v3448, %v3454
    %v3456 = vrot.slane %v3409, 1
    %v3457 = vsel %vm2821, %v3450, %v3456
    %v3458 = vrot.slane %v3410, 1
    %v3459 = vsel %vm2821, %v3452, %v3458
    %v3460 = vrot.slane %v3411, 1
    %v3461 = vsel %vm2821, %v3454, %v3460
    %v3462 = vrot.slane %v3412, 1
    %v3463 = vsel %vm2821, %v3456, %v3462
    %v3482 = vmax.f32 %v3395, %v3433
    %v3483 = vmax.f32 %v3396, %v3436
    %v3484 = vmax.f32 %v3397, %v3439
    %v3485 = vmax.f32 %v3398, %v3441
    %v3486 = vmax.f32 %v3399, %v3443
    %v3487 = vmax.f32 %v3400, %v3445
    %v3488 = vmax.f32 %v3401, %v3447
    %v3489 = vmax.f32 %v3402, %v3449
    %v3490 = vmax.f32 %v3403, %v3451
    %v3491 = vmax.f32 %v3404, %v3453
    %v3492 = vmax.f32 %v3405, %v3455
    %v3493 = vmax.f32 %v3406, %v3457
    %v3494 = vmax.f32 %v3407, %v3459
    %v3495 = vmax.f32 %v3408, %v3461
    %v3496 = vmax.f32 %v3409, %v3463
    %v3497 = vmax.f32 %v3410, %v3458
    %v3498 = vmax.f32 %v3411, %v3460
    %v3499 = vmax.f32 %v3412, %v3462
    %3518 = vrot.lane.b32.xlu0 %v3482, 122
    %v3519 = vpop.permute.xlu0 %3518
    %3520 = vrot.lane.b32.xlu0 %v3483, 122
    %v3521 = vpop.permute.xlu0 %3520
    %3522 = vrot.lane.b32.xlu0 %v3484, 122
    %v3523 = vpop.permute.xlu0 %3522
    %3524 = vrot.lane.b32.xlu0 %v3485, 122
    %v3525 = vpop.permute.xlu0 %3524
    %3526 = vrot.lane.b32.xlu0 %v3486, 122
    %v3527 = vpop.permute.xlu0 %3526
    %3528 = vrot.lane.b32.xlu0 %v3487, 122
    %v3529 = vpop.permute.xlu0 %3528
    %3530 = vrot.lane.b32.xlu0 %v3488, 122
    %v3531 = vpop.permute.xlu0 %3530
    %3532 = vrot.lane.b32.xlu0 %v3489, 122
    %v3533 = vpop.permute.xlu0 %3532
    %3534 = vrot.lane.b32.xlu0 %v3490, 122
    %v3535 = vpop.permute.xlu0 %3534
    %3536 = vrot.lane.b32.xlu0 %v3491, 122
    %v3537 = vpop.permute.xlu0 %3536
    %3538 = vrot.lane.b32.xlu0 %v3492, 122
    %v3539 = vpop.permute.xlu0 %3538
    %3540 = vrot.lane.b32.xlu0 %v3493, 122
    %v3541 = vpop.permute.xlu0 %3540
    %3542 = vrot.lane.b32.xlu0 %v3494, 122
    %v3543 = vpop.permute.xlu0 %3542
    %3544 = vrot.lane.b32.xlu0 %v3495, 122
    %v3545 = vpop.permute.xlu0 %3544
    %3546 = vrot.lane.b32.xlu0 %v3496, 122
    %v3547 = vpop.permute.xlu0 %3546
    %3548 = vrot.lane.b32.xlu0 %v3497, 122
    %v3549 = vpop.permute.xlu0 %3548
    %3550 = vrot.lane.b32.xlu0 %v3498, 122
    %v3551 = vpop.permute.xlu0 %3550
    %3552 = vrot.lane.b32.xlu0 %v3499, 122
    %v3553 = vpop.permute.xlu0 %3552
    %v3554 = vsel %vm2945, %v3519, %v3521
    %v3555 = vsel %vm2945, %v3521, %v3523
    %v3556 = vsel %vm2945, %v3525, %v3527
    %v3557 = vsel %vm2945, %v3527, %v3529
    %v3558 = vsel %vm2945, %v3531, %v3533
    %v3559 = vsel %vm2945, %v3533, %v3535
    %v3560 = vsel %vm2945, %v3537, %v3539
    %v3561 = vsel %vm2945, %v3539, %v3541
    %v3562 = vsel %vm2945, %v3543, %v3545
    %v3563 = vsel %vm2945, %v3545, %v3547
    %v3564 = vsel %vm2945, %v3549, %v3551
    %v3565 = vsel %vm2945, %v3551, %v3553
    %v3584 = vmax.f32 %v3482, %v3554
    %v3585 = vmax.f32 %v3483, %v3555
    %v3586 = vmax.f32 %v3484, %v3523
    %v3587 = vmax.f32 %v3485, %v3556
    %v3588 = vmax.f32 %v3486, %v3557
    %v3589 = vmax.f32 %v3487, %v3529
    %v3590 = vmax.f32 %v3488, %v3558
    %v3591 = vmax.f32 %v3489, %v3559
    %v3592 = vmax.f32 %v3490, %v3535
    %v3593 = vmax.f32 %v3491, %v3560
    %v3594 = vmax.f32 %v3492, %v3561
    %v3595 = vmax.f32 %v3493, %v3541
    %v3596 = vmax.f32 %v3494, %v3562
    %v3597 = vmax.f32 %v3495, %v3563
    %v3598 = vmax.f32 %v3496, %v3547
    %v3599 = vmax.f32 %v3497, %v3564
    %v3600 = vmax.f32 %v3498, %v3565
    %v3601 = vmax.f32 %v3499, %v3553
    %v3602 = vmax.f32 %v3584, 0.0
    %v3603 = vmax.f32 %v3585, 0.0
    %v3604 = vmax.f32 %v3586, 0.0
    %v3605 = vmax.f32 %v3587, 0.0
    %v3606 = vmax.f32 %v3588, 0.0
    %v3607 = vmax.f32 %v3589, 0.0
    %v3608 = vmax.f32 %v3590, 0.0
    %v3609 = vmax.f32 %v3591, 0.0
    %v3610 = vmax.f32 %v3592, 0.0
    %v3611 = vmax.f32 %v3593, 0.0
    %v3612 = vmax.f32 %v3594, 0.0
    %v3613 = vmax.f32 %v3595, 0.0
    %v3614 = vmax.f32 %v3596, 0.0
    %v3615 = vmax.f32 %v3597, 0.0
    %v3616 = vmax.f32 %v3598, 0.0
    %v3617 = vmax.f32 %v3599, 0.0
    %v3618 = vmax.f32 %v3600, 0.0
    %v3619 = vmax.f32 %v3601, 0.0
    %v3621 = vsel %vm3022, %v3617, 0
    %v3624 = vsel %vm3022, %v3618, 0
    %v3627 = vsel %vm3022, %v3619, 0
    %3629 = vmatprep.subr.mxu0 %v3603
    %3630 = vmatpush1.msra.mxu0 %v3602
    %3631 = vmatprep.subr.mxu0 %v3606
    %3632 = vmatpush1.msra.mxu0 %v3605
    %3633 = vmatprep.subr.mxu0 %v3609
    %3634 = vmatpush1.msra.mxu0 %v3608
    %3635 = vmatprep.subr.mxu0 %v3612
    %3636 = vmatpush1.msra.mxu0 %v3611
    %3637 = vmatprep.subr.mxu0 %v3615
    %3638 = vmatpush1.msra.mxu0 %v3614
    %3639 = vmatprep.subr.mxu0 %v3624
    %3640 = vmatpush1.msra.mxu0 %v3621
    %3641 = vmatprep.subr.mxu0 0.0
    %3642 = vmatpush1.msra.mxu0 0.0
    %3643 = vmatprep.subr.mxu0 0.0
    %3644 = vmatpush1.msra.mxu0 0.0
    %3645 = vmatprep.subr.mxu0 0.0
    %3646 = vmatpush1.msra.mxu0 0.0
    %3647 = vmatprep.subr.mxu0 0.0
    %3648 = vmatpush1.msra.mxu0 0.0
    %3649 = vmatprep.subr.mxu0 0.0
    %3650 = vmatpush1.msra.mxu0 0.0
    %3651 = vmatprep.subr.mxu0 0.0
    %3652 = vmatpush1.msra.mxu0 0.0
    %3653 = vmatprep.subr.mxu0 0.0
    %3654 = vmatpush1.msra.mxu0 0.0
    %3655 = vmatprep.subr.mxu0 0.0
    %3656 = vmatpush1.msra.mxu0 0.0
    %3657 = vmatprep.subr.mxu0 0.0
    %3658 = vmatpush1.msra.mxu0 0.0
    %3659 = vmatprep.subr.mxu0 0.0
    %3660 = vmatpush1.msra.mxu0 0.0
    %3661 = vmatprep.subr.mxu0 0.0
    %3662 = vmatpush1.msra.mxu0 0.0
    %3663 = vmatprep.subr.mxu0 0.0
    %3664 = vmatpush1.msra.mxu0 0.0
    %3665 = vmatprep.subr.mxu0 0.0
    %3666 = vmatpush1.msra.mxu0 0.0
    %3667 = vmatprep.subr.mxu0 0.0
    %3668 = vmatpush1.msra.mxu0 0.0
    %3669 = vmatprep.subr.mxu0 0.0
    %3670 = vmatpush1.msra.mxu0 0.0
    %3671 = vmatprep.subr.mxu0 0.0
    %3672 = vmatpush1.msra.mxu0 0.0
    %3673 = vmatprep.subr.mxu0 0.0
    %3674 = vmatpush1.msra.mxu0 0.0
    %3675 = vmatprep.subr.mxu0 0.0
    %3676 = vmatpush1.msra.mxu0 0.0
    %3677 = vmatprep.subr.mxu0 0.0
    %3678 = vmatpush1.msra.mxu0 0.0
    %3679 = vmatprep.subr.mxu0 0.0
    %3680 = vmatpush1.msra.mxu0 0.0
    %3681 = vmatprep.subr.mxu0 0.0
    %3682 = vmatpush1.msra.mxu0 0.0
    %3683 = vmatprep.subr.mxu0 0.0
    %3684 = vmatpush1.msra.mxu0 0.0
    %3685 = vmatprep.subr.mxu0 0.0
    %3686 = vmatpush1.msra.mxu0 0.0
    %3687 = vmatprep.subr.mxu0 0.0
    %3688 = vmatpush1.msra.mxu0 0.0
    %3689 = vmatprep.subr.mxu0 0.0
    %3690 = vmatpush1.msra.mxu0 0.0
    %3691 = vmatprep.subr.mxu0 0.0
    %3692 = vmatpush1.msra.mxu0 0.0
    %3693 = vmatprep.mubr.f32.mxu0 0.0
    %3694 = vmatmul.mubr.f32.gmra.mrb[0].mxu0 %v3014
    %v3695 = vpop.f32.mrb[0].mxu0
    %v3696 = vadd.f32 0.0, %v3695
    %v3697 = vpop.f32.mrb[0].mxu0
    %v3698 = vadd.f32 0.0, %v3697
    %3699 = vmatprep.mubr.f32.mxu0 0.0
    %3700 = vmatmul.mubr.f32.gmra.mrb[0].mxu0 %v3017
    %v3701 = vpop.f32.mrb[0].mxu0
    %v3702 = vadd.f32 0.0, %v3701
    %v3703 = vpop.f32.mrb[0].mxu0
    %v3704 = vadd.f32 0.0, %v3703
    %3705 = vmatprep.mubr.f32.mxu0 0.0
    %3706 = vmatmul.mubr.f32.gmra.mrb[0].mxu0 %v3020
    %v3707 = vpop.f32.mrb[0].mxu0
    %v3708 = vadd.f32 0.0, %v3707
    %v3709 = vpop.f32.mrb[0].mxu0
    %v3710 = vadd.f32 0.0, %v3709
    %3711 = vdwg.mxu0
    %3712 = vmatprep.subr.mxu0 0.0
    %3713 = vmatpush1.msra.mxu0 %v3604
    %3714 = vmatprep.subr.mxu0 0.0
    %3715 = vmatpush1.msra.mxu0 %v3607
    %3716 = vmatprep.subr.mxu0 0.0
    %3717 = vmatpush1.msra.mxu0 %v3610
    %3718 = vmatprep.subr.mxu0 0.0
    %3719 = vmatpush1.msra.mxu0 %v3613
    %3720 = vmatprep.subr.mxu0 0.0
    %3721 = vmatpush1.msra.mxu0 %v3616
    %3722 = vmatprep.subr.mxu0 0.0
    %3723 = vmatpush1.msra.mxu0 %v3627
    %3724 = vmatprep.subr.mxu0 0.0
    %3725 = vmatpush1.msra.mxu0 0.0
    %3726 = vmatprep.subr.mxu0 0.0
    %3727 = vmatpush1.msra.mxu0 0.0
    %3728 = vmatprep.subr.mxu0 0.0
    %3729 = vmatpush1.msra.mxu0 0.0
    %3730 = vmatprep.subr.mxu0 0.0
    %3731 = vmatpush1.msra.mxu0 0.0
    %3732 = vmatprep.subr.mxu0 0.0
    %3733 = vmatpush1.msra.mxu0 0.0
    %3734 = vmatprep.subr.mxu0 0.0
    %3735 = vmatpush1.msra.mxu0 0.0
    %3736 = vmatprep.subr.mxu0 0.0
    %3737 = vmatpush1.msra.mxu0 0.0
    %3738 = vmatprep.subr.mxu0 0.0
    %3739 = vmatpush1.msra.mxu0 0.0
    %3740 = vmatprep.subr.mxu0 0.0
    %3741 = vmatpush1.msra.mxu0 0.0
    %3742 = vmatprep.subr.mxu0 0.0
    %3743 = vmatpush1.msra.mxu0 0.0
    %3744 = vmatprep.subr.mxu0 0.0
    %3745 = vmatpush1.msra.mxu0 0.0
    %3746 = vmatprep.subr.mxu0 0.0
    %3747 = vmatpush1.msra.mxu0 0.0
    %3748 = vmatprep.subr.mxu0 0.0
    %3749 = vmatpush1.msra.mxu0 0.0
    %3750 = vmatprep.subr.mxu0 0.0
    %3751 = vmatpush1.msra.mxu0 0.0
    %3752 = vmatprep.subr.mxu0 0.0
    %3753 = vmatpush1.msra.mxu0 0.0
    %3754 = vmatprep.subr.mxu0 0.0
    %3755 = vmatpush1.msra.mxu0 0.0
    %3756 = vmatprep.subr.mxu0 0.0
    %3757 = vmatpush1.msra.mxu0 0.0
    %3758 = vmatprep.subr.mxu0 0.0
    %3759 = vmatpush1.msra.mxu0 0.0
    %3760 = vmatprep.subr.mxu0 0.0
    %3761 = vmatpush1.msra.mxu0 0.0
    %3762 = vmatprep.subr.mxu0 0.0
    %3763 = vmatpush1.msra.mxu0 0.0
    %3764 = vmatprep.subr.mxu0 0.0
    %3765 = vmatpush1.msra.mxu0 0.0
    %3766 = vmatprep.subr.mxu0 0.0
    %3767 = vmatpush1.msra.mxu0 0.0
    %3768 = vmatprep.subr.mxu0 0.0
    %3769 = vmatpush1.msra.mxu0 0.0
    %3770 = vmatprep.subr.mxu0 0.0
    %3771 = vmatpush1.msra.mxu0 0.0
    %3772 = vmatprep.subr.mxu0 0.0
    %3773 = vmatpush1.msra.mxu0 0.0
    %3774 = vmatprep.subr.mxu0 0.0
    %3775 = vmatpush1.msra.mxu0 0.0
    %3776 = vmatprep.mubr.f32.mxu0 0.0
    %3777 = vmatmul.mubr.f32.gmra.mrb[0].mxu0 %v3014
    %v3778 = vpop.f32.mrb[0].mxu0
    %v3779 = vadd.f32 0.0, %v3778
    %v3780 = vpop.f32.mrb[0].mxu0
    %3781 = vmatprep.mubr.f32.mxu0 0.0
    %3782 = vmatmul.mubr.f32.gmra.mrb[0].mxu0 %v3017
    %v3783 = vpop.f32.mrb[0].mxu0
    %v3784 = vadd.f32 0.0, %v3783
    %v3785 = vpop.f32.mrb[0].mxu0
    %3786 = vmatprep.mubr.f32.mxu0 0.0
    %3787 = vmatmul.mubr.f32.gmra.mrb[0].mxu0 %v3020
    %v3788 = vpop.f32.mrb[0].mxu0
    %v3789 = vadd.f32 0.0, %v3788
    %v3790 = vpop.f32.mrb[0].mxu0
    %3791 = vdwg.mxu0
    %v3793 = vsel %vm3195, %v3779, 0
    %v3796 = vsel %vm3195, %v3784, 0
    %v3799 = vsel %vm3195, %v3789, 0
    %3801 = vmatprep.subr.mxu0 %v2660
    %3802 = vmatpush1.msra.mxu0 %v2659
    %3803 = vmatprep.subr.mxu0 %v2662
    %3804 = vmatpush1.msra.mxu0 %v2661
    %3805 = vmatprep.subr.mxu0 %v2664
    %3806 = vmatpush1.msra.mxu0 %v2663
    %3807 = vmatprep.subr.mxu0 %v2666
    %3808 = vmatpush1.msra.mxu0 %v2665
    %3809 = vmatprep.subr.mxu0 %v2668
    %3810 = vmatpush1.msra.mxu0 %v2667
    %3811 = vmatprep.subr.mxu0 %v2670
    %3812 = vmatpush1.msra.mxu0 %v2669
    %3813 = vmatprep.subr.mxu0 %v2672
    %3814 = vmatpush1.msra.mxu0 %v2671
    %3815 = vmatprep.subr.mxu0 %v2674
    %3816 = vmatpush1.msra.mxu0 %v2673
    %3817 = vmatprep.subr.mxu0 %v2676
    %3818 = vmatpush1.msra.mxu0 %v2675
    %3819 = vmatprep.subr.mxu0 %v2678
    %3820 = vmatpush1.msra.mxu0 %v2677
    %3821 = vmatprep.subr.mxu0 %v2680
    %3822 = vmatpush1.msra.mxu0 %v2679
    %3823 = vmatprep.subr.mxu0 %v2682
    %3824 = vmatpush1.msra.mxu0 %v2681
    %3825 = vmatprep.subr.mxu0 %v2684
    %3826 = vmatpush1.msra.mxu0 %v2683
    %3827 = vmatprep.subr.mxu0 %v2686
    %3828 = vmatpush1.msra.mxu0 %v2685
    %3829 = vmatprep.subr.mxu0 %v2688
    %3830 = vmatpush1.msra.mxu0 %v2687
    %3831 = vmatprep.subr.mxu0 %v2690
    %3832 = vmatpush1.msra.mxu0 %v2689
    %3833 = vmatprep.subr.mxu0 %v2692
    %3834 = vmatpush1.msra.mxu0 %v2691
    %3835 = vmatprep.subr.mxu0 %v2694
    %3836 = vmatpush1.msra.mxu0 %v2693
    %3837 = vmatprep.subr.mxu0 %v2696
    %3838 = vmatpush1.msra.mxu0 %v2695
    %3839 = vmatprep.subr.mxu0 %v2698
    %3840 = vmatpush1.msra.mxu0 %v2697
    %3841 = vmatprep.subr.mxu0 %v2700
    %3842 = vmatpush1.msra.mxu0 %v2699
    %3843 = vmatprep.subr.mxu0 %v2702
    %3844 = vmatpush1.msra.mxu0 %v2701
    %3845 = vmatprep.subr.mxu0 %v2704
    %3846 = vmatpush1.msra.mxu0 %v2703
    %3847 = vmatprep.subr.mxu0 %v2706
    %3848 = vmatpush1.msra.mxu0 %v2705
    %3849 = vmatprep.subr.mxu0 %v2708
    %3850 = vmatpush1.msra.mxu0 %v2707
    %3851 = vmatprep.subr.mxu0 %v2710
    %3852 = vmatpush1.msra.mxu0 %v2709
    %3853 = vmatprep.subr.mxu0 %v2712
    %3854 = vmatpush1.msra.mxu0 %v2711
    %3855 = vmatprep.subr.mxu0 %v2714
    %3856 = vmatpush1.msra.mxu0 %v2713
    %3857 = vmatprep.subr.mxu0 %v2716
    %3858 = vmatpush1.msra.mxu0 %v2715
    %3859 = vmatprep.subr.mxu0 %v2718
    %3860 = vmatpush1.msra.mxu0 %v2717
    %3861 = vmatprep.subr.mxu0 %v2720
    %3862 = vmatpush1.msra.mxu0 %v2719
    %3863 = vmatprep.subr.mxu0 %v2722
    %3864 = vmatpush1.msra.mxu0 %v2721
    %3865 = vmatprep.mubr.f32.mxu0 %v3698
    %3866 = vmatmul.mubr.f32.gmra.mrb[0].mxu0 %v3696
    %v3867 = vpop.f32.mrb[0].mxu0
    %v3868 = vadd.f32 0.0, %v3867
    %v3869 = vpop.f32.mrb[0].mxu0
    %v3870 = vadd.f32 0.0, %v3869
    %3871 = vmatprep.mubr.f32.mxu0 %v3704
    %3872 = vmatmul.mubr.f32.gmra.mrb[0].mxu0 %v3702
    %v3873 = vpop.f32.mrb[0].mxu0
    %v3874 = vadd.f32 0.0, %v3873
    %v3875 = vpop.f32.mrb[0].mxu0
    %v3876 = vadd.f32 0.0, %v3875
    %3877 = vmatprep.mubr.f32.mxu0 %v3710
    %3878 = vmatmul.mubr.f32.gmra.mrb[0].mxu0 %v3708
    %v3879 = vpop.f32.mrb[0].mxu0
    %v3880 = vadd.f32 0.0, %v3879
    %v3881 = vpop.f32.mrb[0].mxu0
    %v3882 = vadd.f32 0.0, %v3881
    %3883 = vdwg.mxu0
    %3884 = vmatprep.subr.mxu0 %v2724
    %3885 = vmatpush1.msra.mxu0 %v2723
    %3886 = vmatprep.subr.mxu0 %v3209
    %3887 = vmatpush1.msra.mxu0 %v3206
    %3888 = vmatprep.subr.mxu0 0.0
    %3889 = vmatpush1.msra.mxu0 0.0
    %3890 = vmatprep.subr.mxu0 0.0
    %3891 = vmatpush1.msra.mxu0 0.0
    %3892 = vmatprep.subr.mxu0 0.0
    %3893 = vmatpush1.msra.mxu0 0.0
    %3894 = vmatprep.subr.mxu0 0.0
    %3895 = vmatpush1.msra.mxu0 0.0
    %3896 = vmatprep.subr.mxu0 0.0
    %3897 = vmatpush1.msra.mxu0 0.0
    %3898 = vmatprep.subr.mxu0 0.0
    %3899 = vmatpush1.msra.mxu0 0.0
    %3900 = vmatprep.subr.mxu0 0.0
    %3901 = vmatpush1.msra.mxu0 0.0
    %3902 = vmatprep.subr.mxu0 0.0
    %3903 = vmatpush1.msra.mxu0 0.0
    %3904 = vmatprep.subr.mxu0 0.0
    %3905 = vmatpush1.msra.mxu0 0.0
    %3906 = vmatprep.subr.mxu0 0.0
    %3907 = vmatpush1.msra.mxu0 0.0
    %3908 = vmatprep.subr.mxu0 0.0
    %3909 = vmatpush1.msra.mxu0 0.0
    %3910 = vmatprep.subr.mxu0 0.0
    %3911 = vmatpush1.msra.mxu0 0.0
    %3912 = vmatprep.subr.mxu0 0.0
    %3913 = vmatpush1.msra.mxu0 0.0
    %3914 = vmatprep.subr.mxu0 0.0
    %3915 = vmatpush1.msra.mxu0 0.0
    %3916 = vmatprep.subr.mxu0 0.0
    %3917 = vmatpush1.msra.mxu0 0.0
    %3918 = vmatprep.subr.mxu0 0.0
    %3919 = vmatpush1.msra.mxu0 0.0
    %3920 = vmatprep.subr.mxu0 0.0
    %3921 = vmatpush1.msra.mxu0 0.0
    %3922 = vmatprep.subr.mxu0 0.0
    %3923 = vmatpush1.msra.mxu0 0.0
    %3924 = vmatprep.subr.mxu0 0.0
    %3925 = vmatpush1.msra.mxu0 0.0
    %3926 = vmatprep.subr.mxu0 0.0
    %3927 = vmatpush1.msra.mxu0 0.0
    %3928 = vmatprep.subr.mxu0 0.0
    %3929 = vmatpush1.msra.mxu0 0.0
    %3930 = vmatprep.subr.mxu0 0.0
    %3931 = vmatpush1.msra.mxu0 0.0
    %3932 = vmatprep.subr.mxu0 0.0
    %3933 = vmatpush1.msra.mxu0 0.0
    %3934 = vmatprep.subr.mxu0 0.0
    %3935 = vmatpush1.msra.mxu0 0.0
    %3936 = vmatprep.subr.mxu0 0.0
    %3937 = vmatpush1.msra.mxu0 0.0
    %3938 = vmatprep.subr.mxu0 0.0
    %3939 = vmatpush1.msra.mxu0 0.0
    %3940 = vmatprep.subr.mxu0 0.0
    %3941 = vmatpush1.msra.mxu0 0.0
    %3942 = vmatprep.subr.mxu0 0.0
    %3943 = vmatpush1.msra.mxu0 0.0
    %3944 = vmatprep.subr.mxu0 0.0
    %3945 = vmatpush1.msra.mxu0 0.0
    %3946 = vmatprep.subr.mxu0 0.0
    %3947 = vmatpush1.msra.mxu0 0.0
    %3948 = vmatprep.mubr.f32.mxu0 0.0
    %3949 = vmatmul.mubr.f32.gmra.mrb[0].mxu0 %v3793
    %v3950 = vpop.f32.mrb[0].mxu0
    %v3951 = vadd.f32 %v3868, %v3950
    %v3952 = vpop.f32.mrb[0].mxu0
    %v3953 = vadd.f32 %v3870, %v3952
    %3954 = vmatprep.mubr.f32.mxu0 0.0
    %3955 = vmatmul.mubr.f32.gmra.mrb[0].mxu0 %v3796
    %v3956 = vpop.f32.mrb[0].mxu0
    %v3957 = vadd.f32 %v3874, %v3956
    %v3958 = vpop.f32.mrb[0].mxu0
    %v3959 = vadd.f32 %v3876, %v3958
    %3960 = vmatprep.mubr.f32.mxu0 0.0
    %3961 = vmatmul.mubr.f32.gmra.mrb[0].mxu0 %v3799
    %v3962 = vpop.f32.mrb[0].mxu0
    %v3963 = vadd.f32 %v3880, %v3962
    %v3964 = vpop.f32.mrb[0].mxu0
    %v3965 = vadd.f32 %v3882, %v3964
    %3966 = vdwg.mxu0
    %v3967 = vpack.c.bf16 %v3367, %v3361
    %v3968 = vpack.c.bf16 %v3369, %v3363
    %v3969 = vpack.c.bf16 %v3373, %v3373
    %v3970 = vpack.c.bf16 %v3375, %v3375
    %v3971 = vld [vmem:[%s7] sm:$0xff]
    %v3972 = vld [vmem:[%s7 + $0x8] sm:$0xff]
    %v3973 = vld [vmem:[%s7 + $0x10] sm:$0xff]
    %v3974 = vld [vmem:[%s7 + $0x18] sm:$0xff]
    %v3975 = vld [vmem:[%s7 + $0x20] sm:$0xff]
    %v3976 = vld [vmem:[%s7 + $0x28] sm:$0xff]
    %v3977 = vld [vmem:[%s7 + $0x30] sm:$0xff]
    %v3978 = vld [vmem:[%s7 + $0x38] sm:$0xff]
    %v3979 = vld [vmem:[%s7 + $0x40] sm:$0xff]
    %v3980 = vld [vmem:[%s7 + $0x48] sm:$0xff]
    %v3981 = vld [vmem:[%s7 + $0x50] sm:$0xff]
    %v3982 = vld [vmem:[%s7 + $0x58] sm:$0xff]
    %v3983 = vld [vmem:[%s7 + $0x60] sm:$0xff]
    %v3984 = vld [vmem:[%s7 + $0x68] sm:$0xff]
    %v3985 = vld [vmem:[%s7 + $0x70] sm:$0xff]
    %v3986 = vld [vmem:[%s7 + $0x78] sm:$0xff]
    %v3987 = vld [vmem:[%s7 + $0x80] sm:$0xff]
    %v3988 = vld [vmem:[%s7 + $0x88] sm:$0x11]
    %s3989 = scalar_lea.vmem %s7, 144
    %v3990 = vld [vmem:[%s3989] sm:$0xff]
    %v3991 = vld [vmem:[%s3989 + $0x8] sm:$0xff]
    %v3992 = vld [vmem:[%s3989 + $0x10] sm:$0xff]
    %v3993 = vld [vmem:[%s3989 + $0x18] sm:$0xff]
    %v3994 = vld [vmem:[%s3989 + $0x20] sm:$0xff]
    %v3995 = vld [vmem:[%s3989 + $0x28] sm:$0xff]
    %v3996 = vld [vmem:[%s3989 + $0x30] sm:$0xff]
    %v3997 = vld [vmem:[%s3989 + $0x38] sm:$0xff]
    %v3998 = vld [vmem:[%s3989 + $0x40] sm:$0xff]
    %v3999 = vld [vmem:[%s3989 + $0x48] sm:$0xff]
    %v4000 = vld [vmem:[%s3989 + $0x50] sm:$0xff]
    %v4001 = vld [vmem:[%s3989 + $0x58] sm:$0xff]
    %v4002 = vld [vmem:[%s3989 + $0x60] sm:$0xff]
    %v4003 = vld [vmem:[%s3989 + $0x68] sm:$0xff]
    %v4004 = vld [vmem:[%s3989 + $0x70] sm:$0xff]
    %v4005 = vld [vmem:[%s3989 + $0x78] sm:$0xff]
    %v4006 = vld [vmem:[%s3989 + $0x80] sm:$0xff]
    %v4007 = vld [vmem:[%s3989 + $0x88] sm:$0x11]
    %v4009 = vshrl.u32 %v3967, 16
    %v4011 = vshll.u32 %v3967, 16
    %v4013 = vrot.slane %v4011, 1
    %v4014 = vor.u32 %v4009, %v4013
    %v4016 = vshll.u32 %v3969, 16
    %v4018 = vrot.slane %v4016, 1
    %v4019 = vsel %vm327, %v4014, %v4018
    %v4021 = vshrl.u32 %v3968, 16
    %v4023 = vshll.u32 %v3968, 16
    %v4025 = vrot.slane %v4023, 1
    %v4026 = vor.u32 %v4021, %v4025
    %v4028 = vshll.u32 %v3970, 16
    %v4030 = vrot.slane %v4028, 1
    %v4031 = vsel %vm327, %v4026, %v4030
    %v4032 = vshrl.u32 %v3969, 16
    %v4034 = vor.u32 %v4032, %v4018
    %v4035 = vshrl.u32 %v3970, 16
    %v4037 = vor.u32 %v4035, %v4030
    %v4058 = vunpack.c.l.b16 %v3990
    %v4059 = vunpack.c.h.b16 %v3990
    %v4060 = vunpack.c.l.b16 %v3991
    %v4061 = vunpack.c.h.b16 %v3991
    %v4062 = vunpack.c.l.b16 %v3992
    %v4063 = vunpack.c.h.b16 %v3992
    %v4064 = vunpack.c.l.b16 %v3993
    %v4065 = vunpack.c.h.b16 %v3993
    %v4066 = vunpack.c.l.b16 %v3994
    %v4067 = vunpack.c.h.b16 %v3994
    %v4068 = vunpack.c.l.b16 %v3995
    %v4069 = vunpack.c.h.b16 %v3995
    %v4070 = vunpack.c.l.b16 %v3996
    %v4071 = vunpack.c.h.b16 %v3996
    %v4072 = vunpack.c.l.b16 %v3997
    %v4073 = vunpack.c.h.b16 %v3997
    %v4074 = vunpack.c.l.b16 %v3998
    %v4075 = vunpack.c.h.b16 %v3998
    %v4076 = vunpack.c.l.b16 %v3999
    %v4077 = vunpack.c.h.b16 %v3999
    %v4078 = vunpack.c.l.b16 %v4000
    %v4079 = vunpack.c.h.b16 %v4000
    %v4080 = vunpack.c.l.b16 %v4001
    %v4081 = vunpack.c.h.b16 %v4001
    %v4082 = vunpack.c.l.b16 %v4002
    %v4083 = vunpack.c.h.b16 %v4002
    %v4084 = vunpack.c.l.b16 %v4003
    %v4085 = vunpack.c.h.b16 %v4003
    %v4086 = vunpack.c.l.b16 %v4004
    %v4087 = vunpack.c.h.b16 %v4004
    %v4088 = vunpack.c.l.b16 %v4005
    %v4089 = vunpack.c.h.b16 %v4005
    %v4090 = vunpack.c.l.b16 %v4006
    %v4091 = vunpack.c.h.b16 %v4006
    %v4092 = vunpack.c.l.b16 %v4007
    %v4093 = vunpack.c.h.b16 %v4007
    %v4094 = vpack.c.b16 %v4060, %v4058
    %v4095 = vpack.c.b16 %v4061, %v4059
    %v4096 = vpack.c.b16 %v4064, %v4062
    %v4097 = vpack.c.b16 %v4065, %v4063
    %v4098 = vpack.c.b16 %v4068, %v4066
    %v4099 = vpack.c.b16 %v4069, %v4067
    %v4100 = vpack.c.b16 %v4072, %v4070
    %v4101 = vpack.c.b16 %v4073, %v4071
    %v4102 = vpack.c.b16 %v4076, %v4074
    %v4103 = vpack.c.b16 %v4077, %v4075
    %v4104 = vpack.c.b16 %v4080, %v4078
    %v4105 = vpack.c.b16 %v4081, %v4079
    %v4106 = vpack.c.b16 %v4084, %v4082
    %v4107 = vpack.c.b16 %v4085, %v4083
    %v4108 = vpack.c.b16 %v4088, %v4086
    %v4109 = vpack.c.b16 %v4089, %v4087
    %v4110 = vpack.c.b16 %v4092, %v4090
    %v4111 = vpack.c.b16 %v4093, %v4091
    %vm4128 = vcmask 80896
    %v4130 = vsel %vm4128, %v4031, 0
    %v4133 = vsel %vm4128, %v4037, 0
    %v4136 = vsel %vm3022, %v4110, 0
    %v4139 = vsel %vm3022, %v4111, 0
    %4141 = vmatprep.subr.bf16.mxu0 %v4095
    %4142 = vmatpush1.bf16.msra.mxu0 %v4094
    %4143 = vmatprep.subr.bf16.mxu0 %v4097
    %4144 = vmatpush1.bf16.msra.mxu0 %v4096
    %4145 = vmatprep.subr.bf16.mxu0 %v4099
    %4146 = vmatpush1.bf16.msra.mxu0 %v4098
    %4147 = vmatprep.subr.bf16.mxu0 %v4101
    %4148 = vmatpush1.bf16.msra.mxu0 %v4100
    %4149 = vmatprep.subr.bf16.mxu0 %v4103
    %4150 = vmatpush1.bf16.msra.mxu0 %v4102
    %4151 = vmatprep.subr.bf16.mxu0 %v4105
    %4152 = vmatpush1.bf16.msra.mxu0 %v4104
    %4153 = vmatprep.subr.bf16.mxu0 %v4107
    %4154 = vmatpush1.bf16.msra.mxu0 %v4106
    %4155 = vmatprep.subr.bf16.mxu0 %v4109
    %4156 = vmatpush1.bf16.msra.mxu0 %v4108
    %4157 = vmatprep.subr.bf16.mxu0 %v4139
    %4158 = vmatpush1.bf16.msra.mxu0 %v4136
    %4159 = vmatprep.subr.bf16.mxu0 0
    %4160 = vmatpush1.bf16.msra.mxu0 0
    %4161 = vmatprep.subr.bf16.mxu0 0
    %4162 = vmatpush1.bf16.msra.mxu0 0
    %4163 = vmatprep.subr.bf16.mxu0 0
    %4164 = vmatpush1.bf16.msra.mxu0 0
    %4165 = vmatprep.subr.bf16.mxu0 0
    %4166 = vmatpush1.bf16.msra.mxu0 0
    %4167 = vmatprep.subr.bf16.mxu0 0
    %4168 = vmatpush1.bf16.msra.mxu0 0
    %4169 = vmatprep.subr.bf16.mxu0 0
    %4170 = vmatpush1.bf16.msra.mxu0 0
    %4171 = vmatprep.subr.bf16.mxu0 0
    %4172 = vmatpush1.bf16.msra.mxu0 0
    %4173 = vmatprep.mubr.bf16.mxu0 %v4130
    %4174 = vmatmul.mubr.bf16.gmra.mrb[0].mxu0 %v4019
    %v4175 = vpop.f32.mrb[0].mxu0
    %v4176 = vadd.f32 0.0, %v4175
    %v4177 = vpop.f32.mrb[0].mxu0
    %v4178 = vadd.f32 0.0, %v4177
    %v4179 = vpop.f32.mrb[0].mxu0
    %v4180 = vadd.f32 0.0, %v4179
    %v4181 = vpop.f32.mrb[0].mxu0
    %v4182 = vadd.f32 0.0, %v4181
    %4183 = vmatprep.mubr.bf16.mxu0 %v4133
    %4184 = vmatmul.mubr.bf16.gmra.mrb[0].mxu0 %v4034
    %v4185 = vpop.f32.mrb[0].mxu0
    %v4186 = vadd.f32 0.0, %v4185
    %v4187 = vpop.f32.mrb[0].mxu0
    %v4188 = vadd.f32 0.0, %v4187
    %v4189 = vpop.f32.mrb[0].mxu0
    %v4190 = vpop.f32.mrb[0].mxu0
    %4191 = vdwg.mxu0
    %v4210 = vunpack.c.l.b16 %v3971
    %v4211 = vunpack.c.h.b16 %v3971
    %v4212 = vunpack.c.l.b16 %v3972
    %v4213 = vunpack.c.h.b16 %v3972
    %v4214 = vunpack.c.l.b16 %v3973
    %v4215 = vunpack.c.h.b16 %v3973
    %v4216 = vunpack.c.l.b16 %v3974
    %v4217 = vunpack.c.h.b16 %v3974
    %v4218 = vunpack.c.l.b16 %v3975
    %v4219 = vunpack.c.h.b16 %v3975
    %v4220 = vunpack.c.l.b16 %v3976
    %v4221 = vunpack.c.h.b16 %v3976
    %v4222 = vunpack.c.l.b16 %v3977
    %v4223 = vunpack.c.h.b16 %v3977
    %v4224 = vunpack.c.l.b16 %v3978
    %v4225 = vunpack.c.h.b16 %v3978
    %v4226 = vunpack.c.l.b16 %v3979
    %v4227 = vunpack.c.h.b16 %v3979
    %v4228 = vunpack.c.l.b16 %v3980
    %v4229 = vunpack.c.h.b16 %v3980
    %v4230 = vunpack.c.l.b16 %v3981
    %v4231 = vunpack.c.h.b16 %v3981
    %v4232 = vunpack.c.l.b16 %v3982
    %v4233 = vunpack.c.h.b16 %v3982
    %v4234 = vunpack.c.l.b16 %v3983
    %v4235 = vunpack.c.h.b16 %v3983
    %v4236 = vunpack.c.l.b16 %v3984
    %v4237 = vunpack.c.h.b16 %v3984
    %v4238 = vunpack.c.l.b16 %v3985
    %v4239 = vunpack.c.h.b16 %v3985
    %v4240 = vunpack.c.l.b16 %v3986
    %v4241 = vunpack.c.h.b16 %v3986
    %v4242 = vunpack.c.l.b16 %v3987
    %v4243 = vunpack.c.h.b16 %v3987
    %v4244 = vunpack.c.l.b16 %v3988
    %v4245 = vunpack.c.h.b16 %v3988
    %v4246 = vpack.c.b16 %v4212, %v4210
    %v4247 = vpack.c.b16 %v4213, %v4211
    %v4248 = vpack.c.b16 %v4216, %v4214
    %v4249 = vpack.c.b16 %v4217, %v4215
    %v4250 = vpack.c.b16 %v4220, %v4218
    %v4251 = vpack.c.b16 %v4221, %v4219
    %v4252 = vpack.c.b16 %v4224, %v4222
    %v4253 = vpack.c.b16 %v4225, %v4223
    %v4254 = vpack.c.b16 %v4228, %v4226
    %v4255 = vpack.c.b16 %v4229, %v4227
    %v4256 = vpack.c.b16 %v4232, %v4230
    %v4257 = vpack.c.b16 %v4233, %v4231
    %v4258 = vpack.c.b16 %v4236, %v4234
    %v4259 = vpack.c.b16 %v4237, %v4235
    %v4260 = vpack.c.b16 %v4240, %v4238
    %v4261 = vpack.c.b16 %v4241, %v4239
    %v4262 = vpack.c.b16 %v4244, %v4242
    %v4263 = vpack.c.b16 %v4245, %v4243
    %v4280 = vsel %vm4128, %v3968, 0
    %v4282 = vsel %vm4128, %v3970, 0
    %v4285 = vsel %vm3022, %v4262, 0
    %v4288 = vsel %vm3022, %v4263, 0
    %4290 = vmatprep.subr.bf16.mxu0 %v4247
    %4291 = vmatpush1.bf16.msra.mxu0 %v4246
    %4292 = vmatprep.subr.bf16.mxu0 %v4249
    %4293 = vmatpush1.bf16.msra.mxu0 %v4248
    %4294 = vmatprep.subr.bf16.mxu0 %v4251
    %4295 = vmatpush1.bf16.msra.mxu0 %v4250
    %4296 = vmatprep.subr.bf16.mxu0 %v4253
    %4297 = vmatpush1.bf16.msra.mxu0 %v4252
    %4298 = vmatprep.subr.bf16.mxu0 %v4255
    %4299 = vmatpush1.bf16.msra.mxu0 %v4254
    %4300 = vmatprep.subr.bf16.mxu0 %v4257
    %4301 = vmatpush1.bf16.msra.mxu0 %v4256
    %4302 = vmatprep.subr.bf16.mxu0 %v4259
    %4303 = vmatpush1.bf16.msra.mxu0 %v4258
    %4304 = vmatprep.subr.bf16.mxu0 %v4261
    %4305 = vmatpush1.bf16.msra.mxu0 %v4260
    %4306 = vmatprep.subr.bf16.mxu0 %v4288
    %4307 = vmatpush1.bf16.msra.mxu0 %v4285
    %4308 = vmatprep.subr.bf16.mxu0 0
    %4309 = vmatpush1.bf16.msra.mxu0 0
    %4310 = vmatprep.subr.bf16.mxu0 0
    %4311 = vmatpush1.bf16.msra.mxu0 0
    %4312 = vmatprep.subr.bf16.mxu0 0
    %4313 = vmatpush1.bf16.msra.mxu0 0
    %4314 = vmatprep.subr.bf16.mxu0 0
    %4315 = vmatpush1.bf16.msra.mxu0 0
    %4316 = vmatprep.subr.bf16.mxu0 0
    %4317 = vmatpush1.bf16.msra.mxu0 0
    %4318 = vmatprep.subr.bf16.mxu0 0
    %4319 = vmatpush1.bf16.msra.mxu0 0
    %4320 = vmatprep.subr.bf16.mxu0 0
    %4321 = vmatpush1.bf16.msra.mxu0 0
    %4322 = vmatprep.mubr.bf16.mxu0 %v4280
    %4323 = vmatmul.mubr.bf16.gmra.mrb[0].mxu0 %v3967
    %v4324 = vpop.f32.mrb[0].mxu0
    %v4325 = vadd.f32 %v4176, %v4324
    %v4326 = vpop.f32.mrb[0].mxu0
    %v4327 = vadd.f32 %v4178, %v4326
    %v4328 = vpop.f32.mrb[0].mxu0
    %v4329 = vadd.f32 %v4180, %v4328
    %v4330 = vpop.f32.mrb[0].mxu0
    %v4331 = vadd.f32 %v4182, %v4330
    %4332 = vmatprep.mubr.bf16.mxu0 %v4282
    %4333 = vmatmul.mubr.bf16.gmra.mrb[0].mxu0 %v3969
    %v4334 = vpop.f32.mrb[0].mxu0
    %v4335 = vadd.f32 %v4186, %v4334
    %v4336 = vpop.f32.mrb[0].mxu0
    %v4337 = vadd.f32 %v4188, %v4336
    %v4338 = vpop.f32.mrb[0].mxu0
    %v4339 = vpop.f32.mrb[0].mxu0
    %4340 = vdwg.mxu0
    %s4341 = scalar_lea.vmem %s7, 288
    %v4342 = vld [vmem:[%s4341] sm:$0xff]
    %v4343 = vld [vmem:[%s4341 + $0x8] sm:$0xff]
    %v4344 = vld [vmem:[%s4341 + $0x10] sm:$0xff]
    %v4345 = vld [vmem:[%s4341 + $0x18] sm:$0xff]
    %v4346 = vld [vmem:[%s4341 + $0x20] sm:$0xff]
    %v4347 = vld [vmem:[%s4341 + $0x28] sm:$0xff]
    %v4348 = vld [vmem:[%s4341 + $0x30] sm:$0xff]
    %v4349 = vld [vmem:[%s4341 + $0x38] sm:$0xff]
    %v4350 = vld [vmem:[%s4341 + $0x40] sm:$0xff]
    %v4351 = vld [vmem:[%s4341 + $0x48] sm:$0xff]
    %v4352 = vld [vmem:[%s4341 + $0x50] sm:$0xff]
    %v4353 = vld [vmem:[%s4341 + $0x58] sm:$0xff]
    %v4354 = vld [vmem:[%s4341 + $0x60] sm:$0xff]
    %v4355 = vld [vmem:[%s4341 + $0x68] sm:$0xff]
    %v4356 = vld [vmem:[%s4341 + $0x70] sm:$0xff]
    %v4357 = vld [vmem:[%s4341 + $0x78] sm:$0xff]
    %v4358 = vld [vmem:[%s4341 + $0x80] sm:$0xff]
    %v4359 = vld [vmem:[%s4341 + $0x88] sm:$0x11]
    %v4364 = vrot.slane %v3967, 1
    %v4365 = vrot.slane %v3969, 1
    %v4366 = vsel %vm964, %v4364, %v4365
    %v4367 = vrot.slane %v3968, 1
    %v4368 = vrot.slane %v3970, 1
    %v4369 = vsel %vm964, %v4367, %v4368
    %v4390 = vunpack.c.l.b16 %v4342
    %v4391 = vunpack.c.h.b16 %v4342
    %v4392 = vunpack.c.l.b16 %v4343
    %v4393 = vunpack.c.h.b16 %v4343
    %v4394 = vunpack.c.l.b16 %v4344
    %v4395 = vunpack.c.h.b16 %v4344
    %v4396 = vunpack.c.l.b16 %v4345
    %v4397 = vunpack.c.h.b16 %v4345
    %v4398 = vunpack.c.l.b16 %v4346
    %v4399 = vunpack.c.h.b16 %v4346
    %v4400 = vunpack.c.l.b16 %v4347
    %v4401 = vunpack.c.h.b16 %v4347
    %v4402 = vunpack.c.l.b16 %v4348
    %v4403 = vunpack.c.h.b16 %v4348
    %v4404 = vunpack.c.l.b16 %v4349
    %v4405 = vunpack.c.h.b16 %v4349
    %v4406 = vunpack.c.l.b16 %v4350
    %v4407 = vunpack.c.h.b16 %v4350
    %v4408 = vunpack.c.l.b16 %v4351
    %v4409 = vunpack.c.h.b16 %v4351
    %v4410 = vunpack.c.l.b16 %v4352
    %v4411 = vunpack.c.h.b16 %v4352
    %v4412 = vunpack.c.l.b16 %v4353
    %v4413 = vunpack.c.h.b16 %v4353
    %v4414 = vunpack.c.l.b16 %v4354
    %v4415 = vunpack.c.h.b16 %v4354
    %v4416 = vunpack.c.l.b16 %v4355
    %v4417 = vunpack.c.h.b16 %v4355
    %v4418 = vunpack.c.l.b16 %v4356
    %v4419 = vunpack.c.h.b16 %v4356
    %v4420 = vunpack.c.l.b16 %v4357
    %v4421 = vunpack.c.h.b16 %v4357
    %v4422 = vunpack.c.l.b16 %v4358
    %v4423 = vunpack.c.h.b16 %v4358
    %v4424 = vunpack.c.l.b16 %v4359
    %v4425 = vunpack.c.h.b16 %v4359
    %v4426 = vpack.c.b16 %v4392, %v4390
    %v4427 = vpack.c.b16 %v4393, %v4391
    %v4428 = vpack.c.b16 %v4396, %v4394
    %v4429 = vpack.c.b16 %v4397, %v4395
    %v4430 = vpack.c.b16 %v4400, %v4398
    %v4431 = vpack.c.b16 %v4401, %v4399
    %v4432 = vpack.c.b16 %v4404, %v4402
    %v4433 = vpack.c.b16 %v4405, %v4403
    %v4434 = vpack.c.b16 %v4408, %v4406
    %v4435 = vpack.c.b16 %v4409, %v4407
    %v4436 = vpack.c.b16 %v4412, %v4410
    %v4437 = vpack.c.b16 %v4413, %v4411
    %v4438 = vpack.c.b16 %v4416, %v4414
    %v4439 = vpack.c.b16 %v4417, %v4415
    %v4440 = vpack.c.b16 %v4420, %v4418
    %v4441 = vpack.c.b16 %v4421, %v4419
    %v4442 = vpack.c.b16 %v4424, %v4422
    %v4443 = vpack.c.b16 %v4425, %v4423
    %v4461 = vsel %vm4128, %v4369, 0
    %v4464 = vsel %vm4128, %v4368, 0
    %v4467 = vsel %vm3022, %v4442, 0
    %v4470 = vsel %vm3022, %v4443, 0
    %4472 = vmatprep.subr.bf16.mxu0 %v4427
    %4473 = vmatpush1.bf16.msra.mxu0 %v4426
    %4474 = vmatprep.subr.bf16.mxu0 %v4429
    %4475 = vmatpush1.bf16.msra.mxu0 %v4428
    %4476 = vmatprep.subr.bf16.mxu0 %v4431
    %4477 = vmatpush1.bf16.msra.mxu0 %v4430
    %4478 = vmatprep.subr.bf16.mxu0 %v4433
    %4479 = vmatpush1.bf16.msra.mxu0 %v4432
    %4480 = vmatprep.subr.bf16.mxu0 %v4435
    %4481 = vmatpush1.bf16.msra.mxu0 %v4434
    %4482 = vmatprep.subr.bf16.mxu0 %v4437
    %4483 = vmatpush1.bf16.msra.mxu0 %v4436
    %4484 = vmatprep.subr.bf16.mxu0 %v4439
    %4485 = vmatpush1.bf16.msra.mxu0 %v4438
    %4486 = vmatprep.subr.bf16.mxu0 %v4441
    %4487 = vmatpush1.bf16.msra.mxu0 %v4440
    %4488 = vmatprep.subr.bf16.mxu0 %v4470
    %4489 = vmatpush1.bf16.msra.mxu0 %v4467
    %4490 = vmatprep.subr.bf16.mxu0 0
    %4491 = vmatpush1.bf16.msra.mxu0 0
    %4492 = vmatprep.subr.bf16.mxu0 0
    %4493 = vmatpush1.bf16.msra.mxu0 0
    %4494 = vmatprep.subr.bf16.mxu0 0
    %4495 = vmatpush1.bf16.msra.mxu0 0
    %4496 = vmatprep.subr.bf16.mxu0 0
    %4497 = vmatpush1.bf16.msra.mxu0 0
    %4498 = vmatprep.subr.bf16.mxu0 0
    %4499 = vmatpush1.bf16.msra.mxu0 0
    %4500 = vmatprep.subr.bf16.mxu0 0
    %4501 = vmatpush1.bf16.msra.mxu0 0
    %4502 = vmatprep.subr.bf16.mxu0 0
    %4503 = vmatpush1.bf16.msra.mxu0 0
    %4504 = vmatprep.mubr.bf16.mxu0 %v4461
    %4505 = vmatmul.mubr.bf16.gmra.mrb[0].mxu0 %v4366
    %v4506 = vpop.f32.mrb[0].mxu0
    %v4507 = vadd.f32 0.0, %v4506
    %v4508 = vpop.f32.mrb[0].mxu0
    %v4509 = vadd.f32 0.0, %v4508
    %v4510 = vpop.f32.mrb[0].mxu0
    %v4511 = vadd.f32 0.0, %v4510
    %v4512 = vpop.f32.mrb[0].mxu0
    %v4513 = vadd.f32 0.0, %v4512
    %4514 = vmatprep.mubr.bf16.mxu0 %v4464
    %4515 = vmatmul.mubr.bf16.gmra.mrb[0].mxu0 %v4365
    %v4516 = vpop.f32.mrb[0].mxu0
    %v4517 = vadd.f32 0.0, %v4516
    %v4518 = vpop.f32.mrb[0].mxu0
    %v4519 = vadd.f32 0.0, %v4518
    %v4520 = vpop.f32.mrb[0].mxu0
    %v4521 = vpop.f32.mrb[0].mxu0
    %4522 = vdwg.mxu0
    %v4523 = vadd.f32 %v4325, %v4507
    %v4524 = vadd.f32 %v4327, %v4509
    %v4525 = vadd.f32 %v4329, %v4511
    %v4526 = vadd.f32 %v4331, %v4513
    %v4527 = vadd.f32 %v4335, %v4517
    %v4528 = vadd.f32 %v4337, %v4519
    %v4529 = vpack.c.bf16 %v3957, %v3951
    %v4530 = vpack.c.bf16 %v3959, %v3953
    %v4531 = vpack.c.bf16 %v3963, %v3963
    %v4532 = vpack.c.bf16 %v3965, %v3965
    %v4534 = vshrl.u32 %v4529, 16
    %v4536 = vshll.u32 %v4529, 16
    %v4538 = vrot.slane %v4536, 1
    %v4539 = vor.u32 %v4534, %v4538
    %v4541 = vshll.u32 %v4531, 16
    %v4543 = vrot.slane %v4541, 1
    %v4544 = vsel %vm327, %v4539, %v4543
    %v4546 = vshrl.u32 %v4530, 16
    %v4548 = vshll.u32 %v4530, 16
    %v4550 = vrot.slane %v4548, 1
    %v4551 = vor.u32 %v4546, %v4550
    %v4553 = vshll.u32 %v4532, 16
    %v4555 = vrot.slane %v4553, 1
    %v4556 = vsel %vm327, %v4551, %v4555
    %v4557 = vshrl.u32 %v4531, 16
    %v4559 = vor.u32 %v4557, %v4543
    %v4560 = vshrl.u32 %v4532, 16
    %v4562 = vor.u32 %v4560, %v4555
    %v4566 = vsel %vm4128, %v4556, 0
    %v4569 = vsel %vm4128, %v4562, 0
    %4571 = vmatprep.subr.bf16.mxu0 %v4095
    %4572 = vmatpush1.bf16.msra.mxu0 %v4094
    %4573 = vmatprep.subr.bf16.mxu0 %v4097
    %4574 = vmatpush1.bf16.msra.mxu0 %v4096
    %4575 = vmatprep.subr.bf16.mxu0 %v4099
    %4576 = vmatpush1.bf16.msra.mxu0 %v4098
    %4577 = vmatprep.subr.bf16.mxu0 %v4101
    %4578 = vmatpush1.bf16.msra.mxu0 %v4100
    %4579 = vmatprep.subr.bf16.mxu0 %v4103
    %4580 = vmatpush1.bf16.msra.mxu0 %v4102
    %4581 = vmatprep.subr.bf16.mxu0 %v4105
    %4582 = vmatpush1.bf16.msra.mxu0 %v4104
    %4583 = vmatprep.subr.bf16.mxu0 %v4107
    %4584 = vmatpush1.bf16.msra.mxu0 %v4106
    %4585 = vmatprep.subr.bf16.mxu0 %v4109
    %4586 = vmatpush1.bf16.msra.mxu0 %v4108
    %4587 = vmatprep.subr.bf16.mxu0 %v4139
    %4588 = vmatpush1.bf16.msra.mxu0 %v4136
    %4589 = vmatprep.subr.bf16.mxu0 0
    %4590 = vmatpush1.bf16.msra.mxu0 0
    %4591 = vmatprep.subr.bf16.mxu0 0
    %4592 = vmatpush1.bf16.msra.mxu0 0
    %4593 = vmatprep.subr.bf16.mxu0 0
    %4594 = vmatpush1.bf16.msra.mxu0 0
    %4595 = vmatprep.subr.bf16.mxu0 0
    %4596 = vmatpush1.bf16.msra.mxu0 0
    %4597 = vmatprep.subr.bf16.mxu0 0
    %4598 = vmatpush1.bf16.msra.mxu0 0
    %4599 = vmatprep.subr.bf16.mxu0 0
    %4600 = vmatpush1.bf16.msra.mxu0 0
    %4601 = vmatprep.subr.bf16.mxu0 0
    %4602 = vmatpush1.bf16.msra.mxu0 0
    %4603 = vmatprep.mubr.bf16.mxu0 %v4566
    %4604 = vmatmul.mubr.bf16.gmra.mrb[0].mxu0 %v4544
    %v4605 = vpop.f32.mrb[0].mxu0
    %v4606 = vadd.f32 0.0, %v4605
    %v4607 = vpop.f32.mrb[0].mxu0
    %v4608 = vadd.f32 0.0, %v4607
    %v4609 = vpop.f32.mrb[0].mxu0
    %v4610 = vadd.f32 0.0, %v4609
    %v4611 = vpop.f32.mrb[0].mxu0
    %v4612 = vadd.f32 0.0, %v4611
    %4613 = vmatprep.mubr.bf16.mxu0 %v4569
    %4614 = vmatmul.mubr.bf16.gmra.mrb[0].mxu0 %v4559
    %v4615 = vpop.f32.mrb[0].mxu0
    %v4616 = vadd.f32 0.0, %v4615
    %v4617 = vpop.f32.mrb[0].mxu0
    %v4618 = vadd.f32 0.0, %v4617
    %v4619 = vpop.f32.mrb[0].mxu0
    %v4620 = vpop.f32.mrb[0].mxu0
    %4621 = vdwg.mxu0
    %v4622 = vsel %vm4128, %v4530, 0
    %v4624 = vsel %vm4128, %v4532, 0
    %4626 = vmatprep.subr.bf16.mxu0 %v4247
    %4627 = vmatpush1.bf16.msra.mxu0 %v4246
    %4628 = vmatprep.subr.bf16.mxu0 %v4249
    %4629 = vmatpush1.bf16.msra.mxu0 %v4248
    %4630 = vmatprep.subr.bf16.mxu0 %v4251
    %4631 = vmatpush1.bf16.msra.mxu0 %v4250
    %4632 = vmatprep.subr.bf16.mxu0 %v4253
    %4633 = vmatpush1.bf16.msra.mxu0 %v4252
    %4634 = vmatprep.subr.bf16.mxu0 %v4255
    %4635 = vmatpush1.bf16.msra.mxu0 %v4254
    %4636 = vmatprep.subr.bf16.mxu0 %v4257
    %4637 = vmatpush1.bf16.msra.mxu0 %v4256
    %4638 = vmatprep.subr.bf16.mxu0 %v4259
    %4639 = vmatpush1.bf16.msra.mxu0 %v4258
    %4640 = vmatprep.subr.bf16.mxu0 %v4261
    %4641 = vmatpush1.bf16.msra.mxu0 %v4260
    %4642 = vmatprep.subr.bf16.mxu0 %v4288
    %4643 = vmatpush1.bf16.msra.mxu0 %v4285
    %4644 = vmatprep.subr.bf16.mxu0 0
    %4645 = vmatpush1.bf16.msra.mxu0 0
    %4646 = vmatprep.subr.bf16.mxu0 0
    %4647 = vmatpush1.bf16.msra.mxu0 0
    %4648 = vmatprep.subr.bf16.mxu0 0
    %4649 = vmatpush1.bf16.msra.mxu0 0
    %4650 = vmatprep.subr.bf16.mxu0 0
    %4651 = vmatpush1.bf16.msra.mxu0 0
    %4652 = vmatprep.subr.bf16.mxu0 0
    %4653 = vmatpush1.bf16.msra.mxu0 0
    %4654 = vmatprep.subr.bf16.mxu0 0
    %4655 = vmatpush1.bf16.msra.mxu0 0
    %4656 = vmatprep.subr.bf16.mxu0 0
    %4657 = vmatpush1.bf16.msra.mxu0 0
    %4658 = vmatprep.mubr.bf16.mxu0 %v4622
    %4659 = vmatmul.mubr.bf16.gmra.mrb[0].mxu0 %v4529
    %v4660 = vpop.f32.mrb[0].mxu0
    %v4661 = vadd.f32 %v4606, %v4660
    %v4662 = vpop.f32.mrb[0].mxu0
    %v4663 = vadd.f32 %v4608, %v4662
    %v4664 = vpop.f32.mrb[0].mxu0
    %v4665 = vadd.f32 %v4610, %v4664
    %v4666 = vpop.f32.mrb[0].mxu0
    %v4667 = vadd.f32 %v4612, %v4666
    %4668 = vmatprep.mubr.bf16.mxu0 %v4624
    %4669 = vmatmul.mubr.bf16.gmra.mrb[0].mxu0 %v4531
    %v4670 = vpop.f32.mrb[0].mxu0
    %v4671 = vadd.f32 %v4616, %v4670
    %v4672 = vpop.f32.mrb[0].mxu0
    %v4673 = vadd.f32 %v4618, %v4672
    %v4674 = vpop.f32.mrb[0].mxu0
    %v4675 = vpop.f32.mrb[0].mxu0
    %4676 = vdwg.mxu0
    %v4681 = vrot.slane %v4529, 1
    %v4682 = vrot.slane %v4531, 1
    %v4683 = vsel %vm964, %v4681, %v4682
    %v4684 = vrot.slane %v4530, 1
    %v4685 = vrot.slane %v4532, 1
    %v4686 = vsel %vm964, %v4684, %v4685
    %v4690 = vsel %vm4128, %v4686, 0
    %v4693 = vsel %vm4128, %v4685, 0
    %4695 = vmatprep.subr.bf16.mxu0 %v4427
    %4696 = vmatpush1.bf16.msra.mxu0 %v4426
    %4697 = vmatprep.subr.bf16.mxu0 %v4429
    %4698 = vmatpush1.bf16.msra.mxu0 %v4428
    %4699 = vmatprep.subr.bf16.mxu0 %v4431
    %4700 = vmatpush1.bf16.msra.mxu0 %v4430
    %4701 = vmatprep.subr.bf16.mxu0 %v4433
    %4702 = vmatpush1.bf16.msra.mxu0 %v4432
    %4703 = vmatprep.subr.bf16.mxu0 %v4435
    %4704 = vmatpush1.bf16.msra.mxu0 %v4434
    %4705 = vmatprep.subr.bf16.mxu0 %v4437
    %4706 = vmatpush1.bf16.msra.mxu0 %v4436
    %4707 = vmatprep.subr.bf16.mxu0 %v4439
    %4708 = vmatpush1.bf16.msra.mxu0 %v4438
    %4709 = vmatprep.subr.bf16.mxu0 %v4441
    %4710 = vmatpush1.bf16.msra.mxu0 %v4440
    %4711 = vmatprep.subr.bf16.mxu0 %v4470
    %4712 = vmatpush1.bf16.msra.mxu0 %v4467
    %4713 = vmatprep.subr.bf16.mxu0 0
    %4714 = vmatpush1.bf16.msra.mxu0 0
    %4715 = vmatprep.subr.bf16.mxu0 0
    %4716 = vmatpush1.bf16.msra.mxu0 0
    %4717 = vmatprep.subr.bf16.mxu0 0
    %4718 = vmatpush1.bf16.msra.mxu0 0
    %4719 = vmatprep.subr.bf16.mxu0 0
    %4720 = vmatpush1.bf16.msra.mxu0 0
    %4721 = vmatprep.subr.bf16.mxu0 0
    %4722 = vmatpush1.bf16.msra.mxu0 0
    %4723 = vmatprep.subr.bf16.mxu0 0
    %4724 = vmatpush1.bf16.msra.mxu0 0
    %4725 = vmatprep.subr.bf16.mxu0 0
    %4726 = vmatpush1.bf16.msra.mxu0 0
    %4727 = vmatprep.mubr.bf16.mxu0 %v4690
    %4728 = vmatmul.mubr.bf16.gmra.mrb[0].mxu0 %v4683
    %v4729 = vpop.f32.mrb[0].mxu0
    %v4730 = vadd.f32 0.0, %v4729
    %v4731 = vpop.f32.mrb[0].mxu0
    %v4732 = vadd.f32 0.0, %v4731
    %v4733 = vpop.f32.mrb[0].mxu0
    %v4734 = vadd.f32 0.0, %v4733
    %v4735 = vpop.f32.mrb[0].mxu0
    %v4736 = vadd.f32 0.0, %v4735
    %4737 = vmatprep.mubr.bf16.mxu0 %v4693
    %4738 = vmatmul.mubr.bf16.gmra.mrb[0].mxu0 %v4682
    %v4739 = vpop.f32.mrb[0].mxu0
    %v4740 = vadd.f32 0.0, %v4739
    %v4741 = vpop.f32.mrb[0].mxu0
    %v4742 = vadd.f32 0.0, %v4741
    %v4743 = vpop.f32.mrb[0].mxu0
    %v4744 = vpop.f32.mrb[0].mxu0
    %4745 = vdwg.mxu0
    %v4746 = vadd.f32 %v4661, %v4730
    %v4747 = vadd.f32 %v4663, %v4732
    %v4748 = vadd.f32 %v4665, %v4734
    %v4749 = vadd.f32 %v4667, %v4736
    %v4750 = vadd.f32 %v4671, %v4740
    %v4751 = vadd.f32 %v4673, %v4742
    %v4752 = vadd.f32 %v4523, %v4525
    %v4753 = vsel %vm3022, %v4527, 0.0
    %v4754 = vadd.f32 %v4752, %v4753
    %v4755 = vrot.slane %v4754, 4
    %v4756 = vadd.f32 %v4754, %v4755
    %v4757 = vrot.slane %v4756, 2
    %v4758 = vadd.f32 %v4756, %v4757
    %v4759 = vrot.slane %v4758, 1
    %v4760 = vadd.f32 %v4758, %v4759
    %vm4761 = vcmask 1014784
    %v4762 = vsel %vm4761, %v4524, 0.0
    %v4763 = vsel %vm4761, %v4526, 0.0
    %v4764 = vadd.f32 %v4762, %v4763
    %vm4765 = vcmask 1011712
    %v4766 = vsel %vm4765, %v4528, 0.0
    %v4767 = vadd.f32 %v4764, %v4766
    %v4768 = vrot.slane %v4767, 4
    %v4769 = vadd.f32 %v4767, %v4768
    %v4770 = vrot.slane %v4769, 2
    %v4771 = vadd.f32 %v4769, %v4770
    %v4772 = vrot.slane %v4771, 1
    %v4773 = vadd.f32 %v4771, %v4772
    %v4774 = vadd.f32 %v4760, 0.0
    %v4775 = vadd.f32 %v4773, 0.0
    %v4776 = vmul.f32 %v4523, %v4523
    %v4777 = vmul.f32 %v4524, %v4524
    %v4778 = vmul.f32 %v4525, %v4525
    %v4779 = vmul.f32 %v4526, %v4526
    %v4780 = vmul.f32 %v4527, %v4527
    %v4781 = vmul.f32 %v4528, %v4528
    %v4782 = vadd.f32 %v4776, %v4778
    %v4783 = vsel %vm3022, %v4780, 0.0
    %v4784 = vadd.f32 %v4782, %v4783
    %v4785 = vrot.slane %v4784, 4
    %v4786 = vadd.f32 %v4784, %v4785
    %v4787 = vrot.slane %v4786, 2
    %v4788 = vadd.f32 %v4786, %v4787
    %v4789 = vrot.slane %v4788, 1
    %v4790 = vadd.f32 %v4788, %v4789
    %v4791 = vsel %vm4761, %v4777, 0.0
    %v4792 = vsel %vm4761, %v4779, 0.0
    %v4793 = vadd.f32 %v4791, %v4792
    %v4794 = vsel %vm4765, %v4781, 0.0
    %v4795 = vadd.f32 %v4793, %v4794
    %v4796 = vrot.slane %v4795, 4
    %v4797 = vadd.f32 %v4795, %v4796
    %v4798 = vrot.slane %v4797, 2
    %v4799 = vadd.f32 %v4797, %v4798
    %v4800 = vrot.slane %v4799, 1
    %v4801 = vadd.f32 %v4799, %v4800
    %v4802 = vadd.f32 %v4790, 0.0
    %v4803 = vadd.f32 %v4801, 0.0
    %v4804 = vadd.f32 %v4746, %v4748
    %v4805 = vsel %vm3022, %v4750, 0.0
    %v4806 = vadd.f32 %v4804, %v4805
    %v4807 = vrot.slane %v4806, 4
    %v4808 = vadd.f32 %v4806, %v4807
    %v4809 = vrot.slane %v4808, 2
    %v4810 = vadd.f32 %v4808, %v4809
    %v4811 = vrot.slane %v4810, 1
    %v4812 = vadd.f32 %v4810, %v4811
    %v4813 = vsel %vm4761, %v4747, 0.0
    %v4814 = vsel %vm4761, %v4749, 0.0
    %v4815 = vadd.f32 %v4813, %v4814
    %v4816 = vsel %vm4765, %v4751, 0.0
    %v4817 = vadd.f32 %v4815, %v4816
    %v4818 = vrot.slane %v4817, 4
    %v4819 = vadd.f32 %v4817, %v4818
    %v4820 = vrot.slane %v4819, 2
    %v4821 = vadd.f32 %v4819, %v4820
    %v4822 = vrot.slane %v4821, 1
    %v4823 = vadd.f32 %v4821, %v4822
    %v4824 = vadd.f32 %v4774, %v4812
    %v4825 = vadd.f32 %v4775, %v4823
    %v4826 = vmul.f32 %v4746, %v4746
    %v4827 = vmul.f32 %v4747, %v4747
    %v4828 = vmul.f32 %v4748, %v4748
    %v4829 = vmul.f32 %v4749, %v4749
    %v4830 = vmul.f32 %v4750, %v4750
    %v4831 = vmul.f32 %v4751, %v4751
    %v4832 = vadd.f32 %v4826, %v4828
    %v4833 = vsel %vm3022, %v4830, 0.0
    %v4834 = vadd.f32 %v4832, %v4833
    %v4835 = vrot.slane %v4834, 4
    %v4836 = vadd.f32 %v4834, %v4835
    %v4837 = vrot.slane %v4836, 2
    %v4838 = vadd.f32 %v4836, %v4837
    %v4839 = vrot.slane %v4838, 1
    %v4840 = vadd.f32 %v4838, %v4839
    %v4841 = vsel %vm4761, %v4827, 0.0
    %v4842 = vsel %vm4761, %v4829, 0.0
    %v4843 = vadd.f32 %v4841, %v4842
    %v4844 = vsel %vm4765, %v4831, 0.0
    %v4845 = vadd.f32 %v4843, %v4844
    %v4846 = vrot.slane %v4845, 4
    %v4847 = vadd.f32 %v4845, %v4846
    %v4848 = vrot.slane %v4847, 2
    %v4849 = vadd.f32 %v4847, %v4848
    %v4850 = vrot.slane %v4849, 1
    %v4851 = vadd.f32 %v4849, %v4850
    %v4852 = vadd.f32 %v4802, %v4840
    %v4853 = vadd.f32 %v4803, %v4851
    %v4854 = vld [vmem:[%s8] sm:$0xff]
    %v4855 = vld [vmem:[%s8 + $0x8] sm:$0xff]
    %v4856 = vld [vmem:[%s8 + $0x10] sm:$0xff]
    %v4857 = vld [vmem:[%s8 + $0x18] sm:$0xff]
    %v4858 = vld [vmem:[%s8 + $0x20] sm:$0xff]
    %v4859 = vld [vmem:[%s8 + $0x28] sm:$0xff]
    %v4860 = vld [vmem:[%s8 + $0x30] sm:$0xff]
    %v4861 = vld [vmem:[%s8 + $0x38] sm:$0xff]
    %v4862 = vld [vmem:[%s8 + $0x40] sm:$0xff]
    %v4863 = vld [vmem:[%s8 + $0x48] sm:$0xff]
    %v4864 = vld [vmem:[%s8 + $0x50] sm:$0xff]
    %v4865 = vld [vmem:[%s8 + $0x58] sm:$0xff]
    %v4866 = vld [vmem:[%s8 + $0x60] sm:$0xff]
    %v4867 = vld [vmem:[%s8 + $0x68] sm:$0xff]
    %v4868 = vld [vmem:[%s8 + $0x70] sm:$0xff]
    %v4869 = vld [vmem:[%s8 + $0x78] sm:$0xff]
    %v4870 = vld [vmem:[%s8 + $0x80] sm:$0xff]
    %v4871 = vld [vmem:[%s8 + $0x88] sm:$0xff]
    %v4872 = vld [vmem:[%s8 + $0x90] sm:$0xff]
    %v4873 = vld [vmem:[%s8 + $0x98] sm:$0xff]
    %v4874 = vld [vmem:[%s8 + $0xa0] sm:$0xff]
    %v4875 = vld [vmem:[%s8 + $0xa8] sm:$0xff]
    %v4876 = vld [vmem:[%s8 + $0xb0] sm:$0xff]
    %v4877 = vld [vmem:[%s8 + $0xb8] sm:$0xff]
    %v4878 = vld [vmem:[%s8 + $0xc0] sm:$0xff]
    %v4879 = vld [vmem:[%s8 + $0xc8] sm:$0xff]
    %v4880 = vld [vmem:[%s8 + $0xd0] sm:$0xff]
    %v4881 = vld [vmem:[%s8 + $0xd8] sm:$0xff]
    %v4882 = vld [vmem:[%s8 + $0xe0] sm:$0xff]
    %v4883 = vld [vmem:[%s8 + $0xe8] sm:$0xff]
    %v4884 = vld [vmem:[%s8 + $0xf0] sm:$0xff]
    %v4885 = vld [vmem:[%s8 + $0xf8] sm:$0xf]
    %v4886 = vld [vmem:[#allocation9] sm:$0xff]
    %v4887 = vld [vmem:[#allocation9 + $0x8] sm:$0xff]
    %v4888 = vld [vmem:[#allocation9 + $0x10] sm:$0xf]
    %v4889 = vld [vmem:[#allocation9 + $0x18] sm:$0xf]
    %v4891 = vsel %vm4761, %v4825, 0
    %v4894 = vsel %vm2001, %v4885, 0
    %4896 = vmatprep.subr.mxu0 0.0
    %4897 = vmatpush1.msra.mxu0 %v4854
    %4898 = vmatprep.subr.mxu0 0.0
    %4899 = vmatpush1.msra.mxu0 %v4855
    %4900 = vmatprep.subr.mxu0 0.0
    %4901 = vmatpush1.msra.mxu0 %v4856
    %4902 = vmatprep.subr.mxu0 0.0
    %4903 = vmatpush1.msra.mxu0 %v4857
    %4904 = vmatprep.subr.mxu0 0.0
    %4905 = vmatpush1.msra.mxu0 %v4858
    %4906 = vmatprep.subr.mxu0 0.0
    %4907 = vmatpush1.msra.mxu0 %v4859
    %4908 = vmatprep.subr.mxu0 0.0
    %4909 = vmatpush1.msra.mxu0 %v4860
    %4910 = vmatprep.subr.mxu0 0.0
    %4911 = vmatpush1.msra.mxu0 %v4861
    %4912 = vmatprep.subr.mxu0 0.0
    %4913 = vmatpush1.msra.mxu0 %v4862
    %4914 = vmatprep.subr.mxu0 0.0
    %4915 = vmatpush1.msra.mxu0 %v4863
    %4916 = vmatprep.subr.mxu0 0.0
    %4917 = vmatpush1.msra.mxu0 %v4864
    %4918 = vmatprep.subr.mxu0 0.0
    %4919 = vmatpush1.msra.mxu0 %v4865
    %4920 = vmatprep.subr.mxu0 0.0
    %4921 = vmatpush1.msra.mxu0 %v4866
    %4922 = vmatprep.subr.mxu0 0.0
    %4923 = vmatpush1.msra.mxu0 %v4867
    %4924 = vmatprep.subr.mxu0 0.0
    %4925 = vmatpush1.msra.mxu0 %v4868
    %4926 = vmatprep.subr.mxu0 0.0
    %4927 = vmatpush1.msra.mxu0 %v4869
    %4928 = vmatprep.subr.mxu0 0.0
    %4929 = vmatpush1.msra.mxu0 %v4870
    %4930 = vmatprep.subr.mxu0 0.0
    %4931 = vmatpush1.msra.mxu0 %v4871
    %4932 = vmatprep.subr.mxu0 0.0
    %4933 = vmatpush1.msra.mxu0 %v4872
    %4934 = vmatprep.subr.mxu0 0.0
    %4935 = vmatpush1.msra.mxu0 %v4873
    %4936 = vmatprep.subr.mxu0 0.0
    %4937 = vmatpush1.msra.mxu0 %v4874
    %4938 = vmatprep.subr.mxu0 0.0
    %4939 = vmatpush1.msra.mxu0 %v4875
    %4940 = vmatprep.subr.mxu0 0.0
    %4941 = vmatpush1.msra.mxu0 %v4876
    %4942 = vmatprep.subr.mxu0 0.0
    %4943 = vmatpush1.msra.mxu0 %v4877
    %4944 = vmatprep.subr.mxu0 0.0
    %4945 = vmatpush1.msra.mxu0 %v4878
    %4946 = vmatprep.subr.mxu0 0.0
    %4947 = vmatpush1.msra.mxu0 %v4879
    %4948 = vmatprep.subr.mxu0 0.0
    %4949 = vmatpush1.msra.mxu0 %v4880
    %4950 = vmatprep.subr.mxu0 0.0
    %4951 = vmatpush1.msra.mxu0 %v4881
    %4952 = vmatprep.subr.mxu0 0.0
    %4953 = vmatpush1.msra.mxu0 %v4882
    %4954 = vmatprep.subr.mxu0 0.0
    %4955 = vmatpush1.msra.mxu0 %v4883
    %4956 = vmatprep.subr.mxu0 0.0
    %4957 = vmatpush1.msra.mxu0 %v4884
    %4958 = vmatprep.subr.mxu0 0.0
    %4959 = vmatpush1.msra.mxu0 %v4894
    %4960 = vmatprep.mubr.f32.mxu0 %v4891
    %4961 = vmatmul.mubr.f32.gmra.mrb[0].mxu0 %v4824
    %v4962 = vpop.f32.mrb[0].mxu0
    %v4963 = vadd.f32 0.0, %v4962
    %v4964 = vpop.f32.mrb[0].mxu0
    %4965 = vdwg.mxu0
    %v4966 = vmul.f32 %v4963, 0.0011337869
    %v4968 = vsel %vm4761, %v4853, 0
    %4970 = vmatprep.subr.mxu0 0.0
    %4971 = vmatpush1.msra.mxu0 %v4854
    %4972 = vmatprep.subr.mxu0 0.0
    %4973 = vmatpush1.msra.mxu0 %v4855
    %4974 = vmatprep.subr.mxu0 0.0
    %4975 = vmatpush1.msra.mxu0 %v4856
    %4976 = vmatprep.subr.mxu0 0.0
    %4977 = vmatpush1.msra.mxu0 %v4857
    %4978 = vmatprep.subr.mxu0 0.0
    %4979 = vmatpush1.msra.mxu0 %v4858
    %4980 = vmatprep.subr.mxu0 0.0
    %4981 = vmatpush1.msra.mxu0 %v4859
    %4982 = vmatprep.subr.mxu0 0.0
    %4983 = vmatpush1.msra.mxu0 %v4860
    %4984 = vmatprep.subr.mxu0 0.0
    %4985 = vmatpush1.msra.mxu0 %v4861
    %4986 = vmatprep.subr.mxu0 0.0
    %4987 = vmatpush1.msra.mxu0 %v4862
    %4988 = vmatprep.subr.mxu0 0.0
    %4989 = vmatpush1.msra.mxu0 %v4863
    %4990 = vmatprep.subr.mxu0 0.0
    %4991 = vmatpush1.msra.mxu0 %v4864
    %4992 = vmatprep.subr.mxu0 0.0
    %4993 = vmatpush1.msra.mxu0 %v4865
    %4994 = vmatprep.subr.mxu0 0.0
    %4995 = vmatpush1.msra.mxu0 %v4866
    %4996 = vmatprep.subr.mxu0 0.0
    %4997 = vmatpush1.msra.mxu0 %v4867
    %4998 = vmatprep.subr.mxu0 0.0
    %4999 = vmatpush1.msra.mxu0 %v4868
    %5000 = vmatprep.subr.mxu0 0.0
    %5001 = vmatpush1.msra.mxu0 %v4869
    %5002 = vmatprep.subr.mxu0 0.0
    %5003 = vmatpush1.msra.mxu0 %v4870
    %5004 = vmatprep.subr.mxu0 0.0
    %5005 = vmatpush1.msra.mxu0 %v4871
    %5006 = vmatprep.subr.mxu0 0.0
    %5007 = vmatpush1.msra.mxu0 %v4872
    %5008 = vmatprep.subr.mxu0 0.0
    %5009 = vmatpush1.msra.mxu0 %v4873
    %5010 = vmatprep.subr.mxu0 0.0
    %5011 = vmatpush1.msra.mxu0 %v4874
    %5012 = vmatprep.subr.mxu0 0.0
    %5013 = vmatpush1.msra.mxu0 %v4875
    %5014 = vmatprep.subr.mxu0 0.0
    %5015 = vmatpush1.msra.mxu0 %v4876
    %5016 = vmatprep.subr.mxu0 0.0
    %5017 = vmatpush1.msra.mxu0 %v4877
    %5018 = vmatprep.subr.mxu0 0.0
    %5019 = vmatpush1.msra.mxu0 %v4878
    %5020 = vmatprep.subr.mxu0 0.0
    %5021 = vmatpush1.msra.mxu0 %v4879
    %5022 = vmatprep.subr.mxu0 0.0
    %5023 = vmatpush1.msra.mxu0 %v4880
    %5024 = vmatprep.subr.mxu0 0.0
    %5025 = vmatpush1.msra.mxu0 %v4881
    %5026 = vmatprep.subr.mxu0 0.0
    %5027 = vmatpush1.msra.mxu0 %v4882
    %5028 = vmatprep.subr.mxu0 0.0
    %5029 = vmatpush1.msra.mxu0 %v4883
    %5030 = vmatprep.subr.mxu0 0.0
    %5031 = vmatpush1.msra.mxu0 %v4884
    %5032 = vmatprep.subr.mxu0 0.0
    %5033 = vmatpush1.msra.mxu0 %v4894
    %5034 = vmatprep.mubr.f32.mxu0 %v4968
    %5035 = vmatmul.mubr.f32.gmra.mrb[0].mxu0 %v4852
    %v5036 = vpop.f32.mrb[0].mxu0
    %v5037 = vadd.f32 0.0, %v5036
    %v5038 = vpop.f32.mrb[0].mxu0
    %5039 = vdwg.mxu0
    %v5040 = vmul.f32 %v5037, 0.0011337869
    %v5041 = vmul.f32 %v4966, %v4966
    %v5042 = vsub.f32 %v5040, %v5041
    %vm5043 = vcmask 97280
    %v5045 = vsel %vm5043, %v4966, 0
    %v5048 = vsel %vm2001, %v4888, 0
    %v5051 = vsel %vm2001, %v4889, 0
    %5053 = vmatprep.subr.mxu0 %v4887
    %5054 = vmatpush1.msra.mxu0 %v4886
    %5055 = vmatprep.subr.mxu0 %v5051
    %5056 = vmatpush1.msra.mxu0 %v5048
    %5057 = vmatprep.subr.mxu0 0.0
    %5058 = vmatpush1.msra.mxu0 0.0
    %5059 = vmatprep.subr.mxu0 0.0
    %5060 = vmatpush1.msra.mxu0 0.0
    %5061 = vmatprep.subr.mxu0 0.0
    %5062 = vmatpush1.msra.mxu0 0.0
    %5063 = vmatprep.subr.mxu0 0.0
    %5064 = vmatpush1.msra.mxu0 0.0
    %5065 = vmatprep.subr.mxu0 0.0
    %5066 = vmatpush1.msra.mxu0 0.0
    %5067 = vmatprep.subr.mxu0 0.0
    %5068 = vmatpush1.msra.mxu0 0.0
    %5069 = vmatprep.subr.mxu0 0.0
    %5070 = vmatpush1.msra.mxu0 0.0
    %5071 = vmatprep.subr.mxu0 0.0
    %5072 = vmatpush1.msra.mxu0 0.0
    %5073 = vmatprep.subr.mxu0 0.0
    %5074 = vmatpush1.msra.mxu0 0.0
    %5075 = vmatprep.subr.mxu0 0.0
    %5076 = vmatpush1.msra.mxu0 0.0
    %5077 = vmatprep.subr.mxu0 0.0
    %5078 = vmatpush1.msra.mxu0 0.0
    %5079 = vmatprep.subr.mxu0 0.0
    %5080 = vmatpush1.msra.mxu0 0.0
    %5081 = vmatprep.subr.mxu0 0.0
    %5082 = vmatpush1.msra.mxu0 0.0
    %5083 = vmatprep.subr.mxu0 0.0
    %5084 = vmatpush1.msra.mxu0 0.0
    %5085 = vmatprep.subr.mxu0 0.0
    %5086 = vmatpush1.msra.mxu0 0.0
    %5087 = vmatprep.subr.mxu0 0.0
    %5088 = vmatpush1.msra.mxu0 0.0
    %5089 = vmatprep.subr.mxu0 0.0
    %5090 = vmatpush1.msra.mxu0 0.0
    %5091 = vmatprep.subr.mxu0 0.0
    %5092 = vmatpush1.msra.mxu0 0.0
    %5093 = vmatprep.subr.mxu0 0.0
    %5094 = vmatpush1.msra.mxu0 0.0
    %5095 = vmatprep.subr.mxu0 0.0
    %5096 = vmatpush1.msra.mxu0 0.0
    %5097 = vmatprep.subr.mxu0 0.0
    %5098 = vmatpush1.msra.mxu0 0.0
    %5099 = vmatprep.subr.mxu0 0.0
    %5100 = vmatpush1.msra.mxu0 0.0
    %5101 = vmatprep.subr.mxu0 0.0
    %5102 = vmatpush1.msra.mxu0 0.0
    %5103 = vmatprep.subr.mxu0 0.0
    %5104 = vmatpush1.msra.mxu0 0.0
    %5105 = vmatprep.subr.mxu0 0.0
    %5106 = vmatpush1.msra.mxu0 0.0
    %5107 = vmatprep.subr.mxu0 0.0
    %5108 = vmatpush1.msra.mxu0 0.0
    %5109 = vmatprep.subr.mxu0 0.0
    %5110 = vmatpush1.msra.mxu0 0.0
    %5111 = vmatprep.subr.mxu0 0.0
    %5112 = vmatpush1.msra.mxu0 0.0
    %5113 = vmatprep.subr.mxu0 0.0
    %5114 = vmatpush1.msra.mxu0 0.0
    %5115 = vmatprep.subr.mxu0 0.0
    %5116 = vmatpush1.msra.mxu0 0.0
    %5117 = vmatprep.mubr.f32.mxu0 0.0
    %5118 = vmatmul.mubr.f32.gmra.mrb[0].mxu0 %v5045
    %v5119 = vpop.f32.mrb[0].mxu0
    %v5120 = vadd.f32 0.0, %v5119
    %v5121 = vpop.f32.mrb[0].mxu0
    %v5122 = vadd.f32 0.0, %v5121
    %5123 = vdwg.mxu0
    %v5124 = vld [vmem:[#allocation11] sm:$0xf]
    %v5126 = vsel %vm5043, %v5042, 0
    %5128 = vmatprep.subr.mxu0 %v4887
    %5129 = vmatpush1.msra.mxu0 %v4886
    %5130 = vmatprep.subr.mxu0 %v5051
    %5131 = vmatpush1.msra.mxu0 %v5048
    %5132 = vmatprep.subr.mxu0 0.0
    %5133 = vmatpush1.msra.mxu0 0.0
    %5134 = vmatprep.subr.mxu0 0.0
    %5135 = vmatpush1.msra.mxu0 0.0
    %5136 = vmatprep.subr.mxu0 0.0
    %5137 = vmatpush1.msra.mxu0 0.0
    %5138 = vmatprep.subr.mxu0 0.0
    %5139 = vmatpush1.msra.mxu0 0.0
    %5140 = vmatprep.subr.mxu0 0.0
    %5141 = vmatpush1.msra.mxu0 0.0
    %5142 = vmatprep.subr.mxu0 0.0
    %5143 = vmatpush1.msra.mxu0 0.0
    %5144 = vmatprep.subr.mxu0 0.0
    %5145 = vmatpush1.msra.mxu0 0.0
    %5146 = vmatprep.subr.mxu0 0.0
    %5147 = vmatpush1.msra.mxu0 0.0
    %5148 = vmatprep.subr.mxu0 0.0
    %5149 = vmatpush1.msra.mxu0 0.0
    %5150 = vmatprep.subr.mxu0 0.0
    %5151 = vmatpush1.msra.mxu0 0.0
    %5152 = vmatprep.subr.mxu0 0.0
    %5153 = vmatpush1.msra.mxu0 0.0
    %5154 = vmatprep.subr.mxu0 0.0
    %5155 = vmatpush1.msra.mxu0 0.0
    %5156 = vmatprep.subr.mxu0 0.0
    %5157 = vmatpush1.msra.mxu0 0.0
    %5158 = vmatprep.subr.mxu0 0.0
    %5159 = vmatpush1.msra.mxu0 0.0
    %5160 = vmatprep.subr.mxu0 0.0
    %5161 = vmatpush1.msra.mxu0 0.0
    %5162 = vmatprep.subr.mxu0 0.0
    %5163 = vmatpush1.msra.mxu0 0.0
    %5164 = vmatprep.subr.mxu0 0.0
    %5165 = vmatpush1.msra.mxu0 0.0
    %5166 = vmatprep.subr.mxu0 0.0
    %5167 = vmatpush1.msra.mxu0 0.0
    %5168 = vmatprep.subr.mxu0 0.0
    %5169 = vmatpush1.msra.mxu0 0.0
    %5170 = vmatprep.subr.mxu0 0.0
    %5171 = vmatpush1.msra.mxu0 0.0
    %5172 = vmatprep.subr.mxu0 0.0
    %5173 = vmatpush1.msra.mxu0 0.0
    %5174 = vmatprep.subr.mxu0 0.0
    %5175 = vmatpush1.msra.mxu0 0.0
    %5176 = vmatprep.subr.mxu0 0.0
    %5177 = vmatpush1.msra.mxu0 0.0
    %5178 = vmatprep.subr.mxu0 0.0
    %5179 = vmatpush1.msra.mxu0 0.0
    %5180 = vmatprep.subr.mxu0 0.0
    %5181 = vmatpush1.msra.mxu0 0.0
    %5182 = vmatprep.subr.mxu0 0.0
    %5183 = vmatpush1.msra.mxu0 0.0
    %5184 = vmatprep.subr.mxu0 0.0
    %5185 = vmatpush1.msra.mxu0 0.0
    %5186 = vmatprep.subr.mxu0 0.0
    %5187 = vmatpush1.msra.mxu0 0.0
    %5188 = vmatprep.subr.mxu0 0.0
    %5189 = vmatpush1.msra.mxu0 0.0
    %5190 = vmatprep.subr.mxu0 0.0
    %5191 = vmatpush1.msra.mxu0 0.0
    %5192 = vmatprep.mubr.f32.mxu0 0.0
    %5193 = vmatmul.mubr.f32.gmra.mrb[0].mxu0 %v5126
    %v5194 = vpop.f32.mrb[0].mxu0
    %v5195 = vadd.f32 1e-05, %v5194
    %v5196 = vpop.f32.mrb[0].mxu0
    %v5197 = vadd.f32 1e-05, %v5196
    %5198 = vdwg.mxu0
    %v5199 = vrsqrt.pop %v5195
    %v5200 = vrsqrt.pop %v5197
    %v5203 = vcombine.low %v5199, %v5200
    %v5205 = vunpack.c.l.s4 1983009808
    %v5206 = vunpack.c.0.s8 %v5205
    %v5207 = vlaneseq
    %v5208 = vshrl.u32 %v5207, 7
    %v5209 = vsub.s32 %v5206, %v5208
    %v5210 = vrot.slane %v5203, %v5209
    %v5212 = vmul.f32 %v5124, %v5210
    %v5214 = vlaneseq
    %v5215 = vshrl.u32 %v5214, 7
    %v5216 = vsub.s32 0, %v5215
    %v5217 = vrot.slane %v5212, %v5216
    %v5218 = vlaneseq
    %v5219 = vshrl.u32 %v5218, 7
    %v5220 = vsub.s32 2, %v5219
    %v5221 = vrot.slane %v5212, %v5220
    %v5224 = vmul.f32 %v5120, %v5217
    %v5225 = vmul.f32 %v5122, %v5221
    %v5228 = vcombine.low %v5224, %v5225
    %v5230 = vunpack.c.l.s4 1983009808
    %v5231 = vunpack.c.0.s8 %v5230
    %v5232 = vlaneseq
    %v5233 = vshrl.u32 %v5232, 7
    %v5234 = vsub.s32 %v5231, %v5233
    %v5235 = vrot.slane %v5228, %v5234
    %v5236 = vrot.slane %v5235, 7
    %v5238 = vsub.f32 %v5124, %v5236
    %v5239 = vld [vmem:[#allocation12] sm:$0xff]
    %v5240 = vld [vmem:[#allocation12 + $0x8] sm:$0x3]
    %v5241 = vld [vmem:[%s12] sm:$0xff]
    %v5242 = vld [vmem:[%s12 + $0x8] sm:$0xff]
    %v5243 = vld [vmem:[%s12 + $0x10] sm:$0xff]
    %v5244 = vld [vmem:[%s12 + $0x18] sm:$0xff]
    %v5245 = vld [vmem:[%s12 + $0x20] sm:$0xff]
    %v5246 = vld [vmem:[%s12 + $0x28] sm:$0xff]
    %v5247 = vld [vmem:[%s12 + $0x30] sm:$0xff]
    %v5248 = vld [vmem:[%s12 + $0x38] sm:$0xff]
    %v5249 = vld [vmem:[%s12 + $0x40] sm:$0xff]
    %v5250 = vld [vmem:[%s12 + $0x48] sm:$0xff]
    %v5251 = vld [vmem:[%s12 + $0x50] sm:$0xff]
    %v5252 = vld [vmem:[%s12 + $0x58] sm:$0xff]
    %v5253 = vld [vmem:[%s12 + $0x60] sm:$0xff]
    %v5254 = vld [vmem:[%s12 + $0x68] sm:$0xff]
    %v5255 = vld [vmem:[%s12 + $0x70] sm:$0xff]
    %v5256 = vld [vmem:[%s12 + $0x78] sm:$0xff]
    %v5257 = vld [vmem:[%s12 + $0x80] sm:$0xff]
    %v5258 = vld [vmem:[%s12 + $0x88] sm:$0xff]
    %v5259 = vld [vmem:[%s12 + $0x90] sm:$0xff]
    %v5260 = vld [vmem:[%s12 + $0x98] sm:$0xff]
    %v5261 = vld [vmem:[%s12 + $0xa0] sm:$0xff]
    %v5262 = vld [vmem:[%s12 + $0xa8] sm:$0xff]
    %v5263 = vld [vmem:[%s12 + $0xb0] sm:$0xff]
    %v5264 = vld [vmem:[%s12 + $0xb8] sm:$0xff]
    %v5265 = vld [vmem:[%s12 + $0xc0] sm:$0xff]
    %v5266 = vld [vmem:[%s12 + $0xc8] sm:$0xff]
    %v5267 = vld [vmem:[%s12 + $0xd0] sm:$0xff]
    %v5268 = vld [vmem:[%s12 + $0xd8] sm:$0xff]
    %v5269 = vld [vmem:[%s12 + $0xe0] sm:$0xff]
    %v5270 = vld [vmem:[%s12 + $0xe8] sm:$0xff]
    %v5271 = vlaneseq
    %v5272 = vshrl.u32 %v5271, 7
    %v5273 = vsub.s32 0, %v5272
    %v5274 = vrot.slane %v5217, %v5273
    %v5275 = vlaneseq
    %v5276 = vshrl.u32 %v5275, 7
    %v5277 = vsub.s32 0, %v5276
    %v5278 = vrot.slane %v5221, %v5277
    %v5279 = vmul.f32 %v4523, %v5274
    %v5280 = vmul.f32 %v4524, %v5278
    %v5281 = vmul.f32 %v4525, %v5274
    %v5282 = vmul.f32 %v4526, %v5278
    %v5283 = vmul.f32 %v4527, %v5274
    %v5284 = vmul.f32 %v4528, %v5278
    %v5286 = vlaneseq
    %v5287 = vshrl.u32 %v5286, 7
    %v5288 = vsub.s32 1, %v5287
    %v5289 = vrot.slane %v5238, %v5288
    %v5290 = vlaneseq
    %v5291 = vshrl.u32 %v5290, 7
    %v5292 = vsub.s32 3, %v5291
    %v5293 = vrot.slane %v5238, %v5292
    %v5296 = vlaneseq
    %v5297 = vshrl.u32 %v5296, 7
    %v5298 = vsub.s32 1, %v5297
    %v5299 = vrot.slane %v5289, %v5298
    %v5300 = vlaneseq
    %v5301 = vshrl.u32 %v5300, 7
    %v5302 = vsub.s32 1, %v5301
    %v5303 = vrot.slane %v5293, %v5302
    %v5304 = vadd.f32 %v5279, %v5299
    %v5305 = vadd.f32 %v5280, %v5303
    %v5306 = vadd.f32 %v5281, %v5299
    %v5307 = vadd.f32 %v5282, %v5303
    %v5308 = vadd.f32 %v5283, %v5299
    %v5309 = vadd.f32 %v5284, %v5303
    %v5316 = vrot.slane %v5304, 1
    %v5317 = vrot.slane %v5306, 1
    %v5318 = vsel %vm2821, %v5316, %v5317
    %v5319 = vrot.slane %v5305, 1
    %v5320 = vrot.slane %v5307, 1
    %v5321 = vsel %vm2821, %v5319, %v5320
    %v5322 = vrot.slane %v5308, 1
    %v5323 = vsel %vm2821, %v5317, %v5322
    %v5324 = vrot.slane %v5309, 1
    %v5325 = vsel %vm2821, %v5320, %v5324
    %v5332 = vmax.f32 %v5304, %v5318
    %v5333 = vmax.f32 %v5305, %v5321
    %v5334 = vmax.f32 %v5306, %v5323
    %v5335 = vmax.f32 %v5307, %v5325
    %v5336 = vmax.f32 %v5308, %v5322
    %v5337 = vmax.f32 %v5309, %v5324
    %5344 = vrot.lane.b32.xlu0 %v5332, 116
    %v5345 = vpop.permute.xlu0 %5344
    %5346 = vrot.lane.b32.xlu0 %v5333, 116
    %v5347 = vpop.permute.xlu0 %5346
    %5348 = vrot.lane.b32.xlu0 %v5334, 116
    %v5349 = vpop.permute.xlu0 %5348
    %5350 = vrot.lane.b32.xlu0 %v5335, 116
    %v5351 = vpop.permute.xlu0 %5350
    %5352 = vrot.lane.b32.xlu0 %v5336, 116
    %v5353 = vpop.permute.xlu0 %5352
    %5354 = vrot.lane.b32.xlu0 %v5337, 116
    %v5355 = vpop.permute.xlu0 %5354
    %vm5356 = vcmask 949248
    %v5357 = vsel %vm5356, %v5345, %v5347
    %v5358 = vsel %vm5356, %v5349, %v5351
    %v5359 = vsel %vm5356, %v5353, %v5355
    %v5366 = vmax.f32 %v5332, %v5357
    %v5367 = vmax.f32 %v5333, %v5347
    %v5368 = vmax.f32 %v5334, %v5358
    %v5369 = vmax.f32 %v5335, %v5351
    %v5370 = vmax.f32 %v5336, %v5359
    %v5371 = vmax.f32 %v5337, %v5355
    %v5372 = vmax.f32 %v5366, 0.0
    %v5373 = vmax.f32 %v5367, 0.0
    %v5374 = vmax.f32 %v5368, 0.0
    %v5375 = vmax.f32 %v5369, 0.0
    %v5376 = vmax.f32 %v5370, 0.0
    %v5377 = vmax.f32 %v5371, 0.0
    %v5379 = vsel %vm1770, %v5239, 0
    %v5382 = vsel %vm1770, %v5240, 0
    %v5385 = vsel %vm2001, %v5376, 0
    %v5388 = vsel %vm2001, %v5377, 0
    %5390 = vmatprep.subr.mxu0 %v5373
    %5391 = vmatpush1.msra.mxu0 %v5372
    %5392 = vmatprep.subr.mxu0 %v5375
    %5393 = vmatpush1.msra.mxu0 %v5374
    %5394 = vmatprep.subr.mxu0 %v5388
    %5395 = vmatpush1.msra.mxu0 %v5385
    %5396 = vmatprep.subr.mxu0 0.0
    %5397 = vmatpush1.msra.mxu0 0.0
    %5398 = vmatprep.subr.mxu0 0.0
    %5399 = vmatpush1.msra.mxu0 0.0
    %5400 = vmatprep.subr.mxu0 0.0
    %5401 = vmatpush1.msra.mxu0 0.0
    %5402 = vmatprep.subr.mxu0 0.0
    %5403 = vmatpush1.msra.mxu0 0.0
    %5404 = vmatprep.subr.mxu0 0.0
    %5405 = vmatpush1.msra.mxu0 0.0
    %5406 = vmatprep.subr.mxu0 0.0
    %5407 = vmatpush1.msra.mxu0 0.0
    %5408 = vmatprep.subr.mxu0 0.0
    %5409 = vmatpush1.msra.mxu0 0.0
    %5410 = vmatprep.subr.mxu0 0.0
    %5411 = vmatpush1.msra.mxu0 0.0
    %5412 = vmatprep.subr.mxu0 0.0
    %5413 = vmatpush1.msra.mxu0 0.0
    %5414 = vmatprep.subr.mxu0 0.0
    %5415 = vmatpush1.msra.mxu0 0.0
    %5416 = vmatprep.subr.mxu0 0.0
    %5417 = vmatpush1.msra.mxu0 0.0
    %5418 = vmatprep.subr.mxu0 0.0
    %5419 = vmatpush1.msra.mxu0 0.0
    %5420 = vmatprep.subr.mxu0 0.0
    %5421 = vmatpush1.msra.mxu0 0.0
    %5422 = vmatprep.subr.mxu0 0.0
    %5423 = vmatpush1.msra.mxu0 0.0
    %5424 = vmatprep.subr.mxu0 0.0
    %5425 = vmatpush1.msra.mxu0 0.0
    %5426 = vmatprep.subr.mxu0 0.0
    %5427 = vmatpush1.msra.mxu0 0.0
    %5428 = vmatprep.subr.mxu0 0.0
    %5429 = vmatpush1.msra.mxu0 0.0
    %5430 = vmatprep.subr.mxu0 0.0
    %5431 = vmatpush1.msra.mxu0 0.0
    %5432 = vmatprep.subr.mxu0 0.0
    %5433 = vmatpush1.msra.mxu0 0.0
    %5434 = vmatprep.subr.mxu0 0.0
    %5435 = vmatpush1.msra.mxu0 0.0
    %5436 = vmatprep.subr.mxu0 0.0
    %5437 = vmatpush1.msra.mxu0 0.0
    %5438 = vmatprep.subr.mxu0 0.0
    %5439 = vmatpush1.msra.mxu0 0.0
    %5440 = vmatprep.subr.mxu0 0.0
    %5441 = vmatpush1.msra.mxu0 0.0
    %5442 = vmatprep.subr.mxu0 0.0
    %5443 = vmatpush1.msra.mxu0 0.0
    %5444 = vmatprep.subr.mxu0 0.0
    %5445 = vmatpush1.msra.mxu0 0.0
    %5446 = vmatprep.subr.mxu0 0.0
    %5447 = vmatpush1.msra.mxu0 0.0
    %5448 = vmatprep.subr.mxu0 0.0
    %5449 = vmatpush1.msra.mxu0 0.0
    %5450 = vmatprep.subr.mxu0 0.0
    %5451 = vmatpush1.msra.mxu0 0.0
    %5452 = vmatprep.subr.mxu0 0.0
    %5453 = vmatpush1.msra.mxu0 0.0
    %5454 = vmatprep.mubr.f32.mxu0 0.0
    %5455 = vmatmul.mubr.f32.gmra.mrb[0].mxu0 %v5379
    %v5456 = vpop.f32.mrb[0].mxu0
    %v5457 = vadd.f32 0.0, %v5456
    %v5458 = vpop.f32.mrb[0].mxu0
    %v5459 = vadd.f32 0.0, %v5458
    %5460 = vmatprep.mubr.f32.mxu0 0.0
    %5461 = vmatmul.mubr.f32.gmra.mrb[0].mxu0 %v5382
    %v5462 = vpop.f32.mrb[0].mxu0
    %v5463 = vadd.f32 0.0, %v5462
    %v5464 = vpop.f32.mrb[0].mxu0
    %v5465 = vadd.f32 0.0, %v5464
    %5466 = vdwg.mxu0
    %vm5467 = vcmask 916480
    %v5469 = vsel %vm5467, %v5459, 0
    %v5472 = vsel %vm5467, %v5465, 0
    %5474 = vmatprep.subr.mxu0 0.0
    %5475 = vmatpush1.msra.mxu0 %v5241
    %5476 = vmatprep.subr.mxu0 0.0
    %5477 = vmatpush1.msra.mxu0 %v5242
    %5478 = vmatprep.subr.mxu0 0.0
    %5479 = vmatpush1.msra.mxu0 %v5243
    %5480 = vmatprep.subr.mxu0 0.0
    %5481 = vmatpush1.msra.mxu0 %v5244
    %5482 = vmatprep.subr.mxu0 0.0
    %5483 = vmatpush1.msra.mxu0 %v5245
    %5484 = vmatprep.subr.mxu0 0.0
    %5485 = vmatpush1.msra.mxu0 %v5246
    %5486 = vmatprep.subr.mxu0 0.0
    %5487 = vmatpush1.msra.mxu0 %v5247
    %5488 = vmatprep.subr.mxu0 0.0
    %5489 = vmatpush1.msra.mxu0 %v5248
    %5490 = vmatprep.subr.mxu0 0.0
    %5491 = vmatpush1.msra.mxu0 %v5249
    %5492 = vmatprep.subr.mxu0 0.0
    %5493 = vmatpush1.msra.mxu0 %v5250
    %5494 = vmatprep.subr.mxu0 0.0
    %5495 = vmatpush1.msra.mxu0 %v5251
    %5496 = vmatprep.subr.mxu0 0.0
    %5497 = vmatpush1.msra.mxu0 %v5252
    %5498 = vmatprep.subr.mxu0 0.0
    %5499 = vmatpush1.msra.mxu0 %v5253
    %5500 = vmatprep.subr.mxu0 0.0
    %5501 = vmatpush1.msra.mxu0 %v5254
    %5502 = vmatprep.subr.mxu0 0.0
    %5503 = vmatpush1.msra.mxu0 %v5255
    %5504 = vmatprep.subr.mxu0 0.0
    %5505 = vmatpush1.msra.mxu0 %v5256
    %5506 = vmatprep.subr.mxu0 0.0
    %5507 = vmatpush1.msra.mxu0 %v5257
    %5508 = vmatprep.subr.mxu0 0.0
    %5509 = vmatpush1.msra.mxu0 %v5258
    %5510 = vmatprep.subr.mxu0 0.0
    %5511 = vmatpush1.msra.mxu0 %v5259
    %5512 = vmatprep.subr.mxu0 0.0
    %5513 = vmatpush1.msra.mxu0 %v5260
    %5514 = vmatprep.subr.mxu0 0.0
    %5515 = vmatpush1.msra.mxu0 %v5261
    %5516 = vmatprep.subr.mxu0 0.0
    %5517 = vmatpush1.msra.mxu0 %v5262
    %5518 = vmatprep.subr.mxu0 0.0
    %5519 = vmatpush1.msra.mxu0 %v5263
    %5520 = vmatprep.subr.mxu0 0.0
    %5521 = vmatpush1.msra.mxu0 %v5264
    %5522 = vmatprep.subr.mxu0 0.0
    %5523 = vmatpush1.msra.mxu0 %v5265
    %5524 = vmatprep.subr.mxu0 0.0
    %5525 = vmatpush1.msra.mxu0 %v5266
    %5526 = vmatprep.subr.mxu0 0.0
    %5527 = vmatpush1.msra.mxu0 %v5267
    %5528 = vmatprep.subr.mxu0 0.0
    %5529 = vmatpush1.msra.mxu0 %v5268
    %5530 = vmatprep.subr.mxu0 0.0
    %5531 = vmatpush1.msra.mxu0 %v5269
    %5532 = vmatprep.subr.mxu0 0.0
    %5533 = vmatpush1.msra.mxu0 %v5270
    %5534 = vmatprep.subr.mxu0 0.0
    %5535 = vmatpush1.msra.mxu0 0.0
    %5536 = vmatprep.subr.mxu0 0.0
    %5537 = vmatpush1.msra.mxu0 0.0
    %5538 = vmatprep.mubr.f32.mxu0 %v5469
    %5539 = vmatmul.mubr.f32.gmra.mrb[0].mxu0 %v5457
    %v5540 = vpop.f32.mrb[0].mxu0
    %v5541 = vadd.f32 0.0, %v5540
    %v5542 = vpop.f32.mrb[0].mxu0
    %5543 = vmatprep.mubr.f32.mxu0 %v5472
    %5544 = vmatmul.mubr.f32.gmra.mrb[0].mxu0 %v5463
    %v5545 = vpop.f32.mrb[0].mxu0
    %v5546 = vadd.f32 0.0, %v5545
    %v5547 = vpop.f32.mrb[0].mxu0
    %5548 = vdwg.mxu0
    %v5549 = vmul.f32 %v4746, %v5274
    %v5550 = vmul.f32 %v4747, %v5278
    %v5551 = vmul.f32 %v4748, %v5274
    %v5552 = vmul.f32 %v4749, %v5278
    %v5553 = vmul.f32 %v4750, %v5274
    %v5554 = vmul.f32 %v4751, %v5278
    %v5555 = vadd.f32 %v5549, %v5299
    %v5556 = vadd.f32 %v5550, %v5303
    %v5557 = vadd.f32 %v5551, %v5299
    %v5558 = vadd.f32 %v5552, %v5303
    %v5559 = vadd.f32 %v5553, %v5299
    %v5560 = vadd.f32 %v5554, %v5303
    %v5567 = vrot.slane %v5555, 1
    %v5568 = vrot.slane %v5557, 1
    %v5569 = vsel %vm2821, %v5567, %v5568
    %v5570 = vrot.slane %v5556, 1
    %v5571 = vrot.slane %v5558, 1
    %v5572 = vsel %vm2821, %v5570, %v5571
    %v5573 = vrot.slane %v5559, 1
    %v5574 = vsel %vm2821, %v5568, %v5573
    %v5575 = vrot.slane %v5560, 1
    %v5576 = vsel %vm2821, %v5571, %v5575
    %v5583 = vmax.f32 %v5555, %v5569
    %v5584 = vmax.f32 %v5556, %v5572
    %v5585 = vmax.f32 %v5557, %v5574
    %v5586 = vmax.f32 %v5558, %v5576
    %v5587 = vmax.f32 %v5559, %v5573
    %v5588 = vmax.f32 %v5560, %v5575
    %5595 = vrot.lane.b32.xlu0 %v5583, 116
    %v5596 = vpop.permute.xlu0 %5595
    %5597 = vrot.lane.b32.xlu0 %v5584, 116
    %v5598 = vpop.permute.xlu0 %5597
    %5599 = vrot.lane.b32.xlu0 %v5585, 116
    %v5600 = vpop.permute.xlu0 %5599
    %5601 = vrot.lane.b32.xlu0 %v5586, 116
    %v5602 = vpop.permute.xlu0 %5601
    %5603 = vrot.lane.b32.xlu0 %v5587, 116
    %v5604 = vpop.permute.xlu0 %5603
    %5605 = vrot.lane.b32.xlu0 %v5588, 116
    %v5606 = vpop.permute.xlu0 %5605
    %v5607 = vsel %vm5356, %v5596, %v5598
    %v5608 = vsel %vm5356, %v5600, %v5602
    %v5609 = vsel %vm5356, %v5604, %v5606
    %v5616 = vmax.f32 %v5583, %v5607
    %v5617 = vmax.f32 %v5584, %v5598
    %v5618 = vmax.f32 %v5585, %v5608
    %v5619 = vmax.f32 %v5586, %v5602
    %v5620 = vmax.f32 %v5587, %v5609
    %v5621 = vmax.f32 %v5588, %v5606
    %v5622 = vmax.f32 %v5616, 0.0
    %v5623 = vmax.f32 %v5617, 0.0
    %v5624 = vmax.f32 %v5618, 0.0
    %v5625 = vmax.f32 %v5619, 0.0
    %v5626 = vmax.f32 %v5620, 0.0
    %v5627 = vmax.f32 %v5621, 0.0
    %v5629 = vsel %vm2001, %v5626, 0
    %v5632 = vsel %vm2001, %v5627, 0
    %5634 = vmatprep.subr.mxu0 %v5623
    %5635 = vmatpush1.msra.mxu0 %v5622
    %5636 = vmatprep.subr.mxu0 %v5625
    %5637 = vmatpush1.msra.mxu0 %v5624
    %5638 = vmatprep.subr.mxu0 %v5632
    %5639 = vmatpush1.msra.mxu0 %v5629
    %5640 = vmatprep.subr.mxu0 0.0
    %5641 = vmatpush1.msra.mxu0 0.0
    %5642 = vmatprep.subr.mxu0 0.0
    %5643 = vmatpush1.msra.mxu0 0.0
    %5644 = vmatprep.subr.mxu0 0.0
    %5645 = vmatpush1.msra.mxu0 0.0
    %5646 = vmatprep.subr.mxu0 0.0
    %5647 = vmatpush1.msra.mxu0 0.0
    %5648 = vmatprep.subr.mxu0 0.0
    %5649 = vmatpush1.msra.mxu0 0.0
    %5650 = vmatprep.subr.mxu0 0.0
    %5651 = vmatpush1.msra.mxu0 0.0
    %5652 = vmatprep.subr.mxu0 0.0
    %5653 = vmatpush1.msra.mxu0 0.0
    %5654 = vmatprep.subr.mxu0 0.0
    %5655 = vmatpush1.msra.mxu0 0.0
    %5656 = vmatprep.subr.mxu0 0.0
    %5657 = vmatpush1.msra.mxu0 0.0
    %5658 = vmatprep.subr.mxu0 0.0
    %5659 = vmatpush1.msra.mxu0 0.0
    %5660 = vmatprep.subr.mxu0 0.0
    %5661 = vmatpush1.msra.mxu0 0.0
    %5662 = vmatprep.subr.mxu0 0.0
    %5663 = vmatpush1.msra.mxu0 0.0
    %5664 = vmatprep.subr.mxu0 0.0
    %5665 = vmatpush1.msra.mxu0 0.0
    %5666 = vmatprep.subr.mxu0 0.0
    %5667 = vmatpush1.msra.mxu0 0.0
    %5668 = vmatprep.subr.mxu0 0.0
    %5669 = vmatpush1.msra.mxu0 0.0
    %5670 = vmatprep.subr.mxu0 0.0
    %5671 = vmatpush1.msra.mxu0 0.0
    %5672 = vmatprep.subr.mxu0 0.0
    %5673 = vmatpush1.msra.mxu0 0.0
    %5674 = vmatprep.subr.mxu0 0.0
    %5675 = vmatpush1.msra.mxu0 0.0
    %5676 = vmatprep.subr.mxu0 0.0
    %5677 = vmatpush1.msra.mxu0 0.0
    %5678 = vmatprep.subr.mxu0 0.0
    %5679 = vmatpush1.msra.mxu0 0.0
    %5680 = vmatprep.subr.mxu0 0.0
    %5681 = vmatpush1.msra.mxu0 0.0
    %5682 = vmatprep.subr.mxu0 0.0
    %5683 = vmatpush1.msra.mxu0 0.0
    %5684 = vmatprep.subr.mxu0 0.0
    %5685 = vmatpush1.msra.mxu0 0.0
    %5686 = vmatprep.subr.mxu0 0.0
    %5687 = vmatpush1.msra.mxu0 0.0
    %5688 = vmatprep.subr.mxu0 0.0
    %5689 = vmatpush1.msra.mxu0 0.0
    %5690 = vmatprep.subr.mxu0 0.0
    %5691 = vmatpush1.msra.mxu0 0.0
    %5692 = vmatprep.subr.mxu0 0.0
    %5693 = vmatpush1.msra.mxu0 0.0
    %5694 = vmatprep.subr.mxu0 0.0
    %5695 = vmatpush1.msra.mxu0 0.0
    %5696 = vmatprep.subr.mxu0 0.0
    %5697 = vmatpush1.msra.mxu0 0.0
    %5698 = vmatprep.mubr.f32.mxu0 0.0
    %5699 = vmatmul.mubr.f32.gmra.mrb[0].mxu0 %v5379
    %v5700 = vpop.f32.mrb[0].mxu0
    %v5701 = vadd.f32 0.0, %v5700
    %v5702 = vpop.f32.mrb[0].mxu0
    %v5703 = vadd.f32 0.0, %v5702
    %5704 = vmatprep.mubr.f32.mxu0 0.0
    %5705 = vmatmul.mubr.f32.gmra.mrb[0].mxu0 %v5382
    %v5706 = vpop.f32.mrb[0].mxu0
    %v5707 = vadd.f32 0.0, %v5706
    %v5708 = vpop.f32.mrb[0].mxu0
    %v5709 = vadd.f32 0.0, %v5708
    %5710 = vdwg.mxu0
    %v5712 = vsel %vm5467, %v5703, 0
    %v5715 = vsel %vm5467, %v5709, 0
    %5717 = vmatprep.subr.mxu0 0.0
    %5718 = vmatpush1.msra.mxu0 %v5241
    %5719 = vmatprep.subr.mxu0 0.0
    %5720 = vmatpush1.msra.mxu0 %v5242
    %5721 = vmatprep.subr.mxu0 0.0
    %5722 = vmatpush1.msra.mxu0 %v5243
    %5723 = vmatprep.subr.mxu0 0.0
    %5724 = vmatpush1.msra.mxu0 %v5244
    %5725 = vmatprep.subr.mxu0 0.0
    %5726 = vmatpush1.msra.mxu0 %v5245
    %5727 = vmatprep.subr.mxu0 0.0
    %5728 = vmatpush1.msra.mxu0 %v5246
    %5729 = vmatprep.subr.mxu0 0.0
    %5730 = vmatpush1.msra.mxu0 %v5247
    %5731 = vmatprep.subr.mxu0 0.0
    %5732 = vmatpush1.msra.mxu0 %v5248
    %5733 = vmatprep.subr.mxu0 0.0
    %5734 = vmatpush1.msra.mxu0 %v5249
    %5735 = vmatprep.subr.mxu0 0.0
    %5736 = vmatpush1.msra.mxu0 %v5250
    %5737 = vmatprep.subr.mxu0 0.0
    %5738 = vmatpush1.msra.mxu0 %v5251
    %5739 = vmatprep.subr.mxu0 0.0
    %5740 = vmatpush1.msra.mxu0 %v5252
    %5741 = vmatprep.subr.mxu0 0.0
    %5742 = vmatpush1.msra.mxu0 %v5253
    %5743 = vmatprep.subr.mxu0 0.0
    %5744 = vmatpush1.msra.mxu0 %v5254
    %5745 = vmatprep.subr.mxu0 0.0
    %5746 = vmatpush1.msra.mxu0 %v5255
    %5747 = vmatprep.subr.mxu0 0.0
    %5748 = vmatpush1.msra.mxu0 %v5256
    %5749 = vmatprep.subr.mxu0 0.0
    %5750 = vmatpush1.msra.mxu0 %v5257
    %5751 = vmatprep.subr.mxu0 0.0
    %5752 = vmatpush1.msra.mxu0 %v5258
    %5753 = vmatprep.subr.mxu0 0.0
    %5754 = vmatpush1.msra.mxu0 %v5259
    %5755 = vmatprep.subr.mxu0 0.0
    %5756 = vmatpush1.msra.mxu0 %v5260
    %5757 = vmatprep.subr.mxu0 0.0
    %5758 = vmatpush1.msra.mxu0 %v5261
    %5759 = vmatprep.subr.mxu0 0.0
    %5760 = vmatpush1.msra.mxu0 %v5262
    %5761 = vmatprep.subr.mxu0 0.0
    %5762 = vmatpush1.msra.mxu0 %v5263
    %5763 = vmatprep.subr.mxu0 0.0
    %5764 = vmatpush1.msra.mxu0 %v5264
    %5765 = vmatprep.subr.mxu0 0.0
    %5766 = vmatpush1.msra.mxu0 %v5265
    %5767 = vmatprep.subr.mxu0 0.0
    %5768 = vmatpush1.msra.mxu0 %v5266
    %5769 = vmatprep.subr.mxu0 0.0
    %5770 = vmatpush1.msra.mxu0 %v5267
    %5771 = vmatprep.subr.mxu0 0.0
    %5772 = vmatpush1.msra.mxu0 %v5268
    %5773 = vmatprep.subr.mxu0 0.0
    %5774 = vmatpush1.msra.mxu0 %v5269
    %5775 = vmatprep.subr.mxu0 0.0
    %5776 = vmatpush1.msra.mxu0 %v5270
    %5777 = vmatprep.subr.mxu0 0.0
    %5778 = vmatpush1.msra.mxu0 0.0
    %5779 = vmatprep.subr.mxu0 0.0
    %5780 = vmatpush1.msra.mxu0 0.0
    %5781 = vmatprep.mubr.f32.mxu0 %v5712
    %5782 = vmatmul.mubr.f32.gmra.mrb[0].mxu0 %v5701
    %v5783 = vpop.f32.mrb[0].mxu0
    %v5784 = vadd.f32 0.0, %v5783
    %v5785 = vpop.f32.mrb[0].mxu0
    %5786 = vmatprep.mubr.f32.mxu0 %v5715
    %5787 = vmatmul.mubr.f32.gmra.mrb[0].mxu0 %v5707
    %v5788 = vpop.f32.mrb[0].mxu0
    %v5789 = vadd.f32 0.0, %v5788
    %v5790 = vpop.f32.mrb[0].mxu0
    %5791 = vdwg.mxu0
    %v5792 = vpack.c.bf16 %v5541, %v5541
    %v5793 = vld [vmem:[%s13] sm:$0xf]
    %v5794 = vld [vmem:[%s13 + $0x4] sm:$0xf]
    %v5795 = vld [vmem:[%s13 + $0x8] sm:$0xf]
    %v5796 = vld [vmem:[%s13 + $0xc] sm:$0xf]
    %v5797 = vld [vmem:[%s13 + $0x10] sm:$0xf]
    %v5798 = vld [vmem:[%s13 + $0x14] sm:$0xf]
    %v5799 = vld [vmem:[%s13 + $0x18] sm:$0xf]
    %v5800 = vld [vmem:[%s13 + $0x1c] sm:$0xf]
    %v5801 = vld [vmem:[%s13 + $0x20] sm:$0xf]
    %v5802 = vld [vmem:[%s13 + $0x24] sm:$0xf]
    %v5803 = vld [vmem:[%s13 + $0x28] sm:$0xf]
    %v5804 = vld [vmem:[%s13 + $0x2c] sm:$0xf]
    %v5805 = vld [vmem:[%s13 + $0x30] sm:$0xf]
    %v5806 = vld [vmem:[%s13 + $0x34] sm:$0xf]
    %v5807 = vld [vmem:[%s13 + $0x38] sm:$0xf]
    %v5808 = vpack.c.bf16 %v5546, %v5541
    %s5809 = scalar_lea.vmem %s13, 60
    %v5810 = vld [vmem:[%s5809] sm:$0xf]
    %v5811 = vld [vmem:[%s5809 + $0x4] sm:$0xf]
    %v5812 = vld [vmem:[%s5809 + $0x8] sm:$0xf]
    %v5813 = vld [vmem:[%s5809 + $0xc] sm:$0xf]
    %v5814 = vld [vmem:[%s5809 + $0x10] sm:$0xf]
    %v5815 = vld [vmem:[%s5809 + $0x14] sm:$0xf]
    %v5816 = vld [vmem:[%s5809 + $0x18] sm:$0xf]
    %v5817 = vld [vmem:[%s5809 + $0x1c] sm:$0xf]
    %v5818 = vld [vmem:[%s5809 + $0x20] sm:$0xf]
    %v5819 = vld [vmem:[%s5809 + $0x24] sm:$0xf]
    %v5820 = vld [vmem:[%s5809 + $0x28] sm:$0xf]
    %v5821 = vld [vmem:[%s5809 + $0x2c] sm:$0xf]
    %v5822 = vld [vmem:[%s5809 + $0x30] sm:$0xf]
    %v5823 = vld [vmem:[%s5809 + $0x34] sm:$0xf]
    %v5824 = vld [vmem:[%s5809 + $0x38] sm:$0xf]
    %v5826 = vshrl.u32 %v5808, 16
    %v5828 = vshll.u32 %v5808, 16
    %v5830 = vrot.slane %v5828, 1
    %v5831 = vor.u32 %v5826, %v5830
    %v5847 = vunpack.c.l.b16 %v5810
    %v5848 = vunpack.c.l.b16 %v5811
    %v5849 = vunpack.c.l.b16 %v5812
    %v5850 = vunpack.c.l.b16 %v5813
    %v5851 = vunpack.c.l.b16 %v5814
    %v5852 = vunpack.c.l.b16 %v5815
    %v5853 = vunpack.c.l.b16 %v5816
    %v5854 = vunpack.c.l.b16 %v5817
    %v5855 = vunpack.c.l.b16 %v5818
    %v5856 = vunpack.c.l.b16 %v5819
    %v5857 = vunpack.c.l.b16 %v5820
    %v5858 = vunpack.c.l.b16 %v5821
    %v5859 = vunpack.c.l.b16 %v5822
    %v5860 = vunpack.c.l.b16 %v5823
    %v5861 = vunpack.c.l.b16 %v5824
    %v5862 = vpack.c.b16 %v5848, %v5847
    %v5863 = vpack.c.b16 %v5850, %v5849
    %v5864 = vpack.c.b16 %v5852, %v5851
    %v5865 = vpack.c.b16 %v5854, %v5853
    %v5866 = vpack.c.b16 %v5856, %v5855
    %v5867 = vpack.c.b16 %v5858, %v5857
    %v5868 = vpack.c.b16 %v5860, %v5859
    %v5869 = vpack.c.b16 %v5861, %v5861
    %vm5877 = vcmask 982016
    %v5879 = vsel %vm5877, %v5831, 0
    %v5882 = vsel %vm2001, %v5869, 0
    %5884 = vmatprep.subr.bf16.mxu0 0
    %5885 = vmatpush1.bf16.msra.mxu0 %v5862
    %5886 = vmatprep.subr.bf16.mxu0 0
    %5887 = vmatpush1.bf16.msra.mxu0 %v5863
    %5888 = vmatprep.subr.bf16.mxu0 0
    %5889 = vmatpush1.bf16.msra.mxu0 %v5864
    %5890 = vmatprep.subr.bf16.mxu0 0
    %5891 = vmatpush1.bf16.msra.mxu0 %v5865
    %5892 = vmatprep.subr.bf16.mxu0 0
    %5893 = vmatpush1.bf16.msra.mxu0 %v5866
    %5894 = vmatprep.subr.bf16.mxu0 0
    %5895 = vmatpush1.bf16.msra.mxu0 %v5867
    %5896 = vmatprep.subr.bf16.mxu0 0
    %5897 = vmatpush1.bf16.msra.mxu0 %v5868
    %5898 = vmatprep.subr.bf16.mxu0 0
    %5899 = vmatpush1.bf16.msra.mxu0 %v5882
    %5900 = vmatprep.subr.bf16.mxu0 0
    %5901 = vmatpush1.bf16.msra.mxu0 0
    %5902 = vmatprep.subr.bf16.mxu0 0
    %5903 = vmatpush1.bf16.msra.mxu0 0
    %5904 = vmatprep.subr.bf16.mxu0 0
    %5905 = vmatpush1.bf16.msra.mxu0 0
    %5906 = vmatprep.subr.bf16.mxu0 0
    %5907 = vmatpush1.bf16.msra.mxu0 0
    %5908 = vmatprep.subr.bf16.mxu0 0
    %5909 = vmatpush1.bf16.msra.mxu0 0
    %5910 = vmatprep.subr.bf16.mxu0 0
    %5911 = vmatpush1.bf16.msra.mxu0 0
    %5912 = vmatprep.subr.bf16.mxu0 0
    %5913 = vmatpush1.bf16.msra.mxu0 0
    %5914 = vmatprep.subr.bf16.mxu0 0
    %5915 = vmatpush1.bf16.msra.mxu0 0
    %5916 = vmatprep.mubr.bf16.mxu0 0
    %5917 = vmatmul.mubr.bf16.gmra.mrb[0].mxu0 %v5879
    %v5918 = vpop.f32.mrb[0].mxu0
    %v5919 = vadd.f32 0.0, %v5918
    %v5920 = vpop.f32.mrb[0].mxu0
    %v5921 = vpop.f32.mrb[0].mxu0
    %v5922 = vpop.f32.mrb[0].mxu0
    %5923 = vdwg.mxu0
    %v5939 = vunpack.c.l.b16 %v5793
    %v5940 = vunpack.c.l.b16 %v5794
    %v5941 = vunpack.c.l.b16 %v5795
    %v5942 = vunpack.c.l.b16 %v5796
    %v5943 = vunpack.c.l.b16 %v5797
    %v5944 = vunpack.c.l.b16 %v5798
    %v5945 = vunpack.c.l.b16 %v5799
    %v5946 = vunpack.c.l.b16 %v5800
    %v5947 = vunpack.c.l.b16 %v5801
    %v5948 = vunpack.c.l.b16 %v5802
    %v5949 = vunpack.c.l.b16 %v5803
    %v5950 = vunpack.c.l.b16 %v5804
    %v5951 = vunpack.c.l.b16 %v5805
    %v5952 = vunpack.c.l.b16 %v5806
    %v5953 = vunpack.c.l.b16 %v5807
    %v5954 = vpack.c.b16 %v5940, %v5939
    %v5955 = vpack.c.b16 %v5942, %v5941
    %v5956 = vpack.c.b16 %v5944, %v5943
    %v5957 = vpack.c.b16 %v5946, %v5945
    %v5958 = vpack.c.b16 %v5948, %v5947
    %v5959 = vpack.c.b16 %v5950, %v5949
    %v5960 = vpack.c.b16 %v5952, %v5951
    %v5961 = vpack.c.b16 %v5953, %v5953
    %v5970 = vsel %vm5877, %v5792, 0
    %v5973 = vsel %vm2001, %v5961, 0
    %5975 = vmatprep.subr.bf16.mxu0 0
    %5976 = vmatpush1.bf16.msra.mxu0 %v5954
    %5977 = vmatprep.subr.bf16.mxu0 0
    %5978 = vmatpush1.bf16.msra.mxu0 %v5955
    %5979 = vmatprep.subr.bf16.mxu0 0
    %5980 = vmatpush1.bf16.msra.mxu0 %v5956
    %5981 = vmatprep.subr.bf16.mxu0 0
    %5982 = vmatpush1.bf16.msra.mxu0 %v5957
    %5983 = vmatprep.subr.bf16.mxu0 0
    %5984 = vmatpush1.bf16.msra.mxu0 %v5958
    %5985 = vmatprep.subr.bf16.mxu0 0
    %5986 = vmatpush1.bf16.msra.mxu0 %v5959
    %5987 = vmatprep.subr.bf16.mxu0 0
    %5988 = vmatpush1.bf16.msra.mxu0 %v5960
    %5989 = vmatprep.subr.bf16.mxu0 0
    %5990 = vmatpush1.bf16.msra.mxu0 %v5973
    %5991 = vmatprep.subr.bf16.mxu0 0
    %5992 = vmatpush1.bf16.msra.mxu0 0
    %5993 = vmatprep.subr.bf16.mxu0 0
    %5994 = vmatpush1.bf16.msra.mxu0 0
    %5995 = vmatprep.subr.bf16.mxu0 0
    %5996 = vmatpush1.bf16.msra.mxu0 0
    %5997 = vmatprep.subr.bf16.mxu0 0
    %5998 = vmatpush1.bf16.msra.mxu0 0
    %5999 = vmatprep.subr.bf16.mxu0 0
    %6000 = vmatpush1.bf16.msra.mxu0 0
    %6001 = vmatprep.subr.bf16.mxu0 0
    %6002 = vmatpush1.bf16.msra.mxu0 0
    %6003 = vmatprep.subr.bf16.mxu0 0
    %6004 = vmatpush1.bf16.msra.mxu0 0
    %6005 = vmatprep.subr.bf16.mxu0 0
    %6006 = vmatpush1.bf16.msra.mxu0 0
    %6007 = vmatprep.mubr.bf16.mxu0 0
    %6008 = vmatmul.mubr.bf16.gmra.mrb[0].mxu0 %v5970
    %v6009 = vpop.f32.mrb[0].mxu0
    %v6010 = vadd.f32 %v5919, %v6009
    %v6011 = vpop.f32.mrb[0].mxu0
    %v6012 = vpop.f32.mrb[0].mxu0
    %v6013 = vpop.f32.mrb[0].mxu0
    %6014 = vdwg.mxu0
    %s6015 = scalar_lea.vmem %s13, 120
    %v6016 = vld [vmem:[%s6015] sm:$0xf]
    %v6017 = vld [vmem:[%s6015 + $0x4] sm:$0xf]
    %v6018 = vld [vmem:[%s6015 + $0x8] sm:$0xf]
    %v6019 = vld [vmem:[%s6015 + $0xc] sm:$0xf]
    %v6020 = vld [vmem:[%s6015 + $0x10] sm:$0xf]
    %v6021 = vld [vmem:[%s6015 + $0x14] sm:$0xf]
    %v6022 = vld [vmem:[%s6015 + $0x18] sm:$0xf]
    %v6023 = vld [vmem:[%s6015 + $0x1c] sm:$0xf]
    %v6024 = vld [vmem:[%s6015 + $0x20] sm:$0xf]
    %v6025 = vld [vmem:[%s6015 + $0x24] sm:$0xf]
    %v6026 = vld [vmem:[%s6015 + $0x28] sm:$0xf]
    %v6027 = vld [vmem:[%s6015 + $0x2c] sm:$0xf]
    %v6028 = vld [vmem:[%s6015 + $0x30] sm:$0xf]
    %v6029 = vld [vmem:[%s6015 + $0x34] sm:$0xf]
    %v6030 = vld [vmem:[%s6015 + $0x38] sm:$0xf]
    %v6032 = vrot.slane %v5808, 1
    %v6048 = vunpack.c.l.b16 %v6016
    %v6049 = vunpack.c.l.b16 %v6017
    %v6050 = vunpack.c.l.b16 %v6018
    %v6051 = vunpack.c.l.b16 %v6019
    %v6052 = vunpack.c.l.b16 %v6020
    %v6053 = vunpack.c.l.b16 %v6021
    %v6054 = vunpack.c.l.b16 %v6022
    %v6055 = vunpack.c.l.b16 %v6023
    %v6056 = vunpack.c.l.b16 %v6024
    %v6057 = vunpack.c.l.b16 %v6025
    %v6058 = vunpack.c.l.b16 %v6026
    %v6059 = vunpack.c.l.b16 %v6027
    %v6060 = vunpack.c.l.b16 %v6028
    %v6061 = vunpack.c.l.b16 %v6029
    %v6062 = vunpack.c.l.b16 %v6030
    %v6063 = vpack.c.b16 %v6049, %v6048
    %v6064 = vpack.c.b16 %v6051, %v6050
    %v6065 = vpack.c.b16 %v6053, %v6052
    %v6066 = vpack.c.b16 %v6055, %v6054
    %v6067 = vpack.c.b16 %v6057, %v6056
    %v6068 = vpack.c.b16 %v6059, %v6058
    %v6069 = vpack.c.b16 %v6061, %v6060
    %v6070 = vpack.c.b16 %v6062, %v6062
    %v6079 = vsel %vm5877, %v6032, 0
    %v6082 = vsel %vm2001, %v6070, 0
    %6084 = vmatprep.subr.bf16.mxu0 0
    %6085 = vmatpush1.bf16.msra.mxu0 %v6063
    %6086 = vmatprep.subr.bf16.mxu0 0
    %6087 = vmatpush1.bf16.msra.mxu0 %v6064
    %6088 = vmatprep.subr.bf16.mxu0 0
    %6089 = vmatpush1.bf16.msra.mxu0 %v6065
    %6090 = vmatprep.subr.bf16.mxu0 0
    %6091 = vmatpush1.bf16.msra.mxu0 %v6066
    %6092 = vmatprep.subr.bf16.mxu0 0
    %6093 = vmatpush1.bf16.msra.mxu0 %v6067
    %6094 = vmatprep.subr.bf16.mxu0 0
    %6095 = vmatpush1.bf16.msra.mxu0 %v6068
    %6096 = vmatprep.subr.bf16.mxu0 0
    %6097 = vmatpush1.bf16.msra.mxu0 %v6069
    %6098 = vmatprep.subr.bf16.mxu0 0
    %6099 = vmatpush1.bf16.msra.mxu0 %v6082
    %6100 = vmatprep.subr.bf16.mxu0 0
    %6101 = vmatpush1.bf16.msra.mxu0 0
    %6102 = vmatprep.subr.bf16.mxu0 0
    %6103 = vmatpush1.bf16.msra.mxu0 0
    %6104 = vmatprep.subr.bf16.mxu0 0
    %6105 = vmatpush1.bf16.msra.mxu0 0
    %6106 = vmatprep.subr.bf16.mxu0 0
    %6107 = vmatpush1.bf16.msra.mxu0 0
    %6108 = vmatprep.subr.bf16.mxu0 0
    %6109 = vmatpush1.bf16.msra.mxu0 0
    %6110 = vmatprep.subr.bf16.mxu0 0
    %6111 = vmatpush1.bf16.msra.mxu0 0
    %6112 = vmatprep.subr.bf16.mxu0 0
    %6113 = vmatpush1.bf16.msra.mxu0 0
    %6114 = vmatprep.subr.bf16.mxu0 0
    %6115 = vmatpush1.bf16.msra.mxu0 0
    %6116 = vmatprep.mubr.bf16.mxu0 0
    %6117 = vmatmul.mubr.bf16.gmra.mrb[0].mxu0 %v6079
    %v6118 = vpop.f32.mrb[0].mxu0
    %v6119 = vadd.f32 0.0, %v6118
    %v6120 = vpop.f32.mrb[0].mxu0
    %v6121 = vpop.f32.mrb[0].mxu0
    %v6122 = vpop.f32.mrb[0].mxu0
    %6123 = vdwg.mxu0
    %v6124 = vadd.f32 %v6010, %v6119
    %v6125 = vpack.c.bf16 %v5784, %v5784
    %v6126 = vpack.c.bf16 %v5789, %v5784
    %v6128 = vshrl.u32 %v6126, 16
    %v6130 = vshll.u32 %v6126, 16
    %v6132 = vrot.slane %v6130, 1
    %v6133 = vor.u32 %v6128, %v6132
    %v6135 = vsel %vm5877, %v6133, 0
    %6137 = vmatprep.subr.bf16.mxu0 0
    %6138 = vmatpush1.bf16.msra.mxu0 %v5862
    %6139 = vmatprep.subr.bf16.mxu0 0
    %6140 = vmatpush1.bf16.msra.mxu0 %v5863
    %6141 = vmatprep.subr.bf16.mxu0 0
    %6142 = vmatpush1.bf16.msra.mxu0 %v5864
    %6143 = vmatprep.subr.bf16.mxu0 0
    %6144 = vmatpush1.bf16.msra.mxu0 %v5865
    %6145 = vmatprep.subr.bf16.mxu0 0
    %6146 = vmatpush1.bf16.msra.mxu0 %v5866
    %6147 = vmatprep.subr.bf16.mxu0 0
    %6148 = vmatpush1.bf16.msra.mxu0 %v5867
    %6149 = vmatprep.subr.bf16.mxu0 0
    %6150 = vmatpush1.bf16.msra.mxu0 %v5868
    %6151 = vmatprep.subr.bf16.mxu0 0
    %6152 = vmatpush1.bf16.msra.mxu0 %v5882
    %6153 = vmatprep.subr.bf16.mxu0 0
    %6154 = vmatpush1.bf16.msra.mxu0 0
    %6155 = vmatprep.subr.bf16.mxu0 0
    %6156 = vmatpush1.bf16.msra.mxu0 0
    %6157 = vmatprep.subr.bf16.mxu0 0
    %6158 = vmatpush1.bf16.msra.mxu0 0
    %6159 = vmatprep.subr.bf16.mxu0 0
    %6160 = vmatpush1.bf16.msra.mxu0 0
    %6161 = vmatprep.subr.bf16.mxu0 0
    %6162 = vmatpush1.bf16.msra.mxu0 0
    %6163 = vmatprep.subr.bf16.mxu0 0
    %6164 = vmatpush1.bf16.msra.mxu0 0
    %6165 = vmatprep.subr.bf16.mxu0 0
    %6166 = vmatpush1.bf16.msra.mxu0 0
    %6167 = vmatprep.subr.bf16.mxu0 0
    %6168 = vmatpush1.bf16.msra.mxu0 0
    %6169 = vmatprep.mubr.bf16.mxu0 0
    %6170 = vmatmul.mubr.bf16.gmra.mrb[0].mxu0 %v6135
    %v6171 = vpop.f32.mrb[0].mxu0
    %v6172 = vadd.f32 0.0, %v6171
    %v6173 = vpop.f32.mrb[0].mxu0
    %v6174 = vpop.f32.mrb[0].mxu0
    %v6175 = vpop.f32.mrb[0].mxu0
    %6176 = vdwg.mxu0
    %v6178 = vsel %vm5877, %v6125, 0
    %6180 = vmatprep.subr.bf16.mxu0 0
    %6181 = vmatpush1.bf16.msra.mxu0 %v5954
    %6182 = vmatprep.subr.bf16.mxu0 0
    %6183 = vmatpush1.bf16.msra.mxu0 %v5955
    %6184 = vmatprep.subr.bf16.mxu0 0
    %6185 = vmatpush1.bf16.msra.mxu0 %v5956
    %6186 = vmatprep.subr.bf16.mxu0 0
    %6187 = vmatpush1.bf16.msra.mxu0 %v5957
    %6188 = vmatprep.subr.bf16.mxu0 0
    %6189 = vmatpush1.bf16.msra.mxu0 %v5958
    %6190 = vmatprep.subr.bf16.mxu0 0
    %6191 = vmatpush1.bf16.msra.mxu0 %v5959
    %6192 = vmatprep.subr.bf16.mxu0 0
    %6193 = vmatpush1.bf16.msra.mxu0 %v5960
    %6194 = vmatprep.subr.bf16.mxu0 0
    %6195 = vmatpush1.bf16.msra.mxu0 %v5973
    %6196 = vmatprep.subr.bf16.mxu0 0
    %6197 = vmatpush1.bf16.msra.mxu0 0
    %6198 = vmatprep.subr.bf16.mxu0 0
    %6199 = vmatpush1.bf16.msra.mxu0 0
    %6200 = vmatprep.subr.bf16.mxu0 0
    %6201 = vmatpush1.bf16.msra.mxu0 0
    %6202 = vmatprep.subr.bf16.mxu0 0
    %6203 = vmatpush1.bf16.msra.mxu0 0
    %6204 = vmatprep.subr.bf16.mxu0 0
    %6205 = vmatpush1.bf16.msra.mxu0 0
    %6206 = vmatprep.subr.bf16.mxu0 0
    %6207 = vmatpush1.bf16.msra.mxu0 0
    %6208 = vmatprep.subr.bf16.mxu0 0
    %6209 = vmatpush1.bf16.msra.mxu0 0
    %6210 = vmatprep.subr.bf16.mxu0 0
    %6211 = vmatpush1.bf16.msra.mxu0 0
    %6212 = vmatprep.mubr.bf16.mxu0 0
    %6213 = vmatmul.mubr.bf16.gmra.mrb[0].mxu0 %v6178
    %v6214 = vpop.f32.mrb[0].mxu0
    %v6215 = vadd.f32 %v6172, %v6214
    %v6216 = vpop.f32.mrb[0].mxu0
    %v6217 = vpop.f32.mrb[0].mxu0
    %v6218 = vpop.f32.mrb[0].mxu0
    %6219 = vdwg.mxu0
    %v6221 = vrot.slane %v6126, 1
    %v6223 = vsel %vm5877, %v6221, 0
    %6225 = vmatprep.subr.bf16.mxu0 0
    %6226 = vmatpush1.bf16.msra.mxu0 %v6063
    %6227 = vmatprep.subr.bf16.mxu0 0
    %6228 = vmatpush1.bf16.msra.mxu0 %v6064
    %6229 = vmatprep.subr.bf16.mxu0 0
    %6230 = vmatpush1.bf16.msra.mxu0 %v6065
    %6231 = vmatprep.subr.bf16.mxu0 0
    %6232 = vmatpush1.bf16.msra.mxu0 %v6066
    %6233 = vmatprep.subr.bf16.mxu0 0
    %6234 = vmatpush1.bf16.msra.mxu0 %v6067
    %6235 = vmatprep.subr.bf16.mxu0 0
    %6236 = vmatpush1.bf16.msra.mxu0 %v6068
    %6237 = vmatprep.subr.bf16.mxu0 0
    %6238 = vmatpush1.bf16.msra.mxu0 %v6069
    %6239 = vmatprep.subr.bf16.mxu0 0
    %6240 = vmatpush1.bf16.msra.mxu0 %v6082
    %6241 = vmatprep.subr.bf16.mxu0 0
    %6242 = vmatpush1.bf16.msra.mxu0 0
    %6243 = vmatprep.subr.bf16.mxu0 0
    %6244 = vmatpush1.bf16.msra.mxu0 0
    %6245 = vmatprep.subr.bf16.mxu0 0
    %6246 = vmatpush1.bf16.msra.mxu0 0
    %6247 = vmatprep.subr.bf16.mxu0 0
    %6248 = vmatpush1.bf16.msra.mxu0 0
    %6249 = vmatprep.subr.bf16.mxu0 0
    %6250 = vmatpush1.bf16.msra.mxu0 0
    %6251 = vmatprep.subr.bf16.mxu0 0
    %6252 = vmatpush1.bf16.msra.mxu0 0
    %6253 = vmatprep.subr.bf16.mxu0 0
    %6254 = vmatpush1.bf16.msra.mxu0 0
    %6255 = vmatprep.subr.bf16.mxu0 0
    %6256 = vmatpush1.bf16.msra.mxu0 0
    %6257 = vmatprep.mubr.bf16.mxu0 0
    %6258 = vmatmul.mubr.bf16.gmra.mrb[0].mxu0 %v6223
    %v6259 = vpop.f32.mrb[0].mxu0
    %v6260 = vadd.f32 0.0, %v6259
    %v6261 = vpop.f32.mrb[0].mxu0
    %v6262 = vpop.f32.mrb[0].mxu0
    %v6263 = vpop.f32.mrb[0].mxu0
    %6264 = vdwg.mxu0
    %v6265 = vadd.f32 %v6215, %v6260
    %v6266 = vrot.slane %v6124, 4
    %v6267 = vadd.f32 %v6124, %v6266
    %v6268 = vrot.slane %v6267, 2
    %v6269 = vadd.f32 %v6267, %v6268
    %v6270 = vrot.slane %v6269, 1
    %v6271 = vadd.f32 %v6269, %v6270
    %v6272 = vadd.f32 %v6271, 0.0
    %v6273 = vmul.f32 %v6124, %v6124
    %v6274 = vrot.slane %v6273, 4
    %v6275 = vadd.f32 %v6273, %v6274
    %v6276 = vrot.slane %v6275, 2
    %v6277 = vadd.f32 %v6275, %v6276
    %v6278 = vrot.slane %v6277, 1
    %v6279 = vadd.f32 %v6277, %v6278
    %v6280 = vadd.f32 %v6279, 0.0
    %v6281 = vrot.slane %v6265, 4
    %v6282 = vadd.f32 %v6265, %v6281
    %v6283 = vrot.slane %v6282, 2
    %v6284 = vadd.f32 %v6282, %v6283
    %v6285 = vrot.slane %v6284, 1
    %v6286 = vadd.f32 %v6284, %v6285
    %v6287 = vadd.f32 %v6272, %v6286
    %v6288 = vmul.f32 %v6265, %v6265
    %v6289 = vrot.slane %v6288, 4
    %v6290 = vadd.f32 %v6288, %v6289
    %v6291 = vrot.slane %v6290, 2
    %v6292 = vadd.f32 %v6290, %v6291
    %v6293 = vrot.slane %v6292, 1
    %v6294 = vadd.f32 %v6292, %v6293
    %v6295 = vadd.f32 %v6280, %v6294
    %v6296 = vld [vmem:[%s14] sm:$0xff]
    %v6297 = vld [vmem:[%s14 + $0x8] sm:$0xff]
    %v6298 = vld [vmem:[%s14 + $0x10] sm:$0xff]
    %v6299 = vld [vmem:[%s14 + $0x18] sm:$0xff]
    %v6300 = vld [vmem:[%s14 + $0x20] sm:$0xff]
    %v6301 = vld [vmem:[%s14 + $0x28] sm:$0xff]
    %v6302 = vld [vmem:[%s14 + $0x30] sm:$0xff]
    %v6303 = vld [vmem:[%s14 + $0x38] sm:$0xff]
    %v6304 = vld [vmem:[%s14 + $0x40] sm:$0xff]
    %v6305 = vld [vmem:[%s14 + $0x48] sm:$0xff]
    %v6306 = vld [vmem:[%s14 + $0x50] sm:$0xff]
    %v6307 = vld [vmem:[%s14 + $0x58] sm:$0xff]
    %v6308 = vld [vmem:[%s14 + $0x60] sm:$0xff]
    %v6309 = vld [vmem:[%s14 + $0x68] sm:$0xff]
    %v6310 = vld [vmem:[%s14 + $0x70] sm:$0xff]
    %v6311 = vld [vmem:[%s14 + $0x78] sm:$0xff]
    %v6312 = vld [vmem:[#allocation14] sm:$0xff]
    %v6313 = vld [vmem:[#allocation14 + $0x8] sm:$0xff]
    %6314 = vmatprep.subr.mxu0 0.0
    %6315 = vmatpush1.msra.mxu0 %v6296
    %6316 = vmatprep.subr.mxu0 0.0
    %6317 = vmatpush1.msra.mxu0 %v6297
    %6318 = vmatprep.subr.mxu0 0.0
    %6319 = vmatpush1.msra.mxu0 %v6298
    %6320 = vmatprep.subr.mxu0 0.0
    %6321 = vmatpush1.msra.mxu0 %v6299
    %6322 = vmatprep.subr.mxu0 0.0
    %6323 = vmatpush1.msra.mxu0 %v6300
    %6324 = vmatprep.subr.mxu0 0.0
    %6325 = vmatpush1.msra.mxu0 %v6301
    %6326 = vmatprep.subr.mxu0 0.0
    %6327 = vmatpush1.msra.mxu0 %v6302
    %6328 = vmatprep.subr.mxu0 0.0
    %6329 = vmatpush1.msra.mxu0 %v6303
    %6330 = vmatprep.subr.mxu0 0.0
    %6331 = vmatpush1.msra.mxu0 %v6304
    %6332 = vmatprep.subr.mxu0 0.0
    %6333 = vmatpush1.msra.mxu0 %v6305
    %6334 = vmatprep.subr.mxu0 0.0
    %6335 = vmatpush1.msra.mxu0 %v6306
    %6336 = vmatprep.subr.mxu0 0.0
    %6337 = vmatpush1.msra.mxu0 %v6307
    %6338 = vmatprep.subr.mxu0 0.0
    %6339 = vmatpush1.msra.mxu0 %v6308
    %6340 = vmatprep.subr.mxu0 0.0
    %6341 = vmatpush1.msra.mxu0 %v6309
    %6342 = vmatprep.subr.mxu0 0.0
    %6343 = vmatpush1.msra.mxu0 %v6310
    %6344 = vmatprep.subr.mxu0 0.0
    %6345 = vmatpush1.msra.mxu0 %v6311
    %6346 = vmatprep.subr.mxu0 0.0
    %6347 = vmatpush1.msra.mxu0 0.0
    %6348 = vmatprep.subr.mxu0 0.0
    %6349 = vmatpush1.msra.mxu0 0.0
    %6350 = vmatprep.subr.mxu0 0.0
    %6351 = vmatpush1.msra.mxu0 0.0
    %6352 = vmatprep.subr.mxu0 0.0
    %6353 = vmatpush1.msra.mxu0 0.0
    %6354 = vmatprep.subr.mxu0 0.0
    %6355 = vmatpush1.msra.mxu0 0.0
    %6356 = vmatprep.subr.mxu0 0.0
    %6357 = vmatpush1.msra.mxu0 0.0
    %6358 = vmatprep.subr.mxu0 0.0
    %6359 = vmatpush1.msra.mxu0 0.0
    %6360 = vmatprep.subr.mxu0 0.0
    %6361 = vmatpush1.msra.mxu0 0.0
    %6362 = vmatprep.subr.mxu0 0.0
    %6363 = vmatpush1.msra.mxu0 0.0
    %6364 = vmatprep.subr.mxu0 0.0
    %6365 = vmatpush1.msra.mxu0 0.0
    %6366 = vmatprep.subr.mxu0 0.0
    %6367 = vmatpush1.msra.mxu0 0.0
    %6368 = vmatprep.subr.mxu0 0.0
    %6369 = vmatpush1.msra.mxu0 0.0
    %6370 = vmatprep.subr.mxu0 0.0
    %6371 = vmatpush1.msra.mxu0 0.0
    %6372 = vmatprep.subr.mxu0 0.0
    %6373 = vmatpush1.msra.mxu0 0.0
    %6374 = vmatprep.subr.mxu0 0.0
    %6375 = vmatpush1.msra.mxu0 0.0
    %6376 = vmatprep.subr.mxu0 0.0
    %6377 = vmatpush1.msra.mxu0 0.0
    %6378 = vmatprep.mubr.f32.mxu0 0.0
    %6379 = vmatmul.mubr.f32.gmra.mrb[0].mxu0 %v6287
    %v6380 = vpop.f32.mrb[0].mxu0
    %v6381 = vadd.f32 0.0, %v6380
    %v6382 = vpop.f32.mrb[0].mxu0
    %6383 = vdwg.mxu0
    %v6384 = vmul.f32 %v6381, 0.0078125
    %6385 = vmatprep.subr.mxu0 0.0
    %6386 = vmatpush1.msra.mxu0 %v6296
    %6387 = vmatprep.subr.mxu0 0.0
    %6388 = vmatpush1.msra.mxu0 %v6297
    %6389 = vmatprep.subr.mxu0 0.0
    %6390 = vmatpush1.msra.mxu0 %v6298
    %6391 = vmatprep.subr.mxu0 0.0
    %6392 = vmatpush1.msra.mxu0 %v6299
    %6393 = vmatprep.subr.mxu0 0.0
    %6394 = vmatpush1.msra.mxu0 %v6300
    %6395 = vmatprep.subr.mxu0 0.0
    %6396 = vmatpush1.msra.mxu0 %v6301
    %6397 = vmatprep.subr.mxu0 0.0
    %6398 = vmatpush1.msra.mxu0 %v6302
    %6399 = vmatprep.subr.mxu0 0.0
    %6400 = vmatpush1.msra.mxu0 %v6303
    %6401 = vmatprep.subr.mxu0 0.0
    %6402 = vmatpush1.msra.mxu0 %v6304
    %6403 = vmatprep.subr.mxu0 0.0
    %6404 = vmatpush1.msra.mxu0 %v6305
    %6405 = vmatprep.subr.mxu0 0.0
    %6406 = vmatpush1.msra.mxu0 %v6306
    %6407 = vmatprep.subr.mxu0 0.0
    %6408 = vmatpush1.msra.mxu0 %v6307
    %6409 = vmatprep.subr.mxu0 0.0
    %6410 = vmatpush1.msra.mxu0 %v6308
    %6411 = vmatprep.subr.mxu0 0.0
    %6412 = vmatpush1.msra.mxu0 %v6309
    %6413 = vmatprep.subr.mxu0 0.0
    %6414 = vmatpush1.msra.mxu0 %v6310
    %6415 = vmatprep.subr.mxu0 0.0
    %6416 = vmatpush1.msra.mxu0 %v6311
    %6417 = vmatprep.subr.mxu0 0.0
    %6418 = vmatpush1.msra.mxu0 0.0
    %6419 = vmatprep.subr.mxu0 0.0
    %6420 = vmatpush1.msra.mxu0 0.0
    %6421 = vmatprep.subr.mxu0 0.0
    %6422 = vmatpush1.msra.mxu0 0.0
    %6423 = vmatprep.subr.mxu0 0.0
    %6424 = vmatpush1.msra.mxu0 0.0
    %6425 = vmatprep.subr.mxu0 0.0
    %6426 = vmatpush1.msra.mxu0 0.0
    %6427 = vmatprep.subr.mxu0 0.0
    %6428 = vmatpush1.msra.mxu0 0.0
    %6429 = vmatprep.subr.mxu0 0.0
    %6430 = vmatpush1.msra.mxu0 0.0
    %6431 = vmatprep.subr.mxu0 0.0
    %6432 = vmatpush1.msra.mxu0 0.0
    %6433 = vmatprep.subr.mxu0 0.0
    %6434 = vmatpush1.msra.mxu0 0.0
    %6435 = vmatprep.subr.mxu0 0.0
    %6436 = vmatpush1.msra.mxu0 0.0
    %6437 = vmatprep.subr.mxu0 0.0
    %6438 = vmatpush1.msra.mxu0 0.0
    %6439 = vmatprep.subr.mxu0 0.0
    %6440 = vmatpush1.msra.mxu0 0.0
    %6441 = vmatprep.subr.mxu0 0.0
    %6442 = vmatpush1.msra.mxu0 0.0
    %6443 = vmatprep.subr.mxu0 0.0
    %6444 = vmatpush1.msra.mxu0 0.0
    %6445 = vmatprep.subr.mxu0 0.0
    %6446 = vmatpush1.msra.mxu0 0.0
    %6447 = vmatprep.subr.mxu0 0.0
    %6448 = vmatpush1.msra.mxu0 0.0
    %6449 = vmatprep.mubr.f32.mxu0 0.0
    %6450 = vmatmul.mubr.f32.gmra.mrb[0].mxu0 %v6295
    %v6451 = vpop.f32.mrb[0].mxu0
    %v6452 = vadd.f32 0.0, %v6451
    %v6453 = vpop.f32.mrb[0].mxu0
    %6454 = vdwg.mxu0
    %v6455 = vmul.f32 %v6452, 0.0078125
    %v6456 = vmul.f32 %v6384, %v6384
    %v6457 = vsub.f32 %v6455, %v6456
    %v6459 = vsel %vm521, %v6384, 0
    %6461 = vmatprep.subr.mxu0 0.0
    %6462 = vmatpush1.msra.mxu0 %v6312
    %6463 = vmatprep.subr.mxu0 0.0
    %6464 = vmatpush1.msra.mxu0 %v6313
    %6465 = vmatprep.subr.mxu0 0.0
    %6466 = vmatpush1.msra.mxu0 0.0
    %6467 = vmatprep.subr.mxu0 0.0
    %6468 = vmatpush1.msra.mxu0 0.0
    %6469 = vmatprep.subr.mxu0 0.0
    %6470 = vmatpush1.msra.mxu0 0.0
    %6471 = vmatprep.subr.mxu0 0.0
    %6472 = vmatpush1.msra.mxu0 0.0
    %6473 = vmatprep.subr.mxu0 0.0
    %6474 = vmatpush1.msra.mxu0 0.0
    %6475 = vmatprep.subr.mxu0 0.0
    %6476 = vmatpush1.msra.mxu0 0.0
    %6477 = vmatprep.subr.mxu0 0.0
    %6478 = vmatpush1.msra.mxu0 0.0
    %6479 = vmatprep.subr.mxu0 0.0
    %6480 = vmatpush1.msra.mxu0 0.0
    %6481 = vmatprep.subr.mxu0 0.0
    %6482 = vmatpush1.msra.mxu0 0.0
    %6483 = vmatprep.subr.mxu0 0.0
    %6484 = vmatpush1.msra.mxu0 0.0
    %6485 = vmatprep.subr.mxu0 0.0
    %6486 = vmatpush1.msra.mxu0 0.0
    %6487 = vmatprep.subr.mxu0 0.0
    %6488 = vmatpush1.msra.mxu0 0.0
    %6489 = vmatprep.subr.mxu0 0.0
    %6490 = vmatpush1.msra.mxu0 0.0
    %6491 = vmatprep.subr.mxu0 0.0
    %6492 = vmatpush1.msra.mxu0 0.0
    %6493 = vmatprep.subr.mxu0 0.0
    %6494 = vmatpush1.msra.mxu0 0.0
    %6495 = vmatprep.subr.mxu0 0.0
    %6496 = vmatpush1.msra.mxu0 0.0
    %6497 = vmatprep.subr.mxu0 0.0
    %6498 = vmatpush1.msra.mxu0 0.0
    %6499 = vmatprep.subr.mxu0 0.0
    %6500 = vmatpush1.msra.mxu0 0.0
    %6501 = vmatprep.subr.mxu0 0.0
    %6502 = vmatpush1.msra.mxu0 0.0
    %6503 = vmatprep.subr.mxu0 0.0
    %6504 = vmatpush1.msra.mxu0 0.0
    %6505 = vmatprep.subr.mxu0 0.0
    %6506 = vmatpush1.msra.mxu0 0.0
    %6507 = vmatprep.subr.mxu0 0.0
    %6508 = vmatpush1.msra.mxu0 0.0
    %6509 = vmatprep.subr.mxu0 0.0
    %6510 = vmatpush1.msra.mxu0 0.0
    %6511 = vmatprep.subr.mxu0 0.0
    %6512 = vmatpush1.msra.mxu0 0.0
    %6513 = vmatprep.subr.mxu0 0.0
    %6514 = vmatpush1.msra.mxu0 0.0
    %6515 = vmatprep.subr.mxu0 0.0
    %6516 = vmatpush1.msra.mxu0 0.0
    %6517 = vmatprep.subr.mxu0 0.0
    %6518 = vmatpush1.msra.mxu0 0.0
    %6519 = vmatprep.subr.mxu0 0.0
    %6520 = vmatpush1.msra.mxu0 0.0
    %6521 = vmatprep.subr.mxu0 0.0
    %6522 = vmatpush1.msra.mxu0 0.0
    %6523 = vmatprep.subr.mxu0 0.0
    %6524 = vmatpush1.msra.mxu0 0.0
    %6525 = vmatprep.mubr.f32.mxu0 0.0
    %6526 = vmatmul.mubr.f32.gmra.mrb[0].mxu0 %v6459
    %v6527 = vpop.f32.mrb[0].mxu0
    %v6528 = vadd.f32 0.0, %v6527
    %v6529 = vpop.f32.mrb[0].mxu0
    %6530 = vdwg.mxu0
    %v6531 = vld [vmem:[%s16] sm:$0x3]
    %v6533 = vsel %vm521, %v6457, 0
    %6535 = vmatprep.subr.mxu0 0.0
    %6536 = vmatpush1.msra.mxu0 %v6312
    %6537 = vmatprep.subr.mxu0 0.0
    %6538 = vmatpush1.msra.mxu0 %v6313
    %6539 = vmatprep.subr.mxu0 0.0
    %6540 = vmatpush1.msra.mxu0 0.0
    %6541 = vmatprep.subr.mxu0 0.0
    %6542 = vmatpush1.msra.mxu0 0.0
    %6543 = vmatprep.subr.mxu0 0.0
    %6544 = vmatpush1.msra.mxu0 0.0
    %6545 = vmatprep.subr.mxu0 0.0
    %6546 = vmatpush1.msra.mxu0 0.0
    %6547 = vmatprep.subr.mxu0 0.0
    %6548 = vmatpush1.msra.mxu0 0.0
    %6549 = vmatprep.subr.mxu0 0.0
    %6550 = vmatpush1.msra.mxu0 0.0
    %6551 = vmatprep.subr.mxu0 0.0
    %6552 = vmatpush1.msra.mxu0 0.0
    %6553 = vmatprep.subr.mxu0 0.0
    %6554 = vmatpush1.msra.mxu0 0.0
    %6555 = vmatprep.subr.mxu0 0.0
    %6556 = vmatpush1.msra.mxu0 0.0
    %6557 = vmatprep.subr.mxu0 0.0
    %6558 = vmatpush1.msra.mxu0 0.0
    %6559 = vmatprep.subr.mxu0 0.0
    %6560 = vmatpush1.msra.mxu0 0.0
    %6561 = vmatprep.subr.mxu0 0.0
    %6562 = vmatpush1.msra.mxu0 0.0
    %6563 = vmatprep.subr.mxu0 0.0
    %6564 = vmatpush1.msra.mxu0 0.0
    %6565 = vmatprep.subr.mxu0 0.0
    %6566 = vmatpush1.msra.mxu0 0.0
    %6567 = vmatprep.subr.mxu0 0.0
    %6568 = vmatpush1.msra.mxu0 0.0
    %6569 = vmatprep.subr.mxu0 0.0
    %6570 = vmatpush1.msra.mxu0 0.0
    %6571 = vmatprep.subr.mxu0 0.0
    %6572 = vmatpush1.msra.mxu0 0.0
    %6573 = vmatprep.subr.mxu0 0.0
    %6574 = vmatpush1.msra.mxu0 0.0
    %6575 = vmatprep.subr.mxu0 0.0
    %6576 = vmatpush1.msra.mxu0 0.0
    %6577 = vmatprep.subr.mxu0 0.0
    %6578 = vmatpush1.msra.mxu0 0.0
    %6579 = vmatprep.subr.mxu0 0.0
    %6580 = vmatpush1.msra.mxu0 0.0
    %6581 = vmatprep.subr.mxu0 0.0
    %6582 = vmatpush1.msra.mxu0 0.0
    %6583 = vmatprep.subr.mxu0 0.0
    %6584 = vmatpush1.msra.mxu0 0.0
    %6585 = vmatprep.subr.mxu0 0.0
    %6586 = vmatpush1.msra.mxu0 0.0
    %6587 = vmatprep.subr.mxu0 0.0
    %6588 = vmatpush1.msra.mxu0 0.0
    %6589 = vmatprep.subr.mxu0 0.0
    %6590 = vmatpush1.msra.mxu0 0.0
    %6591 = vmatprep.subr.mxu0 0.0
    %6592 = vmatpush1.msra.mxu0 0.0
    %6593 = vmatprep.subr.mxu0 0.0
    %6594 = vmatpush1.msra.mxu0 0.0
    %6595 = vmatprep.subr.mxu0 0.0
    %6596 = vmatpush1.msra.mxu0 0.0
    %6597 = vmatprep.subr.mxu0 0.0
    %6598 = vmatpush1.msra.mxu0 0.0
    %6599 = vmatprep.mubr.f32.mxu0 0.0
    %6600 = vmatmul.mubr.f32.gmra.mrb[0].mxu0 %v6533
    %v6601 = vpop.f32.mrb[0].mxu0
    %v6602 = vadd.f32 1e-05, %v6601
    %v6603 = vpop.f32.mrb[0].mxu0
    %6604 = vdwg.mxu0
    %v6605 = vrsqrt.pop %v6602
    %v6606 = vmul.f32 %v6531, %v6605
    %v6607 = vmul.f32 %v6528, %v6606
    %v6609 = vrot.slane %v6607, 7
    %v6611 = vsub.f32 %v6531, %v6609
    %v6612 = vld [vmem:[#allocation15] sm:$0xf]
    %v6613 = vld [vmem:[%s18] sm:$0xff]
    %v6614 = vld [vmem:[%s18 + $0x8] sm:$0xff]
    %v6615 = vld [vmem:[%s18 + $0x10] sm:$0xff]
    %v6616 = vld [vmem:[%s18 + $0x18] sm:$0xff]
    %v6617 = vld [vmem:[%s18 + $0x20] sm:$0xff]
    %v6618 = vld [vmem:[%s18 + $0x28] sm:$0xff]
    %v6619 = vld [vmem:[%s18 + $0x30] sm:$0xff]
    %v6620 = vld [vmem:[%s18 + $0x38] sm:$0xff]
    %v6621 = vld [vmem:[%s18 + $0x40] sm:$0xff]
    %v6622 = vld [vmem:[%s18 + $0x48] sm:$0xff]
    %v6623 = vld [vmem:[%s18 + $0x50] sm:$0xff]
    %v6624 = vld [vmem:[%s18 + $0x58] sm:$0xff]
    %v6625 = vld [vmem:[%s18 + $0x60] sm:$0xff]
    %v6626 = vld [vmem:[%s18 + $0x68] sm:$0xff]
    %v6627 = vlaneseq
    %v6628 = vshrl.u32 %v6627, 7
    %v6629 = vsub.s32 0, %v6628
    %v6630 = vrot.slane %v6606, %v6629
    %v6631 = vmul.f32 %v6124, %v6630
    %v6632 = vlaneseq
    %v6633 = vshrl.u32 %v6632, 7
    %v6634 = vsub.s32 1, %v6633
    %v6635 = vrot.slane %v6611, %v6634
    %v6636 = vadd.f32 %v6631, %v6635
    %v6638 = vrot.slane %v6636, 1
    %v6640 = vmax.f32 %v6636, %v6638
    %6642 = vrot.lane.b32.xlu0 %v6640, 112
    %v6643 = vpop.permute.xlu0 %6642
    %v6645 = vmax.f32 %v6640, %v6643
    %v6646 = vmax.f32 %v6645, 0.0
    %vm6647 = vcmask 56320
    %v6649 = vsel %vm6647, %v6612, 0
    %v6652 = vsel %vm2821, %v6646, 0
    %6654 = vmatprep.subr.mxu0 0.0
    %6655 = vmatpush1.msra.mxu0 %v6652
    %6656 = vmatprep.subr.mxu0 0.0
    %6657 = vmatpush1.msra.mxu0 0.0
    %6658 = vmatprep.subr.mxu0 0.0
    %6659 = vmatpush1.msra.mxu0 0.0
    %6660 = vmatprep.subr.mxu0 0.0
    %6661 = vmatpush1.msra.mxu0 0.0
    %6662 = vmatprep.subr.mxu0 0.0
    %6663 = vmatpush1.msra.mxu0 0.0
    %6664 = vmatprep.subr.mxu0 0.0
    %6665 = vmatpush1.msra.mxu0 0.0
    %6666 = vmatprep.subr.mxu0 0.0
    %6667 = vmatpush1.msra.mxu0 0.0
    %6668 = vmatprep.subr.mxu0 0.0
    %6669 = vmatpush1.msra.mxu0 0.0
    %6670 = vmatprep.subr.mxu0 0.0
    %6671 = vmatpush1.msra.mxu0 0.0
    %6672 = vmatprep.subr.mxu0 0.0
    %6673 = vmatpush1.msra.mxu0 0.0
    %6674 = vmatprep.subr.mxu0 0.0
    %6675 = vmatpush1.msra.mxu0 0.0
    %6676 = vmatprep.subr.mxu0 0.0
    %6677 = vmatpush1.msra.mxu0 0.0
    %6678 = vmatprep.subr.mxu0 0.0
    %6679 = vmatpush1.msra.mxu0 0.0
    %6680 = vmatprep.subr.mxu0 0.0
    %6681 = vmatpush1.msra.mxu0 0.0
    %6682 = vmatprep.subr.mxu0 0.0
    %6683 = vmatpush1.msra.mxu0 0.0
    %6684 = vmatprep.subr.mxu0 0.0
    %6685 = vmatpush1.msra.mxu0 0.0
    %6686 = vmatprep.subr.mxu0 0.0
    %6687 = vmatpush1.msra.mxu0 0.0
    %6688 = vmatprep.subr.mxu0 0.0
    %6689 = vmatpush1.msra.mxu0 0.0
    %6690 = vmatprep.subr.mxu0 0.0
    %6691 = vmatpush1.msra.mxu0 0.0
    %6692 = vmatprep.subr.mxu0 0.0
    %6693 = vmatpush1.msra.mxu0 0.0
    %6694 = vmatprep.subr.mxu0 0.0
    %6695 = vmatpush1.msra.mxu0 0.0
    %6696 = vmatprep.subr.mxu0 0.0
    %6697 = vmatpush1.msra.mxu0 0.0
    %6698 = vmatprep.subr.mxu0 0.0
    %6699 = vmatpush1.msra.mxu0 0.0
    %6700 = vmatprep.subr.mxu0 0.0
    %6701 = vmatpush1.msra.mxu0 0.0
    %6702 = vmatprep.subr.mxu0 0.0
    %6703 = vmatpush1.msra.mxu0 0.0
    %6704 = vmatprep.subr.mxu0 0.0
    %6705 = vmatpush1.msra.mxu0 0.0
    %6706 = vmatprep.subr.mxu0 0.0
    %6707 = vmatpush1.msra.mxu0 0.0
    %6708 = vmatprep.subr.mxu0 0.0
    %6709 = vmatpush1.msra.mxu0 0.0
    %6710 = vmatprep.subr.mxu0 0.0
    %6711 = vmatpush1.msra.mxu0 0.0
    %6712 = vmatprep.subr.mxu0 0.0
    %6713 = vmatpush1.msra.mxu0 0.0
    %6714 = vmatprep.subr.mxu0 0.0
    %6715 = vmatpush1.msra.mxu0 0.0
    %6716 = vmatprep.subr.mxu0 0.0
    %6717 = vmatpush1.msra.mxu0 0.0
    %6718 = vmatprep.mubr.f32.mxu0 0.0
    %6719 = vmatmul.mubr.f32.gmra.mrb[0].mxu0 %v6649
    %v6720 = vpop.f32.mrb[0].mxu0
    %v6721 = vadd.f32 0.0, %v6720
    %v6722 = vpop.f32.mrb[0].mxu0
    %6723 = vdwg.mxu0
    %v6725 = vsel %vm5467, %v6721, 0
    %6727 = vmatprep.subr.mxu0 0.0
    %6728 = vmatpush1.msra.mxu0 %v6613
    %6729 = vmatprep.subr.mxu0 0.0
    %6730 = vmatpush1.msra.mxu0 %v6614
    %6731 = vmatprep.subr.mxu0 0.0
    %6732 = vmatpush1.msra.mxu0 %v6615
    %6733 = vmatprep.subr.mxu0 0.0
    %6734 = vmatpush1.msra.mxu0 %v6616
    %6735 = vmatprep.subr.mxu0 0.0
    %6736 = vmatpush1.msra.mxu0 %v6617
    %6737 = vmatprep.subr.mxu0 0.0
    %6738 = vmatpush1.msra.mxu0 %v6618
    %6739 = vmatprep.subr.mxu0 0.0
    %6740 = vmatpush1.msra.mxu0 %v6619
    %6741 = vmatprep.subr.mxu0 0.0
    %6742 = vmatpush1.msra.mxu0 %v6620
    %6743 = vmatprep.subr.mxu0 0.0
    %6744 = vmatpush1.msra.mxu0 %v6621
    %6745 = vmatprep.subr.mxu0 0.0
    %6746 = vmatpush1.msra.mxu0 %v6622
    %6747 = vmatprep.subr.mxu0 0.0
    %6748 = vmatpush1.msra.mxu0 %v6623
    %6749 = vmatprep.subr.mxu0 0.0
    %6750 = vmatpush1.msra.mxu0 %v6624
    %6751 = vmatprep.subr.mxu0 0.0
    %6752 = vmatpush1.msra.mxu0 %v6625
    %6753 = vmatprep.subr.mxu0 0.0
    %6754 = vmatpush1.msra.mxu0 %v6626
    %6755 = vmatprep.subr.mxu0 0.0
    %6756 = vmatpush1.msra.mxu0 0.0
    %6757 = vmatprep.subr.mxu0 0.0
    %6758 = vmatpush1.msra.mxu0 0.0
    %6759 = vmatprep.subr.mxu0 0.0
    %6760 = vmatpush1.msra.mxu0 0.0
    %6761 = vmatprep.subr.mxu0 0.0
    %6762 = vmatpush1.msra.mxu0 0.0
    %6763 = vmatprep.subr.mxu0 0.0
    %6764 = vmatpush1.msra.mxu0 0.0
    %6765 = vmatprep.subr.mxu0 0.0
    %6766 = vmatpush1.msra.mxu0 0.0
    %6767 = vmatprep.subr.mxu0 0.0
    %6768 = vmatpush1.msra.mxu0 0.0
    %6769 = vmatprep.subr.mxu0 0.0
    %6770 = vmatpush1.msra.mxu0 0.0
    %6771 = vmatprep.subr.mxu0 0.0
    %6772 = vmatpush1.msra.mxu0 0.0
    %6773 = vmatprep.subr.mxu0 0.0
    %6774 = vmatpush1.msra.mxu0 0.0
    %6775 = vmatprep.subr.mxu0 0.0
    %6776 = vmatpush1.msra.mxu0 0.0
    %6777 = vmatprep.subr.mxu0 0.0
    %6778 = vmatpush1.msra.mxu0 0.0
    %6779 = vmatprep.subr.mxu0 0.0
    %6780 = vmatpush1.msra.mxu0 0.0
    %6781 = vmatprep.subr.mxu0 0.0
    %6782 = vmatpush1.msra.mxu0 0.0
    %6783 = vmatprep.subr.mxu0 0.0
    %6784 = vmatpush1.msra.mxu0 0.0
    %6785 = vmatprep.subr.mxu0 0.0
    %6786 = vmatpush1.msra.mxu0 0.0
    %6787 = vmatprep.subr.mxu0 0.0
    %6788 = vmatpush1.msra.mxu0 0.0
    %6789 = vmatprep.subr.mxu0 0.0
    %6790 = vmatpush1.msra.mxu0 0.0
    %6791 = vmatprep.mubr.f32.mxu0 0.0
    %6792 = vmatmul.mubr.f32.gmra.mrb[0].mxu0 %v6725
    %v6793 = vpop.f32.mrb[0].mxu0
    %v6794 = vadd.f32 0.0, %v6793
    %v6795 = vpop.f32.mrb[0].mxu0
    %6796 = vdwg.mxu0
    %v6797 = vmul.f32 %v6265, %v6630
    %v6798 = vadd.f32 %v6797, %v6635
    %v6800 = vrot.slane %v6798, 1
    %v6802 = vmax.f32 %v6798, %v6800
    %6804 = vrot.lane.b32.xlu0 %v6802, 112
    %v6805 = vpop.permute.xlu0 %6804
    %v6807 = vmax.f32 %v6802, %v6805
    %v6808 = vmax.f32 %v6807, 0.0
    %v6810 = vsel %vm2821, %v6808, 0
    %6812 = vmatprep.subr.mxu0 0.0
    %6813 = vmatpush1.msra.mxu0 %v6810
    %6814 = vmatprep.subr.mxu0 0.0
    %6815 = vmatpush1.msra.mxu0 0.0
    %6816 = vmatprep.subr.mxu0 0.0
    %6817 = vmatpush1.msra.mxu0 0.0
    %6818 = vmatprep.subr.mxu0 0.0
    %6819 = vmatpush1.msra.mxu0 0.0
    %6820 = vmatprep.subr.mxu0 0.0
    %6821 = vmatpush1.msra.mxu0 0.0
    %6822 = vmatprep.subr.mxu0 0.0
    %6823 = vmatpush1.msra.mxu0 0.0
    %6824 = vmatprep.subr.mxu0 0.0
    %6825 = vmatpush1.msra.mxu0 0.0
    %6826 = vmatprep.subr.mxu0 0.0
    %6827 = vmatpush1.msra.mxu0 0.0
    %6828 = vmatprep.subr.mxu0 0.0
    %6829 = vmatpush1.msra.mxu0 0.0
    %6830 = vmatprep.subr.mxu0 0.0
    %6831 = vmatpush1.msra.mxu0 0.0
    %6832 = vmatprep.subr.mxu0 0.0
    %6833 = vmatpush1.msra.mxu0 0.0
    %6834 = vmatprep.subr.mxu0 0.0
    %6835 = vmatpush1.msra.mxu0 0.0
    %6836 = vmatprep.subr.mxu0 0.0
    %6837 = vmatpush1.msra.mxu0 0.0
    %6838 = vmatprep.subr.mxu0 0.0
    %6839 = vmatpush1.msra.mxu0 0.0
    %6840 = vmatprep.subr.mxu0 0.0
    %6841 = vmatpush1.msra.mxu0 0.0
    %6842 = vmatprep.subr.mxu0 0.0
    %6843 = vmatpush1.msra.mxu0 0.0
    %6844 = vmatprep.subr.mxu0 0.0
    %6845 = vmatpush1.msra.mxu0 0.0
    %6846 = vmatprep.subr.mxu0 0.0
    %6847 = vmatpush1.msra.mxu0 0.0
    %6848 = vmatprep.subr.mxu0 0.0
    %6849 = vmatpush1.msra.mxu0 0.0
    %6850 = vmatprep.subr.mxu0 0.0
    %6851 = vmatpush1.msra.mxu0 0.0
    %6852 = vmatprep.subr.mxu0 0.0
    %6853 = vmatpush1.msra.mxu0 0.0
    %6854 = vmatprep.subr.mxu0 0.0
    %6855 = vmatpush1.msra.mxu0 0.0
    %6856 = vmatprep.subr.mxu0 0.0
    %6857 = vmatpush1.msra.mxu0 0.0
    %6858 = vmatprep.subr.mxu0 0.0
    %6859 = vmatpush1.msra.mxu0 0.0
    %6860 = vmatprep.subr.mxu0 0.0
    %6861 = vmatpush1.msra.mxu0 0.0
    %6862 = vmatprep.subr.mxu0 0.0
    %6863 = vmatpush1.msra.mxu0 0.0
    %6864 = vmatprep.subr.mxu0 0.0
    %6865 = vmatpush1.msra.mxu0 0.0
    %6866 = vmatprep.subr.mxu0 0.0
    %6867 = vmatpush1.msra.mxu0 0.0
    %6868 = vmatprep.subr.mxu0 0.0
    %6869 = vmatpush1.msra.mxu0 0.0
    %6870 = vmatprep.subr.mxu0 0.0
    %6871 = vmatpush1.msra.mxu0 0.0
    %6872 = vmatprep.subr.mxu0 0.0
    %6873 = vmatpush1.msra.mxu0 0.0
    %6874 = vmatprep.subr.mxu0 0.0
    %6875 = vmatpush1.msra.mxu0 0.0
    %6876 = vmatprep.mubr.f32.mxu0 0.0
    %6877 = vmatmul.mubr.f32.gmra.mrb[0].mxu0 %v6649
    %v6878 = vpop.f32.mrb[0].mxu0
    %v6879 = vadd.f32 0.0, %v6878
    %v6880 = vpop.f32.mrb[0].mxu0
    %6881 = vdwg.mxu0
    %v6883 = vsel %vm5467, %v6879, 0
    %6885 = vmatprep.subr.mxu0 0.0
    %6886 = vmatpush1.msra.mxu0 %v6613
    %6887 = vmatprep.subr.mxu0 0.0
    %6888 = vmatpush1.msra.mxu0 %v6614
    %6889 = vmatprep.subr.mxu0 0.0
    %6890 = vmatpush1.msra.mxu0 %v6615
    %6891 = vmatprep.subr.mxu0 0.0
    %6892 = vmatpush1.msra.mxu0 %v6616
    %6893 = vmatprep.subr.mxu0 0.0
    %6894 = vmatpush1.msra.mxu0 %v6617
    %6895 = vmatprep.subr.mxu0 0.0
    %6896 = vmatpush1.msra.mxu0 %v6618
    %6897 = vmatprep.subr.mxu0 0.0
    %6898 = vmatpush1.msra.mxu0 %v6619
    %6899 = vmatprep.subr.mxu0 0.0
    %6900 = vmatpush1.msra.mxu0 %v6620
    %6901 = vmatprep.subr.mxu0 0.0
    %6902 = vmatpush1.msra.mxu0 %v6621
    %6903 = vmatprep.subr.mxu0 0.0
    %6904 = vmatpush1.msra.mxu0 %v6622
    %6905 = vmatprep.subr.mxu0 0.0
    %6906 = vmatpush1.msra.mxu0 %v6623
    %6907 = vmatprep.subr.mxu0 0.0
    %6908 = vmatpush1.msra.mxu0 %v6624
    %6909 = vmatprep.subr.mxu0 0.0
    %6910 = vmatpush1.msra.mxu0 %v6625
    %6911 = vmatprep.subr.mxu0 0.0
    %6912 = vmatpush1.msra.mxu0 %v6626
    %6913 = vmatprep.subr.mxu0 0.0
    %6914 = vmatpush1.msra.mxu0 0.0
    %6915 = vmatprep.subr.mxu0 0.0
    %6916 = vmatpush1.msra.mxu0 0.0
    %6917 = vmatprep.subr.mxu0 0.0
    %6918 = vmatpush1.msra.mxu0 0.0
    %6919 = vmatprep.subr.mxu0 0.0
    %6920 = vmatpush1.msra.mxu0 0.0
    %6921 = vmatprep.subr.mxu0 0.0
    %6922 = vmatpush1.msra.mxu0 0.0
    %6923 = vmatprep.subr.mxu0 0.0
    %6924 = vmatpush1.msra.mxu0 0.0
    %6925 = vmatprep.subr.mxu0 0.0
    %6926 = vmatpush1.msra.mxu0 0.0
    %6927 = vmatprep.subr.mxu0 0.0
    %6928 = vmatpush1.msra.mxu0 0.0
    %6929 = vmatprep.subr.mxu0 0.0
    %6930 = vmatpush1.msra.mxu0 0.0
    %6931 = vmatprep.subr.mxu0 0.0
    %6932 = vmatpush1.msra.mxu0 0.0
    %6933 = vmatprep.subr.mxu0 0.0
    %6934 = vmatpush1.msra.mxu0 0.0
    %6935 = vmatprep.subr.mxu0 0.0
    %6936 = vmatpush1.msra.mxu0 0.0
    %6937 = vmatprep.subr.mxu0 0.0
    %6938 = vmatpush1.msra.mxu0 0.0
    %6939 = vmatprep.subr.mxu0 0.0
    %6940 = vmatpush1.msra.mxu0 0.0
    %6941 = vmatprep.subr.mxu0 0.0
    %6942 = vmatpush1.msra.mxu0 0.0
    %6943 = vmatprep.subr.mxu0 0.0
    %6944 = vmatpush1.msra.mxu0 0.0
    %6945 = vmatprep.subr.mxu0 0.0
    %6946 = vmatpush1.msra.mxu0 0.0
    %6947 = vmatprep.subr.mxu0 0.0
    %6948 = vmatpush1.msra.mxu0 0.0
    %6949 = vmatprep.mubr.f32.mxu0 0.0
    %6950 = vmatmul.mubr.f32.gmra.mrb[0].mxu0 %v6883
    %v6951 = vpop.f32.mrb[0].mxu0
    %v6952 = vadd.f32 0.0, %v6951
    %v6953 = vpop.f32.mrb[0].mxu0
    %6954 = vdwg.mxu0
    %v6955 = vpack.c.bf16 %v6794, %v6794
    %v6956 = vld [vmem:[%s19] sm:$0xf]
    %v6957 = vld [vmem:[%s19 + $0x4] sm:$0xf]
    %v6958 = vld [vmem:[%s19 + $0x8] sm:$0xf]
    %v6959 = vld [vmem:[%s19 + $0xc] sm:$0xf]
    %v6960 = vld [vmem:[%s19 + $0x10] sm:$0xf]
    %v6961 = vld [vmem:[%s19 + $0x14] sm:$0xf]
    %v6962 = vld [vmem:[%s19 + $0x18] sm:$0xf]
    %v6963 = vld [vmem:[%s19 + $0x1c] sm:$0xf]
    %s6964 = scalar_lea.vmem %s19, 32
    %v6965 = vld [vmem:[%s6964] sm:$0xf]
    %v6966 = vld [vmem:[%s6964 + $0x4] sm:$0xf]
    %v6967 = vld [vmem:[%s6964 + $0x8] sm:$0xf]
    %v6968 = vld [vmem:[%s6964 + $0xc] sm:$0xf]
    %v6969 = vld [vmem:[%s6964 + $0x10] sm:$0xf]
    %v6970 = vld [vmem:[%s6964 + $0x14] sm:$0xf]
    %v6971 = vld [vmem:[%s6964 + $0x18] sm:$0xf]
    %v6972 = vld [vmem:[%s6964 + $0x1c] sm:$0xf]
    %v6974 = vshrl.u32 %v6955, 16
    %v6976 = vshll.u32 %v6955, 16
    %v6978 = vrot.slane %v6976, 1
    %v6979 = vor.u32 %v6974, %v6978
    %v6988 = vunpack.c.l.b16 %v6965
    %v6989 = vunpack.c.l.b16 %v6966
    %v6990 = vunpack.c.l.b16 %v6967
    %v6991 = vunpack.c.l.b16 %v6968
    %v6992 = vunpack.c.l.b16 %v6969
    %v6993 = vunpack.c.l.b16 %v6970
    %v6994 = vunpack.c.l.b16 %v6971
    %v6995 = vunpack.c.l.b16 %v6972
    %v6996 = vpack.c.b16 %v6989, %v6988
    %v6997 = vpack.c.b16 %v6991, %v6990
    %v6998 = vpack.c.b16 %v6993, %v6992
    %v6999 = vpack.c.b16 %v6995, %v6994
    %vm7004 = vcmask 523264
    %v7006 = vsel %vm7004, %v6979, 0
    %7008 = vmatprep.subr.bf16.mxu0 0
    %7009 = vmatpush1.bf16.msra.mxu0 %v6996
    %7010 = vmatprep.subr.bf16.mxu0 0
    %7011 = vmatpush1.bf16.msra.mxu0 %v6997
    %7012 = vmatprep.subr.bf16.mxu0 0
    %7013 = vmatpush1.bf16.msra.mxu0 %v6998
    %7014 = vmatprep.subr.bf16.mxu0 0
    %7015 = vmatpush1.bf16.msra.mxu0 %v6999
    %7016 = vmatprep.subr.bf16.mxu0 0
    %7017 = vmatpush1.bf16.msra.mxu0 0
    %7018 = vmatprep.subr.bf16.mxu0 0
    %7019 = vmatpush1.bf16.msra.mxu0 0
    %7020 = vmatprep.subr.bf16.mxu0 0
    %7021 = vmatpush1.bf16.msra.mxu0 0
    %7022 = vmatprep.subr.bf16.mxu0 0
    %7023 = vmatpush1.bf16.msra.mxu0 0
    %7024 = vmatprep.subr.bf16.mxu0 0
    %7025 = vmatpush1.bf16.msra.mxu0 0
    %7026 = vmatprep.subr.bf16.mxu0 0
    %7027 = vmatpush1.bf16.msra.mxu0 0
    %7028 = vmatprep.subr.bf16.mxu0 0
    %7029 = vmatpush1.bf16.msra.mxu0 0
    %7030 = vmatprep.subr.bf16.mxu0 0
    %7031 = vmatpush1.bf16.msra.mxu0 0
    %7032 = vmatprep.subr.bf16.mxu0 0
    %7033 = vmatpush1.bf16.msra.mxu0 0
    %7034 = vmatprep.subr.bf16.mxu0 0
    %7035 = vmatpush1.bf16.msra.mxu0 0
    %7036 = vmatprep.subr.bf16.mxu0 0
    %7037 = vmatpush1.bf16.msra.mxu0 0
    %7038 = vmatprep.subr.bf16.mxu0 0
    %7039 = vmatpush1.bf16.msra.mxu0 0
    %7040 = vmatprep.mubr.bf16.mxu0 0
    %7041 = vmatmul.mubr.bf16.gmra.mrb[0].mxu0 %v7006
    %v7042 = vpop.f32.mrb[0].mxu0
    %v7043 = vadd.f32 0.0, %v7042
    %v7044 = vpop.f32.mrb[0].mxu0
    %v7045 = vpop.f32.mrb[0].mxu0
    %v7046 = vpop.f32.mrb[0].mxu0
    %7047 = vdwg.mxu0
    %v7056 = vunpack.c.l.b16 %v6956
    %v7057 = vunpack.c.l.b16 %v6957
    %v7058 = vunpack.c.l.b16 %v6958
    %v7059 = vunpack.c.l.b16 %v6959
    %v7060 = vunpack.c.l.b16 %v6960
    %v7061 = vunpack.c.l.b16 %v6961
    %v7062 = vunpack.c.l.b16 %v6962
    %v7063 = vunpack.c.l.b16 %v6963
    %v7064 = vpack.c.b16 %v7057, %v7056
    %v7065 = vpack.c.b16 %v7059, %v7058
    %v7066 = vpack.c.b16 %v7061, %v7060
    %v7067 = vpack.c.b16 %v7063, %v7062
    %v7072 = vsel %vm7004, %v6955, 0
    %7074 = vmatprep.subr.bf16.mxu0 0
    %7075 = vmatpush1.bf16.msra.mxu0 %v7064
    %7076 = vmatprep.subr.bf16.mxu0 0
    %7077 = vmatpush1.bf16.msra.mxu0 %v7065
    %7078 = vmatprep.subr.bf16.mxu0 0
    %7079 = vmatpush1.bf16.msra.mxu0 %v7066
    %7080 = vmatprep.subr.bf16.mxu0 0
    %7081 = vmatpush1.bf16.msra.mxu0 %v7067
    %7082 = vmatprep.subr.bf16.mxu0 0
    %7083 = vmatpush1.bf16.msra.mxu0 0
    %7084 = vmatprep.subr.bf16.mxu0 0
    %7085 = vmatpush1.bf16.msra.mxu0 0
    %7086 = vmatprep.subr.bf16.mxu0 0
    %7087 = vmatpush1.bf16.msra.mxu0 0
    %7088 = vmatprep.subr.bf16.mxu0 0
    %7089 = vmatpush1.bf16.msra.mxu0 0
    %7090 = vmatprep.subr.bf16.mxu0 0
    %7091 = vmatpush1.bf16.msra.mxu0 0
    %7092 = vmatprep.subr.bf16.mxu0 0
    %7093 = vmatpush1.bf16.msra.mxu0 0
    %7094 = vmatprep.subr.bf16.mxu0 0
    %7095 = vmatpush1.bf16.msra.mxu0 0
    %7096 = vmatprep.subr.bf16.mxu0 0
    %7097 = vmatpush1.bf16.msra.mxu0 0
    %7098 = vmatprep.subr.bf16.mxu0 0
    %7099 = vmatpush1.bf16.msra.mxu0 0
    %7100 = vmatprep.subr.bf16.mxu0 0
    %7101 = vmatpush1.bf16.msra.mxu0 0
    %7102 = vmatprep.subr.bf16.mxu0 0
    %7103 = vmatpush1.bf16.msra.mxu0 0
    %7104 = vmatprep.subr.bf16.mxu0 0
    %7105 = vmatpush1.bf16.msra.mxu0 0
    %7106 = vmatprep.mubr.bf16.mxu0 0
    %7107 = vmatmul.mubr.bf16.gmra.mrb[0].mxu0 %v7072
    %v7108 = vpop.f32.mrb[0].mxu0
    %v7109 = vadd.f32 %v7043, %v7108
    %v7110 = vpop.f32.mrb[0].mxu0
    %v7111 = vpop.f32.mrb[0].mxu0
    %v7112 = vpop.f32.mrb[0].mxu0
    %7113 = vdwg.mxu0
    %s7114 = scalar_lea.vmem %s19, 64
    %v7115 = vld [vmem:[%s7114] sm:$0xf]
    %v7116 = vld [vmem:[%s7114 + $0x4] sm:$0xf]
    %v7117 = vld [vmem:[%s7114 + $0x8] sm:$0xf]
    %v7118 = vld [vmem:[%s7114 + $0xc] sm:$0xf]
    %v7119 = vld [vmem:[%s7114 + $0x10] sm:$0xf]
    %v7120 = vld [vmem:[%s7114 + $0x14] sm:$0xf]
    %v7121 = vld [vmem:[%s7114 + $0x18] sm:$0xf]
    %v7122 = vld [vmem:[%s7114 + $0x1c] sm:$0xf]
    %v7124 = vrot.slane %v6955, 1
    %v7133 = vunpack.c.l.b16 %v7115
    %v7134 = vunpack.c.l.b16 %v7116
    %v7135 = vunpack.c.l.b16 %v7117
    %v7136 = vunpack.c.l.b16 %v7118
    %v7137 = vunpack.c.l.b16 %v7119
    %v7138 = vunpack.c.l.b16 %v7120
    %v7139 = vunpack.c.l.b16 %v7121
    %v7140 = vunpack.c.l.b16 %v7122
    %v7141 = vpack.c.b16 %v7134, %v7133
    %v7142 = vpack.c.b16 %v7136, %v7135
    %v7143 = vpack.c.b16 %v7138, %v7137
    %v7144 = vpack.c.b16 %v7140, %v7139
    %v7150 = vsel %vm7004, %v7124, 0
    %7152 = vmatprep.subr.bf16.mxu0 0
    %7153 = vmatpush1.bf16.msra.mxu0 %v7141
    %7154 = vmatprep.subr.bf16.mxu0 0
    %7155 = vmatpush1.bf16.msra.mxu0 %v7142
    %7156 = vmatprep.subr.bf16.mxu0 0
    %7157 = vmatpush1.bf16.msra.mxu0 %v7143
    %7158 = vmatprep.subr.bf16.mxu0 0
    %7159 = vmatpush1.bf16.msra.mxu0 %v7144
    %7160 = vmatprep.subr.bf16.mxu0 0
    %7161 = vmatpush1.bf16.msra.mxu0 0
    %7162 = vmatprep.subr.bf16.mxu0 0
    %7163 = vmatpush1.bf16.msra.mxu0 0
    %7164 = vmatprep.subr.bf16.mxu0 0
    %7165 = vmatpush1.bf16.msra.mxu0 0
    %7166 = vmatprep.subr.bf16.mxu0 0
    %7167 = vmatpush1.bf16.msra.mxu0 0
    %7168 = vmatprep.subr.bf16.mxu0 0
    %7169 = vmatpush1.bf16.msra.mxu0 0
    %7170 = vmatprep.subr.bf16.mxu0 0
    %7171 = vmatpush1.bf16.msra.mxu0 0
    %7172 = vmatprep.subr.bf16.mxu0 0
    %7173 = vmatpush1.bf16.msra.mxu0 0
    %7174 = vmatprep.subr.bf16.mxu0 0
    %7175 = vmatpush1.bf16.msra.mxu0 0
    %7176 = vmatprep.subr.bf16.mxu0 0
    %7177 = vmatpush1.bf16.msra.mxu0 0
    %7178 = vmatprep.subr.bf16.mxu0 0
    %7179 = vmatpush1.bf16.msra.mxu0 0
    %7180 = vmatprep.subr.bf16.mxu0 0
    %7181 = vmatpush1.bf16.msra.mxu0 0
    %7182 = vmatprep.subr.bf16.mxu0 0
    %7183 = vmatpush1.bf16.msra.mxu0 0
    %7184 = vmatprep.mubr.bf16.mxu0 0
    %7185 = vmatmul.mubr.bf16.gmra.mrb[0].mxu0 %v7150
    %v7186 = vpop.f32.mrb[0].mxu0
    %v7187 = vadd.f32 0.0, %v7186
    %v7188 = vpop.f32.mrb[0].mxu0
    %v7189 = vpop.f32.mrb[0].mxu0
    %v7190 = vpop.f32.mrb[0].mxu0
    %7191 = vdwg.mxu0
    %v7192 = vadd.f32 %v7109, %v7187
    %v7193 = vpack.c.bf16 %v6952, %v6952
    %v7195 = vshrl.u32 %v7193, 16
    %v7197 = vshll.u32 %v7193, 16
    %v7199 = vrot.slane %v7197, 1
    %v7200 = vor.u32 %v7195, %v7199
    %v7202 = vsel %vm7004, %v7200, 0
    %7204 = vmatprep.subr.bf16.mxu0 0
    %7205 = vmatpush1.bf16.msra.mxu0 %v6996
    %7206 = vmatprep.subr.bf16.mxu0 0
    %7207 = vmatpush1.bf16.msra.mxu0 %v6997
    %7208 = vmatprep.subr.bf16.mxu0 0
    %7209 = vmatpush1.bf16.msra.mxu0 %v6998
    %7210 = vmatprep.subr.bf16.mxu0 0
    %7211 = vmatpush1.bf16.msra.mxu0 %v6999
    %7212 = vmatprep.subr.bf16.mxu0 0
    %7213 = vmatpush1.bf16.msra.mxu0 0
    %7214 = vmatprep.subr.bf16.mxu0 0
    %7215 = vmatpush1.bf16.msra.mxu0 0
    %7216 = vmatprep.subr.bf16.mxu0 0
    %7217 = vmatpush1.bf16.msra.mxu0 0
    %7218 = vmatprep.subr.bf16.mxu0 0
    %7219 = vmatpush1.bf16.msra.mxu0 0
    %7220 = vmatprep.subr.bf16.mxu0 0
    %7221 = vmatpush1.bf16.msra.mxu0 0
    %7222 = vmatprep.subr.bf16.mxu0 0
    %7223 = vmatpush1.bf16.msra.mxu0 0
    %7224 = vmatprep.subr.bf16.mxu0 0
    %7225 = vmatpush1.bf16.msra.mxu0 0
    %7226 = vmatprep.subr.bf16.mxu0 0
    %7227 = vmatpush1.bf16.msra.mxu0 0
    %7228 = vmatprep.subr.bf16.mxu0 0
    %7229 = vmatpush1.bf16.msra.mxu0 0
    %7230 = vmatprep.subr.bf16.mxu0 0
    %7231 = vmatpush1.bf16.msra.mxu0 0
    %7232 = vmatprep.subr.bf16.mxu0 0
    %7233 = vmatpush1.bf16.msra.mxu0 0
    %7234 = vmatprep.subr.bf16.mxu0 0
    %7235 = vmatpush1.bf16.msra.mxu0 0
    %7236 = vmatprep.mubr.bf16.mxu0 0
    %7237 = vmatmul.mubr.bf16.gmra.mrb[0].mxu0 %v7202
    %v7238 = vpop.f32.mrb[0].mxu0
    %v7239 = vadd.f32 0.0, %v7238
    %v7240 = vpop.f32.mrb[0].mxu0
    %v7241 = vpop.f32.mrb[0].mxu0
    %v7242 = vpop.f32.mrb[0].mxu0
    %7243 = vdwg.mxu0
    %v7244 = vsel %vm7004, %v7193, 0
    %7246 = vmatprep.subr.bf16.mxu0 0
    %7247 = vmatpush1.bf16.msra.mxu0 %v7064
    %7248 = vmatprep.subr.bf16.mxu0 0
    %7249 = vmatpush1.bf16.msra.mxu0 %v7065
    %7250 = vmatprep.subr.bf16.mxu0 0
    %7251 = vmatpush1.bf16.msra.mxu0 %v7066
    %7252 = vmatprep.subr.bf16.mxu0 0
    %7253 = vmatpush1.bf16.msra.mxu0 %v7067
    %7254 = vmatprep.subr.bf16.mxu0 0
    %7255 = vmatpush1.bf16.msra.mxu0 0
    %7256 = vmatprep.subr.bf16.mxu0 0
    %7257 = vmatpush1.bf16.msra.mxu0 0
    %7258 = vmatprep.subr.bf16.mxu0 0
    %7259 = vmatpush1.bf16.msra.mxu0 0
    %7260 = vmatprep.subr.bf16.mxu0 0
    %7261 = vmatpush1.bf16.msra.mxu0 0
    %7262 = vmatprep.subr.bf16.mxu0 0
    %7263 = vmatpush1.bf16.msra.mxu0 0
    %7264 = vmatprep.subr.bf16.mxu0 0
    %7265 = vmatpush1.bf16.msra.mxu0 0
    %7266 = vmatprep.subr.bf16.mxu0 0
    %7267 = vmatpush1.bf16.msra.mxu0 0
    %7268 = vmatprep.subr.bf16.mxu0 0
    %7269 = vmatpush1.bf16.msra.mxu0 0
    %7270 = vmatprep.subr.bf16.mxu0 0
    %7271 = vmatpush1.bf16.msra.mxu0 0
    %7272 = vmatprep.subr.bf16.mxu0 0
    %7273 = vmatpush1.bf16.msra.mxu0 0
    %7274 = vmatprep.subr.bf16.mxu0 0
    %7275 = vmatpush1.bf16.msra.mxu0 0
    %7276 = vmatprep.subr.bf16.mxu0 0
    %7277 = vmatpush1.bf16.msra.mxu0 0
    %7278 = vmatprep.mubr.bf16.mxu0 0
    %7279 = vmatmul.mubr.bf16.gmra.mrb[0].mxu0 %v7244
    %v7280 = vpop.f32.mrb[0].mxu0
    %v7281 = vadd.f32 %v7239, %v7280
    %v7282 = vpop.f32.mrb[0].mxu0
    %v7283 = vpop.f32.mrb[0].mxu0
    %v7284 = vpop.f32.mrb[0].mxu0
    %7285 = vdwg.mxu0
    %v7287 = vrot.slane %v7193, 1
    %v7289 = vsel %vm7004, %v7287, 0
    %7291 = vmatprep.subr.bf16.mxu0 0
    %7292 = vmatpush1.bf16.msra.mxu0 %v7141
    %7293 = vmatprep.subr.bf16.mxu0 0
    %7294 = vmatpush1.bf16.msra.mxu0 %v7142
    %7295 = vmatprep.subr.bf16.mxu0 0
    %7296 = vmatpush1.bf16.msra.mxu0 %v7143
    %7297 = vmatprep.subr.bf16.mxu0 0
    %7298 = vmatpush1.bf16.msra.mxu0 %v7144
    %7299 = vmatprep.subr.bf16.mxu0 0
    %7300 = vmatpush1.bf16.msra.mxu0 0
    %7301 = vmatprep.subr.bf16.mxu0 0
    %7302 = vmatpush1.bf16.msra.mxu0 0
    %7303 = vmatprep.subr.bf16.mxu0 0
    %7304 = vmatpush1.bf16.msra.mxu0 0
    %7305 = vmatprep.subr.bf16.mxu0 0
    %7306 = vmatpush1.bf16.msra.mxu0 0
    %7307 = vmatprep.subr.bf16.mxu0 0
    %7308 = vmatpush1.bf16.msra.mxu0 0
    %7309 = vmatprep.subr.bf16.mxu0 0
    %7310 = vmatpush1.bf16.msra.mxu0 0
    %7311 = vmatprep.subr.bf16.mxu0 0
    %7312 = vmatpush1.bf16.msra.mxu0 0
    %7313 = vmatprep.subr.bf16.mxu0 0
    %7314 = vmatpush1.bf16.msra.mxu0 0
    %7315 = vmatprep.subr.bf16.mxu0 0
    %7316 = vmatpush1.bf16.msra.mxu0 0
    %7317 = vmatprep.subr.bf16.mxu0 0
    %7318 = vmatpush1.bf16.msra.mxu0 0
    %7319 = vmatprep.subr.bf16.mxu0 0
    %7320 = vmatpush1.bf16.msra.mxu0 0
    %7321 = vmatprep.subr.bf16.mxu0 0
    %7322 = vmatpush1.bf16.msra.mxu0 0
    %7323 = vmatprep.mubr.bf16.mxu0 0
    %7324 = vmatmul.mubr.bf16.gmra.mrb[0].mxu0 %v7289
    %v7325 = vpop.f32.mrb[0].mxu0
    %v7326 = vadd.f32 0.0, %v7325
    %v7327 = vpop.f32.mrb[0].mxu0
    %v7328 = vpop.f32.mrb[0].mxu0
    %v7329 = vpop.f32.mrb[0].mxu0
    %7330 = vdwg.mxu0
    %v7331 = vadd.f32 %v7281, %v7326
    %vm7332 = vcmask 386048
    %v7333 = vsel %vm7332, %v7192, 0.0
    %v7334 = vrot.slane %v7333, 4
    %v7335 = vadd.f32 %v7333, %v7334
    %v7336 = vrot.slane %v7335, 2
    %v7337 = vadd.f32 %v7335, %v7336
    %v7338 = vrot.slane %v7337, 1
    %v7339 = vadd.f32 %v7337, %v7338
    %v7340 = vadd.f32 %v7339, 0.0
    %v7341 = vmul.f32 %v7192, %v7192
    %v7342 = vsel %vm7332, %v7341, 0.0
    %v7343 = vrot.slane %v7342, 4
    %v7344 = vadd.f32 %v7342, %v7343
    %v7345 = vrot.slane %v7344, 2
    %v7346 = vadd.f32 %v7344, %v7345
    %v7347 = vrot.slane %v7346, 1
    %v7348 = vadd.f32 %v7346, %v7347
    %v7349 = vadd.f32 %v7348, 0.0
    %v7350 = vsel %vm7332, %v7331, 0.0
    %v7351 = vrot.slane %v7350, 4
    %v7352 = vadd.f32 %v7350, %v7351
    %v7353 = vrot.slane %v7352, 2
    %v7354 = vadd.f32 %v7352, %v7353
    %v7355 = vrot.slane %v7354, 1
    %v7356 = vadd.f32 %v7354, %v7355
    %v7357 = vadd.f32 %v7340, %v7356
    %v7358 = vmul.f32 %v7331, %v7331
    %v7359 = vsel %vm7332, %v7358, 0.0
    %v7360 = vrot.slane %v7359, 4
    %v7361 = vadd.f32 %v7359, %v7360
    %v7362 = vrot.slane %v7361, 2
    %v7363 = vadd.f32 %v7361, %v7362
    %v7364 = vrot.slane %v7363, 1
    %v7365 = vadd.f32 %v7363, %v7364
    %v7366 = vadd.f32 %v7349, %v7365
    %v7367 = vld [vmem:[%s20] sm:$0xff]
    %v7368 = vld [vmem:[%s20 + $0x8] sm:$0xff]
    %v7369 = vld [vmem:[%s20 + $0x10] sm:$0xff]
    %v7370 = vld [vmem:[%s20 + $0x18] sm:$0xff]
    %v7371 = vld [vmem:[%s20 + $0x20] sm:$0xff]
    %v7372 = vld [vmem:[%s20 + $0x28] sm:$0xff]
    %v7373 = vld [vmem:[#allocation17] sm:$0xff]
    %v7374 = vld [vmem:[#allocation17 + $0x8] sm:$0xff]
    %v7375 = vld [vmem:[#allocation17 + $0x10] sm:$0xff]
    %vm7376 = vcmask 392192
    %v7378 = vsel %vm7376, %v7357, 0
    %7380 = vmatprep.subr.mxu0 0.0
    %7381 = vmatpush1.msra.mxu0 %v7367
    %7382 = vmatprep.subr.mxu0 0.0
    %7383 = vmatpush1.msra.mxu0 %v7368
    %7384 = vmatprep.subr.mxu0 0.0
    %7385 = vmatpush1.msra.mxu0 %v7369
    %7386 = vmatprep.subr.mxu0 0.0
    %7387 = vmatpush1.msra.mxu0 %v7370
    %7388 = vmatprep.subr.mxu0 0.0
    %7389 = vmatpush1.msra.mxu0 %v7371
    %7390 = vmatprep.subr.mxu0 0.0
    %7391 = vmatpush1.msra.mxu0 %v7372
    %7392 = vmatprep.subr.mxu0 0.0
    %7393 = vmatpush1.msra.mxu0 0.0
    %7394 = vmatprep.subr.mxu0 0.0
    %7395 = vmatpush1.msra.mxu0 0.0
    %7396 = vmatprep.subr.mxu0 0.0
    %7397 = vmatpush1.msra.mxu0 0.0
    %7398 = vmatprep.subr.mxu0 0.0
    %7399 = vmatpush1.msra.mxu0 0.0
    %7400 = vmatprep.subr.mxu0 0.0
    %7401 = vmatpush1.msra.mxu0 0.0
    %7402 = vmatprep.subr.mxu0 0.0
    %7403 = vmatpush1.msra.mxu0 0.0
    %7404 = vmatprep.subr.mxu0 0.0
    %7405 = vmatpush1.msra.mxu0 0.0
    %7406 = vmatprep.subr.mxu0 0.0
    %7407 = vmatpush1.msra.mxu0 0.0
    %7408 = vmatprep.subr.mxu0 0.0
    %7409 = vmatpush1.msra.mxu0 0.0
    %7410 = vmatprep.subr.mxu0 0.0
    %7411 = vmatpush1.msra.mxu0 0.0
    %7412 = vmatprep.subr.mxu0 0.0
    %7413 = vmatpush1.msra.mxu0 0.0
    %7414 = vmatprep.subr.mxu0 0.0
    %7415 = vmatpush1.msra.mxu0 0.0
    %7416 = vmatprep.subr.mxu0 0.0
    %7417 = vmatpush1.msra.mxu0 0.0
    %7418 = vmatprep.subr.mxu0 0.0
    %7419 = vmatpush1.msra.mxu0 0.0
    %7420 = vmatprep.subr.mxu0 0.0
    %7421 = vmatpush1.msra.mxu0 0.0
    %7422 = vmatprep.subr.mxu0 0.0
    %7423 = vmatpush1.msra.mxu0 0.0
    %7424 = vmatprep.subr.mxu0 0.0
    %7425 = vmatpush1.msra.mxu0 0.0
    %7426 = vmatprep.subr.mxu0 0.0
    %7427 = vmatpush1.msra.mxu0 0.0
    %7428 = vmatprep.subr.mxu0 0.0
    %7429 = vmatpush1.msra.mxu0 0.0
    %7430 = vmatprep.subr.mxu0 0.0
    %7431 = vmatpush1.msra.mxu0 0.0
    %7432 = vmatprep.subr.mxu0 0.0
    %7433 = vmatpush1.msra.mxu0 0.0
    %7434 = vmatprep.subr.mxu0 0.0
    %7435 = vmatpush1.msra.mxu0 0.0
    %7436 = vmatprep.subr.mxu0 0.0
    %7437 = vmatpush1.msra.mxu0 0.0
    %7438 = vmatprep.subr.mxu0 0.0
    %7439 = vmatpush1.msra.mxu0 0.0
    %7440 = vmatprep.subr.mxu0 0.0
    %7441 = vmatpush1.msra.mxu0 0.0
    %7442 = vmatprep.subr.mxu0 0.0
    %7443 = vmatpush1.msra.mxu0 0.0
    %7444 = vmatprep.mubr.f32.mxu0 0.0
    %7445 = vmatmul.mubr.f32.gmra.mrb[0].mxu0 %v7378
    %v7446 = vpop.f32.mrb[0].mxu0
    %v7447 = vadd.f32 0.0, %v7446
    %v7448 = vpop.f32.mrb[0].mxu0
    %7449 = vdwg.mxu0
    %v7450 = vmul.f32 %v7447, 0.125
    %v7452 = vsel %vm7376, %v7366, 0
    %7454 = vmatprep.subr.mxu0 0.0
    %7455 = vmatpush1.msra.mxu0 %v7367
    %7456 = vmatprep.subr.mxu0 0.0
    %7457 = vmatpush1.msra.mxu0 %v7368
    %7458 = vmatprep.subr.mxu0 0.0
    %7459 = vmatpush1.msra.mxu0 %v7369
    %7460 = vmatprep.subr.mxu0 0.0
    %7461 = vmatpush1.msra.mxu0 %v7370
    %7462 = vmatprep.subr.mxu0 0.0
    %7463 = vmatpush1.msra.mxu0 %v7371
    %7464 = vmatprep.subr.mxu0 0.0
    %7465 = vmatpush1.msra.mxu0 %v7372
    %7466 = vmatprep.subr.mxu0 0.0
    %7467 = vmatpush1.msra.mxu0 0.0
    %7468 = vmatprep.subr.mxu0 0.0
    %7469 = vmatpush1.msra.mxu0 0.0
    %7470 = vmatprep.subr.mxu0 0.0
    %7471 = vmatpush1.msra.mxu0 0.0
    %7472 = vmatprep.subr.mxu0 0.0
    %7473 = vmatpush1.msra.mxu0 0.0
    %7474 = vmatprep.subr.mxu0 0.0
    %7475 = vmatpush1.msra.mxu0 0.0
    %7476 = vmatprep.subr.mxu0 0.0
    %7477 = vmatpush1.msra.mxu0 0.0
    %7478 = vmatprep.subr.mxu0 0.0
    %7479 = vmatpush1.msra.mxu0 0.0
    %7480 = vmatprep.subr.mxu0 0.0
    %7481 = vmatpush1.msra.mxu0 0.0
    %7482 = vmatprep.subr.mxu0 0.0
    %7483 = vmatpush1.msra.mxu0 0.0
    %7484 = vmatprep.subr.mxu0 0.0
    %7485 = vmatpush1.msra.mxu0 0.0
    %7486 = vmatprep.subr.mxu0 0.0
    %7487 = vmatpush1.msra.mxu0 0.0
    %7488 = vmatprep.subr.mxu0 0.0
    %7489 = vmatpush1.msra.mxu0 0.0
    %7490 = vmatprep.subr.mxu0 0.0
    %7491 = vmatpush1.msra.mxu0 0.0
    %7492 = vmatprep.subr.mxu0 0.0
    %7493 = vmatpush1.msra.mxu0 0.0
    %7494 = vmatprep.subr.mxu0 0.0
    %7495 = vmatpush1.msra.mxu0 0.0
    %7496 = vmatprep.subr.mxu0 0.0
    %7497 = vmatpush1.msra.mxu0 0.0
    %7498 = vmatprep.subr.mxu0 0.0
    %7499 = vmatpush1.msra.mxu0 0.0
    %7500 = vmatprep.subr.mxu0 0.0
    %7501 = vmatpush1.msra.mxu0 0.0
    %7502 = vmatprep.subr.mxu0 0.0
    %7503 = vmatpush1.msra.mxu0 0.0
    %7504 = vmatprep.subr.mxu0 0.0
    %7505 = vmatpush1.msra.mxu0 0.0
    %7506 = vmatprep.subr.mxu0 0.0
    %7507 = vmatpush1.msra.mxu0 0.0
    %7508 = vmatprep.subr.mxu0 0.0
    %7509 = vmatpush1.msra.mxu0 0.0
    %7510 = vmatprep.subr.mxu0 0.0
    %7511 = vmatpush1.msra.mxu0 0.0
    %7512 = vmatprep.subr.mxu0 0.0
    %7513 = vmatpush1.msra.mxu0 0.0
    %7514 = vmatprep.subr.mxu0 0.0
    %7515 = vmatpush1.msra.mxu0 0.0
    %7516 = vmatprep.subr.mxu0 0.0
    %7517 = vmatpush1.msra.mxu0 0.0
    %7518 = vmatprep.mubr.f32.mxu0 0.0
    %7519 = vmatmul.mubr.f32.gmra.mrb[0].mxu0 %v7452
    %v7520 = vpop.f32.mrb[0].mxu0
    %v7521 = vadd.f32 0.0, %v7520
    %v7522 = vpop.f32.mrb[0].mxu0
    %7523 = vdwg.mxu0
    %v7524 = vmul.f32 %v7521, 0.125
    %v7525 = vmul.f32 %v7450, %v7450
    %v7526 = vsub.f32 %v7524, %v7525
    %vm7527 = vcmask 195584
    %v7529 = vsel %vm7527, %v7450, 0
    %7531 = vmatprep.subr.mxu0 0.0
    %7532 = vmatpush1.msra.mxu0 %v7373
    %7533 = vmatprep.subr.mxu0 0.0
    %7534 = vmatpush1.msra.mxu0 %v7374
    %7535 = vmatprep.subr.mxu0 0.0
    %7536 = vmatpush1.msra.mxu0 %v7375
    %7537 = vmatprep.subr.mxu0 0.0
    %7538 = vmatpush1.msra.mxu0 0.0
    %7539 = vmatprep.subr.mxu0 0.0
    %7540 = vmatpush1.msra.mxu0 0.0
    %7541 = vmatprep.subr.mxu0 0.0
    %7542 = vmatpush1.msra.mxu0 0.0
    %7543 = vmatprep.subr.mxu0 0.0
    %7544 = vmatpush1.msra.mxu0 0.0
    %7545 = vmatprep.subr.mxu0 0.0
    %7546 = vmatpush1.msra.mxu0 0.0
    %7547 = vmatprep.subr.mxu0 0.0
    %7548 = vmatpush1.msra.mxu0 0.0
    %7549 = vmatprep.subr.mxu0 0.0
    %7550 = vmatpush1.msra.mxu0 0.0
    %7551 = vmatprep.subr.mxu0 0.0
    %7552 = vmatpush1.msra.mxu0 0.0
    %7553 = vmatprep.subr.mxu0 0.0
    %7554 = vmatpush1.msra.mxu0 0.0
    %7555 = vmatprep.subr.mxu0 0.0
    %7556 = vmatpush1.msra.mxu0 0.0
    %7557 = vmatprep.subr.mxu0 0.0
    %7558 = vmatpush1.msra.mxu0 0.0
    %7559 = vmatprep.subr.mxu0 0.0
    %7560 = vmatpush1.msra.mxu0 0.0
    %7561 = vmatprep.subr.mxu0 0.0
    %7562 = vmatpush1.msra.mxu0 0.0
    %7563 = vmatprep.subr.mxu0 0.0
    %7564 = vmatpush1.msra.mxu0 0.0
    %7565 = vmatprep.subr.mxu0 0.0
    %7566 = vmatpush1.msra.mxu0 0.0
    %7567 = vmatprep.subr.mxu0 0.0
    %7568 = vmatpush1.msra.mxu0 0.0
    %7569 = vmatprep.subr.mxu0 0.0
    %7570 = vmatpush1.msra.mxu0 0.0
    %7571 = vmatprep.subr.mxu0 0.0
    %7572 = vmatpush1.msra.mxu0 0.0
    %7573 = vmatprep.subr.mxu0 0.0
    %7574 = vmatpush1.msra.mxu0 0.0
    %7575 = vmatprep.subr.mxu0 0.0
    %7576 = vmatpush1.msra.mxu0 0.0
    %7577 = vmatprep.subr.mxu0 0.0
    %7578 = vmatpush1.msra.mxu0 0.0
    %7579 = vmatprep.subr.mxu0 0.0
    %7580 = vmatpush1.msra.mxu0 0.0
    %7581 = vmatprep.subr.mxu0 0.0
    %7582 = vmatpush1.msra.mxu0 0.0
    %7583 = vmatprep.subr.mxu0 0.0
    %7584 = vmatpush1.msra.mxu0 0.0
    %7585 = vmatprep.subr.mxu0 0.0
    %7586 = vmatpush1.msra.mxu0 0.0
    %7587 = vmatprep.subr.mxu0 0.0
    %7588 = vmatpush1.msra.mxu0 0.0
    %7589 = vmatprep.subr.mxu0 0.0
    %7590 = vmatpush1.msra.mxu0 0.0
    %7591 = vmatprep.subr.mxu0 0.0
    %7592 = vmatpush1.msra.mxu0 0.0
    %7593 = vmatprep.subr.mxu0 0.0
    %7594 = vmatpush1.msra.mxu0 0.0
    %7595 = vmatprep.mubr.f32.mxu0 0.0
    %7596 = vmatmul.mubr.f32.gmra.mrb[0].mxu0 %v7529
    %v7597 = vpop.f32.mrb[0].mxu0
    %v7598 = vadd.f32 0.0, %v7597
    %v7599 = vpop.f32.mrb[0].mxu0
    %7600 = vdwg.mxu0
    %v7601 = vld [vmem:[#allocation18] sm:$0x3]
    %v7603 = vsel %vm7527, %v7526, 0
    %7605 = vmatprep.subr.mxu0 0.0
    %7606 = vmatpush1.msra.mxu0 %v7373
    %7607 = vmatprep.subr.mxu0 0.0
    %7608 = vmatpush1.msra.mxu0 %v7374
    %7609 = vmatprep.subr.mxu0 0.0
    %7610 = vmatpush1.msra.mxu0 %v7375
    %7611 = vmatprep.subr.mxu0 0.0
    %7612 = vmatpush1.msra.mxu0 0.0
    %7613 = vmatprep.subr.mxu0 0.0
    %7614 = vmatpush1.msra.mxu0 0.0
    %7615 = vmatprep.subr.mxu0 0.0
    %7616 = vmatpush1.msra.mxu0 0.0
    %7617 = vmatprep.subr.mxu0 0.0
    %7618 = vmatpush1.msra.mxu0 0.0
    %7619 = vmatprep.subr.mxu0 0.0
    %7620 = vmatpush1.msra.mxu0 0.0
    %7621 = vmatprep.subr.mxu0 0.0
    %7622 = vmatpush1.msra.mxu0 0.0
    %7623 = vmatprep.subr.mxu0 0.0
    %7624 = vmatpush1.msra.mxu0 0.0
    %7625 = vmatprep.subr.mxu0 0.0
    %7626 = vmatpush1.msra.mxu0 0.0
    %7627 = vmatprep.subr.mxu0 0.0
    %7628 = vmatpush1.msra.mxu0 0.0
    %7629 = vmatprep.subr.mxu0 0.0
    %7630 = vmatpush1.msra.mxu0 0.0
    %7631 = vmatprep.subr.mxu0 0.0
    %7632 = vmatpush1.msra.mxu0 0.0
    %7633 = vmatprep.subr.mxu0 0.0
    %7634 = vmatpush1.msra.mxu0 0.0
    %7635 = vmatprep.subr.mxu0 0.0
    %7636 = vmatpush1.msra.mxu0 0.0
    %7637 = vmatprep.subr.mxu0 0.0
    %7638 = vmatpush1.msra.mxu0 0.0
    %7639 = vmatprep.subr.mxu0 0.0
    %7640 = vmatpush1.msra.mxu0 0.0
    %7641 = vmatprep.subr.mxu0 0.0
    %7642 = vmatpush1.msra.mxu0 0.0
    %7643 = vmatprep.subr.mxu0 0.0
    %7644 = vmatpush1.msra.mxu0 0.0
    %7645 = vmatprep.subr.mxu0 0.0
    %7646 = vmatpush1.msra.mxu0 0.0
    %7647 = vmatprep.subr.mxu0 0.0
    %7648 = vmatpush1.msra.mxu0 0.0
    %7649 = vmatprep.subr.mxu0 0.0
    %7650 = vmatpush1.msra.mxu0 0.0
    %7651 = vmatprep.subr.mxu0 0.0
    %7652 = vmatpush1.msra.mxu0 0.0
    %7653 = vmatprep.subr.mxu0 0.0
    %7654 = vmatpush1.msra.mxu0 0.0
    %7655 = vmatprep.subr.mxu0 0.0
    %7656 = vmatpush1.msra.mxu0 0.0
    %7657 = vmatprep.subr.mxu0 0.0
    %7658 = vmatpush1.msra.mxu0 0.0
    %7659 = vmatprep.subr.mxu0 0.0
    %7660 = vmatpush1.msra.mxu0 0.0
    %7661 = vmatprep.subr.mxu0 0.0
    %7662 = vmatpush1.msra.mxu0 0.0
    %7663 = vmatprep.subr.mxu0 0.0
    %7664 = vmatpush1.msra.mxu0 0.0
    %7665 = vmatprep.subr.mxu0 0.0
    %7666 = vmatpush1.msra.mxu0 0.0
    %7667 = vmatprep.subr.mxu0 0.0
    %7668 = vmatpush1.msra.mxu0 0.0
    %7669 = vmatprep.mubr.f32.mxu0 0.0
    %7670 = vmatmul.mubr.f32.gmra.mrb[0].mxu0 %v7603
    %v7671 = vpop.f32.mrb[0].mxu0
    %v7672 = vadd.f32 1e-05, %v7671
    %v7673 = vpop.f32.mrb[0].mxu0
    %7674 = vdwg.mxu0
    %v7675 = vrsqrt.pop %v7672
    %v7676 = vmul.f32 %v7601, %v7675
    %v7677 = vmul.f32 %v7598, %v7676
    %v7679 = vrot.slane %v7677, 7
    %v7681 = vsub.f32 %v7601, %v7679
    %v7682 = vlaneseq
    %v7683 = vshrl.u32 %v7682, 7
    %v7684 = vsub.s32 0, %v7683
    %v7685 = vrot.slane %v7676, %v7684
    %v7686 = vmul.f32 %v7192, %v7685
    %v7687 = vlaneseq
    %v7688 = vshrl.u32 %v7687, 7
    %v7689 = vsub.s32 1, %v7688
    %v7690 = vrot.slane %v7681, %v7689
    %v7691 = vadd.f32 %v7686, %v7690
    %v7693 = vrot.slane %v7691, 1
    %v7695 = vmax.f32 %v7691, %v7693
    %7697 = vrot.lane.b32.xlu0 %v7695, 104
    %v7698 = vpop.permute.xlu0 %7697
    %v7700 = vmax.f32 %v7695, %v7698
    %v7701 = vmax.f32 %v7700, 0.0
    %v7702 = vmul.f32 %v7331, %v7685
    %v7703 = vadd.f32 %v7702, %v7690
    %v7705 = vrot.slane %v7703, 1
    %v7707 = vmax.f32 %v7703, %v7705
    %7709 = vrot.lane.b32.xlu0 %v7707, 104
    %v7710 = vpop.permute.xlu0 %7709
    %v7712 = vmax.f32 %v7707, %v7710
    %v7713 = vmax.f32 %v7712, 0.0
    %vm7714 = vcmask 188416
    %7715 = vst.msk [vmem:[#allocation21] sm:$0x1] %vm7714, %v7701
    %s7716 = scalar_lea.vmem [#allocation21], 1
    %7717 = vst.msk [vmem:[%s7716] sm:$0x1] %vm7714, %v7713
    // Predicated region
    $region146: #{tpu_custom_call.1} parent=1 // pred_check
      _
    $region147: #{tpu_custom_call.1} parent=1 // pred_check_branch
      %7719 = sbr.rel (0) target = $region149
    $region148: #{tpu_custom_call.1} parent=1 // pred_region
      %s7721 = ssub.s32 32, 32
      %7722 = vsyncadd [#allocation5], %s7721
      %s7723 = sshll.u32 [#allocation21], 4
      %s7724 = int_to_ptr.vmem [resolvable:$true] %s7723
      %7729 = dma.vmem_to_hbm [thread:$0]  %s7724, 32, %s25, [#allocation5], 16, 16, 1
    $region149: #{tpu_custom_call.1} parent=1 // pred_fallthru
      _
    // Predicated region
    $region150: #{tpu_custom_call.1} parent=1 // pred_check
      _
    $region151: #{tpu_custom_call.1} parent=1 // pred_check_branch
      %7731 = sbr.rel (0) target = $region153
    $region152: #{tpu_custom_call.1} parent=1 // pred_region
      %7732 = dma.done [#allocation5], 32
    $region153: #{tpu_custom_call.1} parent=1 // pred_fallthru
      _
    %7733 = vsyncpa [#allocation4], 1
    %7734 = vsyncpa [#allocation7], 1
    %7735 = vsyncpa [#allocation10], 1
    %7736 = vsyncpa [#allocation13], 1
    %7737 = vsyncpa [#allocation16], 1
    %7738 = vsyncpa [#allocation19], 1
    %7739 = vsyncpa [#allocation5], 1

</llo_original>
